<compile_context>
chip_gen: v7x
topology: tpu7x:2x2x1
jax: 0.10.0
libtpu: 0.0.40
codegen_flags: <defaults>
</compile_context>

<pallas_src>
import functools
import math

import jax
import jax.numpy as jnp
from jax import lax
from jax.experimental import pallas as pl
from jax.experimental.pallas import tpu as pltpu


# ----------------------------- fused whole-model kernel -----------------------------

def _funnel_model_kernel(emb_ref, mask_ref, eg_ref, eb_ref,
                         qkvw_ref, qkvb_ref, ow_ref, ob_ref, ag_ref, ab_ref,
                         w1_ref, b1_ref, w2_ref, b2_ref, fg_ref, fb_ref,
                         cw_ref, cb_ref, out_ref,
                         *, heads, block_sizes, num_decoder_layers, eps):
    f32 = jnp.float32
    S0, D = emb_ref.shape[1], emb_ref.shape[2]
    dh = D // heads
    scale = 1.0 / math.sqrt(dh)

    def ln(x, g, b):
        mu = jnp.mean(x, axis=-1, keepdims=True)
        var = jnp.mean(jnp.square(x - mu), axis=-1, keepdims=True)
        return (x - mu) * lax.rsqrt(var + eps) * g.astype(f32) + b.astype(f32)

    def gelu_new(x):  # tanh-approx GELU == HF "gelu_new"
        c = math.sqrt(2.0 / math.pi)
        return 0.5 * x * (1.0 + jnp.tanh(c * (x + 0.044715 * x * x * x)))

    def mm(a, w):  # bf16 operands into the MXU, f32 accumulation
        return lax.dot_general(a.astype(w.dtype), w, (((1,), (0,)), ((), ())),
                               preferred_element_type=f32)

    def mm_f32(a, b):  # small f32 matmul (pooling / upsampling)
        return lax.dot_general(a, b, (((1,), (0,)), ((), ())),
                               preferred_element_type=f32)

    def pool_matrix(s):  # (s//2, s) stride-2 mean pooling
        r = lax.broadcasted_iota(jnp.int32, (s // 2, s), 0)
        c = lax.broadcasted_iota(jnp.int32, (s // 2, s), 1)
        sel = jnp.logical_or(c == 2 * r, c == 2 * r + 1)
        return jnp.where(sel, 0.5, 0.0).astype(f32)

    def upsample_matrix(s_small, s_big):  # (s_big, s_small) repeat upsampling
        stride = s_big // s_small
        r = lax.broadcasted_iota(jnp.int32, (s_big, s_small), 0)
        c = lax.broadcasted_iota(jnp.int32, (s_big, s_small), 1)
        sel = jnp.logical_and(r >= stride * c, r < stride * (c + 1))
        return jnp.where(sel, 1.0, 0.0).astype(f32)

    def transformer_layer(l, kv_x, res_x, add_mask_kv, pool_mat):
        # fused QKV projection on the (unpooled) hidden: one MXU push, N=3D
        qkv = mm(kv_x, qkvw_ref[l]) + qkvb_ref[l].astype(f32)          # (Sk, 3D) f32
        q, k, v = qkv[:, :D], qkv[:, D:2 * D], qkv[:, 2 * D:]
        if pool_mat is not None:
            # pool_q_only: stride-2 mean pooling commutes with the affine Q projection
            q = mm_f32(pool_mat, q)
        q = q * scale                                                  # scale folded once
        Sq, Sk = q.shape[0], k.shape[0]
        mask_b = jnp.broadcast_to(add_mask_kv, (Sq, Sk))               # hoisted out of head loop
        qb = q.astype(jnp.bfloat16)
        kb = k.astype(jnp.bfloat16)
        vb = v.astype(jnp.bfloat16)

        ctx = []
        for h in range(heads):                                         # heads = lane slices of D
            sl = slice(h * dh, (h + 1) * dh)
            s = lax.dot_general(qb[:, sl], kb[:, sl], (((1,), (1,)), ((), ())),
                                preferred_element_type=f32)            # (Sq, Sk), no K transpose
            s = s + mask_b
            s = s - jnp.max(s, axis=-1, keepdims=True)
            p = jnp.exp(s)
            p = p * pl.reciprocal(jnp.sum(p, axis=-1, keepdims=True), approx=True)
            ctx.append(lax.dot_general(p.astype(jnp.bfloat16), vb[:, sl],
                                       (((1,), (0,)), ((), ())),
                                       preferred_element_type=f32))    # (Sq, dh)
        ctx = jnp.concatenate(ctx, axis=-1)                            # (Sq, D)
        attn = mm(ctx, ow_ref[l]) + ob_ref[l].astype(f32)              # single full-D Wo matmul
        h1 = ln(res_x + attn, ag_ref[l], ab_ref[l])
        t = gelu_new(mm(h1, w1_ref[l]) + b1_ref[l].astype(f32))
        t = mm(t, w2_ref[l]) + b2_ref[l].astype(f32)
        return ln(h1 + t, fg_ref[l], fb_ref[l])

    # --- embeddings: LayerNorm of the gathered word embeddings ---
    hidden = ln(emb_ref[0].astype(f32), eg_ref[...], eb_ref[...])      # (S0, D) f32
    full_mask = mask_ref[0].astype(f32)                                # (1, S0) additive
    cur_mask = full_mask

    # --- funnel encoder: blocks with stride-2 query pooling (pool_q_only) ---
    layer_idx = 0
    first_block_hidden = None
    for bi, bsize in enumerate(block_sizes):
        pooling = bi > 0 and hidden.shape[0] > 1
        if pooling:
            pmat = pool_matrix(hidden.shape[0])
            pooled_hidden = mm_f32(pmat, hidden)
            # mean-pooling the additive mask keeps masked positions at ~-5e8 (still -inf-like)
            pooled_mask = lax.dot_general(cur_mask, pmat, (((1,), (1,)), ((), ())),
                                          preferred_element_type=f32)
        for li in range(bsize):
            if pooling and li == 0:
                # pooled query + pooled residual, full-length keys/values
                hidden = transformer_layer(layer_idx, hidden, pooled_hidden, cur_mask, pmat)
                cur_mask = pooled_mask
            else:
                hidden = transformer_layer(layer_idx, hidden, hidden, cur_mask, None)
            layer_idx += 1
        if bi == 0:
            first_block_hidden = hidden                                # (S0, D)

    # --- funnel decoder: upsample + first-block residual + full-length layers ---
    # TODO(synk): separate-CLS upsampling of HF Funnel replaced by plain repeat.
    if hidden.shape[0] != S0:
        umat = upsample_matrix(hidden.shape[0], S0)
        hidden = mm_f32(umat, hidden)
    hidden = hidden + first_block_hidden
    for _ in range(num_decoder_layers):
        hidden = transformer_layer(layer_idx, hidden, hidden, full_mask, None)
        layer_idx += 1

    # --- classifier head: last_hidden_state[:, -1] -> Linear(D, num_classes) ---
    # TODO(synk): nn.Dropout (dr_rate) branch omitted — inactive for dr_rate=None / eval.
    last = hidden[S0 - 1:S0, :]                                        # (1, D)
    logits = mm(last, cw_ref[...]) + cb_ref[...].astype(f32)           # (1, C)
    out_ref[0] = logits.astype(out_ref.dtype)


# ----------------------------- model definition -----------------------------

class Config:
    vocab_size = 100
    hidden = 32                # d_model
    heads = 2                  # d_head = 16
    block_sizes = (2, 2)       # encoder: 2 blocks x 2 layers, pooling between blocks
    num_decoder_layers = 2
    intermediate = 64
    num_classes = 3
    layer_norm_eps = 1e-9      # HF Funnel default
    dtype = jnp.bfloat16       # weight / HBM activation storage dtype


def init_params(cfg, key):
    dt = cfg.dtype
    D, inter, C = cfg.hidden, cfg.intermediate, cfg.num_classes
    L = sum(cfg.block_sizes) + cfg.num_decoder_layers   # encoder layers then decoder layers

    def w(kk, shape):
        return (0.02 * jax.random.normal(kk, shape, jnp.float32)).astype(dt)

    keys = jax.random.split(key, 6)
    return {
        "word_emb": w(keys[0], (cfg.vocab_size, D)),
        "emb_ln_g": jnp.ones((1, D), dt), "emb_ln_b": jnp.zeros((1, D), dt),
        # stacked per-layer weights (layer axis first) — VMEM-resident in the fused kernel
        "qkv_w": w(keys[1], (L, D, 3 * D)), "qkv_b": jnp.zeros((L, 1, 3 * D), dt),
        "o_w": w(keys[2], (L, D, D)),       "o_b": jnp.zeros((L, 1, D), dt),
        "attn_ln_g": jnp.ones((L, 1, D), dt), "attn_ln_b": jnp.zeros((L, 1, D), dt),
        "ffn_w1": w(keys[3], (L, D, inter)), "ffn_b1": jnp.zeros((L, 1, inter), dt),
        "ffn_w2": w(keys[4], (L, inter, D)), "ffn_b2": jnp.zeros((L, 1, D), dt),
        "ffn_ln_g": jnp.ones((L, 1, D), dt), "ffn_ln_b": jnp.zeros((L, 1, D), dt),
        # classifier: num_layers=1, dr_rate=None, bias=True -> single Linear(D, C)
        "cls_w": w(keys[5], (D, C)), "cls_b": jnp.zeros((1, C), dt),
    }


def funnel_classifier_forward(params, cfg, input_ids, attention_mask, token_type_ids):
    B, S = input_ids.shape
    D, inter, C = cfg.hidden, cfg.intermediate, cfg.num_classes
    L = sum(cfg.block_sizes) + cfg.num_decoder_layers

    # TODO(synk): HF Funnel consumes token_type_ids as a token-type attention bias
    # inside its relative attention (omitted in this simplified attention).
    del token_type_ids

    # embedding gather is glue (data-dependent gather); everything else is one kernel
    emb = jnp.take(params["word_emb"], input_ids.astype(jnp.int32), axis=0)      # (B, S, D) bf16
    add_mask = ((1.0 - attention_mask.astype(jnp.float32)) * -1e9)[:, None, :]   # (B, 1, S) f32

    kernel = functools.partial(
        _funnel_model_kernel,
        heads=cfg.heads, block_sizes=cfg.block_sizes,
        num_decoder_layers=cfg.num_decoder_layers, eps=cfg.layer_norm_eps)

    const3 = lambda b: (0, 0, 0)
    const2 = lambda b: (0, 0)

    out = pl.pallas_call(
        kernel,
        out_shape=jax.ShapeDtypeStruct((B, 1, C), jnp.float32),
        grid=(B,),
        in_specs=[
            pl.BlockSpec((1, S, D), lambda b: (b, 0, 0)),      # embedded tokens
            pl.BlockSpec((1, 1, S), lambda b: (b, 0, 0)),      # additive key mask
            pl.BlockSpec((1, D), const2),                      # emb LN gamma
            pl.BlockSpec((1, D), const2),                      # emb LN beta
            pl.BlockSpec((L, D, 3 * D), const3),               # qkv_w (stacked)
            pl.BlockSpec((L, 1, 3 * D), const3),               # qkv_b
            pl.BlockSpec((L, D, D), const3),                   # o_w
            pl.BlockSpec((L, 1, D), const3),                   # o_b
            pl.BlockSpec((L, 1, D), const3),                   # attn LN gamma
            pl.BlockSpec((L, 1, D), const3),                   # attn LN beta
            pl.BlockSpec((L, D, inter), const3),               # ffn_w1
            pl.BlockSpec((L, 1, inter), const3),               # ffn_b1
            pl.BlockSpec((L, inter, D), const3),               # ffn_w2
            pl.BlockSpec((L, 1, D), const3),                   # ffn_b2
            pl.BlockSpec((L, 1, D), const3),                   # ffn LN gamma
            pl.BlockSpec((L, 1, D), const3),                   # ffn LN beta
            pl.BlockSpec((D, C), const2),                      # classifier W
            pl.BlockSpec((1, C), const2),                      # classifier b
        ],
        out_specs=pl.BlockSpec((1, 1, C), lambda b: (b, 0, 0)),
        compiler_params=pltpu.CompilerParams(dimension_semantics=("parallel",)),
    )(emb, add_mask, params["emb_ln_g"], params["emb_ln_b"],
      params["qkv_w"], params["qkv_b"], params["o_w"], params["o_b"],
      params["attn_ln_g"], params["attn_ln_b"],
      params["ffn_w1"], params["ffn_b1"], params["ffn_w2"], params["ffn_b2"],
      params["ffn_ln_g"], params["ffn_ln_b"],
      params["cls_w"], params["cls_b"])

    return out[:, 0, :]                                        # (B, num_classes) f32


# ----------------------------- main -----------------------------

if __name__ == "__main__":
    cfg = Config()
    key = jax.random.PRNGKey(0)
    pkey, ikey = jax.random.split(key)

    params = init_params(cfg, pkey)

    B, S = 2, 8
    input_ids = jax.random.randint(ikey, (B, S), 0, cfg.vocab_size, dtype=jnp.int32)
    token_type_ids = jnp.zeros((B, S), dtype=jnp.int32)
    attention_mask = jnp.ones((B, S), dtype=jnp.int32).at[1, 6:].set(0)

    fwd = jax.jit(functools.partial(funnel_classifier_forward, params, cfg))
    logits = fwd(input_ids, attention_mask, token_type_ids)
    jax.block_until_ready(logits)

    assert logits.shape == (B, cfg.num_classes)
    assert jnp.all(jnp.isfinite(logits))
    print("KERNEL_OK")
</pallas_src>

<mosaic_0001>
module attributes {stable_mosaic.version = 11 : i64} {
  func.func @_funnel_model_kernel(%arg0: i32, %arg1: memref<1x8x32xbf16, #tpu.memory_space<vmem>>, %arg2: memref<1x1x8xf32, #tpu.memory_space<vmem>>, %arg3: memref<1x32xbf16, #tpu.memory_space<vmem>>, %arg4: memref<1x32xbf16, #tpu.memory_space<vmem>>, %arg5: memref<6x32x96xbf16, #tpu.memory_space<vmem>>, %arg6: memref<6x1x96xbf16, #tpu.memory_space<vmem>>, %arg7: memref<6x32x32xbf16, #tpu.memory_space<vmem>>, %arg8: memref<6x1x32xbf16, #tpu.memory_space<vmem>>, %arg9: memref<6x1x32xbf16, #tpu.memory_space<vmem>>, %arg10: memref<6x1x32xbf16, #tpu.memory_space<vmem>>, %arg11: memref<6x32x64xbf16, #tpu.memory_space<vmem>>, %arg12: memref<6x1x64xbf16, #tpu.memory_space<vmem>>, %arg13: memref<6x64x32xbf16, #tpu.memory_space<vmem>>, %arg14: memref<6x1x32xbf16, #tpu.memory_space<vmem>>, %arg15: memref<6x1x32xbf16, #tpu.memory_space<vmem>>, %arg16: memref<6x1x32xbf16, #tpu.memory_space<vmem>>, %arg17: memref<32x3xbf16, #tpu.memory_space<vmem>>, %arg18: memref<1x3xbf16, #tpu.memory_space<vmem>>, %arg19: memref<1x1x3xf32, #tpu.memory_space<vmem>>) attributes {dimension_semantics = [#tpu.dimension_semantics<parallel>], iteration_bounds = array<i64: 2>, scalar_prefetch = 0 : i64, scratch_operands = 0 : i64, tpu.core_type = #tpu.core_type<tc>, window_params = [{transform_indices = @transform_0, window_bounds = array<i64: 1, 8, 32>}, {transform_indices = @transform_1, window_bounds = array<i64: 1, 1, 8>}, {pipeline_mode = #tpu.pipeline_mode<synchronous>, transform_indices = @transform_2, window_bounds = array<i64: 1, 32>}, {pipeline_mode = #tpu.pipeline_mode<synchronous>, transform_indices = @transform_3, window_bounds = array<i64: 1, 32>}, {pipeline_mode = #tpu.pipeline_mode<synchronous>, transform_indices = @transform_4, window_bounds = array<i64: 6, 32, 96>}, {pipeline_mode = #tpu.pipeline_mode<synchronous>, transform_indices = @transform_5, window_bounds = array<i64: 6, 1, 96>}, {pipeline_mode = #tpu.pipeline_mode<synchronous>, transform_indices = @transform_6, window_bounds = array<i64: 6, 32, 32>}, {pipeline_mode = #tpu.pipeline_mode<synchronous>, transform_indices = @transform_7, window_bounds = array<i64: 6, 1, 32>}, {pipeline_mode = #tpu.pipeline_mode<synchronous>, transform_indices = @transform_8, window_bounds = array<i64: 6, 1, 32>}, {pipeline_mode = #tpu.pipeline_mode<synchronous>, transform_indices = @transform_9, window_bounds = array<i64: 6, 1, 32>}, {pipeline_mode = #tpu.pipeline_mode<synchronous>, transform_indices = @transform_10, window_bounds = array<i64: 6, 32, 64>}, {pipeline_mode = #tpu.pipeline_mode<synchronous>, transform_indices = @transform_11, window_bounds = array<i64: 6, 1, 64>}, {pipeline_mode = #tpu.pipeline_mode<synchronous>, transform_indices = @transform_12, window_bounds = array<i64: 6, 64, 32>}, {pipeline_mode = #tpu.pipeline_mode<synchronous>, transform_indices = @transform_13, window_bounds = array<i64: 6, 1, 32>}, {pipeline_mode = #tpu.pipeline_mode<synchronous>, transform_indices = @transform_14, window_bounds = array<i64: 6, 1, 32>}, {pipeline_mode = #tpu.pipeline_mode<synchronous>, transform_indices = @transform_15, window_bounds = array<i64: 6, 1, 32>}, {pipeline_mode = #tpu.pipeline_mode<synchronous>, transform_indices = @transform_16, window_bounds = array<i64: 32, 3>}, {pipeline_mode = #tpu.pipeline_mode<synchronous>, transform_indices = @transform_17, window_bounds = array<i64: 1, 3>}, {transform_indices = @transform_18, window_bounds = array<i64: 1, 1, 3>}]} {
    %c0 = arith.constant 0 : index
    %c0_0 = arith.constant 0 : index
    %c0_1 = arith.constant 0 : index
    %0 = vector.load %arg1[%c0, %c0_0, %c0_1] : memref<1x8x32xbf16, #tpu.memory_space<vmem>>, vector<1x8x32xbf16>
    %1 = vector.shape_cast %0 : vector<1x8x32xbf16> to vector<8x32xbf16>
    %2 = arith.extf %1 : vector<8x32xbf16> to vector<8x32xf32>
    %c0_2 = arith.constant 0 : index
    %c0_3 = arith.constant 0 : index
    %3 = vector.load %arg3[%c0_2, %c0_3] : memref<1x32xbf16, #tpu.memory_space<vmem>>, vector<1x32xbf16>
    %c0_4 = arith.constant 0 : index
    %c0_5 = arith.constant 0 : index
    %4 = vector.load %arg4[%c0_4, %c0_5] : memref<1x32xbf16, #tpu.memory_space<vmem>>, vector<1x32xbf16>
    %cst = arith.constant dense<0.000000e+00> : vector<8xf32>
    %5 = vector.multi_reduction <add>, %2, %cst [1] : vector<8x32xf32> to vector<8xf32>
    %6 = vector.shape_cast %5 : vector<8xf32> to vector<8x1xf32>
    %cst_6 = arith.constant 3.200000e+01 : f32
    %7 = vector.broadcast %cst_6 : f32 to vector<8x1xf32>
    %8 = arith.divf %6, %7 : vector<8x1xf32>
    %9 = vector.broadcast %8 : vector<8x1xf32> to vector<8x32xf32>
    %10 = arith.subf %2, %9 : vector<8x32xf32>
    %11 = arith.mulf %10, %10 : vector<8x32xf32>
    %cst_7 = arith.constant dense<0.000000e+00> : vector<8xf32>
    %12 = vector.multi_reduction <add>, %11, %cst_7 [1] : vector<8x32xf32> to vector<8xf32>
    %13 = vector.shape_cast %12 : vector<8xf32> to vector<8x1xf32>
    %cst_8 = arith.constant 3.200000e+01 : f32
    %14 = vector.broadcast %cst_8 : f32 to vector<8x1xf32>
    %15 = arith.divf %13, %14 : vector<8x1xf32>
    %16 = vector.broadcast %8 : vector<8x1xf32> to vector<8x32xf32>
    %17 = arith.subf %2, %16 : vector<8x32xf32>
    %cst_9 = arith.constant 9.99999971E-10 : f32
    %18 = vector.broadcast %cst_9 : f32 to vector<8x1xf32>
    %19 = arith.addf %15, %18 : vector<8x1xf32>
    %20 = math.rsqrt %19 : vector<8x1xf32>
    %21 = vector.broadcast %20 : vector<8x1xf32> to vector<8x32xf32>
    %22 = arith.mulf %17, %21 : vector<8x32xf32>
    %23 = arith.extf %3 : vector<1x32xbf16> to vector<1x32xf32>
    %24 = vector.broadcast %23 : vector<1x32xf32> to vector<8x32xf32>
    %25 = arith.mulf %22, %24 : vector<8x32xf32>
    %26 = arith.extf %4 : vector<1x32xbf16> to vector<1x32xf32>
    %27 = vector.broadcast %26 : vector<1x32xf32> to vector<8x32xf32>
    %28 = arith.addf %25, %27 : vector<8x32xf32>
    %c0_10 = arith.constant 0 : index
    %c0_11 = arith.constant 0 : index
    %c0_12 = arith.constant 0 : index
    %29 = vector.load %arg2[%c0_10, %c0_11, %c0_12] : memref<1x1x8xf32, #tpu.memory_space<vmem>>, vector<1x1x8xf32>
    %30 = vector.shape_cast %29 : vector<1x1x8xf32> to vector<1x8xf32>
    %c0_13 = arith.constant 0 : index
    %c0_14 = arith.constant 0 : index
    %c0_15 = arith.constant 0 : index
    %31 = vector.load %arg5[%c0_13, %c0_14, %c0_15] : memref<6x32x96xbf16, #tpu.memory_space<vmem>>, vector<1x32x96xbf16>
    %32 = vector.shape_cast %31 : vector<1x32x96xbf16> to vector<32x96xbf16>
    %33 = arith.truncf %28 : vector<8x32xf32> to vector<8x32xbf16>
    %cst_16 = arith.constant dense<0.000000e+00> : vector<8x96xf32>
    %34 = tpu.matmul %33, %32, %cst_16 {dimension_numbers = #tpu.dot_dimension_numbers<[1], [0], [0], [1], [0, 0, 1, 1], [], []>} : vector<8x32xbf16>, vector<32x96xbf16>, vector<8x96xf32> -> vector<8x96xf32>
    %c0_17 = arith.constant 0 : index
    %c0_18 = arith.constant 0 : index
    %c0_19 = arith.constant 0 : index
    %35 = vector.load %arg6[%c0_17, %c0_18, %c0_19] : memref<6x1x96xbf16, #tpu.memory_space<vmem>>, vector<1x1x96xbf16>
    %36 = vector.shape_cast %35 : vector<1x1x96xbf16> to vector<1x96xbf16>
    %37 = arith.extf %36 : vector<1x96xbf16> to vector<1x96xf32>
    %38 = vector.broadcast %37 : vector<1x96xf32> to vector<8x96xf32>
    %39 = arith.addf %34, %38 : vector<8x96xf32>
    %40 = vector.extract_strided_slice %39 {offsets = [0, 0], sizes = [8, 32], strides = [1, 1]} : vector<8x96xf32> to vector<8x32xf32>
    %41 = vector.extract_strided_slice %39 {offsets = [0, 32], sizes = [8, 32], strides = [1, 1]} : vector<8x96xf32> to vector<8x32xf32>
    %42 = vector.extract_strided_slice %39 {offsets = [0, 64], sizes = [8, 32], strides = [1, 1]} : vector<8x96xf32> to vector<8x32xf32>
    %cst_20 = arith.constant 2.500000e-01 : f32
    %43 = vector.broadcast %cst_20 : f32 to vector<8x32xf32>
    %44 = arith.mulf %40, %43 : vector<8x32xf32>
    %45 = vector.shape_cast %30 : vector<1x8xf32> to vector<1x8xf32>
    %46 = vector.broadcast %45 : vector<1x8xf32> to vector<8x8xf32>
    %47 = arith.truncf %44 : vector<8x32xf32> to vector<8x32xbf16>
    %48 = arith.truncf %41 : vector<8x32xf32> to vector<8x32xbf16>
    %49 = arith.truncf %42 : vector<8x32xf32> to vector<8x32xbf16>
    %50 = vector.extract_strided_slice %47 {offsets = [0, 0], sizes = [8, 16], strides = [1, 1]} : vector<8x32xbf16> to vector<8x16xbf16>
    %51 = vector.extract_strided_slice %48 {offsets = [0, 0], sizes = [8, 16], strides = [1, 1]} : vector<8x32xbf16> to vector<8x16xbf16>
    %cst_21 = arith.constant dense<0.000000e+00> : vector<8x8xf32>
    %52 = tpu.matmul %50, %51, %cst_21 {dimension_numbers = #tpu.dot_dimension_numbers<[1], [1], [0], [0], [0, 0, 1, 0], [], []>} : vector<8x16xbf16>, vector<8x16xbf16>, vector<8x8xf32> -> vector<8x8xf32>
    %53 = arith.addf %52, %46 : vector<8x8xf32>
    %cst_22 = arith.constant dense<0xFF800000> : vector<8xf32>
    %54 = vector.multi_reduction <maximumf>, %53, %cst_22 [1] : vector<8x8xf32> to vector<8xf32>
    %55 = vector.shape_cast %54 : vector<8xf32> to vector<8x1xf32>
    %56 = vector.broadcast %55 : vector<8x1xf32> to vector<8x8xf32>
    %57 = arith.subf %53, %56 : vector<8x8xf32>
    %58 = math.exp %57 : vector<8x8xf32>
    %cst_23 = arith.constant dense<0.000000e+00> : vector<8xf32>
    %59 = vector.multi_reduction <add>, %58, %cst_23 [1] : vector<8x8xf32> to vector<8xf32>
    %60 = vector.shape_cast %59 : vector<8xf32> to vector<8x1xf32>
    %61 = tpu.reciprocal %60 {approx = true} : vector<8x1xf32> -> vector<8x1xf32>
    %62 = vector.broadcast %61 : vector<8x1xf32> to vector<8x8xf32>
    %63 = arith.mulf %58, %62 : vector<8x8xf32>
    %64 = arith.truncf %63 : vector<8x8xf32> to vector<8x8xbf16>
    %65 = vector.extract_strided_slice %49 {offsets = [0, 0], sizes = [8, 16], strides = [1, 1]} : vector<8x32xbf16> to vector<8x16xbf16>
    %cst_24 = arith.constant dense<0.000000e+00> : vector<8x16xf32>
    %66 = tpu.matmul %64, %65, %cst_24 {dimension_numbers = #tpu.dot_dimension_numbers<[1], [0], [0], [1], [0, 0, 1, 1], [], []>} : vector<8x8xbf16>, vector<8x16xbf16>, vector<8x16xf32> -> vector<8x16xf32>
    %67 = vector.extract_strided_slice %47 {offsets = [0, 16], sizes = [8, 16], strides = [1, 1]} : vector<8x32xbf16> to vector<8x16xbf16>
    %68 = vector.extract_strided_slice %48 {offsets = [0, 16], sizes = [8, 16], strides = [1, 1]} : vector<8x32xbf16> to vector<8x16xbf16>
    %cst_25 = arith.constant dense<0.000000e+00> : vector<8x8xf32>
    %69 = tpu.matmul %67, %68, %cst_25 {dimension_numbers = #tpu.dot_dimension_numbers<[1], [1], [0], [0], [0, 0, 1, 0], [], []>} : vector<8x16xbf16>, vector<8x16xbf16>, vector<8x8xf32> -> vector<8x8xf32>
    %70 = arith.addf %69, %46 : vector<8x8xf32>
    %cst_26 = arith.constant dense<0xFF800000> : vector<8xf32>
    %71 = vector.multi_reduction <maximumf>, %70, %cst_26 [1] : vector<8x8xf32> to vector<8xf32>
    %72 = vector.shape_cast %71 : vector<8xf32> to vector<8x1xf32>
    %73 = vector.broadcast %72 : vector<8x1xf32> to vector<8x8xf32>
    %74 = arith.subf %70, %73 : vector<8x8xf32>
    %75 = math.exp %74 : vector<8x8xf32>
    %cst_27 = arith.constant dense<0.000000e+00> : vector<8xf32>
    %76 = vector.multi_reduction <add>, %75, %cst_27 [1] : vector<8x8xf32> to vector<8xf32>
    %77 = vector.shape_cast %76 : vector<8xf32> to vector<8x1xf32>
    %78 = tpu.reciprocal %77 {approx = true} : vector<8x1xf32> -> vector<8x1xf32>
    %79 = vector.broadcast %78 : vector<8x1xf32> to vector<8x8xf32>
    %80 = arith.mulf %75, %79 : vector<8x8xf32>
    %81 = arith.truncf %80 : vector<8x8xf32> to vector<8x8xbf16>
    %82 = vector.extract_strided_slice %49 {offsets = [0, 16], sizes = [8, 16], strides = [1, 1]} : vector<8x32xbf16> to vector<8x16xbf16>
    %cst_28 = arith.constant dense<0.000000e+00> : vector<8x16xf32>
    %83 = tpu.matmul %81, %82, %cst_28 {dimension_numbers = #tpu.dot_dimension_numbers<[1], [0], [0], [1], [0, 0, 1, 1], [], []>} : vector<8x8xbf16>, vector<8x16xbf16>, vector<8x16xf32> -> vector<8x16xf32>
    %84 = tpu.concatenate %66, %83 in 1 : vector<8x16xf32>, vector<8x16xf32> -> vector<8x32xf32>
    %c0_29 = arith.constant 0 : index
    %c0_30 = arith.constant 0 : index
    %c0_31 = arith.constant 0 : index
    %85 = vector.load %arg7[%c0_29, %c0_30, %c0_31] : memref<6x32x32xbf16, #tpu.memory_space<vmem>>, vector<1x32x32xbf16>
    %86 = vector.shape_cast %85 : vector<1x32x32xbf16> to vector<32x32xbf16>
    %87 = arith.truncf %84 : vector<8x32xf32> to vector<8x32xbf16>
    %cst_32 = arith.constant dense<0.000000e+00> : vector<8x32xf32>
    %88 = tpu.matmul %87, %86, %cst_32 {dimension_numbers = #tpu.dot_dimension_numbers<[1], [0], [0], [1], [0, 0, 1, 1], [], []>} : vector<8x32xbf16>, vector<32x32xbf16>, vector<8x32xf32> -> vector<8x32xf32>
    %c0_33 = arith.constant 0 : index
    %c0_34 = arith.constant 0 : index
    %c0_35 = arith.constant 0 : index
    %89 = vector.load %arg8[%c0_33, %c0_34, %c0_35] : memref<6x1x32xbf16, #tpu.memory_space<vmem>>, vector<1x1x32xbf16>
    %90 = vector.shape_cast %89 : vector<1x1x32xbf16> to vector<1x32xbf16>
    %91 = arith.extf %90 : vector<1x32xbf16> to vector<1x32xf32>
    %92 = vector.broadcast %91 : vector<1x32xf32> to vector<8x32xf32>
    %93 = arith.addf %88, %92 : vector<8x32xf32>
    %94 = arith.addf %28, %93 : vector<8x32xf32>
    %c0_36 = arith.constant 0 : index
    %c0_37 = arith.constant 0 : index
    %c0_38 = arith.constant 0 : index
    %95 = vector.load %arg9[%c0_36, %c0_37, %c0_38] : memref<6x1x32xbf16, #tpu.memory_space<vmem>>, vector<1x1x32xbf16>
    %96 = vector.shape_cast %95 : vector<1x1x32xbf16> to vector<1x32xbf16>
    %c0_39 = arith.constant 0 : index
    %c0_40 = arith.constant 0 : index
    %c0_41 = arith.constant 0 : index
    %97 = vector.load %arg10[%c0_39, %c0_40, %c0_41] : memref<6x1x32xbf16, #tpu.memory_space<vmem>>, vector<1x1x32xbf16>
    %98 = vector.shape_cast %97 : vector<1x1x32xbf16> to vector<1x32xbf16>
    %cst_42 = arith.constant dense<0.000000e+00> : vector<8xf32>
    %99 = vector.multi_reduction <add>, %94, %cst_42 [1] : vector<8x32xf32> to vector<8xf32>
    %100 = vector.shape_cast %99 : vector<8xf32> to vector<8x1xf32>
    %cst_43 = arith.constant 3.200000e+01 : f32
    %101 = vector.broadcast %cst_43 : f32 to vector<8x1xf32>
    %102 = arith.divf %100, %101 : vector<8x1xf32>
    %103 = vector.broadcast %102 : vector<8x1xf32> to vector<8x32xf32>
    %104 = arith.subf %94, %103 : vector<8x32xf32>
    %105 = arith.mulf %104, %104 : vector<8x32xf32>
    %cst_44 = arith.constant dense<0.000000e+00> : vector<8xf32>
    %106 = vector.multi_reduction <add>, %105, %cst_44 [1] : vector<8x32xf32> to vector<8xf32>
    %107 = vector.shape_cast %106 : vector<8xf32> to vector<8x1xf32>
    %cst_45 = arith.constant 3.200000e+01 : f32
    %108 = vector.broadcast %cst_45 : f32 to vector<8x1xf32>
    %109 = arith.divf %107, %108 : vector<8x1xf32>
    %110 = vector.broadcast %102 : vector<8x1xf32> to vector<8x32xf32>
    %111 = arith.subf %94, %110 : vector<8x32xf32>
    %cst_46 = arith.constant 9.99999971E-10 : f32
    %112 = vector.broadcast %cst_46 : f32 to vector<8x1xf32>
    %113 = arith.addf %109, %112 : vector<8x1xf32>
    %114 = math.rsqrt %113 : vector<8x1xf32>
    %115 = vector.broadcast %114 : vector<8x1xf32> to vector<8x32xf32>
    %116 = arith.mulf %111, %115 : vector<8x32xf32>
    %117 = arith.extf %96 : vector<1x32xbf16> to vector<1x32xf32>
    %118 = vector.broadcast %117 : vector<1x32xf32> to vector<8x32xf32>
    %119 = arith.mulf %116, %118 : vector<8x32xf32>
    %120 = arith.extf %98 : vector<1x32xbf16> to vector<1x32xf32>
    %121 = vector.broadcast %120 : vector<1x32xf32> to vector<8x32xf32>
    %122 = arith.addf %119, %121 : vector<8x32xf32>
    %c0_47 = arith.constant 0 : index
    %c0_48 = arith.constant 0 : index
    %c0_49 = arith.constant 0 : index
    %123 = vector.load %arg11[%c0_47, %c0_48, %c0_49] : memref<6x32x64xbf16, #tpu.memory_space<vmem>>, vector<1x32x64xbf16>
    %124 = vector.shape_cast %123 : vector<1x32x64xbf16> to vector<32x64xbf16>
    %125 = arith.truncf %122 : vector<8x32xf32> to vector<8x32xbf16>
    %cst_50 = arith.constant dense<0.000000e+00> : vector<8x64xf32>
    %126 = tpu.matmul %125, %124, %cst_50 {dimension_numbers = #tpu.dot_dimension_numbers<[1], [0], [0], [1], [0, 0, 1, 1], [], []>} : vector<8x32xbf16>, vector<32x64xbf16>, vector<8x64xf32> -> vector<8x64xf32>
    %c0_51 = arith.constant 0 : index
    %c0_52 = arith.constant 0 : index
    %c0_53 = arith.constant 0 : index
    %127 = vector.load %arg12[%c0_51, %c0_52, %c0_53] : memref<6x1x64xbf16, #tpu.memory_space<vmem>>, vector<1x1x64xbf16>
    %128 = vector.shape_cast %127 : vector<1x1x64xbf16> to vector<1x64xbf16>
    %129 = arith.extf %128 : vector<1x64xbf16> to vector<1x64xf32>
    %130 = vector.broadcast %129 : vector<1x64xf32> to vector<8x64xf32>
    %131 = arith.addf %126, %130 : vector<8x64xf32>
    %cst_54 = arith.constant 5.000000e-01 : f32
    %132 = vector.broadcast %cst_54 : f32 to vector<8x64xf32>
    %133 = arith.mulf %132, %131 : vector<8x64xf32>
    %cst_55 = arith.constant 4.471500e-02 : f32
    %134 = vector.broadcast %cst_55 : f32 to vector<8x64xf32>
    %135 = arith.mulf %134, %131 : vector<8x64xf32>
    %136 = arith.mulf %135, %131 : vector<8x64xf32>
    %137 = arith.mulf %136, %131 : vector<8x64xf32>
    %138 = arith.addf %131, %137 : vector<8x64xf32>
    %cst_56 = arith.constant 0.797884583 : f32
    %139 = vector.broadcast %cst_56 : f32 to vector<8x64xf32>
    %140 = arith.mulf %139, %138 : vector<8x64xf32>
    %141 = math.tanh %140 : vector<8x64xf32>
    %cst_57 = arith.constant 1.000000e+00 : f32
    %142 = vector.broadcast %cst_57 : f32 to vector<8x64xf32>
    %143 = arith.addf %142, %141 : vector<8x64xf32>
    %144 = arith.mulf %133, %143 : vector<8x64xf32>
    %c0_58 = arith.constant 0 : index
    %c0_59 = arith.constant 0 : index
    %c0_60 = arith.constant 0 : index
    %145 = vector.load %arg13[%c0_58, %c0_59, %c0_60] : memref<6x64x32xbf16, #tpu.memory_space<vmem>>, vector<1x64x32xbf16>
    %146 = vector.shape_cast %145 : vector<1x64x32xbf16> to vector<64x32xbf16>
    %147 = arith.truncf %144 : vector<8x64xf32> to vector<8x64xbf16>
    %cst_61 = arith.constant dense<0.000000e+00> : vector<8x32xf32>
    %148 = tpu.matmul %147, %146, %cst_61 {dimension_numbers = #tpu.dot_dimension_numbers<[1], [0], [0], [1], [0, 0, 1, 1], [], []>} : vector<8x64xbf16>, vector<64x32xbf16>, vector<8x32xf32> -> vector<8x32xf32>
    %c0_62 = arith.constant 0 : index
    %c0_63 = arith.constant 0 : index
    %c0_64 = arith.constant 0 : index
    %149 = vector.load %arg14[%c0_62, %c0_63, %c0_64] : memref<6x1x32xbf16, #tpu.memory_space<vmem>>, vector<1x1x32xbf16>
    %150 = vector.shape_cast %149 : vector<1x1x32xbf16> to vector<1x32xbf16>
    %151 = arith.extf %150 : vector<1x32xbf16> to vector<1x32xf32>
    %152 = vector.broadcast %151 : vector<1x32xf32> to vector<8x32xf32>
    %153 = arith.addf %148, %152 : vector<8x32xf32>
    %154 = arith.addf %122, %153 : vector<8x32xf32>
    %c0_65 = arith.constant 0 : index
    %c0_66 = arith.constant 0 : index
    %c0_67 = arith.constant 0 : index
    %155 = vector.load %arg15[%c0_65, %c0_66, %c0_67] : memref<6x1x32xbf16, #tpu.memory_space<vmem>>, vector<1x1x32xbf16>
    %156 = vector.shape_cast %155 : vector<1x1x32xbf16> to vector<1x32xbf16>
    %c0_68 = arith.constant 0 : index
    %c0_69 = arith.constant 0 : index
    %c0_70 = arith.constant 0 : index
    %157 = vector.load %arg16[%c0_68, %c0_69, %c0_70] : memref<6x1x32xbf16, #tpu.memory_space<vmem>>, vector<1x1x32xbf16>
    %158 = vector.shape_cast %157 : vector<1x1x32xbf16> to vector<1x32xbf16>
    %cst_71 = arith.constant dense<0.000000e+00> : vector<8xf32>
    %159 = vector.multi_reduction <add>, %154, %cst_71 [1] : vector<8x32xf32> to vector<8xf32>
    %160 = vector.shape_cast %159 : vector<8xf32> to vector<8x1xf32>
    %cst_72 = arith.constant 3.200000e+01 : f32
    %161 = vector.broadcast %cst_72 : f32 to vector<8x1xf32>
    %162 = arith.divf %160, %161 : vector<8x1xf32>
    %163 = vector.broadcast %162 : vector<8x1xf32> to vector<8x32xf32>
    %164 = arith.subf %154, %163 : vector<8x32xf32>
    %165 = arith.mulf %164, %164 : vector<8x32xf32>
    %cst_73 = arith.constant dense<0.000000e+00> : vector<8xf32>
    %166 = vector.multi_reduction <add>, %165, %cst_73 [1] : vector<8x32xf32> to vector<8xf32>
    %167 = vector.shape_cast %166 : vector<8xf32> to vector<8x1xf32>
    %cst_74 = arith.constant 3.200000e+01 : f32
    %168 = vector.broadcast %cst_74 : f32 to vector<8x1xf32>
    %169 = arith.divf %167, %168 : vector<8x1xf32>
    %170 = vector.broadcast %162 : vector<8x1xf32> to vector<8x32xf32>
    %171 = arith.subf %154, %170 : vector<8x32xf32>
    %cst_75 = arith.constant 9.99999971E-10 : f32
    %172 = vector.broadcast %cst_75 : f32 to vector<8x1xf32>
    %173 = arith.addf %169, %172 : vector<8x1xf32>
    %174 = math.rsqrt %173 : vector<8x1xf32>
    %175 = vector.broadcast %174 : vector<8x1xf32> to vector<8x32xf32>
    %176 = arith.mulf %171, %175 : vector<8x32xf32>
    %177 = arith.extf %156 : vector<1x32xbf16> to vector<1x32xf32>
    %178 = vector.broadcast %177 : vector<1x32xf32> to vector<8x32xf32>
    %179 = arith.mulf %176, %178 : vector<8x32xf32>
    %180 = arith.extf %158 : vector<1x32xbf16> to vector<1x32xf32>
    %181 = vector.broadcast %180 : vector<1x32xf32> to vector<8x32xf32>
    %182 = arith.addf %179, %181 : vector<8x32xf32>
    %c1 = arith.constant 1 : index
    %c0_76 = arith.constant 0 : index
    %c0_77 = arith.constant 0 : index
    %183 = vector.load %arg5[%c1, %c0_76, %c0_77] : memref<6x32x96xbf16, #tpu.memory_space<vmem>>, vector<1x32x96xbf16>
    %184 = vector.shape_cast %183 : vector<1x32x96xbf16> to vector<32x96xbf16>
    %185 = arith.truncf %182 : vector<8x32xf32> to vector<8x32xbf16>
    %cst_78 = arith.constant dense<0.000000e+00> : vector<8x96xf32>
    %186 = tpu.matmul %185, %184, %cst_78 {dimension_numbers = #tpu.dot_dimension_numbers<[1], [0], [0], [1], [0, 0, 1, 1], [], []>} : vector<8x32xbf16>, vector<32x96xbf16>, vector<8x96xf32> -> vector<8x96xf32>
    %c1_79 = arith.constant 1 : index
    %c0_80 = arith.constant 0 : index
    %c0_81 = arith.constant 0 : index
    %187 = vector.load %arg6[%c1_79, %c0_80, %c0_81] : memref<6x1x96xbf16, #tpu.memory_space<vmem>>, vector<1x1x96xbf16>
    %188 = vector.shape_cast %187 : vector<1x1x96xbf16> to vector<1x96xbf16>
    %189 = arith.extf %188 : vector<1x96xbf16> to vector<1x96xf32>
    %190 = vector.broadcast %189 : vector<1x96xf32> to vector<8x96xf32>
    %191 = arith.addf %186, %190 : vector<8x96xf32>
    %192 = vector.extract_strided_slice %191 {offsets = [0, 0], sizes = [8, 32], strides = [1, 1]} : vector<8x96xf32> to vector<8x32xf32>
    %193 = vector.extract_strided_slice %191 {offsets = [0, 32], sizes = [8, 32], strides = [1, 1]} : vector<8x96xf32> to vector<8x32xf32>
    %194 = vector.extract_strided_slice %191 {offsets = [0, 64], sizes = [8, 32], strides = [1, 1]} : vector<8x96xf32> to vector<8x32xf32>
    %cst_82 = arith.constant 2.500000e-01 : f32
    %195 = vector.broadcast %cst_82 : f32 to vector<8x32xf32>
    %196 = arith.mulf %192, %195 : vector<8x32xf32>
    %197 = vector.shape_cast %30 : vector<1x8xf32> to vector<1x8xf32>
    %198 = vector.broadcast %197 : vector<1x8xf32> to vector<8x8xf32>
    %199 = arith.truncf %196 : vector<8x32xf32> to vector<8x32xbf16>
    %200 = arith.truncf %193 : vector<8x32xf32> to vector<8x32xbf16>
    %201 = arith.truncf %194 : vector<8x32xf32> to vector<8x32xbf16>
    %202 = vector.extract_strided_slice %199 {offsets = [0, 0], sizes = [8, 16], strides = [1, 1]} : vector<8x32xbf16> to vector<8x16xbf16>
    %203 = vector.extract_strided_slice %200 {offsets = [0, 0], sizes = [8, 16], strides = [1, 1]} : vector<8x32xbf16> to vector<8x16xbf16>
    %cst_83 = arith.constant dense<0.000000e+00> : vector<8x8xf32>
    %204 = tpu.matmul %202, %203, %cst_83 {dimension_numbers = #tpu.dot_dimension_numbers<[1], [1], [0], [0], [0, 0, 1, 0], [], []>} : vector<8x16xbf16>, vector<8x16xbf16>, vector<8x8xf32> -> vector<8x8xf32>
    %205 = arith.addf %204, %198 : vector<8x8xf32>
    %cst_84 = arith.constant dense<0xFF800000> : vector<8xf32>
    %206 = vector.multi_reduction <maximumf>, %205, %cst_84 [1] : vector<8x8xf32> to vector<8xf32>
    %207 = vector.shape_cast %206 : vector<8xf32> to vector<8x1xf32>
    %208 = vector.broadcast %207 : vector<8x1xf32> to vector<8x8xf32>
    %209 = arith.subf %205, %208 : vector<8x8xf32>
    %210 = math.exp %209 : vector<8x8xf32>
    %cst_85 = arith.constant dense<0.000000e+00> : vector<8xf32>
    %211 = vector.multi_reduction <add>, %210, %cst_85 [1] : vector<8x8xf32> to vector<8xf32>
    %212 = vector.shape_cast %211 : vector<8xf32> to vector<8x1xf32>
    %213 = tpu.reciprocal %212 {approx = true} : vector<8x1xf32> -> vector<8x1xf32>
    %214 = vector.broadcast %213 : vector<8x1xf32> to vector<8x8xf32>
    %215 = arith.mulf %210, %214 : vector<8x8xf32>
    %216 = arith.truncf %215 : vector<8x8xf32> to vector<8x8xbf16>
    %217 = vector.extract_strided_slice %201 {offsets = [0, 0], sizes = [8, 16], strides = [1, 1]} : vector<8x32xbf16> to vector<8x16xbf16>
    %cst_86 = arith.constant dense<0.000000e+00> : vector<8x16xf32>
    %218 = tpu.matmul %216, %217, %cst_86 {dimension_numbers = #tpu.dot_dimension_numbers<[1], [0], [0], [1], [0, 0, 1, 1], [], []>} : vector<8x8xbf16>, vector<8x16xbf16>, vector<8x16xf32> -> vector<8x16xf32>
    %219 = vector.extract_strided_slice %199 {offsets = [0, 16], sizes = [8, 16], strides = [1, 1]} : vector<8x32xbf16> to vector<8x16xbf16>
    %220 = vector.extract_strided_slice %200 {offsets = [0, 16], sizes = [8, 16], strides = [1, 1]} : vector<8x32xbf16> to vector<8x16xbf16>
    %cst_87 = arith.constant dense<0.000000e+00> : vector<8x8xf32>
    %221 = tpu.matmul %219, %220, %cst_87 {dimension_numbers = #tpu.dot_dimension_numbers<[1], [1], [0], [0], [0, 0, 1, 0], [], []>} : vector<8x16xbf16>, vector<8x16xbf16>, vector<8x8xf32> -> vector<8x8xf32>
    %222 = arith.addf %221, %198 : vector<8x8xf32>
    %cst_88 = arith.constant dense<0xFF800000> : vector<8xf32>
    %223 = vector.multi_reduction <maximumf>, %222, %cst_88 [1] : vector<8x8xf32> to vector<8xf32>
    %224 = vector.shape_cast %223 : vector<8xf32> to vector<8x1xf32>
    %225 = vector.broadcast %224 : vector<8x1xf32> to vector<8x8xf32>
    %226 = arith.subf %222, %225 : vector<8x8xf32>
    %227 = math.exp %226 : vector<8x8xf32>
    %cst_89 = arith.constant dense<0.000000e+00> : vector<8xf32>
    %228 = vector.multi_reduction <add>, %227, %cst_89 [1] : vector<8x8xf32> to vector<8xf32>
    %229 = vector.shape_cast %228 : vector<8xf32> to vector<8x1xf32>
    %230 = tpu.reciprocal %229 {approx = true} : vector<8x1xf32> -> vector<8x1xf32>
    %231 = vector.broadcast %230 : vector<8x1xf32> to vector<8x8xf32>
    %232 = arith.mulf %227, %231 : vector<8x8xf32>
    %233 = arith.truncf %232 : vector<8x8xf32> to vector<8x8xbf16>
    %234 = vector.extract_strided_slice %201 {offsets = [0, 16], sizes = [8, 16], strides = [1, 1]} : vector<8x32xbf16> to vector<8x16xbf16>
    %cst_90 = arith.constant dense<0.000000e+00> : vector<8x16xf32>
    %235 = tpu.matmul %233, %234, %cst_90 {dimension_numbers = #tpu.dot_dimension_numbers<[1], [0], [0], [1], [0, 0, 1, 1], [], []>} : vector<8x8xbf16>, vector<8x16xbf16>, vector<8x16xf32> -> vector<8x16xf32>
    %236 = tpu.concatenate %218, %235 in 1 : vector<8x16xf32>, vector<8x16xf32> -> vector<8x32xf32>
    %c1_91 = arith.constant 1 : index
    %c0_92 = arith.constant 0 : index
    %c0_93 = arith.constant 0 : index
    %237 = vector.load %arg7[%c1_91, %c0_92, %c0_93] : memref<6x32x32xbf16, #tpu.memory_space<vmem>>, vector<1x32x32xbf16>
    %238 = vector.shape_cast %237 : vector<1x32x32xbf16> to vector<32x32xbf16>
    %239 = arith.truncf %236 : vector<8x32xf32> to vector<8x32xbf16>
    %cst_94 = arith.constant dense<0.000000e+00> : vector<8x32xf32>
    %240 = tpu.matmul %239, %238, %cst_94 {dimension_numbers = #tpu.dot_dimension_numbers<[1], [0], [0], [1], [0, 0, 1, 1], [], []>} : vector<8x32xbf16>, vector<32x32xbf16>, vector<8x32xf32> -> vector<8x32xf32>
    %c1_95 = arith.constant 1 : index
    %c0_96 = arith.constant 0 : index
    %c0_97 = arith.constant 0 : index
    %241 = vector.load %arg8[%c1_95, %c0_96, %c0_97] : memref<6x1x32xbf16, #tpu.memory_space<vmem>>, vector<1x1x32xbf16>
    %242 = vector.shape_cast %241 : vector<1x1x32xbf16> to vector<1x32xbf16>
    %243 = arith.extf %242 : vector<1x32xbf16> to vector<1x32xf32>
    %244 = vector.broadcast %243 : vector<1x32xf32> to vector<8x32xf32>
    %245 = arith.addf %240, %244 : vector<8x32xf32>
    %246 = arith.addf %182, %245 : vector<8x32xf32>
    %c1_98 = arith.constant 1 : index
    %c0_99 = arith.constant 0 : index
    %c0_100 = arith.constant 0 : index
    %247 = vector.load %arg9[%c1_98, %c0_99, %c0_100] : memref<6x1x32xbf16, #tpu.memory_space<vmem>>, vector<1x1x32xbf16>
    %248 = vector.shape_cast %247 : vector<1x1x32xbf16> to vector<1x32xbf16>
    %c1_101 = arith.constant 1 : index
    %c0_102 = arith.constant 0 : index
    %c0_103 = arith.constant 0 : index
    %249 = vector.load %arg10[%c1_101, %c0_102, %c0_103] : memref<6x1x32xbf16, #tpu.memory_space<vmem>>, vector<1x1x32xbf16>
    %250 = vector.shape_cast %249 : vector<1x1x32xbf16> to vector<1x32xbf16>
    %cst_104 = arith.constant dense<0.000000e+00> : vector<8xf32>
    %251 = vector.multi_reduction <add>, %246, %cst_104 [1] : vector<8x32xf32> to vector<8xf32>
    %252 = vector.shape_cast %251 : vector<8xf32> to vector<8x1xf32>
    %cst_105 = arith.constant 3.200000e+01 : f32
    %253 = vector.broadcast %cst_105 : f32 to vector<8x1xf32>
    %254 = arith.divf %252, %253 : vector<8x1xf32>
    %255 = vector.broadcast %254 : vector<8x1xf32> to vector<8x32xf32>
    %256 = arith.subf %246, %255 : vector<8x32xf32>
    %257 = arith.mulf %256, %256 : vector<8x32xf32>
    %cst_106 = arith.constant dense<0.000000e+00> : vector<8xf32>
    %258 = vector.multi_reduction <add>, %257, %cst_106 [1] : vector<8x32xf32> to vector<8xf32>
    %259 = vector.shape_cast %258 : vector<8xf32> to vector<8x1xf32>
    %cst_107 = arith.constant 3.200000e+01 : f32
    %260 = vector.broadcast %cst_107 : f32 to vector<8x1xf32>
    %261 = arith.divf %259, %260 : vector<8x1xf32>
    %262 = vector.broadcast %254 : vector<8x1xf32> to vector<8x32xf32>
    %263 = arith.subf %246, %262 : vector<8x32xf32>
    %cst_108 = arith.constant 9.99999971E-10 : f32
    %264 = vector.broadcast %cst_108 : f32 to vector<8x1xf32>
    %265 = arith.addf %261, %264 : vector<8x1xf32>
    %266 = math.rsqrt %265 : vector<8x1xf32>
    %267 = vector.broadcast %266 : vector<8x1xf32> to vector<8x32xf32>
    %268 = arith.mulf %263, %267 : vector<8x32xf32>
    %269 = arith.extf %248 : vector<1x32xbf16> to vector<1x32xf32>
    %270 = vector.broadcast %269 : vector<1x32xf32> to vector<8x32xf32>
    %271 = arith.mulf %268, %270 : vector<8x32xf32>
    %272 = arith.extf %250 : vector<1x32xbf16> to vector<1x32xf32>
    %273 = vector.broadcast %272 : vector<1x32xf32> to vector<8x32xf32>
    %274 = arith.addf %271, %273 : vector<8x32xf32>
    %c1_109 = arith.constant 1 : index
    %c0_110 = arith.constant 0 : index
    %c0_111 = arith.constant 0 : index
    %275 = vector.load %arg11[%c1_109, %c0_110, %c0_111] : memref<6x32x64xbf16, #tpu.memory_space<vmem>>, vector<1x32x64xbf16>
    %276 = vector.shape_cast %275 : vector<1x32x64xbf16> to vector<32x64xbf16>
    %277 = arith.truncf %274 : vector<8x32xf32> to vector<8x32xbf16>
    %cst_112 = arith.constant dense<0.000000e+00> : vector<8x64xf32>
    %278 = tpu.matmul %277, %276, %cst_112 {dimension_numbers = #tpu.dot_dimension_numbers<[1], [0], [0], [1], [0, 0, 1, 1], [], []>} : vector<8x32xbf16>, vector<32x64xbf16>, vector<8x64xf32> -> vector<8x64xf32>
    %c1_113 = arith.constant 1 : index
    %c0_114 = arith.constant 0 : index
    %c0_115 = arith.constant 0 : index
    %279 = vector.load %arg12[%c1_113, %c0_114, %c0_115] : memref<6x1x64xbf16, #tpu.memory_space<vmem>>, vector<1x1x64xbf16>
    %280 = vector.shape_cast %279 : vector<1x1x64xbf16> to vector<1x64xbf16>
    %281 = arith.extf %280 : vector<1x64xbf16> to vector<1x64xf32>
    %282 = vector.broadcast %281 : vector<1x64xf32> to vector<8x64xf32>
    %283 = arith.addf %278, %282 : vector<8x64xf32>
    %cst_116 = arith.constant 5.000000e-01 : f32
    %284 = vector.broadcast %cst_116 : f32 to vector<8x64xf32>
    %285 = arith.mulf %284, %283 : vector<8x64xf32>
    %cst_117 = arith.constant 4.471500e-02 : f32
    %286 = vector.broadcast %cst_117 : f32 to vector<8x64xf32>
    %287 = arith.mulf %286, %283 : vector<8x64xf32>
    %288 = arith.mulf %287, %283 : vector<8x64xf32>
    %289 = arith.mulf %288, %283 : vector<8x64xf32>
    %290 = arith.addf %283, %289 : vector<8x64xf32>
    %cst_118 = arith.constant 0.797884583 : f32
    %291 = vector.broadcast %cst_118 : f32 to vector<8x64xf32>
    %292 = arith.mulf %291, %290 : vector<8x64xf32>
    %293 = math.tanh %292 : vector<8x64xf32>
    %cst_119 = arith.constant 1.000000e+00 : f32
    %294 = vector.broadcast %cst_119 : f32 to vector<8x64xf32>
    %295 = arith.addf %294, %293 : vector<8x64xf32>
    %296 = arith.mulf %285, %295 : vector<8x64xf32>
    %c1_120 = arith.constant 1 : index
    %c0_121 = arith.constant 0 : index
    %c0_122 = arith.constant 0 : index
    %297 = vector.load %arg13[%c1_120, %c0_121, %c0_122] : memref<6x64x32xbf16, #tpu.memory_space<vmem>>, vector<1x64x32xbf16>
    %298 = vector.shape_cast %297 : vector<1x64x32xbf16> to vector<64x32xbf16>
    %299 = arith.truncf %296 : vector<8x64xf32> to vector<8x64xbf16>
    %cst_123 = arith.constant dense<0.000000e+00> : vector<8x32xf32>
    %300 = tpu.matmul %299, %298, %cst_123 {dimension_numbers = #tpu.dot_dimension_numbers<[1], [0], [0], [1], [0, 0, 1, 1], [], []>} : vector<8x64xbf16>, vector<64x32xbf16>, vector<8x32xf32> -> vector<8x32xf32>
    %c1_124 = arith.constant 1 : index
    %c0_125 = arith.constant 0 : index
    %c0_126 = arith.constant 0 : index
    %301 = vector.load %arg14[%c1_124, %c0_125, %c0_126] : memref<6x1x32xbf16, #tpu.memory_space<vmem>>, vector<1x1x32xbf16>
    %302 = vector.shape_cast %301 : vector<1x1x32xbf16> to vector<1x32xbf16>
    %303 = arith.extf %302 : vector<1x32xbf16> to vector<1x32xf32>
    %304 = vector.broadcast %303 : vector<1x32xf32> to vector<8x32xf32>
    %305 = arith.addf %300, %304 : vector<8x32xf32>
    %306 = arith.addf %274, %305 : vector<8x32xf32>
    %c1_127 = arith.constant 1 : index
    %c0_128 = arith.constant 0 : index
    %c0_129 = arith.constant 0 : index
    %307 = vector.load %arg15[%c1_127, %c0_128, %c0_129] : memref<6x1x32xbf16, #tpu.memory_space<vmem>>, vector<1x1x32xbf16>
    %308 = vector.shape_cast %307 : vector<1x1x32xbf16> to vector<1x32xbf16>
    %c1_130 = arith.constant 1 : index
    %c0_131 = arith.constant 0 : index
    %c0_132 = arith.constant 0 : index
    %309 = vector.load %arg16[%c1_130, %c0_131, %c0_132] : memref<6x1x32xbf16, #tpu.memory_space<vmem>>, vector<1x1x32xbf16>
    %310 = vector.shape_cast %309 : vector<1x1x32xbf16> to vector<1x32xbf16>
    %cst_133 = arith.constant dense<0.000000e+00> : vector<8xf32>
    %311 = vector.multi_reduction <add>, %306, %cst_133 [1] : vector<8x32xf32> to vector<8xf32>
    %312 = vector.shape_cast %311 : vector<8xf32> to vector<8x1xf32>
    %cst_134 = arith.constant 3.200000e+01 : f32
    %313 = vector.broadcast %cst_134 : f32 to vector<8x1xf32>
    %314 = arith.divf %312, %313 : vector<8x1xf32>
    %315 = vector.broadcast %314 : vector<8x1xf32> to vector<8x32xf32>
    %316 = arith.subf %306, %315 : vector<8x32xf32>
    %317 = arith.mulf %316, %316 : vector<8x32xf32>
    %cst_135 = arith.constant dense<0.000000e+00> : vector<8xf32>
    %318 = vector.multi_reduction <add>, %317, %cst_135 [1] : vector<8x32xf32> to vector<8xf32>
    %319 = vector.shape_cast %318 : vector<8xf32> to vector<8x1xf32>
    %cst_136 = arith.constant 3.200000e+01 : f32
    %320 = vector.broadcast %cst_136 : f32 to vector<8x1xf32>
    %321 = arith.divf %319, %320 : vector<8x1xf32>
    %322 = vector.broadcast %314 : vector<8x1xf32> to vector<8x32xf32>
    %323 = arith.subf %306, %322 : vector<8x32xf32>
    %cst_137 = arith.constant 9.99999971E-10 : f32
    %324 = vector.broadcast %cst_137 : f32 to vector<8x1xf32>
    %325 = arith.addf %321, %324 : vector<8x1xf32>
    %326 = math.rsqrt %325 : vector<8x1xf32>
    %327 = vector.broadcast %326 : vector<8x1xf32> to vector<8x32xf32>
    %328 = arith.mulf %323, %327 : vector<8x32xf32>
    %329 = arith.extf %308 : vector<1x32xbf16> to vector<1x32xf32>
    %330 = vector.broadcast %329 : vector<1x32xf32> to vector<8x32xf32>
    %331 = arith.mulf %328, %330 : vector<8x32xf32>
    %332 = arith.extf %310 : vector<1x32xbf16> to vector<1x32xf32>
    %333 = vector.broadcast %332 : vector<1x32xf32> to vector<8x32xf32>
    %334 = arith.addf %331, %333 : vector<8x32xf32>
    %335 = tpu.iota {dimensions = array<i32: 0>} : vector<4x8xi32>
    %336 = tpu.iota {dimensions = array<i32: 1>} : vector<4x8xi32>
    %c2_i32 = arith.constant 2 : i32
    %337 = vector.broadcast %c2_i32 : i32 to vector<4x8xi32>
    %338 = arith.muli %337, %335 : vector<4x8xi32>
    %339 = arith.cmpi eq, %336, %338 : vector<4x8xi32>
    %c2_i32_138 = arith.constant 2 : i32
    %340 = vector.broadcast %c2_i32_138 : i32 to vector<4x8xi32>
    %341 = arith.muli %340, %335 : vector<4x8xi32>
    %c1_i32 = arith.constant 1 : i32
    %342 = vector.broadcast %c1_i32 : i32 to vector<4x8xi32>
    %343 = arith.addi %341, %342 : vector<4x8xi32>
    %344 = arith.cmpi eq, %336, %343 : vector<4x8xi32>
    %345 = arith.ori %339, %344 : vector<4x8xi1>
    %cst_139 = arith.constant 5.000000e-01 : f32
    %cst_140 = arith.constant 0.000000e+00 : f32
    %346 = vector.broadcast %cst_139 : f32 to vector<4x8xf32>
    %347 = vector.broadcast %cst_140 : f32 to vector<4x8xf32>
    %348 = arith.select %345, %346, %347 : vector<4x8xi1>, vector<4x8xf32>
    %cst_141 = arith.constant dense<0.000000e+00> : vector<4x32xf32>
    %349 = tpu.matmul %348, %334, %cst_141 {dimension_numbers = #tpu.dot_dimension_numbers<[1], [0], [0], [1], [0, 0, 1, 1], [], []>} : vector<4x8xf32>, vector<8x32xf32>, vector<4x32xf32> -> vector<4x32xf32>
    %cst_142 = arith.constant dense<0.000000e+00> : vector<1x4xf32>
    %350 = tpu.matmul %30, %348, %cst_142 {dimension_numbers = #tpu.dot_dimension_numbers<[1], [1], [0], [0], [0, 0, 1, 0], [], []>} : vector<1x8xf32>, vector<4x8xf32>, vector<1x4xf32> -> vector<1x4xf32>
    %c2 = arith.constant 2 : index
    %c0_143 = arith.constant 0 : index
    %c0_144 = arith.constant 0 : index
    %351 = vector.load %arg5[%c2, %c0_143, %c0_144] : memref<6x32x96xbf16, #tpu.memory_space<vmem>>, vector<1x32x96xbf16>
    %352 = vector.shape_cast %351 : vector<1x32x96xbf16> to vector<32x96xbf16>
    %353 = arith.truncf %334 : vector<8x32xf32> to vector<8x32xbf16>
    %cst_145 = arith.constant dense<0.000000e+00> : vector<8x96xf32>
    %354 = tpu.matmul %353, %352, %cst_145 {dimension_numbers = #tpu.dot_dimension_numbers<[1], [0], [0], [1], [0, 0, 1, 1], [], []>} : vector<8x32xbf16>, vector<32x96xbf16>, vector<8x96xf32> -> vector<8x96xf32>
    %c2_146 = arith.constant 2 : index
    %c0_147 = arith.constant 0 : index
    %c0_148 = arith.constant 0 : index
    %355 = vector.load %arg6[%c2_146, %c0_147, %c0_148] : memref<6x1x96xbf16, #tpu.memory_space<vmem>>, vector<1x1x96xbf16>
    %356 = vector.shape_cast %355 : vector<1x1x96xbf16> to vector<1x96xbf16>
    %357 = arith.extf %356 : vector<1x96xbf16> to vector<1x96xf32>
    %358 = vector.broadcast %357 : vector<1x96xf32> to vector<8x96xf32>
    %359 = arith.addf %354, %358 : vector<8x96xf32>
    %360 = vector.extract_strided_slice %359 {offsets = [0, 0], sizes = [8, 32], strides = [1, 1]} : vector<8x96xf32> to vector<8x32xf32>
    %361 = vector.extract_strided_slice %359 {offsets = [0, 32], sizes = [8, 32], strides = [1, 1]} : vector<8x96xf32> to vector<8x32xf32>
    %362 = vector.extract_strided_slice %359 {offsets = [0, 64], sizes = [8, 32], strides = [1, 1]} : vector<8x96xf32> to vector<8x32xf32>
    %cst_149 = arith.constant dense<0.000000e+00> : vector<4x32xf32>
    %363 = tpu.matmul %348, %360, %cst_149 {dimension_numbers = #tpu.dot_dimension_numbers<[1], [0], [0], [1], [0, 0, 1, 1], [], []>} : vector<4x8xf32>, vector<8x32xf32>, vector<4x32xf32> -> vector<4x32xf32>
    %cst_150 = arith.constant 2.500000e-01 : f32
    %364 = vector.broadcast %cst_150 : f32 to vector<4x32xf32>
    %365 = arith.mulf %363, %364 : vector<4x32xf32>
    %366 = vector.shape_cast %30 : vector<1x8xf32> to vector<1x8xf32>
    %367 = vector.broadcast %366 : vector<1x8xf32> to vector<4x8xf32>
    %368 = arith.truncf %365 : vector<4x32xf32> to vector<4x32xbf16>
    %369 = arith.truncf %361 : vector<8x32xf32> to vector<8x32xbf16>
    %370 = arith.truncf %362 : vector<8x32xf32> to vector<8x32xbf16>
    %371 = vector.extract_strided_slice %368 {offsets = [0, 0], sizes = [4, 16], strides = [1, 1]} : vector<4x32xbf16> to vector<4x16xbf16>
    %372 = vector.extract_strided_slice %369 {offsets = [0, 0], sizes = [8, 16], strides = [1, 1]} : vector<8x32xbf16> to vector<8x16xbf16>
    %cst_151 = arith.constant dense<0.000000e+00> : vector<4x8xf32>
    %373 = tpu.matmul %371, %372, %cst_151 {dimension_numbers = #tpu.dot_dimension_numbers<[1], [1], [0], [0], [0, 0, 1, 0], [], []>} : vector<4x16xbf16>, vector<8x16xbf16>, vector<4x8xf32> -> vector<4x8xf32>
    %374 = arith.addf %373, %367 : vector<4x8xf32>
    %cst_152 = arith.constant dense<0xFF800000> : vector<4xf32>
    %375 = vector.multi_reduction <maximumf>, %374, %cst_152 [1] : vector<4x8xf32> to vector<4xf32>
    %376 = vector.shape_cast %375 : vector<4xf32> to vector<4x1xf32>
    %377 = vector.broadcast %376 : vector<4x1xf32> to vector<4x8xf32>
    %378 = arith.subf %374, %377 : vector<4x8xf32>
    %379 = math.exp %378 : vector<4x8xf32>
    %cst_153 = arith.constant dense<0.000000e+00> : vector<4xf32>
    %380 = vector.multi_reduction <add>, %379, %cst_153 [1] : vector<4x8xf32> to vector<4xf32>
    %381 = vector.shape_cast %380 : vector<4xf32> to vector<4x1xf32>
    %382 = tpu.reciprocal %381 {approx = true} : vector<4x1xf32> -> vector<4x1xf32>
    %383 = vector.broadcast %382 : vector<4x1xf32> to vector<4x8xf32>
    %384 = arith.mulf %379, %383 : vector<4x8xf32>
    %385 = arith.truncf %384 : vector<4x8xf32> to vector<4x8xbf16>
    %386 = vector.extract_strided_slice %370 {offsets = [0, 0], sizes = [8, 16], strides = [1, 1]} : vector<8x32xbf16> to vector<8x16xbf16>
    %cst_154 = arith.constant dense<0.000000e+00> : vector<4x16xf32>
    %387 = tpu.matmul %385, %386, %cst_154 {dimension_numbers = #tpu.dot_dimension_numbers<[1], [0], [0], [1], [0, 0, 1, 1], [], []>} : vector<4x8xbf16>, vector<8x16xbf16>, vector<4x16xf32> -> vector<4x16xf32>
    %388 = vector.extract_strided_slice %368 {offsets = [0, 16], sizes = [4, 16], strides = [1, 1]} : vector<4x32xbf16> to vector<4x16xbf16>
    %389 = vector.extract_strided_slice %369 {offsets = [0, 16], sizes = [8, 16], strides = [1, 1]} : vector<8x32xbf16> to vector<8x16xbf16>
    %cst_155 = arith.constant dense<0.000000e+00> : vector<4x8xf32>
    %390 = tpu.matmul %388, %389, %cst_155 {dimension_numbers = #tpu.dot_dimension_numbers<[1], [1], [0], [0], [0, 0, 1, 0], [], []>} : vector<4x16xbf16>, vector<8x16xbf16>, vector<4x8xf32> -> vector<4x8xf32>
    %391 = arith.addf %390, %367 : vector<4x8xf32>
    %cst_156 = arith.constant dense<0xFF800000> : vector<4xf32>
    %392 = vector.multi_reduction <maximumf>, %391, %cst_156 [1] : vector<4x8xf32> to vector<4xf32>
    %393 = vector.shape_cast %392 : vector<4xf32> to vector<4x1xf32>
    %394 = vector.broadcast %393 : vector<4x1xf32> to vector<4x8xf32>
    %395 = arith.subf %391, %394 : vector<4x8xf32>
    %396 = math.exp %395 : vector<4x8xf32>
    %cst_157 = arith.constant dense<0.000000e+00> : vector<4xf32>
    %397 = vector.multi_reduction <add>, %396, %cst_157 [1] : vector<4x8xf32> to vector<4xf32>
    %398 = vector.shape_cast %397 : vector<4xf32> to vector<4x1xf32>
    %399 = tpu.reciprocal %398 {approx = true} : vector<4x1xf32> -> vector<4x1xf32>
    %400 = vector.broadcast %399 : vector<4x1xf32> to vector<4x8xf32>
    %401 = arith.mulf %396, %400 : vector<4x8xf32>
    %402 = arith.truncf %401 : vector<4x8xf32> to vector<4x8xbf16>
    %403 = vector.extract_strided_slice %370 {offsets = [0, 16], sizes = [8, 16], strides = [1, 1]} : vector<8x32xbf16> to vector<8x16xbf16>
    %cst_158 = arith.constant dense<0.000000e+00> : vector<4x16xf32>
    %404 = tpu.matmul %402, %403, %cst_158 {dimension_numbers = #tpu.dot_dimension_numbers<[1], [0], [0], [1], [0, 0, 1, 1], [], []>} : vector<4x8xbf16>, vector<8x16xbf16>, vector<4x16xf32> -> vector<4x16xf32>
    %405 = tpu.concatenate %387, %404 in 1 : vector<4x16xf32>, vector<4x16xf32> -> vector<4x32xf32>
    %c2_159 = arith.constant 2 : index
    %c0_160 = arith.constant 0 : index
    %c0_161 = arith.constant 0 : index
    %406 = vector.load %arg7[%c2_159, %c0_160, %c0_161] : memref<6x32x32xbf16, #tpu.memory_space<vmem>>, vector<1x32x32xbf16>
    %407 = vector.shape_cast %406 : vector<1x32x32xbf16> to vector<32x32xbf16>
    %408 = arith.truncf %405 : vector<4x32xf32> to vector<4x32xbf16>
    %cst_162 = arith.constant dense<0.000000e+00> : vector<4x32xf32>
    %409 = tpu.matmul %408, %407, %cst_162 {dimension_numbers = #tpu.dot_dimension_numbers<[1], [0], [0], [1], [0, 0, 1, 1], [], []>} : vector<4x32xbf16>, vector<32x32xbf16>, vector<4x32xf32> -> vector<4x32xf32>
    %c2_163 = arith.constant 2 : index
    %c0_164 = arith.constant 0 : index
    %c0_165 = arith.constant 0 : index
    %410 = vector.load %arg8[%c2_163, %c0_164, %c0_165] : memref<6x1x32xbf16, #tpu.memory_space<vmem>>, vector<1x1x32xbf16>
    %411 = vector.shape_cast %410 : vector<1x1x32xbf16> to vector<1x32xbf16>
    %412 = arith.extf %411 : vector<1x32xbf16> to vector<1x32xf32>
    %413 = vector.broadcast %412 : vector<1x32xf32> to vector<4x32xf32>
    %414 = arith.addf %409, %413 : vector<4x32xf32>
    %415 = arith.addf %349, %414 : vector<4x32xf32>
    %c2_166 = arith.constant 2 : index
    %c0_167 = arith.constant 0 : index
    %c0_168 = arith.constant 0 : index
    %416 = vector.load %arg9[%c2_166, %c0_167, %c0_168] : memref<6x1x32xbf16, #tpu.memory_space<vmem>>, vector<1x1x32xbf16>
    %417 = vector.shape_cast %416 : vector<1x1x32xbf16> to vector<1x32xbf16>
    %c2_169 = arith.constant 2 : index
    %c0_170 = arith.constant 0 : index
    %c0_171 = arith.constant 0 : index
    %418 = vector.load %arg10[%c2_169, %c0_170, %c0_171] : memref<6x1x32xbf16, #tpu.memory_space<vmem>>, vector<1x1x32xbf16>
    %419 = vector.shape_cast %418 : vector<1x1x32xbf16> to vector<1x32xbf16>
    %cst_172 = arith.constant dense<0.000000e+00> : vector<4xf32>
    %420 = vector.multi_reduction <add>, %415, %cst_172 [1] : vector<4x32xf32> to vector<4xf32>
    %421 = vector.shape_cast %420 : vector<4xf32> to vector<4x1xf32>
    %cst_173 = arith.constant 3.200000e+01 : f32
    %422 = vector.broadcast %cst_173 : f32 to vector<4x1xf32>
    %423 = arith.divf %421, %422 : vector<4x1xf32>
    %424 = vector.broadcast %423 : vector<4x1xf32> to vector<4x32xf32>
    %425 = arith.subf %415, %424 : vector<4x32xf32>
    %426 = arith.mulf %425, %425 : vector<4x32xf32>
    %cst_174 = arith.constant dense<0.000000e+00> : vector<4xf32>
    %427 = vector.multi_reduction <add>, %426, %cst_174 [1] : vector<4x32xf32> to vector<4xf32>
    %428 = vector.shape_cast %427 : vector<4xf32> to vector<4x1xf32>
    %cst_175 = arith.constant 3.200000e+01 : f32
    %429 = vector.broadcast %cst_175 : f32 to vector<4x1xf32>
    %430 = arith.divf %428, %429 : vector<4x1xf32>
    %431 = vector.broadcast %423 : vector<4x1xf32> to vector<4x32xf32>
    %432 = arith.subf %415, %431 : vector<4x32xf32>
    %cst_176 = arith.constant 9.99999971E-10 : f32
    %433 = vector.broadcast %cst_176 : f32 to vector<4x1xf32>
    %434 = arith.addf %430, %433 : vector<4x1xf32>
    %435 = math.rsqrt %434 : vector<4x1xf32>
    %436 = vector.broadcast %435 : vector<4x1xf32> to vector<4x32xf32>
    %437 = arith.mulf %432, %436 : vector<4x32xf32>
    %438 = arith.extf %417 : vector<1x32xbf16> to vector<1x32xf32>
    %439 = vector.broadcast %438 : vector<1x32xf32> to vector<4x32xf32>
    %440 = arith.mulf %437, %439 : vector<4x32xf32>
    %441 = arith.extf %419 : vector<1x32xbf16> to vector<1x32xf32>
    %442 = vector.broadcast %441 : vector<1x32xf32> to vector<4x32xf32>
    %443 = arith.addf %440, %442 : vector<4x32xf32>
    %c2_177 = arith.constant 2 : index
    %c0_178 = arith.constant 0 : index
    %c0_179 = arith.constant 0 : index
    %444 = vector.load %arg11[%c2_177, %c0_178, %c0_179] : memref<6x32x64xbf16, #tpu.memory_space<vmem>>, vector<1x32x64xbf16>
    %445 = vector.shape_cast %444 : vector<1x32x64xbf16> to vector<32x64xbf16>
    %446 = arith.truncf %443 : vector<4x32xf32> to vector<4x32xbf16>
    %cst_180 = arith.constant dense<0.000000e+00> : vector<4x64xf32>
    %447 = tpu.matmul %446, %445, %cst_180 {dimension_numbers = #tpu.dot_dimension_numbers<[1], [0], [0], [1], [0, 0, 1, 1], [], []>} : vector<4x32xbf16>, vector<32x64xbf16>, vector<4x64xf32> -> vector<4x64xf32>
    %c2_181 = arith.constant 2 : index
    %c0_182 = arith.constant 0 : index
    %c0_183 = arith.constant 0 : index
    %448 = vector.load %arg12[%c2_181, %c0_182, %c0_183] : memref<6x1x64xbf16, #tpu.memory_space<vmem>>, vector<1x1x64xbf16>
    %449 = vector.shape_cast %448 : vector<1x1x64xbf16> to vector<1x64xbf16>
    %450 = arith.extf %449 : vector<1x64xbf16> to vector<1x64xf32>
    %451 = vector.broadcast %450 : vector<1x64xf32> to vector<4x64xf32>
    %452 = arith.addf %447, %451 : vector<4x64xf32>
    %cst_184 = arith.constant 5.000000e-01 : f32
    %453 = vector.broadcast %cst_184 : f32 to vector<4x64xf32>
    %454 = arith.mulf %453, %452 : vector<4x64xf32>
    %cst_185 = arith.constant 4.471500e-02 : f32
    %455 = vector.broadcast %cst_185 : f32 to vector<4x64xf32>
    %456 = arith.mulf %455, %452 : vector<4x64xf32>
    %457 = arith.mulf %456, %452 : vector<4x64xf32>
    %458 = arith.mulf %457, %452 : vector<4x64xf32>
    %459 = arith.addf %452, %458 : vector<4x64xf32>
    %cst_186 = arith.constant 0.797884583 : f32
    %460 = vector.broadcast %cst_186 : f32 to vector<4x64xf32>
    %461 = arith.mulf %460, %459 : vector<4x64xf32>
    %462 = math.tanh %461 : vector<4x64xf32>
    %cst_187 = arith.constant 1.000000e+00 : f32
    %463 = vector.broadcast %cst_187 : f32 to vector<4x64xf32>
    %464 = arith.addf %463, %462 : vector<4x64xf32>
    %465 = arith.mulf %454, %464 : vector<4x64xf32>
    %c2_188 = arith.constant 2 : index
    %c0_189 = arith.constant 0 : index
    %c0_190 = arith.constant 0 : index
    %466 = vector.load %arg13[%c2_188, %c0_189, %c0_190] : memref<6x64x32xbf16, #tpu.memory_space<vmem>>, vector<1x64x32xbf16>
    %467 = vector.shape_cast %466 : vector<1x64x32xbf16> to vector<64x32xbf16>
    %468 = arith.truncf %465 : vector<4x64xf32> to vector<4x64xbf16>
    %cst_191 = arith.constant dense<0.000000e+00> : vector<4x32xf32>
    %469 = tpu.matmul %468, %467, %cst_191 {dimension_numbers = #tpu.dot_dimension_numbers<[1], [0], [0], [1], [0, 0, 1, 1], [], []>} : vector<4x64xbf16>, vector<64x32xbf16>, vector<4x32xf32> -> vector<4x32xf32>
    %c2_192 = arith.constant 2 : index
    %c0_193 = arith.constant 0 : index
    %c0_194 = arith.constant 0 : index
    %470 = vector.load %arg14[%c2_192, %c0_193, %c0_194] : memref<6x1x32xbf16, #tpu.memory_space<vmem>>, vector<1x1x32xbf16>
    %471 = vector.shape_cast %470 : vector<1x1x32xbf16> to vector<1x32xbf16>
    %472 = arith.extf %471 : vector<1x32xbf16> to vector<1x32xf32>
    %473 = vector.broadcast %472 : vector<1x32xf32> to vector<4x32xf32>
    %474 = arith.addf %469, %473 : vector<4x32xf32>
    %475 = arith.addf %443, %474 : vector<4x32xf32>
    %c2_195 = arith.constant 2 : index
    %c0_196 = arith.constant 0 : index
    %c0_197 = arith.constant 0 : index
    %476 = vector.load %arg15[%c2_195, %c0_196, %c0_197] : memref<6x1x32xbf16, #tpu.memory_space<vmem>>, vector<1x1x32xbf16>
    %477 = vector.shape_cast %476 : vector<1x1x32xbf16> to vector<1x32xbf16>
    %c2_198 = arith.constant 2 : index
    %c0_199 = arith.constant 0 : index
    %c0_200 = arith.constant 0 : index
    %478 = vector.load %arg16[%c2_198, %c0_199, %c0_200] : memref<6x1x32xbf16, #tpu.memory_space<vmem>>, vector<1x1x32xbf16>
    %479 = vector.shape_cast %478 : vector<1x1x32xbf16> to vector<1x32xbf16>
    %cst_201 = arith.constant dense<0.000000e+00> : vector<4xf32>
    %480 = vector.multi_reduction <add>, %475, %cst_201 [1] : vector<4x32xf32> to vector<4xf32>
    %481 = vector.shape_cast %480 : vector<4xf32> to vector<4x1xf32>
    %cst_202 = arith.constant 3.200000e+01 : f32
    %482 = vector.broadcast %cst_202 : f32 to vector<4x1xf32>
    %483 = arith.divf %481, %482 : vector<4x1xf32>
    %484 = vector.broadcast %483 : vector<4x1xf32> to vector<4x32xf32>
    %485 = arith.subf %475, %484 : vector<4x32xf32>
    %486 = arith.mulf %485, %485 : vector<4x32xf32>
    %cst_203 = arith.constant dense<0.000000e+00> : vector<4xf32>
    %487 = vector.multi_reduction <add>, %486, %cst_203 [1] : vector<4x32xf32> to vector<4xf32>
    %488 = vector.shape_cast %487 : vector<4xf32> to vector<4x1xf32>
    %cst_204 = arith.constant 3.200000e+01 : f32
    %489 = vector.broadcast %cst_204 : f32 to vector<4x1xf32>
    %490 = arith.divf %488, %489 : vector<4x1xf32>
    %491 = vector.broadcast %483 : vector<4x1xf32> to vector<4x32xf32>
    %492 = arith.subf %475, %491 : vector<4x32xf32>
    %cst_205 = arith.constant 9.99999971E-10 : f32
    %493 = vector.broadcast %cst_205 : f32 to vector<4x1xf32>
    %494 = arith.addf %490, %493 : vector<4x1xf32>
    %495 = math.rsqrt %494 : vector<4x1xf32>
    %496 = vector.broadcast %495 : vector<4x1xf32> to vector<4x32xf32>
    %497 = arith.mulf %492, %496 : vector<4x32xf32>
    %498 = arith.extf %477 : vector<1x32xbf16> to vector<1x32xf32>
    %499 = vector.broadcast %498 : vector<1x32xf32> to vector<4x32xf32>
    %500 = arith.mulf %497, %499 : vector<4x32xf32>
    %501 = arith.extf %479 : vector<1x32xbf16> to vector<1x32xf32>
    %502 = vector.broadcast %501 : vector<1x32xf32> to vector<4x32xf32>
    %503 = arith.addf %500, %502 : vector<4x32xf32>
    %c3 = arith.constant 3 : index
    %c0_206 = arith.constant 0 : index
    %c0_207 = arith.constant 0 : index
    %504 = vector.load %arg5[%c3, %c0_206, %c0_207] : memref<6x32x96xbf16, #tpu.memory_space<vmem>>, vector<1x32x96xbf16>
    %505 = vector.shape_cast %504 : vector<1x32x96xbf16> to vector<32x96xbf16>
    %506 = arith.truncf %503 : vector<4x32xf32> to vector<4x32xbf16>
    %cst_208 = arith.constant dense<0.000000e+00> : vector<4x96xf32>
    %507 = tpu.matmul %506, %505, %cst_208 {dimension_numbers = #tpu.dot_dimension_numbers<[1], [0], [0], [1], [0, 0, 1, 1], [], []>} : vector<4x32xbf16>, vector<32x96xbf16>, vector<4x96xf32> -> vector<4x96xf32>
    %c3_209 = arith.constant 3 : index
    %c0_210 = arith.constant 0 : index
    %c0_211 = arith.constant 0 : index
    %508 = vector.load %arg6[%c3_209, %c0_210, %c0_211] : memref<6x1x96xbf16, #tpu.memory_space<vmem>>, vector<1x1x96xbf16>
    %509 = vector.shape_cast %508 : vector<1x1x96xbf16> to vector<1x96xbf16>
    %510 = arith.extf %509 : vector<1x96xbf16> to vector<1x96xf32>
    %511 = vector.broadcast %510 : vector<1x96xf32> to vector<4x96xf32>
    %512 = arith.addf %507, %511 : vector<4x96xf32>
    %513 = vector.extract_strided_slice %512 {offsets = [0, 0], sizes = [4, 32], strides = [1, 1]} : vector<4x96xf32> to vector<4x32xf32>
    %514 = vector.extract_strided_slice %512 {offsets = [0, 32], sizes = [4, 32], strides = [1, 1]} : vector<4x96xf32> to vector<4x32xf32>
    %515 = vector.extract_strided_slice %512 {offsets = [0, 64], sizes = [4, 32], strides = [1, 1]} : vector<4x96xf32> to vector<4x32xf32>
    %cst_212 = arith.constant 2.500000e-01 : f32
    %516 = vector.broadcast %cst_212 : f32 to vector<4x32xf32>
    %517 = arith.mulf %513, %516 : vector<4x32xf32>
    %518 = vector.shape_cast %350 : vector<1x4xf32> to vector<1x4xf32>
    %519 = vector.broadcast %518 : vector<1x4xf32> to vector<4x4xf32>
    %520 = arith.truncf %517 : vector<4x32xf32> to vector<4x32xbf16>
    %521 = arith.truncf %514 : vector<4x32xf32> to vector<4x32xbf16>
    %522 = arith.truncf %515 : vector<4x32xf32> to vector<4x32xbf16>
    %523 = vector.extract_strided_slice %520 {offsets = [0, 0], sizes = [4, 16], strides = [1, 1]} : vector<4x32xbf16> to vector<4x16xbf16>
    %524 = vector.extract_strided_slice %521 {offsets = [0, 0], sizes = [4, 16], strides = [1, 1]} : vector<4x32xbf16> to vector<4x16xbf16>
    %cst_213 = arith.constant dense<0.000000e+00> : vector<4x4xf32>
    %525 = tpu.matmul %523, %524, %cst_213 {dimension_numbers = #tpu.dot_dimension_numbers<[1], [1], [0], [0], [0, 0, 1, 0], [], []>} : vector<4x16xbf16>, vector<4x16xbf16>, vector<4x4xf32> -> vector<4x4xf32>
    %526 = arith.addf %525, %519 : vector<4x4xf32>
    %cst_214 = arith.constant dense<0xFF800000> : vector<4xf32>
    %527 = vector.multi_reduction <maximumf>, %526, %cst_214 [1] : vector<4x4xf32> to vector<4xf32>
    %528 = vector.shape_cast %527 : vector<4xf32> to vector<4x1xf32>
    %529 = vector.broadcast %528 : vector<4x1xf32> to vector<4x4xf32>
    %530 = arith.subf %526, %529 : vector<4x4xf32>
    %531 = math.exp %530 : vector<4x4xf32>
    %cst_215 = arith.constant dense<0.000000e+00> : vector<4xf32>
    %532 = vector.multi_reduction <add>, %531, %cst_215 [1] : vector<4x4xf32> to vector<4xf32>
    %533 = vector.shape_cast %532 : vector<4xf32> to vector<4x1xf32>
    %534 = tpu.reciprocal %533 {approx = true} : vector<4x1xf32> -> vector<4x1xf32>
    %535 = vector.broadcast %534 : vector<4x1xf32> to vector<4x4xf32>
    %536 = arith.mulf %531, %535 : vector<4x4xf32>
    %537 = arith.truncf %536 : vector<4x4xf32> to vector<4x4xbf16>
    %538 = vector.extract_strided_slice %522 {offsets = [0, 0], sizes = [4, 16], strides = [1, 1]} : vector<4x32xbf16> to vector<4x16xbf16>
    %cst_216 = arith.constant dense<0.000000e+00> : vector<4x16xf32>
    %539 = tpu.matmul %537, %538, %cst_216 {dimension_numbers = #tpu.dot_dimension_numbers<[1], [0], [0], [1], [0, 0, 1, 1], [], []>} : vector<4x4xbf16>, vector<4x16xbf16>, vector<4x16xf32> -> vector<4x16xf32>
    %540 = vector.extract_strided_slice %520 {offsets = [0, 16], sizes = [4, 16], strides = [1, 1]} : vector<4x32xbf16> to vector<4x16xbf16>
    %541 = vector.extract_strided_slice %521 {offsets = [0, 16], sizes = [4, 16], strides = [1, 1]} : vector<4x32xbf16> to vector<4x16xbf16>
    %cst_217 = arith.constant dense<0.000000e+00> : vector<4x4xf32>
    %542 = tpu.matmul %540, %541, %cst_217 {dimension_numbers = #tpu.dot_dimension_numbers<[1], [1], [0], [0], [0, 0, 1, 0], [], []>} : vector<4x16xbf16>, vector<4x16xbf16>, vector<4x4xf32> -> vector<4x4xf32>
    %543 = arith.addf %542, %519 : vector<4x4xf32>
    %cst_218 = arith.constant dense<0xFF800000> : vector<4xf32>
    %544 = vector.multi_reduction <maximumf>, %543, %cst_218 [1] : vector<4x4xf32> to vector<4xf32>
    %545 = vector.shape_cast %544 : vector<4xf32> to vector<4x1xf32>
    %546 = vector.broadcast %545 : vector<4x1xf32> to vector<4x4xf32>
    %547 = arith.subf %543, %546 : vector<4x4xf32>
    %548 = math.exp %547 : vector<4x4xf32>
    %cst_219 = arith.constant dense<0.000000e+00> : vector<4xf32>
    %549 = vector.multi_reduction <add>, %548, %cst_219 [1] : vector<4x4xf32> to vector<4xf32>
    %550 = vector.shape_cast %549 : vector<4xf32> to vector<4x1xf32>
    %551 = tpu.reciprocal %550 {approx = true} : vector<4x1xf32> -> vector<4x1xf32>
    %552 = vector.broadcast %551 : vector<4x1xf32> to vector<4x4xf32>
    %553 = arith.mulf %548, %552 : vector<4x4xf32>
    %554 = arith.truncf %553 : vector<4x4xf32> to vector<4x4xbf16>
    %555 = vector.extract_strided_slice %522 {offsets = [0, 16], sizes = [4, 16], strides = [1, 1]} : vector<4x32xbf16> to vector<4x16xbf16>
    %cst_220 = arith.constant dense<0.000000e+00> : vector<4x16xf32>
    %556 = tpu.matmul %554, %555, %cst_220 {dimension_numbers = #tpu.dot_dimension_numbers<[1], [0], [0], [1], [0, 0, 1, 1], [], []>} : vector<4x4xbf16>, vector<4x16xbf16>, vector<4x16xf32> -> vector<4x16xf32>
    %557 = tpu.concatenate %539, %556 in 1 : vector<4x16xf32>, vector<4x16xf32> -> vector<4x32xf32>
    %c3_221 = arith.constant 3 : index
    %c0_222 = arith.constant 0 : index
    %c0_223 = arith.constant 0 : index
    %558 = vector.load %arg7[%c3_221, %c0_222, %c0_223] : memref<6x32x32xbf16, #tpu.memory_space<vmem>>, vector<1x32x32xbf16>
    %559 = vector.shape_cast %558 : vector<1x32x32xbf16> to vector<32x32xbf16>
    %560 = arith.truncf %557 : vector<4x32xf32> to vector<4x32xbf16>
    %cst_224 = arith.constant dense<0.000000e+00> : vector<4x32xf32>
    %561 = tpu.matmul %560, %559, %cst_224 {dimension_numbers = #tpu.dot_dimension_numbers<[1], [0], [0], [1], [0, 0, 1, 1], [], []>} : vector<4x32xbf16>, vector<32x32xbf16>, vector<4x32xf32> -> vector<4x32xf32>
    %c3_225 = arith.constant 3 : index
    %c0_226 = arith.constant 0 : index
    %c0_227 = arith.constant 0 : index
    %562 = vector.load %arg8[%c3_225, %c0_226, %c0_227] : memref<6x1x32xbf16, #tpu.memory_space<vmem>>, vector<1x1x32xbf16>
    %563 = vector.shape_cast %562 : vector<1x1x32xbf16> to vector<1x32xbf16>
    %564 = arith.extf %563 : vector<1x32xbf16> to vector<1x32xf32>
    %565 = vector.broadcast %564 : vector<1x32xf32> to vector<4x32xf32>
    %566 = arith.addf %561, %565 : vector<4x32xf32>
    %567 = arith.addf %503, %566 : vector<4x32xf32>
    %c3_228 = arith.constant 3 : index
    %c0_229 = arith.constant 0 : index
    %c0_230 = arith.constant 0 : index
    %568 = vector.load %arg9[%c3_228, %c0_229, %c0_230] : memref<6x1x32xbf16, #tpu.memory_space<vmem>>, vector<1x1x32xbf16>
    %569 = vector.shape_cast %568 : vector<1x1x32xbf16> to vector<1x32xbf16>
    %c3_231 = arith.constant 3 : index
    %c0_232 = arith.constant 0 : index
    %c0_233 = arith.constant 0 : index
    %570 = vector.load %arg10[%c3_231, %c0_232, %c0_233] : memref<6x1x32xbf16, #tpu.memory_space<vmem>>, vector<1x1x32xbf16>
    %571 = vector.shape_cast %570 : vector<1x1x32xbf16> to vector<1x32xbf16>
    %cst_234 = arith.constant dense<0.000000e+00> : vector<4xf32>
    %572 = vector.multi_reduction <add>, %567, %cst_234 [1] : vector<4x32xf32> to vector<4xf32>
    %573 = vector.shape_cast %572 : vector<4xf32> to vector<4x1xf32>
    %cst_235 = arith.constant 3.200000e+01 : f32
    %574 = vector.broadcast %cst_235 : f32 to vector<4x1xf32>
    %575 = arith.divf %573, %574 : vector<4x1xf32>
    %576 = vector.broadcast %575 : vector<4x1xf32> to vector<4x32xf32>
    %577 = arith.subf %567, %576 : vector<4x32xf32>
    %578 = arith.mulf %577, %577 : vector<4x32xf32>
    %cst_236 = arith.constant dense<0.000000e+00> : vector<4xf32>
    %579 = vector.multi_reduction <add>, %578, %cst_236 [1] : vector<4x32xf32> to vector<4xf32>
    %580 = vector.shape_cast %579 : vector<4xf32> to vector<4x1xf32>
    %cst_237 = arith.constant 3.200000e+01 : f32
    %581 = vector.broadcast %cst_237 : f32 to vector<4x1xf32>
    %582 = arith.divf %580, %581 : vector<4x1xf32>
    %583 = vector.broadcast %575 : vector<4x1xf32> to vector<4x32xf32>
    %584 = arith.subf %567, %583 : vector<4x32xf32>
    %cst_238 = arith.constant 9.99999971E-10 : f32
    %585 = vector.broadcast %cst_238 : f32 to vector<4x1xf32>
    %586 = arith.addf %582, %585 : vector<4x1xf32>
    %587 = math.rsqrt %586 : vector<4x1xf32>
    %588 = vector.broadcast %587 : vector<4x1xf32> to vector<4x32xf32>
    %589 = arith.mulf %584, %588 : vector<4x32xf32>
    %590 = arith.extf %569 : vector<1x32xbf16> to vector<1x32xf32>
    %591 = vector.broadcast %590 : vector<1x32xf32> to vector<4x32xf32>
    %592 = arith.mulf %589, %591 : vector<4x32xf32>
    %593 = arith.extf %571 : vector<1x32xbf16> to vector<1x32xf32>
    %594 = vector.broadcast %593 : vector<1x32xf32> to vector<4x32xf32>
    %595 = arith.addf %592, %594 : vector<4x32xf32>
    %c3_239 = arith.constant 3 : index
    %c0_240 = arith.constant 0 : index
    %c0_241 = arith.constant 0 : index
    %596 = vector.load %arg11[%c3_239, %c0_240, %c0_241] : memref<6x32x64xbf16, #tpu.memory_space<vmem>>, vector<1x32x64xbf16>
    %597 = vector.shape_cast %596 : vector<1x32x64xbf16> to vector<32x64xbf16>
    %598 = arith.truncf %595 : vector<4x32xf32> to vector<4x32xbf16>
    %cst_242 = arith.constant dense<0.000000e+00> : vector<4x64xf32>
    %599 = tpu.matmul %598, %597, %cst_242 {dimension_numbers = #tpu.dot_dimension_numbers<[1], [0], [0], [1], [0, 0, 1, 1], [], []>} : vector<4x32xbf16>, vector<32x64xbf16>, vector<4x64xf32> -> vector<4x64xf32>
    %c3_243 = arith.constant 3 : index
    %c0_244 = arith.constant 0 : index
    %c0_245 = arith.constant 0 : index
    %600 = vector.load %arg12[%c3_243, %c0_244, %c0_245] : memref<6x1x64xbf16, #tpu.memory_space<vmem>>, vector<1x1x64xbf16>
    %601 = vector.shape_cast %600 : vector<1x1x64xbf16> to vector<1x64xbf16>
    %602 = arith.extf %601 : vector<1x64xbf16> to vector<1x64xf32>
    %603 = vector.broadcast %602 : vector<1x64xf32> to vector<4x64xf32>
    %604 = arith.addf %599, %603 : vector<4x64xf32>
    %cst_246 = arith.constant 5.000000e-01 : f32
    %605 = vector.broadcast %cst_246 : f32 to vector<4x64xf32>
    %606 = arith.mulf %605, %604 : vector<4x64xf32>
    %cst_247 = arith.constant 4.471500e-02 : f32
    %607 = vector.broadcast %cst_247 : f32 to vector<4x64xf32>
    %608 = arith.mulf %607, %604 : vector<4x64xf32>
    %609 = arith.mulf %608, %604 : vector<4x64xf32>
    %610 = arith.mulf %609, %604 : vector<4x64xf32>
    %611 = arith.addf %604, %610 : vector<4x64xf32>
    %cst_248 = arith.constant 0.797884583 : f32
    %612 = vector.broadcast %cst_248 : f32 to vector<4x64xf32>
    %613 = arith.mulf %612, %611 : vector<4x64xf32>
    %614 = math.tanh %613 : vector<4x64xf32>
    %cst_249 = arith.constant 1.000000e+00 : f32
    %615 = vector.broadcast %cst_249 : f32 to vector<4x64xf32>
    %616 = arith.addf %615, %614 : vector<4x64xf32>
    %617 = arith.mulf %606, %616 : vector<4x64xf32>
    %c3_250 = arith.constant 3 : index
    %c0_251 = arith.constant 0 : index
    %c0_252 = arith.constant 0 : index
    %618 = vector.load %arg13[%c3_250, %c0_251, %c0_252] : memref<6x64x32xbf16, #tpu.memory_space<vmem>>, vector<1x64x32xbf16>
    %619 = vector.shape_cast %618 : vector<1x64x32xbf16> to vector<64x32xbf16>
    %620 = arith.truncf %617 : vector<4x64xf32> to vector<4x64xbf16>
    %cst_253 = arith.constant dense<0.000000e+00> : vector<4x32xf32>
    %621 = tpu.matmul %620, %619, %cst_253 {dimension_numbers = #tpu.dot_dimension_numbers<[1], [0], [0], [1], [0, 0, 1, 1], [], []>} : vector<4x64xbf16>, vector<64x32xbf16>, vector<4x32xf32> -> vector<4x32xf32>
    %c3_254 = arith.constant 3 : index
    %c0_255 = arith.constant 0 : index
    %c0_256 = arith.constant 0 : index
    %622 = vector.load %arg14[%c3_254, %c0_255, %c0_256] : memref<6x1x32xbf16, #tpu.memory_space<vmem>>, vector<1x1x32xbf16>
    %623 = vector.shape_cast %622 : vector<1x1x32xbf16> to vector<1x32xbf16>
    %624 = arith.extf %623 : vector<1x32xbf16> to vector<1x32xf32>
    %625 = vector.broadcast %624 : vector<1x32xf32> to vector<4x32xf32>
    %626 = arith.addf %621, %625 : vector<4x32xf32>
    %627 = arith.addf %595, %626 : vector<4x32xf32>
    %c3_257 = arith.constant 3 : index
    %c0_258 = arith.constant 0 : index
    %c0_259 = arith.constant 0 : index
    %628 = vector.load %arg15[%c3_257, %c0_258, %c0_259] : memref<6x1x32xbf16, #tpu.memory_space<vmem>>, vector<1x1x32xbf16>
    %629 = vector.shape_cast %628 : vector<1x1x32xbf16> to vector<1x32xbf16>
    %c3_260 = arith.constant 3 : index
    %c0_261 = arith.constant 0 : index
    %c0_262 = arith.constant 0 : index
    %630 = vector.load %arg16[%c3_260, %c0_261, %c0_262] : memref<6x1x32xbf16, #tpu.memory_space<vmem>>, vector<1x1x32xbf16>
    %631 = vector.shape_cast %630 : vector<1x1x32xbf16> to vector<1x32xbf16>
    %cst_263 = arith.constant dense<0.000000e+00> : vector<4xf32>
    %632 = vector.multi_reduction <add>, %627, %cst_263 [1] : vector<4x32xf32> to vector<4xf32>
    %633 = vector.shape_cast %632 : vector<4xf32> to vector<4x1xf32>
    %cst_264 = arith.constant 3.200000e+01 : f32
    %634 = vector.broadcast %cst_264 : f32 to vector<4x1xf32>
    %635 = arith.divf %633, %634 : vector<4x1xf32>
    %636 = vector.broadcast %635 : vector<4x1xf32> to vector<4x32xf32>
    %637 = arith.subf %627, %636 : vector<4x32xf32>
    %638 = arith.mulf %637, %637 : vector<4x32xf32>
    %cst_265 = arith.constant dense<0.000000e+00> : vector<4xf32>
    %639 = vector.multi_reduction <add>, %638, %cst_265 [1] : vector<4x32xf32> to vector<4xf32>
    %640 = vector.shape_cast %639 : vector<4xf32> to vector<4x1xf32>
    %cst_266 = arith.constant 3.200000e+01 : f32
    %641 = vector.broadcast %cst_266 : f32 to vector<4x1xf32>
    %642 = arith.divf %640, %641 : vector<4x1xf32>
    %643 = vector.broadcast %635 : vector<4x1xf32> to vector<4x32xf32>
    %644 = arith.subf %627, %643 : vector<4x32xf32>
    %cst_267 = arith.constant 9.99999971E-10 : f32
    %645 = vector.broadcast %cst_267 : f32 to vector<4x1xf32>
    %646 = arith.addf %642, %645 : vector<4x1xf32>
    %647 = math.rsqrt %646 : vector<4x1xf32>
    %648 = vector.broadcast %647 : vector<4x1xf32> to vector<4x32xf32>
    %649 = arith.mulf %644, %648 : vector<4x32xf32>
    %650 = arith.extf %629 : vector<1x32xbf16> to vector<1x32xf32>
    %651 = vector.broadcast %650 : vector<1x32xf32> to vector<4x32xf32>
    %652 = arith.mulf %649, %651 : vector<4x32xf32>
    %653 = arith.extf %631 : vector<1x32xbf16> to vector<1x32xf32>
    %654 = vector.broadcast %653 : vector<1x32xf32> to vector<4x32xf32>
    %655 = arith.addf %652, %654 : vector<4x32xf32>
    %656 = tpu.iota {dimensions = array<i32: 0>} : vector<8x4xi32>
    %657 = tpu.iota {dimensions = array<i32: 1>} : vector<8x4xi32>
    %c2_i32_268 = arith.constant 2 : i32
    %658 = vector.broadcast %c2_i32_268 : i32 to vector<8x4xi32>
    %659 = arith.muli %658, %657 : vector<8x4xi32>
    %660 = arith.cmpi sge, %656, %659 : vector<8x4xi32>
    %c1_i32_269 = arith.constant 1 : i32
    %661 = vector.broadcast %c1_i32_269 : i32 to vector<8x4xi32>
    %662 = arith.addi %657, %661 : vector<8x4xi32>
    %c2_i32_270 = arith.constant 2 : i32
    %663 = vector.broadcast %c2_i32_270 : i32 to vector<8x4xi32>
    %664 = arith.muli %663, %662 : vector<8x4xi32>
    %665 = arith.cmpi slt, %656, %664 : vector<8x4xi32>
    %666 = arith.andi %660, %665 : vector<8x4xi1>
    %cst_271 = arith.constant 1.000000e+00 : f32
    %cst_272 = arith.constant 0.000000e+00 : f32
    %667 = vector.broadcast %cst_271 : f32 to vector<8x4xf32>
    %668 = vector.broadcast %cst_272 : f32 to vector<8x4xf32>
    %669 = arith.select %666, %667, %668 : vector<8x4xi1>, vector<8x4xf32>
    %cst_273 = arith.constant dense<0.000000e+00> : vector<8x32xf32>
    %670 = tpu.matmul %669, %655, %cst_273 {dimension_numbers = #tpu.dot_dimension_numbers<[1], [0], [0], [1], [0, 0, 1, 1], [], []>} : vector<8x4xf32>, vector<4x32xf32>, vector<8x32xf32> -> vector<8x32xf32>
    %671 = arith.addf %670, %334 : vector<8x32xf32>
    %c4 = arith.constant 4 : index
    %c0_274 = arith.constant 0 : index
    %c0_275 = arith.constant 0 : index
    %672 = vector.load %arg5[%c4, %c0_274, %c0_275] : memref<6x32x96xbf16, #tpu.memory_space<vmem>>, vector<1x32x96xbf16>
    %673 = vector.shape_cast %672 : vector<1x32x96xbf16> to vector<32x96xbf16>
    %674 = arith.truncf %671 : vector<8x32xf32> to vector<8x32xbf16>
    %cst_276 = arith.constant dense<0.000000e+00> : vector<8x96xf32>
    %675 = tpu.matmul %674, %673, %cst_276 {dimension_numbers = #tpu.dot_dimension_numbers<[1], [0], [0], [1], [0, 0, 1, 1], [], []>} : vector<8x32xbf16>, vector<32x96xbf16>, vector<8x96xf32> -> vector<8x96xf32>
    %c4_277 = arith.constant 4 : index
    %c0_278 = arith.constant 0 : index
    %c0_279 = arith.constant 0 : index
    %676 = vector.load %arg6[%c4_277, %c0_278, %c0_279] : memref<6x1x96xbf16, #tpu.memory_space<vmem>>, vector<1x1x96xbf16>
    %677 = vector.shape_cast %676 : vector<1x1x96xbf16> to vector<1x96xbf16>
    %678 = arith.extf %677 : vector<1x96xbf16> to vector<1x96xf32>
    %679 = vector.broadcast %678 : vector<1x96xf32> to vector<8x96xf32>
    %680 = arith.addf %675, %679 : vector<8x96xf32>
    %681 = vector.extract_strided_slice %680 {offsets = [0, 0], sizes = [8, 32], strides = [1, 1]} : vector<8x96xf32> to vector<8x32xf32>
    %682 = vector.extract_strided_slice %680 {offsets = [0, 32], sizes = [8, 32], strides = [1, 1]} : vector<8x96xf32> to vector<8x32xf32>
    %683 = vector.extract_strided_slice %680 {offsets = [0, 64], sizes = [8, 32], strides = [1, 1]} : vector<8x96xf32> to vector<8x32xf32>
    %cst_280 = arith.constant 2.500000e-01 : f32
    %684 = vector.broadcast %cst_280 : f32 to vector<8x32xf32>
    %685 = arith.mulf %681, %684 : vector<8x32xf32>
    %686 = vector.shape_cast %30 : vector<1x8xf32> to vector<1x8xf32>
    %687 = vector.broadcast %686 : vector<1x8xf32> to vector<8x8xf32>
    %688 = arith.truncf %685 : vector<8x32xf32> to vector<8x32xbf16>
    %689 = arith.truncf %682 : vector<8x32xf32> to vector<8x32xbf16>
    %690 = arith.truncf %683 : vector<8x32xf32> to vector<8x32xbf16>
    %691 = vector.extract_strided_slice %688 {offsets = [0, 0], sizes = [8, 16], strides = [1, 1]} : vector<8x32xbf16> to vector<8x16xbf16>
    %692 = vector.extract_strided_slice %689 {offsets = [0, 0], sizes = [8, 16], strides = [1, 1]} : vector<8x32xbf16> to vector<8x16xbf16>
    %cst_281 = arith.constant dense<0.000000e+00> : vector<8x8xf32>
    %693 = tpu.matmul %691, %692, %cst_281 {dimension_numbers = #tpu.dot_dimension_numbers<[1], [1], [0], [0], [0, 0, 1, 0], [], []>} : vector<8x16xbf16>, vector<8x16xbf16>, vector<8x8xf32> -> vector<8x8xf32>
    %694 = arith.addf %693, %687 : vector<8x8xf32>
    %cst_282 = arith.constant dense<0xFF800000> : vector<8xf32>
    %695 = vector.multi_reduction <maximumf>, %694, %cst_282 [1] : vector<8x8xf32> to vector<8xf32>
    %696 = vector.shape_cast %695 : vector<8xf32> to vector<8x1xf32>
    %697 = vector.broadcast %696 : vector<8x1xf32> to vector<8x8xf32>
    %698 = arith.subf %694, %697 : vector<8x8xf32>
    %699 = math.exp %698 : vector<8x8xf32>
    %cst_283 = arith.constant dense<0.000000e+00> : vector<8xf32>
    %700 = vector.multi_reduction <add>, %699, %cst_283 [1] : vector<8x8xf32> to vector<8xf32>
    %701 = vector.shape_cast %700 : vector<8xf32> to vector<8x1xf32>
    %702 = tpu.reciprocal %701 {approx = true} : vector<8x1xf32> -> vector<8x1xf32>
    %703 = vector.broadcast %702 : vector<8x1xf32> to vector<8x8xf32>
    %704 = arith.mulf %699, %703 : vector<8x8xf32>
    %705 = arith.truncf %704 : vector<8x8xf32> to vector<8x8xbf16>
    %706 = vector.extract_strided_slice %690 {offsets = [0, 0], sizes = [8, 16], strides = [1, 1]} : vector<8x32xbf16> to vector<8x16xbf16>
    %cst_284 = arith.constant dense<0.000000e+00> : vector<8x16xf32>
    %707 = tpu.matmul %705, %706, %cst_284 {dimension_numbers = #tpu.dot_dimension_numbers<[1], [0], [0], [1], [0, 0, 1, 1], [], []>} : vector<8x8xbf16>, vector<8x16xbf16>, vector<8x16xf32> -> vector<8x16xf32>
    %708 = vector.extract_strided_slice %688 {offsets = [0, 16], sizes = [8, 16], strides = [1, 1]} : vector<8x32xbf16> to vector<8x16xbf16>
    %709 = vector.extract_strided_slice %689 {offsets = [0, 16], sizes = [8, 16], strides = [1, 1]} : vector<8x32xbf16> to vector<8x16xbf16>
    %cst_285 = arith.constant dense<0.000000e+00> : vector<8x8xf32>
    %710 = tpu.matmul %708, %709, %cst_285 {dimension_numbers = #tpu.dot_dimension_numbers<[1], [1], [0], [0], [0, 0, 1, 0], [], []>} : vector<8x16xbf16>, vector<8x16xbf16>, vector<8x8xf32> -> vector<8x8xf32>
    %711 = arith.addf %710, %687 : vector<8x8xf32>
    %cst_286 = arith.constant dense<0xFF800000> : vector<8xf32>
    %712 = vector.multi_reduction <maximumf>, %711, %cst_286 [1] : vector<8x8xf32> to vector<8xf32>
    %713 = vector.shape_cast %712 : vector<8xf32> to vector<8x1xf32>
    %714 = vector.broadcast %713 : vector<8x1xf32> to vector<8x8xf32>
    %715 = arith.subf %711, %714 : vector<8x8xf32>
    %716 = math.exp %715 : vector<8x8xf32>
    %cst_287 = arith.constant dense<0.000000e+00> : vector<8xf32>
    %717 = vector.multi_reduction <add>, %716, %cst_287 [1] : vector<8x8xf32> to vector<8xf32>
    %718 = vector.shape_cast %717 : vector<8xf32> to vector<8x1xf32>
    %719 = tpu.reciprocal %718 {approx = true} : vector<8x1xf32> -> vector<8x1xf32>
    %720 = vector.broadcast %719 : vector<8x1xf32> to vector<8x8xf32>
    %721 = arith.mulf %716, %720 : vector<8x8xf32>
    %722 = arith.truncf %721 : vector<8x8xf32> to vector<8x8xbf16>
    %723 = vector.extract_strided_slice %690 {offsets = [0, 16], sizes = [8, 16], strides = [1, 1]} : vector<8x32xbf16> to vector<8x16xbf16>
    %cst_288 = arith.constant dense<0.000000e+00> : vector<8x16xf32>
    %724 = tpu.matmul %722, %723, %cst_288 {dimension_numbers = #tpu.dot_dimension_numbers<[1], [0], [0], [1], [0, 0, 1, 1], [], []>} : vector<8x8xbf16>, vector<8x16xbf16>, vector<8x16xf32> -> vector<8x16xf32>
    %725 = tpu.concatenate %707, %724 in 1 : vector<8x16xf32>, vector<8x16xf32> -> vector<8x32xf32>
    %c4_289 = arith.constant 4 : index
    %c0_290 = arith.constant 0 : index
    %c0_291 = arith.constant 0 : index
    %726 = vector.load %arg7[%c4_289, %c0_290, %c0_291] : memref<6x32x32xbf16, #tpu.memory_space<vmem>>, vector<1x32x32xbf16>
    %727 = vector.shape_cast %726 : vector<1x32x32xbf16> to vector<32x32xbf16>
    %728 = arith.truncf %725 : vector<8x32xf32> to vector<8x32xbf16>
    %cst_292 = arith.constant dense<0.000000e+00> : vector<8x32xf32>
    %729 = tpu.matmul %728, %727, %cst_292 {dimension_numbers = #tpu.dot_dimension_numbers<[1], [0], [0], [1], [0, 0, 1, 1], [], []>} : vector<8x32xbf16>, vector<32x32xbf16>, vector<8x32xf32> -> vector<8x32xf32>
    %c4_293 = arith.constant 4 : index
    %c0_294 = arith.constant 0 : index
    %c0_295 = arith.constant 0 : index
    %730 = vector.load %arg8[%c4_293, %c0_294, %c0_295] : memref<6x1x32xbf16, #tpu.memory_space<vmem>>, vector<1x1x32xbf16>
    %731 = vector.shape_cast %730 : vector<1x1x32xbf16> to vector<1x32xbf16>
    %732 = arith.extf %731 : vector<1x32xbf16> to vector<1x32xf32>
    %733 = vector.broadcast %732 : vector<1x32xf32> to vector<8x32xf32>
    %734 = arith.addf %729, %733 : vector<8x32xf32>
    %735 = arith.addf %671, %734 : vector<8x32xf32>
    %c4_296 = arith.constant 4 : index
    %c0_297 = arith.constant 0 : index
    %c0_298 = arith.constant 0 : index
    %736 = vector.load %arg9[%c4_296, %c0_297, %c0_298] : memref<6x1x32xbf16, #tpu.memory_space<vmem>>, vector<1x1x32xbf16>
    %737 = vector.shape_cast %736 : vector<1x1x32xbf16> to vector<1x32xbf16>
    %c4_299 = arith.constant 4 : index
    %c0_300 = arith.constant 0 : index
    %c0_301 = arith.constant 0 : index
    %738 = vector.load %arg10[%c4_299, %c0_300, %c0_301] : memref<6x1x32xbf16, #tpu.memory_space<vmem>>, vector<1x1x32xbf16>
    %739 = vector.shape_cast %738 : vector<1x1x32xbf16> to vector<1x32xbf16>
    %cst_302 = arith.constant dense<0.000000e+00> : vector<8xf32>
    %740 = vector.multi_reduction <add>, %735, %cst_302 [1] : vector<8x32xf32> to vector<8xf32>
    %741 = vector.shape_cast %740 : vector<8xf32> to vector<8x1xf32>
    %cst_303 = arith.constant 3.200000e+01 : f32
    %742 = vector.broadcast %cst_303 : f32 to vector<8x1xf32>
    %743 = arith.divf %741, %742 : vector<8x1xf32>
    %744 = vector.broadcast %743 : vector<8x1xf32> to vector<8x32xf32>
    %745 = arith.subf %735, %744 : vector<8x32xf32>
    %746 = arith.mulf %745, %745 : vector<8x32xf32>
    %cst_304 = arith.constant dense<0.000000e+00> : vector<8xf32>
    %747 = vector.multi_reduction <add>, %746, %cst_304 [1] : vector<8x32xf32> to vector<8xf32>
    %748 = vector.shape_cast %747 : vector<8xf32> to vector<8x1xf32>
    %cst_305 = arith.constant 3.200000e+01 : f32
    %749 = vector.broadcast %cst_305 : f32 to vector<8x1xf32>
    %750 = arith.divf %748, %749 : vector<8x1xf32>
    %751 = vector.broadcast %743 : vector<8x1xf32> to vector<8x32xf32>
    %752 = arith.subf %735, %751 : vector<8x32xf32>
    %cst_306 = arith.constant 9.99999971E-10 : f32
    %753 = vector.broadcast %cst_306 : f32 to vector<8x1xf32>
    %754 = arith.addf %750, %753 : vector<8x1xf32>
    %755 = math.rsqrt %754 : vector<8x1xf32>
    %756 = vector.broadcast %755 : vector<8x1xf32> to vector<8x32xf32>
    %757 = arith.mulf %752, %756 : vector<8x32xf32>
    %758 = arith.extf %737 : vector<1x32xbf16> to vector<1x32xf32>
    %759 = vector.broadcast %758 : vector<1x32xf32> to vector<8x32xf32>
    %760 = arith.mulf %757, %759 : vector<8x32xf32>
    %761 = arith.extf %739 : vector<1x32xbf16> to vector<1x32xf32>
    %762 = vector.broadcast %761 : vector<1x32xf32> to vector<8x32xf32>
    %763 = arith.addf %760, %762 : vector<8x32xf32>
    %c4_307 = arith.constant 4 : index
    %c0_308 = arith.constant 0 : index
    %c0_309 = arith.constant 0 : index
    %764 = vector.load %arg11[%c4_307, %c0_308, %c0_309] : memref<6x32x64xbf16, #tpu.memory_space<vmem>>, vector<1x32x64xbf16>
    %765 = vector.shape_cast %764 : vector<1x32x64xbf16> to vector<32x64xbf16>
    %766 = arith.truncf %763 : vector<8x32xf32> to vector<8x32xbf16>
    %cst_310 = arith.constant dense<0.000000e+00> : vector<8x64xf32>
    %767 = tpu.matmul %766, %765, %cst_310 {dimension_numbers = #tpu.dot_dimension_numbers<[1], [0], [0], [1], [0, 0, 1, 1], [], []>} : vector<8x32xbf16>, vector<32x64xbf16>, vector<8x64xf32> -> vector<8x64xf32>
    %c4_311 = arith.constant 4 : index
    %c0_312 = arith.constant 0 : index
    %c0_313 = arith.constant 0 : index
    %768 = vector.load %arg12[%c4_311, %c0_312, %c0_313] : memref<6x1x64xbf16, #tpu.memory_space<vmem>>, vector<1x1x64xbf16>
    %769 = vector.shape_cast %768 : vector<1x1x64xbf16> to vector<1x64xbf16>
    %770 = arith.extf %769 : vector<1x64xbf16> to vector<1x64xf32>
    %771 = vector.broadcast %770 : vector<1x64xf32> to vector<8x64xf32>
    %772 = arith.addf %767, %771 : vector<8x64xf32>
    %cst_314 = arith.constant 5.000000e-01 : f32
    %773 = vector.broadcast %cst_314 : f32 to vector<8x64xf32>
    %774 = arith.mulf %773, %772 : vector<8x64xf32>
    %cst_315 = arith.constant 4.471500e-02 : f32
    %775 = vector.broadcast %cst_315 : f32 to vector<8x64xf32>
    %776 = arith.mulf %775, %772 : vector<8x64xf32>
    %777 = arith.mulf %776, %772 : vector<8x64xf32>
    %778 = arith.mulf %777, %772 : vector<8x64xf32>
    %779 = arith.addf %772, %778 : vector<8x64xf32>
    %cst_316 = arith.constant 0.797884583 : f32
    %780 = vector.broadcast %cst_316 : f32 to vector<8x64xf32>
    %781 = arith.mulf %780, %779 : vector<8x64xf32>
    %782 = math.tanh %781 : vector<8x64xf32>
    %cst_317 = arith.constant 1.000000e+00 : f32
    %783 = vector.broadcast %cst_317 : f32 to vector<8x64xf32>
    %784 = arith.addf %783, %782 : vector<8x64xf32>
    %785 = arith.mulf %774, %784 : vector<8x64xf32>
    %c4_318 = arith.constant 4 : index
    %c0_319 = arith.constant 0 : index
    %c0_320 = arith.constant 0 : index
    %786 = vector.load %arg13[%c4_318, %c0_319, %c0_320] : memref<6x64x32xbf16, #tpu.memory_space<vmem>>, vector<1x64x32xbf16>
    %787 = vector.shape_cast %786 : vector<1x64x32xbf16> to vector<64x32xbf16>
    %788 = arith.truncf %785 : vector<8x64xf32> to vector<8x64xbf16>
    %cst_321 = arith.constant dense<0.000000e+00> : vector<8x32xf32>
    %789 = tpu.matmul %788, %787, %cst_321 {dimension_numbers = #tpu.dot_dimension_numbers<[1], [0], [0], [1], [0, 0, 1, 1], [], []>} : vector<8x64xbf16>, vector<64x32xbf16>, vector<8x32xf32> -> vector<8x32xf32>
    %c4_322 = arith.constant 4 : index
    %c0_323 = arith.constant 0 : index
    %c0_324 = arith.constant 0 : index
    %790 = vector.load %arg14[%c4_322, %c0_323, %c0_324] : memref<6x1x32xbf16, #tpu.memory_space<vmem>>, vector<1x1x32xbf16>
    %791 = vector.shape_cast %790 : vector<1x1x32xbf16> to vector<1x32xbf16>
    %792 = arith.extf %791 : vector<1x32xbf16> to vector<1x32xf32>
    %793 = vector.broadcast %792 : vector<1x32xf32> to vector<8x32xf32>
    %794 = arith.addf %789, %793 : vector<8x32xf32>
    %795 = arith.addf %763, %794 : vector<8x32xf32>
    %c4_325 = arith.constant 4 : index
    %c0_326 = arith.constant 0 : index
    %c0_327 = arith.constant 0 : index
    %796 = vector.load %arg15[%c4_325, %c0_326, %c0_327] : memref<6x1x32xbf16, #tpu.memory_space<vmem>>, vector<1x1x32xbf16>
    %797 = vector.shape_cast %796 : vector<1x1x32xbf16> to vector<1x32xbf16>
    %c4_328 = arith.constant 4 : index
    %c0_329 = arith.constant 0 : index
    %c0_330 = arith.constant 0 : index
    %798 = vector.load %arg16[%c4_328, %c0_329, %c0_330] : memref<6x1x32xbf16, #tpu.memory_space<vmem>>, vector<1x1x32xbf16>
    %799 = vector.shape_cast %798 : vector<1x1x32xbf16> to vector<1x32xbf16>
    %cst_331 = arith.constant dense<0.000000e+00> : vector<8xf32>
    %800 = vector.multi_reduction <add>, %795, %cst_331 [1] : vector<8x32xf32> to vector<8xf32>
    %801 = vector.shape_cast %800 : vector<8xf32> to vector<8x1xf32>
    %cst_332 = arith.constant 3.200000e+01 : f32
    %802 = vector.broadcast %cst_332 : f32 to vector<8x1xf32>
    %803 = arith.divf %801, %802 : vector<8x1xf32>
    %804 = vector.broadcast %803 : vector<8x1xf32> to vector<8x32xf32>
    %805 = arith.subf %795, %804 : vector<8x32xf32>
    %806 = arith.mulf %805, %805 : vector<8x32xf32>
    %cst_333 = arith.constant dense<0.000000e+00> : vector<8xf32>
    %807 = vector.multi_reduction <add>, %806, %cst_333 [1] : vector<8x32xf32> to vector<8xf32>
    %808 = vector.shape_cast %807 : vector<8xf32> to vector<8x1xf32>
    %cst_334 = arith.constant 3.200000e+01 : f32
    %809 = vector.broadcast %cst_334 : f32 to vector<8x1xf32>
    %810 = arith.divf %808, %809 : vector<8x1xf32>
    %811 = vector.broadcast %803 : vector<8x1xf32> to vector<8x32xf32>
    %812 = arith.subf %795, %811 : vector<8x32xf32>
    %cst_335 = arith.constant 9.99999971E-10 : f32
    %813 = vector.broadcast %cst_335 : f32 to vector<8x1xf32>
    %814 = arith.addf %810, %813 : vector<8x1xf32>
    %815 = math.rsqrt %814 : vector<8x1xf32>
    %816 = vector.broadcast %815 : vector<8x1xf32> to vector<8x32xf32>
    %817 = arith.mulf %812, %816 : vector<8x32xf32>
    %818 = arith.extf %797 : vector<1x32xbf16> to vector<1x32xf32>
    %819 = vector.broadcast %818 : vector<1x32xf32> to vector<8x32xf32>
    %820 = arith.mulf %817, %819 : vector<8x32xf32>
    %821 = arith.extf %799 : vector<1x32xbf16> to vector<1x32xf32>
    %822 = vector.broadcast %821 : vector<1x32xf32> to vector<8x32xf32>
    %823 = arith.addf %820, %822 : vector<8x32xf32>
    %c5 = arith.constant 5 : index
    %c0_336 = arith.constant 0 : index
    %c0_337 = arith.constant 0 : index
    %824 = vector.load %arg5[%c5, %c0_336, %c0_337] : memref<6x32x96xbf16, #tpu.memory_space<vmem>>, vector<1x32x96xbf16>
    %825 = vector.shape_cast %824 : vector<1x32x96xbf16> to vector<32x96xbf16>
    %826 = arith.truncf %823 : vector<8x32xf32> to vector<8x32xbf16>
    %cst_338 = arith.constant dense<0.000000e+00> : vector<8x96xf32>
    %827 = tpu.matmul %826, %825, %cst_338 {dimension_numbers = #tpu.dot_dimension_numbers<[1], [0], [0], [1], [0, 0, 1, 1], [], []>} : vector<8x32xbf16>, vector<32x96xbf16>, vector<8x96xf32> -> vector<8x96xf32>
    %c5_339 = arith.constant 5 : index
    %c0_340 = arith.constant 0 : index
    %c0_341 = arith.constant 0 : index
    %828 = vector.load %arg6[%c5_339, %c0_340, %c0_341] : memref<6x1x96xbf16, #tpu.memory_space<vmem>>, vector<1x1x96xbf16>
    %829 = vector.shape_cast %828 : vector<1x1x96xbf16> to vector<1x96xbf16>
    %830 = arith.extf %829 : vector<1x96xbf16> to vector<1x96xf32>
    %831 = vector.broadcast %830 : vector<1x96xf32> to vector<8x96xf32>
    %832 = arith.addf %827, %831 : vector<8x96xf32>
    %833 = vector.extract_strided_slice %832 {offsets = [0, 0], sizes = [8, 32], strides = [1, 1]} : vector<8x96xf32> to vector<8x32xf32>
    %834 = vector.extract_strided_slice %832 {offsets = [0, 32], sizes = [8, 32], strides = [1, 1]} : vector<8x96xf32> to vector<8x32xf32>
    %835 = vector.extract_strided_slice %832 {offsets = [0, 64], sizes = [8, 32], strides = [1, 1]} : vector<8x96xf32> to vector<8x32xf32>
    %cst_342 = arith.constant 2.500000e-01 : f32
    %836 = vector.broadcast %cst_342 : f32 to vector<8x32xf32>
    %837 = arith.mulf %833, %836 : vector<8x32xf32>
    %838 = vector.shape_cast %30 : vector<1x8xf32> to vector<1x8xf32>
    %839 = vector.broadcast %838 : vector<1x8xf32> to vector<8x8xf32>
    %840 = arith.truncf %837 : vector<8x32xf32> to vector<8x32xbf16>
    %841 = arith.truncf %834 : vector<8x32xf32> to vector<8x32xbf16>
    %842 = arith.truncf %835 : vector<8x32xf32> to vector<8x32xbf16>
    %843 = vector.extract_strided_slice %840 {offsets = [0, 0], sizes = [8, 16], strides = [1, 1]} : vector<8x32xbf16> to vector<8x16xbf16>
    %844 = vector.extract_strided_slice %841 {offsets = [0, 0], sizes = [8, 16], strides = [1, 1]} : vector<8x32xbf16> to vector<8x16xbf16>
    %cst_343 = arith.constant dense<0.000000e+00> : vector<8x8xf32>
    %845 = tpu.matmul %843, %844, %cst_343 {dimension_numbers = #tpu.dot_dimension_numbers<[1], [1], [0], [0], [0, 0, 1, 0], [], []>} : vector<8x16xbf16>, vector<8x16xbf16>, vector<8x8xf32> -> vector<8x8xf32>
    %846 = arith.addf %845, %839 : vector<8x8xf32>
    %cst_344 = arith.constant dense<0xFF800000> : vector<8xf32>
    %847 = vector.multi_reduction <maximumf>, %846, %cst_344 [1] : vector<8x8xf32> to vector<8xf32>
    %848 = vector.shape_cast %847 : vector<8xf32> to vector<8x1xf32>
    %849 = vector.broadcast %848 : vector<8x1xf32> to vector<8x8xf32>
    %850 = arith.subf %846, %849 : vector<8x8xf32>
    %851 = math.exp %850 : vector<8x8xf32>
    %cst_345 = arith.constant dense<0.000000e+00> : vector<8xf32>
    %852 = vector.multi_reduction <add>, %851, %cst_345 [1] : vector<8x8xf32> to vector<8xf32>
    %853 = vector.shape_cast %852 : vector<8xf32> to vector<8x1xf32>
    %854 = tpu.reciprocal %853 {approx = true} : vector<8x1xf32> -> vector<8x1xf32>
    %855 = vector.broadcast %854 : vector<8x1xf32> to vector<8x8xf32>
    %856 = arith.mulf %851, %855 : vector<8x8xf32>
    %857 = arith.truncf %856 : vector<8x8xf32> to vector<8x8xbf16>
    %858 = vector.extract_strided_slice %842 {offsets = [0, 0], sizes = [8, 16], strides = [1, 1]} : vector<8x32xbf16> to vector<8x16xbf16>
    %cst_346 = arith.constant dense<0.000000e+00> : vector<8x16xf32>
    %859 = tpu.matmul %857, %858, %cst_346 {dimension_numbers = #tpu.dot_dimension_numbers<[1], [0], [0], [1], [0, 0, 1, 1], [], []>} : vector<8x8xbf16>, vector<8x16xbf16>, vector<8x16xf32> -> vector<8x16xf32>
    %860 = vector.extract_strided_slice %840 {offsets = [0, 16], sizes = [8, 16], strides = [1, 1]} : vector<8x32xbf16> to vector<8x16xbf16>
    %861 = vector.extract_strided_slice %841 {offsets = [0, 16], sizes = [8, 16], strides = [1, 1]} : vector<8x32xbf16> to vector<8x16xbf16>
    %cst_347 = arith.constant dense<0.000000e+00> : vector<8x8xf32>
    %862 = tpu.matmul %860, %861, %cst_347 {dimension_numbers = #tpu.dot_dimension_numbers<[1], [1], [0], [0], [0, 0, 1, 0], [], []>} : vector<8x16xbf16>, vector<8x16xbf16>, vector<8x8xf32> -> vector<8x8xf32>
    %863 = arith.addf %862, %839 : vector<8x8xf32>
    %cst_348 = arith.constant dense<0xFF800000> : vector<8xf32>
    %864 = vector.multi_reduction <maximumf>, %863, %cst_348 [1] : vector<8x8xf32> to vector<8xf32>
    %865 = vector.shape_cast %864 : vector<8xf32> to vector<8x1xf32>
    %866 = vector.broadcast %865 : vector<8x1xf32> to vector<8x8xf32>
    %867 = arith.subf %863, %866 : vector<8x8xf32>
    %868 = math.exp %867 : vector<8x8xf32>
    %cst_349 = arith.constant dense<0.000000e+00> : vector<8xf32>
    %869 = vector.multi_reduction <add>, %868, %cst_349 [1] : vector<8x8xf32> to vector<8xf32>
    %870 = vector.shape_cast %869 : vector<8xf32> to vector<8x1xf32>
    %871 = tpu.reciprocal %870 {approx = true} : vector<8x1xf32> -> vector<8x1xf32>
    %872 = vector.broadcast %871 : vector<8x1xf32> to vector<8x8xf32>
    %873 = arith.mulf %868, %872 : vector<8x8xf32>
    %874 = arith.truncf %873 : vector<8x8xf32> to vector<8x8xbf16>
    %875 = vector.extract_strided_slice %842 {offsets = [0, 16], sizes = [8, 16], strides = [1, 1]} : vector<8x32xbf16> to vector<8x16xbf16>
    %cst_350 = arith.constant dense<0.000000e+00> : vector<8x16xf32>
    %876 = tpu.matmul %874, %875, %cst_350 {dimension_numbers = #tpu.dot_dimension_numbers<[1], [0], [0], [1], [0, 0, 1, 1], [], []>} : vector<8x8xbf16>, vector<8x16xbf16>, vector<8x16xf32> -> vector<8x16xf32>
    %877 = tpu.concatenate %859, %876 in 1 : vector<8x16xf32>, vector<8x16xf32> -> vector<8x32xf32>
    %c5_351 = arith.constant 5 : index
    %c0_352 = arith.constant 0 : index
    %c0_353 = arith.constant 0 : index
    %878 = vector.load %arg7[%c5_351, %c0_352, %c0_353] : memref<6x32x32xbf16, #tpu.memory_space<vmem>>, vector<1x32x32xbf16>
    %879 = vector.shape_cast %878 : vector<1x32x32xbf16> to vector<32x32xbf16>
    %880 = arith.truncf %877 : vector<8x32xf32> to vector<8x32xbf16>
    %cst_354 = arith.constant dense<0.000000e+00> : vector<8x32xf32>
    %881 = tpu.matmul %880, %879, %cst_354 {dimension_numbers = #tpu.dot_dimension_numbers<[1], [0], [0], [1], [0, 0, 1, 1], [], []>} : vector<8x32xbf16>, vector<32x32xbf16>, vector<8x32xf32> -> vector<8x32xf32>
    %c5_355 = arith.constant 5 : index
    %c0_356 = arith.constant 0 : index
    %c0_357 = arith.constant 0 : index
    %882 = vector.load %arg8[%c5_355, %c0_356, %c0_357] : memref<6x1x32xbf16, #tpu.memory_space<vmem>>, vector<1x1x32xbf16>
    %883 = vector.shape_cast %882 : vector<1x1x32xbf16> to vector<1x32xbf16>
    %884 = arith.extf %883 : vector<1x32xbf16> to vector<1x32xf32>
    %885 = vector.broadcast %884 : vector<1x32xf32> to vector<8x32xf32>
    %886 = arith.addf %881, %885 : vector<8x32xf32>
    %887 = arith.addf %823, %886 : vector<8x32xf32>
    %c5_358 = arith.constant 5 : index
    %c0_359 = arith.constant 0 : index
    %c0_360 = arith.constant 0 : index
    %888 = vector.load %arg9[%c5_358, %c0_359, %c0_360] : memref<6x1x32xbf16, #tpu.memory_space<vmem>>, vector<1x1x32xbf16>
    %889 = vector.shape_cast %888 : vector<1x1x32xbf16> to vector<1x32xbf16>
    %c5_361 = arith.constant 5 : index
    %c0_362 = arith.constant 0 : index
    %c0_363 = arith.constant 0 : index
    %890 = vector.load %arg10[%c5_361, %c0_362, %c0_363] : memref<6x1x32xbf16, #tpu.memory_space<vmem>>, vector<1x1x32xbf16>
    %891 = vector.shape_cast %890 : vector<1x1x32xbf16> to vector<1x32xbf16>
    %cst_364 = arith.constant dense<0.000000e+00> : vector<8xf32>
    %892 = vector.multi_reduction <add>, %887, %cst_364 [1] : vector<8x32xf32> to vector<8xf32>
    %893 = vector.shape_cast %892 : vector<8xf32> to vector<8x1xf32>
    %cst_365 = arith.constant 3.200000e+01 : f32
    %894 = vector.broadcast %cst_365 : f32 to vector<8x1xf32>
    %895 = arith.divf %893, %894 : vector<8x1xf32>
    %896 = vector.broadcast %895 : vector<8x1xf32> to vector<8x32xf32>
    %897 = arith.subf %887, %896 : vector<8x32xf32>
    %898 = arith.mulf %897, %897 : vector<8x32xf32>
    %cst_366 = arith.constant dense<0.000000e+00> : vector<8xf32>
    %899 = vector.multi_reduction <add>, %898, %cst_366 [1] : vector<8x32xf32> to vector<8xf32>
    %900 = vector.shape_cast %899 : vector<8xf32> to vector<8x1xf32>
    %cst_367 = arith.constant 3.200000e+01 : f32
    %901 = vector.broadcast %cst_367 : f32 to vector<8x1xf32>
    %902 = arith.divf %900, %901 : vector<8x1xf32>
    %903 = vector.broadcast %895 : vector<8x1xf32> to vector<8x32xf32>
    %904 = arith.subf %887, %903 : vector<8x32xf32>
    %cst_368 = arith.constant 9.99999971E-10 : f32
    %905 = vector.broadcast %cst_368 : f32 to vector<8x1xf32>
    %906 = arith.addf %902, %905 : vector<8x1xf32>
    %907 = math.rsqrt %906 : vector<8x1xf32>
    %908 = vector.broadcast %907 : vector<8x1xf32> to vector<8x32xf32>
    %909 = arith.mulf %904, %908 : vector<8x32xf32>
    %910 = arith.extf %889 : vector<1x32xbf16> to vector<1x32xf32>
    %911 = vector.broadcast %910 : vector<1x32xf32> to vector<8x32xf32>
    %912 = arith.mulf %909, %911 : vector<8x32xf32>
    %913 = arith.extf %891 : vector<1x32xbf16> to vector<1x32xf32>
    %914 = vector.broadcast %913 : vector<1x32xf32> to vector<8x32xf32>
    %915 = arith.addf %912, %914 : vector<8x32xf32>
    %c5_369 = arith.constant 5 : index
    %c0_370 = arith.constant 0 : index
    %c0_371 = arith.constant 0 : index
    %916 = vector.load %arg11[%c5_369, %c0_370, %c0_371] : memref<6x32x64xbf16, #tpu.memory_space<vmem>>, vector<1x32x64xbf16>
    %917 = vector.shape_cast %916 : vector<1x32x64xbf16> to vector<32x64xbf16>
    %918 = arith.truncf %915 : vector<8x32xf32> to vector<8x32xbf16>
    %cst_372 = arith.constant dense<0.000000e+00> : vector<8x64xf32>
    %919 = tpu.matmul %918, %917, %cst_372 {dimension_numbers = #tpu.dot_dimension_numbers<[1], [0], [0], [1], [0, 0, 1, 1], [], []>} : vector<8x32xbf16>, vector<32x64xbf16>, vector<8x64xf32> -> vector<8x64xf32>
    %c5_373 = arith.constant 5 : index
    %c0_374 = arith.constant 0 : index
    %c0_375 = arith.constant 0 : index
    %920 = vector.load %arg12[%c5_373, %c0_374, %c0_375] : memref<6x1x64xbf16, #tpu.memory_space<vmem>>, vector<1x1x64xbf16>
    %921 = vector.shape_cast %920 : vector<1x1x64xbf16> to vector<1x64xbf16>
    %922 = arith.extf %921 : vector<1x64xbf16> to vector<1x64xf32>
    %923 = vector.broadcast %922 : vector<1x64xf32> to vector<8x64xf32>
    %924 = arith.addf %919, %923 : vector<8x64xf32>
    %cst_376 = arith.constant 5.000000e-01 : f32
    %925 = vector.broadcast %cst_376 : f32 to vector<8x64xf32>
    %926 = arith.mulf %925, %924 : vector<8x64xf32>
    %cst_377 = arith.constant 4.471500e-02 : f32
    %927 = vector.broadcast %cst_377 : f32 to vector<8x64xf32>
    %928 = arith.mulf %927, %924 : vector<8x64xf32>
    %929 = arith.mulf %928, %924 : vector<8x64xf32>
    %930 = arith.mulf %929, %924 : vector<8x64xf32>
    %931 = arith.addf %924, %930 : vector<8x64xf32>
    %cst_378 = arith.constant 0.797884583 : f32
    %932 = vector.broadcast %cst_378 : f32 to vector<8x64xf32>
    %933 = arith.mulf %932, %931 : vector<8x64xf32>
    %934 = math.tanh %933 : vector<8x64xf32>
    %cst_379 = arith.constant 1.000000e+00 : f32
    %935 = vector.broadcast %cst_379 : f32 to vector<8x64xf32>
    %936 = arith.addf %935, %934 : vector<8x64xf32>
    %937 = arith.mulf %926, %936 : vector<8x64xf32>
    %c5_380 = arith.constant 5 : index
    %c0_381 = arith.constant 0 : index
    %c0_382 = arith.constant 0 : index
    %938 = vector.load %arg13[%c5_380, %c0_381, %c0_382] : memref<6x64x32xbf16, #tpu.memory_space<vmem>>, vector<1x64x32xbf16>
    %939 = vector.shape_cast %938 : vector<1x64x32xbf16> to vector<64x32xbf16>
    %940 = arith.truncf %937 : vector<8x64xf32> to vector<8x64xbf16>
    %cst_383 = arith.constant dense<0.000000e+00> : vector<8x32xf32>
    %941 = tpu.matmul %940, %939, %cst_383 {dimension_numbers = #tpu.dot_dimension_numbers<[1], [0], [0], [1], [0, 0, 1, 1], [], []>} : vector<8x64xbf16>, vector<64x32xbf16>, vector<8x32xf32> -> vector<8x32xf32>
    %c5_384 = arith.constant 5 : index
    %c0_385 = arith.constant 0 : index
    %c0_386 = arith.constant 0 : index
    %942 = vector.load %arg14[%c5_384, %c0_385, %c0_386] : memref<6x1x32xbf16, #tpu.memory_space<vmem>>, vector<1x1x32xbf16>
    %943 = vector.shape_cast %942 : vector<1x1x32xbf16> to vector<1x32xbf16>
    %944 = arith.extf %943 : vector<1x32xbf16> to vector<1x32xf32>
    %945 = vector.broadcast %944 : vector<1x32xf32> to vector<8x32xf32>
    %946 = arith.addf %941, %945 : vector<8x32xf32>
    %947 = arith.addf %915, %946 : vector<8x32xf32>
    %c5_387 = arith.constant 5 : index
    %c0_388 = arith.constant 0 : index
    %c0_389 = arith.constant 0 : index
    %948 = vector.load %arg15[%c5_387, %c0_388, %c0_389] : memref<6x1x32xbf16, #tpu.memory_space<vmem>>, vector<1x1x32xbf16>
    %949 = vector.shape_cast %948 : vector<1x1x32xbf16> to vector<1x32xbf16>
    %c5_390 = arith.constant 5 : index
    %c0_391 = arith.constant 0 : index
    %c0_392 = arith.constant 0 : index
    %950 = vector.load %arg16[%c5_390, %c0_391, %c0_392] : memref<6x1x32xbf16, #tpu.memory_space<vmem>>, vector<1x1x32xbf16>
    %951 = vector.shape_cast %950 : vector<1x1x32xbf16> to vector<1x32xbf16>
    %cst_393 = arith.constant dense<0.000000e+00> : vector<8xf32>
    %952 = vector.multi_reduction <add>, %947, %cst_393 [1] : vector<8x32xf32> to vector<8xf32>
    %953 = vector.shape_cast %952 : vector<8xf32> to vector<8x1xf32>
    %cst_394 = arith.constant 3.200000e+01 : f32
    %954 = vector.broadcast %cst_394 : f32 to vector<8x1xf32>
    %955 = arith.divf %953, %954 : vector<8x1xf32>
    %956 = vector.broadcast %955 : vector<8x1xf32> to vector<8x32xf32>
    %957 = arith.subf %947, %956 : vector<8x32xf32>
    %958 = arith.mulf %957, %957 : vector<8x32xf32>
    %cst_395 = arith.constant dense<0.000000e+00> : vector<8xf32>
    %959 = vector.multi_reduction <add>, %958, %cst_395 [1] : vector<8x32xf32> to vector<8xf32>
    %960 = vector.shape_cast %959 : vector<8xf32> to vector<8x1xf32>
    %cst_396 = arith.constant 3.200000e+01 : f32
    %961 = vector.broadcast %cst_396 : f32 to vector<8x1xf32>
    %962 = arith.divf %960, %961 : vector<8x1xf32>
    %963 = vector.broadcast %955 : vector<8x1xf32> to vector<8x32xf32>
    %964 = arith.subf %947, %963 : vector<8x32xf32>
    %cst_397 = arith.constant 9.99999971E-10 : f32
    %965 = vector.broadcast %cst_397 : f32 to vector<8x1xf32>
    %966 = arith.addf %962, %965 : vector<8x1xf32>
    %967 = math.rsqrt %966 : vector<8x1xf32>
    %968 = vector.broadcast %967 : vector<8x1xf32> to vector<8x32xf32>
    %969 = arith.mulf %964, %968 : vector<8x32xf32>
    %970 = arith.extf %949 : vector<1x32xbf16> to vector<1x32xf32>
    %971 = vector.broadcast %970 : vector<1x32xf32> to vector<8x32xf32>
    %972 = arith.mulf %969, %971 : vector<8x32xf32>
    %973 = arith.extf %951 : vector<1x32xbf16> to vector<1x32xf32>
    %974 = vector.broadcast %973 : vector<1x32xf32> to vector<8x32xf32>
    %975 = arith.addf %972, %974 : vector<8x32xf32>
    %976 = vector.extract_strided_slice %975 {offsets = [7, 0], sizes = [1, 32], strides = [1, 1]} : vector<8x32xf32> to vector<1x32xf32>
    %c0_398 = arith.constant 0 : index
    %c0_399 = arith.constant 0 : index
    %977 = vector.load %arg17[%c0_398, %c0_399] : memref<32x3xbf16, #tpu.memory_space<vmem>>, vector<32x3xbf16>
    %978 = arith.truncf %976 : vector<1x32xf32> to vector<1x32xbf16>
    %cst_400 = arith.constant dense<0.000000e+00> : vector<1x3xf32>
    %979 = tpu.matmul %978, %977, %cst_400 {dimension_numbers = #tpu.dot_dimension_numbers<[1], [0], [0], [1], [0, 0, 1, 1], [], []>} : vector<1x32xbf16>, vector<32x3xbf16>, vector<1x3xf32> -> vector<1x3xf32>
    %c0_401 = arith.constant 0 : index
    %c0_402 = arith.constant 0 : index
    %980 = vector.load %arg18[%c0_401, %c0_402] : memref<1x3xbf16, #tpu.memory_space<vmem>>, vector<1x3xbf16>
    %981 = arith.extf %980 : vector<1x3xbf16> to vector<1x3xf32>
    %982 = arith.addf %979, %981 : vector<1x3xf32>
    %c0_403 = arith.constant 0 : index
    %c0_404 = arith.constant 0 : index
    %c0_405 = arith.constant 0 : index
    %983 = vector.load %arg19[%c0_403, %c0_404, %c0_405] : memref<1x1x3xf32, #tpu.memory_space<vmem>>, vector<1x1x3xf32>
    %984 = vector.shape_cast %983 : vector<1x1x3xf32> to vector<1x3xf32>
    %985 = vector.shape_cast %982 : vector<1x3xf32> to vector<1x1x3xf32>
    tpu.vector_store %arg19[%c0_403, %c0_404, %c0_405], %985 {strides = array<i32>} : memref<1x1x3xf32, #tpu.memory_space<vmem>>, vector<1x1x3xf32>,
    return
  }
  func.func @transform_0(%arg0: i32) -> (i32, i32, i32) {
    %c0_i32 = arith.constant 0 : i32
    %c0_i32_0 = arith.constant 0 : i32
    %c0_i32_1 = arith.constant 0 : i32
    return %arg0, %c0_i32, %c0_i32_0 : i32, i32, i32
  }
  func.func @transform_1(%arg0: i32) -> (i32, i32, i32) {
    %c0_i32 = arith.constant 0 : i32
    %c0_i32_0 = arith.constant 0 : i32
    %c0_i32_1 = arith.constant 0 : i32
    return %arg0, %c0_i32, %c0_i32_0 : i32, i32, i32
  }
  func.func @transform_2(%arg0: i32) -> (i32, i32) {
    %c0_i32 = arith.constant 0 : i32
    %c0_i32_0 = arith.constant 0 : i32
    %c0_i32_1 = arith.constant 0 : i32
    return %c0_i32, %c0_i32_0 : i32, i32
  }
  func.func @transform_3(%arg0: i32) -> (i32, i32) {
    %c0_i32 = arith.constant 0 : i32
    %c0_i32_0 = arith.constant 0 : i32
    %c0_i32_1 = arith.constant 0 : i32
    return %c0_i32, %c0_i32_0 : i32, i32
  }
  func.func @transform_4(%arg0: i32) -> (i32, i32, i32) {
    %c0_i32 = arith.constant 0 : i32
    %c0_i32_0 = arith.constant 0 : i32
    %c0_i32_1 = arith.constant 0 : i32
    %c0_i32_2 = arith.constant 0 : i32
    return %c0_i32, %c0_i32_0, %c0_i32_1 : i32, i32, i32
  }
  func.func @transform_5(%arg0: i32) -> (i32, i32, i32) {
    %c0_i32 = arith.constant 0 : i32
    %c0_i32_0 = arith.constant 0 : i32
    %c0_i32_1 = arith.constant 0 : i32
    %c0_i32_2 = arith.constant 0 : i32
    return %c0_i32, %c0_i32_0, %c0_i32_1 : i32, i32, i32
  }
  func.func @transform_6(%arg0: i32) -> (i32, i32, i32) {
    %c0_i32 = arith.constant 0 : i32
    %c0_i32_0 = arith.constant 0 : i32
    %c0_i32_1 = arith.constant 0 : i32
    %c0_i32_2 = arith.constant 0 : i32
    return %c0_i32, %c0_i32_0, %c0_i32_1 : i32, i32, i32
  }
  func.func @transform_7(%arg0: i32) -> (i32, i32, i32) {
    %c0_i32 = arith.constant 0 : i32
    %c0_i32_0 = arith.constant 0 : i32
    %c0_i32_1 = arith.constant 0 : i32
    %c0_i32_2 = arith.constant 0 : i32
    return %c0_i32, %c0_i32_0, %c0_i32_1 : i32, i32, i32
  }
  func.func @transform_8(%arg0: i32) -> (i32, i32, i32) {
    %c0_i32 = arith.constant 0 : i32
    %c0_i32_0 = arith.constant 0 : i32
    %c0_i32_1 = arith.constant 0 : i32
    %c0_i32_2 = arith.constant 0 : i32
    return %c0_i32, %c0_i32_0, %c0_i32_1 : i32, i32, i32
  }
  func.func @transform_9(%arg0: i32) -> (i32, i32, i32) {
    %c0_i32 = arith.constant 0 : i32
    %c0_i32_0 = arith.constant 0 : i32
    %c0_i32_1 = arith.constant 0 : i32
    %c0_i32_2 = arith.constant 0 : i32
    return %c0_i32, %c0_i32_0, %c0_i32_1 : i32, i32, i32
  }
  func.func @transform_10(%arg0: i32) -> (i32, i32, i32) {
    %c0_i32 = arith.constant 0 : i32
    %c0_i32_0 = arith.constant 0 : i32
    %c0_i32_1 = arith.constant 0 : i32
    %c0_i32_2 = arith.constant 0 : i32
    return %c0_i32, %c0_i32_0, %c0_i32_1 : i32, i32, i32
  }
  func.func @transform_11(%arg0: i32) -> (i32, i32, i32) {
    %c0_i32 = arith.constant 0 : i32
    %c0_i32_0 = arith.constant 0 : i32
    %c0_i32_1 = arith.constant 0 : i32
    %c0_i32_2 = arith.constant 0 : i32
    return %c0_i32, %c0_i32_0, %c0_i32_1 : i32, i32, i32
  }
  func.func @transform_12(%arg0: i32) -> (i32, i32, i32) {
    %c0_i32 = arith.constant 0 : i32
    %c0_i32_0 = arith.constant 0 : i32
    %c0_i32_1 = arith.constant 0 : i32
    %c0_i32_2 = arith.constant 0 : i32
    return %c0_i32, %c0_i32_0, %c0_i32_1 : i32, i32, i32
  }
  func.func @transform_13(%arg0: i32) -> (i32, i32, i32) {
    %c0_i32 = arith.constant 0 : i32
    %c0_i32_0 = arith.constant 0 : i32
    %c0_i32_1 = arith.constant 0 : i32
    %c0_i32_2 = arith.constant 0 : i32
    return %c0_i32, %c0_i32_0, %c0_i32_1 : i32, i32, i32
  }
  func.func @transform_14(%arg0: i32) -> (i32, i32, i32) {
    %c0_i32 = arith.constant 0 : i32
    %c0_i32_0 = arith.constant 0 : i32
    %c0_i32_1 = arith.constant 0 : i32
    %c0_i32_2 = arith.constant 0 : i32
    return %c0_i32, %c0_i32_0, %c0_i32_1 : i32, i32, i32
  }
  func.func @transform_15(%arg0: i32) -> (i32, i32, i32) {
    %c0_i32 = arith.constant 0 : i32
    %c0_i32_0 = arith.constant 0 : i32
    %c0_i32_1 = arith.constant 0 : i32
    %c0_i32_2 = arith.constant 0 : i32
    return %c0_i32, %c0_i32_0, %c0_i32_1 : i32, i32, i32
  }
  func.func @transform_16(%arg0: i32) -> (i32, i32) {
    %c0_i32 = arith.constant 0 : i32
    %c0_i32_0 = arith.constant 0 : i32
    %c0_i32_1 = arith.constant 0 : i32
    return %c0_i32, %c0_i32_0 : i32, i32
  }
  func.func @transform_17(%arg0: i32) -> (i32, i32) {
    %c0_i32 = arith.constant 0 : i32
    %c0_i32_0 = arith.constant 0 : i32
    %c0_i32_1 = arith.constant 0 : i32
    return %c0_i32, %c0_i32_0 : i32, i32
  }
  func.func @transform_18(%arg0: i32) -> (i32, i32, i32) {
    %c0_i32 = arith.constant 0 : i32
    %c0_i32_0 = arith.constant 0 : i32
    %c0_i32_1 = arith.constant 0 : i32
    return %arg0, %c0_i32, %c0_i32_0 : i32, i32, i32
  }
}

</mosaic_0001>

<llo_original>
// kernel: funnel_classifier_forward.1
$region0: #{funnel_classifier_forward.1}
  #allocation0 [shape = 'u32[]', space=smem, size = 0x4, offset = 0x4, fixed_abs, tag = 'smem constant byte address 0x4 - core index']
  #allocation1 [shape = 'u32[144,128]{1,0:T(1,128)}', space=vmem, size = 0x12000, scoped, tag = 'internal scratch']
  %s0 = inlined_call_operand.vmem [shape: bf16[2,8,32], index: 0, kind: input, shape index: {}]
  %s1 = inlined_call_operand.vmem [shape: f32[2,1,8], index: 1, kind: input, shape index: {}]
  %s2 = inlined_call_operand.vmem [shape: bf16[1,32], index: 2, kind: input, shape index: {}]
  %s3 = inlined_call_operand.vmem [shape: bf16[1,32], index: 3, kind: input, shape index: {}]
  %s4 = inlined_call_operand.hbm [shape: bf16[6,32,96], index: 4, kind: input, shape index: {}]
  %s5 = inlined_call_operand.vmem [shape: bf16[6,1,96], index: 5, kind: input, shape index: {}]
  %s6 = inlined_call_operand.hbm [shape: bf16[6,32,32], index: 6, kind: input, shape index: {}]
  %s7 = inlined_call_operand.vmem [shape: bf16[6,1,32], index: 7, kind: input, shape index: {}, may-alias: {7,9,13,15}]
  %s8 = inlined_call_operand.vmem [shape: bf16[6,1,32], index: 8, kind: input, shape index: {}, may-alias: {8,14}]
  %s9 = inlined_call_operand.vmem [shape: bf16[6,1,32], index: 9, kind: input, shape index: {}, may-alias: {7,9,13,15}]
  %s10 = inlined_call_operand.hbm [shape: bf16[6,32,64], index: 10, kind: input, shape index: {}]
  %s11 = inlined_call_operand.vmem [shape: bf16[6,1,64], index: 11, kind: input, shape index: {}]
  %s12 = inlined_call_operand.vmem [shape: bf16[6,64,32], index: 12, kind: input, shape index: {}]
  %s13 = inlined_call_operand.vmem [shape: bf16[6,1,32], index: 13, kind: input, shape index: {}, may-alias: {7,9,13,15}]
  %s14 = inlined_call_operand.vmem [shape: bf16[6,1,32], index: 14, kind: input, shape index: {}, may-alias: {8,14}]
  %s15 = inlined_call_operand.vmem [shape: bf16[6,1,32], index: 15, kind: input, shape index: {}, may-alias: {7,9,13,15}]
  %s16 = inlined_call_operand.hbm [shape: bf16[32,3], index: 16, kind: input, shape index: {}]
  %s17 = inlined_call_operand.vmem [shape: bf16[1,3], index: 17, kind: input, shape index: {}]
  %s18 = inlined_call_operand.hbm [shape: f32[2,1,3], index: 18, kind: output, shape index: {}]
  %s19 = sld [smem:[#allocation0]]
  $region121: #{funnel_classifier_forward.1} parent=0
    _
  %s21 = ssub.s32 1, %s19
  %s22 = scalar_select 0, %s21, %s19
  $region1: #{funnel_classifier_forward.1} parent=0
    #allocation2 [shape = 'u8[49152]{0}', space=vmem, size = 0xc000, scoped, tag = 'input window, operand 4, single buffered']
    #allocation3 [shape = 's32[2]{0}', space=sflag, size = 0x8, scoped, tag = 'scoped memory for funnel_classifier_forward.1']
    #allocation4 [shape = 's32[2]{0}', space=sflag, size = 0x8, scoped, tag = 'scoped memory for funnel_classifier_forward.1']
    #allocation5 [shape = 'u8[49152]{0}', space=vmem, size = 0xc000, scoped, tag = 'input window, operand 6, single buffered']
    #allocation6 [shape = 's32[1]{0}', space=sflag, size = 0x4, scoped, tag = 'scoped memory for funnel_classifier_forward.1']
    #allocation7 [shape = 'u8[49152]{0}', space=vmem, size = 0xc000, scoped, tag = 'input window, operand 10, single buffered']
    #allocation8 [shape = 'u8[8192]{0}', space=vmem, size = 0x2000, scoped, tag = 'input window, operand 16, single buffered']
    #allocation9 [shape = 's32[1]{0}', space=sflag, size = 0x4, scoped, tag = 'scoped memory for funnel_classifier_forward.1']
    #allocation10 [shape = 'u8[1024]{0}', space=vmem, size = 0x400, scoped, tag = 'output window, operand 0']
    %23 = vsyncpa [#allocation3], 0
    %24 = vsyncpa [#allocation6], 0
    %25 = vsyncpa [#allocation9], 0
    %26 = vsyncpa [#allocation4], 0
    %s27 = scalar_lea.sflag [#allocation4], 1
    %28 = vsyncpa %s27, 0
    loop: start=0, step=1, limit=4
    $region2: #{funnel_classifier_forward.1} parent=1 // loop_pre_header
      _
    $region3: #{funnel_classifier_forward.1} parent=1 // loop_header
      %s30 = sphi 0, %s34
      %p31 = scmp.ge.s32.totalorder %s30, 4
      %s40 = sphi 0, %s42
      %s43 = sphi 0, %s40
      %s44 = sphi 0, %s43
      %s60 = sphi 0, %s44
      %s66 = sphi 0, %s68
      %s69 = sphi 0, %s66
      %s70 = sphi 0, %s69
      %s86 = sphi 0, %s70
      %s90 = sphi 0, %s90
      %s92 = sphi 0, %s90
      %s93 = sphi 0, %s92
      %s107 = sphi 0, %s93
      %s111 = sphi 0, %s111
      %s113 = sphi 0, %s111
      %s114 = sphi 0, %s113
      %s128 = sphi 0, %s114
      %s132 = sphi 0, %s132
      %s134 = sphi 0, %s132
      %s135 = sphi 0, %s134
      %s149 = sphi 0, %s135
      %s153 = sphi 0, %s153
      %s155 = sphi 0, %s153
      %s156 = sphi 0, %s155
      %s170 = sphi 0, %s156
      %s174 = sphi 0, %s174
      %s176 = sphi 0, %s174
      %s177 = sphi 0, %s176
      %s191 = sphi 0, %s177
      %s195 = sphi 0, %s195
      %s197 = sphi 0, %s195
      %s198 = sphi 0, %s197
      %s212 = sphi 0, %s198
      %s216 = sphi 0, %s216
      %s218 = sphi 0, %s216
      %s219 = sphi 0, %s218
      %s233 = sphi 0, %s219
      %s237 = sphi 0, %s237
      %s239 = sphi 0, %s237
      %s240 = sphi 0, %s239
      %s254 = sphi 0, %s240
      %s258 = sphi 0, %s258
      %s260 = sphi 0, %s258
      %s261 = sphi 0, %s260
      %s275 = sphi 0, %s261
      %s279 = sphi 0, %s279
      %s281 = sphi 0, %s279
      %s282 = sphi 0, %s281
      %s296 = sphi 0, %s282
      %s300 = sphi 0, %s300
      %s302 = sphi 0, %s300
      %s303 = sphi 0, %s302
      %s317 = sphi 0, %s303
      %s321 = sphi 0, %s321
      %s323 = sphi 0, %s321
      %s324 = sphi 0, %s323
      %s338 = sphi 0, %s324
      %s342 = sphi 0, %s342
      %s344 = sphi 0, %s342
      %s345 = sphi 0, %s344
      %s359 = sphi 0, %s345
      %s363 = sphi 0, %s363
      %s365 = sphi 0, %s363
      %s366 = sphi 0, %s365
      %s380 = sphi 0, %s366
      %s384 = sphi 0, %s384
      %s386 = sphi 0, %s384
      %s387 = sphi 0, %s386
      %s401 = sphi 0, %s387
      %s405 = sphi 0, %s405
      %s407 = sphi 0, %s405
      %s408 = sphi 0, %s407
      %s422 = sphi 0, %s408
      %s428 = sphi 0, %s430
      %s431 = sphi 0, %s428
      %s432 = sphi 0, %s431
      %s448 = sphi 0, %s432
    $region4: #{funnel_classifier_forward.1} parent=1 // loop_header_branch
      %33 = sbr.rel (%p31) target = $region8
    $region5: #{funnel_classifier_forward.1} parent=1 // loop_body
      %s35 = ssub.s32 %s30, 1
      %s36 = ssub.s32 %s30, 2
      %s37 = sadd.s32 %s30, 1
      %s38 = ssub.s32 %s30, %s37
      %p39 = scmp.eq.s32.totalorder %s38, 0
      %s41 = sadd.s32 %s40, 1
      %s42 = scalar_select %p39, %s40, %s41
      %p45 = pneg %p39
      %p46 = scmp.eq.s32.totalorder %s30, 1
      %p47 = por %p45, %p46
      %p48 = scmp.ne.s32.totalorder %s40, %s43
      %p49 = scmp.eq.s32.totalorder %s30, 0
      %p50 = por %p48, %p49
      %p51 = scmp.ne.s32.totalorder %s40, %s43
      %p52 = scmp.eq.s32.totalorder %s35, 1
      %p53 = por %p51, %p52
      %p54 = scmp.ne.s32.totalorder %s43, %s44
      %p55 = scmp.eq.s32.totalorder %s35, 0
      %p56 = por %p54, %p55
      %p57 = scmp.ne.s32.totalorder %s43, %s44
      %p58 = scmp.eq.s32.totalorder %s36, 1
      %p59 = por %p57, %p58
      %p61 = scmp.ne.s32.totalorder %s44, %s60
      %p62 = scmp.eq.s32.totalorder %s36, 0
      %p63 = por %p61, %p62
      %s64 = ssub.s32 %s30, %s37
      %p65 = scmp.eq.s32.totalorder %s64, 0
      %s67 = sadd.s32 %s66, 1
      %s68 = scalar_select %p65, %s66, %s67
      %p71 = pneg %p65
      %p72 = scmp.eq.s32.totalorder %s30, 1
      %p73 = por %p71, %p72
      %p74 = scmp.ne.s32.totalorder %s66, %s69
      %p75 = scmp.eq.s32.totalorder %s30, 0
      %p76 = por %p74, %p75
      %p77 = scmp.ne.s32.totalorder %s66, %s69
      %p78 = scmp.eq.s32.totalorder %s35, 1
      %p79 = por %p77, %p78
      %p80 = scmp.ne.s32.totalorder %s69, %s70
      %p81 = scmp.eq.s32.totalorder %s35, 0
      %p82 = por %p80, %p81
      %p83 = scmp.ne.s32.totalorder %s69, %s70
      %p84 = scmp.eq.s32.totalorder %s36, 1
      %p85 = por %p83, %p84
      %p87 = scmp.ne.s32.totalorder %s70, %s86
      %p88 = scmp.eq.s32.totalorder %s36, 0
      %p89 = por %p87, %p88
      %s91 = sadd.s32 %s90, 1
      %p94 = scmp.eq.s32.totalorder %s30, 1
      %p95 = scmp.ne.s32.totalorder %s90, %s92
      %p96 = scmp.eq.s32.totalorder %s30, 0
      %p97 = por %p95, %p96
      %p98 = scmp.ne.s32.totalorder %s90, %s92
      %p99 = scmp.eq.s32.totalorder %s35, 1
      %p100 = por %p98, %p99
      %p101 = scmp.ne.s32.totalorder %s92, %s93
      %p102 = scmp.eq.s32.totalorder %s35, 0
      %p103 = por %p101, %p102
      %p104 = scmp.ne.s32.totalorder %s92, %s93
      %p105 = scmp.eq.s32.totalorder %s36, 1
      %p106 = por %p104, %p105
      %p108 = scmp.ne.s32.totalorder %s93, %s107
      %p109 = scmp.eq.s32.totalorder %s36, 0
      %p110 = por %p108, %p109
      %s112 = sadd.s32 %s111, 1
      %p115 = scmp.eq.s32.totalorder %s30, 1
      %p116 = scmp.ne.s32.totalorder %s111, %s113
      %p117 = scmp.eq.s32.totalorder %s30, 0
      %p118 = por %p116, %p117
      %p119 = scmp.ne.s32.totalorder %s111, %s113
      %p120 = scmp.eq.s32.totalorder %s35, 1
      %p121 = por %p119, %p120
      %p122 = scmp.ne.s32.totalorder %s113, %s114
      %p123 = scmp.eq.s32.totalorder %s35, 0
      %p124 = por %p122, %p123
      %p125 = scmp.ne.s32.totalorder %s113, %s114
      %p126 = scmp.eq.s32.totalorder %s36, 1
      %p127 = por %p125, %p126
      %p129 = scmp.ne.s32.totalorder %s114, %s128
      %p130 = scmp.eq.s32.totalorder %s36, 0
      %p131 = por %p129, %p130
      %s133 = sadd.s32 %s132, 1
      %p136 = scmp.eq.s32.totalorder %s30, 1
      %p137 = scmp.ne.s32.totalorder %s132, %s134
      %p138 = scmp.eq.s32.totalorder %s30, 0
      %p139 = por %p137, %p138
      %p140 = scmp.ne.s32.totalorder %s132, %s134
      %p141 = scmp.eq.s32.totalorder %s35, 1
      %p142 = por %p140, %p141
      %p143 = scmp.ne.s32.totalorder %s134, %s135
      %p144 = scmp.eq.s32.totalorder %s35, 0
      %p145 = por %p143, %p144
      %p146 = scmp.ne.s32.totalorder %s134, %s135
      %p147 = scmp.eq.s32.totalorder %s36, 1
      %p148 = por %p146, %p147
      %p150 = scmp.ne.s32.totalorder %s135, %s149
      %p151 = scmp.eq.s32.totalorder %s36, 0
      %p152 = por %p150, %p151
      %s154 = sadd.s32 %s153, 1
      %p157 = scmp.eq.s32.totalorder %s30, 1
      %p158 = scmp.ne.s32.totalorder %s153, %s155
      %p159 = scmp.eq.s32.totalorder %s30, 0
      %p160 = por %p158, %p159
      %p161 = scmp.ne.s32.totalorder %s153, %s155
      %p162 = scmp.eq.s32.totalorder %s35, 1
      %p163 = por %p161, %p162
      %p164 = scmp.ne.s32.totalorder %s155, %s156
      %p165 = scmp.eq.s32.totalorder %s35, 0
      %p166 = por %p164, %p165
      %p167 = scmp.ne.s32.totalorder %s155, %s156
      %p168 = scmp.eq.s32.totalorder %s36, 1
      %p169 = por %p167, %p168
      %p171 = scmp.ne.s32.totalorder %s156, %s170
      %p172 = scmp.eq.s32.totalorder %s36, 0
      %p173 = por %p171, %p172
      %s175 = sadd.s32 %s174, 1
      %p178 = scmp.eq.s32.totalorder %s30, 1
      %p179 = scmp.ne.s32.totalorder %s174, %s176
      %p180 = scmp.eq.s32.totalorder %s30, 0
      %p181 = por %p179, %p180
      %p182 = scmp.ne.s32.totalorder %s174, %s176
      %p183 = scmp.eq.s32.totalorder %s35, 1
      %p184 = por %p182, %p183
      %p185 = scmp.ne.s32.totalorder %s176, %s177
      %p186 = scmp.eq.s32.totalorder %s35, 0
      %p187 = por %p185, %p186
      %p188 = scmp.ne.s32.totalorder %s176, %s177
      %p189 = scmp.eq.s32.totalorder %s36, 1
      %p190 = por %p188, %p189
      %p192 = scmp.ne.s32.totalorder %s177, %s191
      %p193 = scmp.eq.s32.totalorder %s36, 0
      %p194 = por %p192, %p193
      %s196 = sadd.s32 %s195, 1
      %p199 = scmp.eq.s32.totalorder %s30, 1
      %p200 = scmp.ne.s32.totalorder %s195, %s197
      %p201 = scmp.eq.s32.totalorder %s30, 0
      %p202 = por %p200, %p201
      %p203 = scmp.ne.s32.totalorder %s195, %s197
      %p204 = scmp.eq.s32.totalorder %s35, 1
      %p205 = por %p203, %p204
      %p206 = scmp.ne.s32.totalorder %s197, %s198
      %p207 = scmp.eq.s32.totalorder %s35, 0
      %p208 = por %p206, %p207
      %p209 = scmp.ne.s32.totalorder %s197, %s198
      %p210 = scmp.eq.s32.totalorder %s36, 1
      %p211 = por %p209, %p210
      %p213 = scmp.ne.s32.totalorder %s198, %s212
      %p214 = scmp.eq.s32.totalorder %s36, 0
      %p215 = por %p213, %p214
      %s217 = sadd.s32 %s216, 1
      %p220 = scmp.eq.s32.totalorder %s30, 1
      %p221 = scmp.ne.s32.totalorder %s216, %s218
      %p222 = scmp.eq.s32.totalorder %s30, 0
      %p223 = por %p221, %p222
      %p224 = scmp.ne.s32.totalorder %s216, %s218
      %p225 = scmp.eq.s32.totalorder %s35, 1
      %p226 = por %p224, %p225
      %p227 = scmp.ne.s32.totalorder %s218, %s219
      %p228 = scmp.eq.s32.totalorder %s35, 0
      %p229 = por %p227, %p228
      %p230 = scmp.ne.s32.totalorder %s218, %s219
      %p231 = scmp.eq.s32.totalorder %s36, 1
      %p232 = por %p230, %p231
      %p234 = scmp.ne.s32.totalorder %s219, %s233
      %p235 = scmp.eq.s32.totalorder %s36, 0
      %p236 = por %p234, %p235
      %s238 = sadd.s32 %s237, 1
      %p241 = scmp.eq.s32.totalorder %s30, 1
      %p242 = scmp.ne.s32.totalorder %s237, %s239
      %p243 = scmp.eq.s32.totalorder %s30, 0
      %p244 = por %p242, %p243
      %p245 = scmp.ne.s32.totalorder %s237, %s239
      %p246 = scmp.eq.s32.totalorder %s35, 1
      %p247 = por %p245, %p246
      %p248 = scmp.ne.s32.totalorder %s239, %s240
      %p249 = scmp.eq.s32.totalorder %s35, 0
      %p250 = por %p248, %p249
      %p251 = scmp.ne.s32.totalorder %s239, %s240
      %p252 = scmp.eq.s32.totalorder %s36, 1
      %p253 = por %p251, %p252
      %p255 = scmp.ne.s32.totalorder %s240, %s254
      %p256 = scmp.eq.s32.totalorder %s36, 0
      %p257 = por %p255, %p256
      %s259 = sadd.s32 %s258, 1
      %p262 = scmp.eq.s32.totalorder %s30, 1
      %p263 = scmp.ne.s32.totalorder %s258, %s260
      %p264 = scmp.eq.s32.totalorder %s30, 0
      %p265 = por %p263, %p264
      %p266 = scmp.ne.s32.totalorder %s258, %s260
      %p267 = scmp.eq.s32.totalorder %s35, 1
      %p268 = por %p266, %p267
      %p269 = scmp.ne.s32.totalorder %s260, %s261
      %p270 = scmp.eq.s32.totalorder %s35, 0
      %p271 = por %p269, %p270
      %p272 = scmp.ne.s32.totalorder %s260, %s261
      %p273 = scmp.eq.s32.totalorder %s36, 1
      %p274 = por %p272, %p273
      %p276 = scmp.ne.s32.totalorder %s261, %s275
      %p277 = scmp.eq.s32.totalorder %s36, 0
      %p278 = por %p276, %p277
      %s280 = sadd.s32 %s279, 1
      %p283 = scmp.eq.s32.totalorder %s30, 1
      %p284 = scmp.ne.s32.totalorder %s279, %s281
      %p285 = scmp.eq.s32.totalorder %s30, 0
      %p286 = por %p284, %p285
      %p287 = scmp.ne.s32.totalorder %s279, %s281
      %p288 = scmp.eq.s32.totalorder %s35, 1
      %p289 = por %p287, %p288
      %p290 = scmp.ne.s32.totalorder %s281, %s282
      %p291 = scmp.eq.s32.totalorder %s35, 0
      %p292 = por %p290, %p291
      %p293 = scmp.ne.s32.totalorder %s281, %s282
      %p294 = scmp.eq.s32.totalorder %s36, 1
      %p295 = por %p293, %p294
      %p297 = scmp.ne.s32.totalorder %s282, %s296
      %p298 = scmp.eq.s32.totalorder %s36, 0
      %p299 = por %p297, %p298
      %s301 = sadd.s32 %s300, 1
      %p304 = scmp.eq.s32.totalorder %s30, 1
      %p305 = scmp.ne.s32.totalorder %s300, %s302
      %p306 = scmp.eq.s32.totalorder %s30, 0
      %p307 = por %p305, %p306
      %p308 = scmp.ne.s32.totalorder %s300, %s302
      %p309 = scmp.eq.s32.totalorder %s35, 1
      %p310 = por %p308, %p309
      %p311 = scmp.ne.s32.totalorder %s302, %s303
      %p312 = scmp.eq.s32.totalorder %s35, 0
      %p313 = por %p311, %p312
      %p314 = scmp.ne.s32.totalorder %s302, %s303
      %p315 = scmp.eq.s32.totalorder %s36, 1
      %p316 = por %p314, %p315
      %p318 = scmp.ne.s32.totalorder %s303, %s317
      %p319 = scmp.eq.s32.totalorder %s36, 0
      %p320 = por %p318, %p319
      %s322 = sadd.s32 %s321, 1
      %p325 = scmp.eq.s32.totalorder %s30, 1
      %p326 = scmp.ne.s32.totalorder %s321, %s323
      %p327 = scmp.eq.s32.totalorder %s30, 0
      %p328 = por %p326, %p327
      %p329 = scmp.ne.s32.totalorder %s321, %s323
      %p330 = scmp.eq.s32.totalorder %s35, 1
      %p331 = por %p329, %p330
      %p332 = scmp.ne.s32.totalorder %s323, %s324
      %p333 = scmp.eq.s32.totalorder %s35, 0
      %p334 = por %p332, %p333
      %p335 = scmp.ne.s32.totalorder %s323, %s324
      %p336 = scmp.eq.s32.totalorder %s36, 1
      %p337 = por %p335, %p336
      %p339 = scmp.ne.s32.totalorder %s324, %s338
      %p340 = scmp.eq.s32.totalorder %s36, 0
      %p341 = por %p339, %p340
      %s343 = sadd.s32 %s342, 1
      %p346 = scmp.eq.s32.totalorder %s30, 1
      %p347 = scmp.ne.s32.totalorder %s342, %s344
      %p348 = scmp.eq.s32.totalorder %s30, 0
      %p349 = por %p347, %p348
      %p350 = scmp.ne.s32.totalorder %s342, %s344
      %p351 = scmp.eq.s32.totalorder %s35, 1
      %p352 = por %p350, %p351
      %p353 = scmp.ne.s32.totalorder %s344, %s345
      %p354 = scmp.eq.s32.totalorder %s35, 0
      %p355 = por %p353, %p354
      %p356 = scmp.ne.s32.totalorder %s344, %s345
      %p357 = scmp.eq.s32.totalorder %s36, 1
      %p358 = por %p356, %p357
      %p360 = scmp.ne.s32.totalorder %s345, %s359
      %p361 = scmp.eq.s32.totalorder %s36, 0
      %p362 = por %p360, %p361
      %s364 = sadd.s32 %s363, 1
      %p367 = scmp.eq.s32.totalorder %s30, 1
      %p368 = scmp.ne.s32.totalorder %s363, %s365
      %p369 = scmp.eq.s32.totalorder %s30, 0
      %p370 = por %p368, %p369
      %p371 = scmp.ne.s32.totalorder %s363, %s365
      %p372 = scmp.eq.s32.totalorder %s35, 1
      %p373 = por %p371, %p372
      %p374 = scmp.ne.s32.totalorder %s365, %s366
      %p375 = scmp.eq.s32.totalorder %s35, 0
      %p376 = por %p374, %p375
      %p377 = scmp.ne.s32.totalorder %s365, %s366
      %p378 = scmp.eq.s32.totalorder %s36, 1
      %p379 = por %p377, %p378
      %p381 = scmp.ne.s32.totalorder %s366, %s380
      %p382 = scmp.eq.s32.totalorder %s36, 0
      %p383 = por %p381, %p382
      %s385 = sadd.s32 %s384, 1
      %p388 = scmp.eq.s32.totalorder %s30, 1
      %p389 = scmp.ne.s32.totalorder %s384, %s386
      %p390 = scmp.eq.s32.totalorder %s30, 0
      %p391 = por %p389, %p390
      %p392 = scmp.ne.s32.totalorder %s384, %s386
      %p393 = scmp.eq.s32.totalorder %s35, 1
      %p394 = por %p392, %p393
      %p395 = scmp.ne.s32.totalorder %s386, %s387
      %p396 = scmp.eq.s32.totalorder %s35, 0
      %p397 = por %p395, %p396
      %p398 = scmp.ne.s32.totalorder %s386, %s387
      %p399 = scmp.eq.s32.totalorder %s36, 1
      %p400 = por %p398, %p399
      %p402 = scmp.ne.s32.totalorder %s387, %s401
      %p403 = scmp.eq.s32.totalorder %s36, 0
      %p404 = por %p402, %p403
      %s406 = sadd.s32 %s405, 1
      %p409 = scmp.eq.s32.totalorder %s30, 1
      %p410 = scmp.ne.s32.totalorder %s405, %s407
      %p411 = scmp.eq.s32.totalorder %s30, 0
      %p412 = por %p410, %p411
      %p413 = scmp.ne.s32.totalorder %s405, %s407
      %p414 = scmp.eq.s32.totalorder %s35, 1
      %p415 = por %p413, %p414
      %p416 = scmp.ne.s32.totalorder %s407, %s408
      %p417 = scmp.eq.s32.totalorder %s35, 0
      %p418 = por %p416, %p417
      %p419 = scmp.ne.s32.totalorder %s407, %s408
      %p420 = scmp.eq.s32.totalorder %s36, 1
      %p421 = por %p419, %p420
      %p423 = scmp.ne.s32.totalorder %s408, %s422
      %p424 = scmp.eq.s32.totalorder %s36, 0
      %p425 = por %p423, %p424
      %s426 = ssub.s32 %s30, %s37
      %p427 = scmp.eq.s32.totalorder %s426, 0
      %s429 = sadd.s32 %s428, 1
      %s430 = scalar_select %p427, %s428, %s429
      %p433 = pneg %p427
      %p434 = scmp.eq.s32.totalorder %s30, 1
      %p435 = por %p433, %p434
      %p436 = scmp.ne.s32.totalorder %s428, %s431
      %p437 = scmp.eq.s32.totalorder %s30, 0
      %p438 = por %p436, %p437
      %p439 = scmp.ne.s32.totalorder %s428, %s431
      %p440 = scmp.eq.s32.totalorder %s35, 1
      %p441 = por %p439, %p440
      %p442 = scmp.ne.s32.totalorder %s431, %s432
      %p443 = scmp.eq.s32.totalorder %s35, 0
      %p444 = por %p442, %p443
      %p445 = scmp.ne.s32.totalorder %s431, %s432
      %p446 = scmp.eq.s32.totalorder %s36, 1
      %p447 = por %p445, %p446
      %p449 = scmp.ne.s32.totalorder %s432, %s448
      %p450 = scmp.eq.s32.totalorder %s36, 0
      %p451 = por %p449, %p450
      %p452 = scmp.le.s32.totalorder 1, %s30
      %p453 = scmp.lt.s32.totalorder %s30, 3
      %p454 = pnand %p452, %p453
      %p455 = pneg %p454
      // Predicated region
      $region9: #{funnel_classifier_forward.1} parent=5 // pred_check
        _
      $region10: #{funnel_classifier_forward.1} parent=5 // pred_check_branch
        %457 = sbr.rel (%p454) target = $region12
      $region11: #{funnel_classifier_forward.1} parent=5 // pred_region
        %s458 = ssub.s32 %s30, 1
        // Predicated region
        $region13: #{funnel_classifier_forward.1} parent=11 // pred_check
          %p459 = pneg %p103
        $region14: #{funnel_classifier_forward.1} parent=11 // pred_check_branch
          %461 = sbr.rel (%p459) target = $region16
        $region15: #{funnel_classifier_forward.1} parent=11 // pred_region
          _
        $region16: #{funnel_classifier_forward.1} parent=11 // pred_fallthru
          _
        // Predicated region
        $region17: #{funnel_classifier_forward.1} parent=11 // pred_check
          %p462 = pneg %p124
        $region18: #{funnel_classifier_forward.1} parent=11 // pred_check_branch
          %464 = sbr.rel (%p462) target = $region20
        $region19: #{funnel_classifier_forward.1} parent=11 // pred_region
          _
        $region20: #{funnel_classifier_forward.1} parent=11 // pred_fallthru
          _
        // Predicated region
        $region21: #{funnel_classifier_forward.1} parent=11 // pred_check
          %p465 = pneg %p145
        $region22: #{funnel_classifier_forward.1} parent=11 // pred_check_branch
          %467 = sbr.rel (%p465) target = $region24
        $region23: #{funnel_classifier_forward.1} parent=11 // pred_region
          %s469 = ssub.s32 1536, 1536
          %470 = vsyncadd [#allocation3], %s469
          %s471 = sshll.u32 [#allocation2], 4
          %s472 = int_to_ptr.vmem [resolvable:$true] %s471
          %477 = dma.hbm_to_vmem [thread:$0]  %s4, 1536, %s472, [#allocation3], 64, 64, 4
        $region24: #{funnel_classifier_forward.1} parent=11 // pred_fallthru
          _
        // Predicated region
        $region25: #{funnel_classifier_forward.1} parent=11 // pred_check
          %p478 = pneg %p166
        $region26: #{funnel_classifier_forward.1} parent=11 // pred_check_branch
          %480 = sbr.rel (%p478) target = $region28
        $region27: #{funnel_classifier_forward.1} parent=11 // pred_region
          _
        $region28: #{funnel_classifier_forward.1} parent=11 // pred_fallthru
          _
        // Predicated region
        $region29: #{funnel_classifier_forward.1} parent=11 // pred_check
          %p481 = pneg %p187
        $region30: #{funnel_classifier_forward.1} parent=11 // pred_check_branch
          %483 = sbr.rel (%p481) target = $region32
        $region31: #{funnel_classifier_forward.1} parent=11 // pred_region
          %s485 = ssub.s32 1536, 1536
          %486 = vsyncadd [#allocation6], %s485
          %s487 = sshll.u32 [#allocation5], 4
          %s488 = int_to_ptr.vmem [resolvable:$true] %s487
          %493 = dma.hbm_to_vmem [thread:$0]  %s6, 1536, %s488, [#allocation6], 64, 64, 4
        $region32: #{funnel_classifier_forward.1} parent=11 // pred_fallthru
          _
        // Predicated region
        $region33: #{funnel_classifier_forward.1} parent=11 // pred_check
          %p494 = pneg %p208
        $region34: #{funnel_classifier_forward.1} parent=11 // pred_check_branch
          %496 = sbr.rel (%p494) target = $region36
        $region35: #{funnel_classifier_forward.1} parent=11 // pred_region
          _
        $region36: #{funnel_classifier_forward.1} parent=11 // pred_fallthru
          _
        // Predicated region
        $region37: #{funnel_classifier_forward.1} parent=11 // pred_check
          %p497 = pneg %p229
        $region38: #{funnel_classifier_forward.1} parent=11 // pred_check_branch
          %499 = sbr.rel (%p497) target = $region40
        $region39: #{funnel_classifier_forward.1} parent=11 // pred_region
          _
        $region40: #{funnel_classifier_forward.1} parent=11 // pred_fallthru
          _
        // Predicated region
        $region41: #{funnel_classifier_forward.1} parent=11 // pred_check
          %p500 = pneg %p250
        $region42: #{funnel_classifier_forward.1} parent=11 // pred_check_branch
          %502 = sbr.rel (%p500) target = $region44
        $region43: #{funnel_classifier_forward.1} parent=11 // pred_region
          _
        $region44: #{funnel_classifier_forward.1} parent=11 // pred_fallthru
          _
        // Predicated region
        $region45: #{funnel_classifier_forward.1} parent=11 // pred_check
          %p503 = pneg %p271
        $region46: #{funnel_classifier_forward.1} parent=11 // pred_check_branch
          %505 = sbr.rel (%p503) target = $region48
        $region47: #{funnel_classifier_forward.1} parent=11 // pred_region
          %s507 = ssub.s32 1536, 1536
          %508 = vsyncadd [#allocation6], %s507
          %s509 = sshll.u32 [#allocation7], 4
          %s510 = int_to_ptr.vmem [resolvable:$true] %s509
          %515 = dma.hbm_to_vmem [thread:$0]  %s10, 1536, %s510, [#allocation6], 64, 64, 4
        $region48: #{funnel_classifier_forward.1} parent=11 // pred_fallthru
          _
        // Predicated region
        $region49: #{funnel_classifier_forward.1} parent=11 // pred_check
          %p516 = pneg %p292
        $region50: #{funnel_classifier_forward.1} parent=11 // pred_check_branch
          %518 = sbr.rel (%p516) target = $region52
        $region51: #{funnel_classifier_forward.1} parent=11 // pred_region
          _
        $region52: #{funnel_classifier_forward.1} parent=11 // pred_fallthru
          _
        // Predicated region
        $region53: #{funnel_classifier_forward.1} parent=11 // pred_check
          %p519 = pneg %p313
        $region54: #{funnel_classifier_forward.1} parent=11 // pred_check_branch
          %521 = sbr.rel (%p519) target = $region56
        $region55: #{funnel_classifier_forward.1} parent=11 // pred_region
          _
        $region56: #{funnel_classifier_forward.1} parent=11 // pred_fallthru
          _
        // Predicated region
        $region57: #{funnel_classifier_forward.1} parent=11 // pred_check
          %p522 = pneg %p334
        $region58: #{funnel_classifier_forward.1} parent=11 // pred_check_branch
          %524 = sbr.rel (%p522) target = $region60
        $region59: #{funnel_classifier_forward.1} parent=11 // pred_region
          _
        $region60: #{funnel_classifier_forward.1} parent=11 // pred_fallthru
          _
        // Predicated region
        $region61: #{funnel_classifier_forward.1} parent=11 // pred_check
          %p525 = pneg %p355
        $region62: #{funnel_classifier_forward.1} parent=11 // pred_check_branch
          %527 = sbr.rel (%p525) target = $region64
        $region63: #{funnel_classifier_forward.1} parent=11 // pred_region
          _
        $region64: #{funnel_classifier_forward.1} parent=11 // pred_fallthru
          _
        // Predicated region
        $region65: #{funnel_classifier_forward.1} parent=11 // pred_check
          %p528 = pneg %p376
        $region66: #{funnel_classifier_forward.1} parent=11 // pred_check_branch
          %530 = sbr.rel (%p528) target = $region68
        $region67: #{funnel_classifier_forward.1} parent=11 // pred_region
          _
        $region68: #{funnel_classifier_forward.1} parent=11 // pred_fallthru
          _
        // Predicated region
        $region69: #{funnel_classifier_forward.1} parent=11 // pred_check
          %p531 = pneg %p397
        $region70: #{funnel_classifier_forward.1} parent=11 // pred_check_branch
          %533 = sbr.rel (%p531) target = $region72
        $region71: #{funnel_classifier_forward.1} parent=11 // pred_region
          %s535 = ssub.s32 256, 256
          %536 = vsyncadd [#allocation9], %s535
          %s537 = sshll.u32 [#allocation8], 4
          %s538 = int_to_ptr.vmem [resolvable:$true] %s537
          %543 = dma.hbm_to_vmem [thread:$0]  %s16, 256, %s538, [#allocation9], 64, 64, 4
        $region72: #{funnel_classifier_forward.1} parent=11 // pred_fallthru
          _
        // Predicated region
        $region73: #{funnel_classifier_forward.1} parent=11 // pred_check
          %p544 = pneg %p418
        $region74: #{funnel_classifier_forward.1} parent=11 // pred_check_branch
          %546 = sbr.rel (%p544) target = $region76
        $region75: #{funnel_classifier_forward.1} parent=11 // pred_region
          _
        $region76: #{funnel_classifier_forward.1} parent=11 // pred_fallthru
          _
      $region12: #{funnel_classifier_forward.1} parent=5 // pred_fallthru
        _
      %p547 = scmp.lt.s32.totalorder %s30, 2
      // Predicated region
      $region77: #{funnel_classifier_forward.1} parent=5 // pred_check
        %p548 = pneg %p547
      $region78: #{funnel_classifier_forward.1} parent=5 // pred_check_branch
        %550 = sbr.rel (%p548) target = $region80
      $region79: #{funnel_classifier_forward.1} parent=5 // pred_region
        // Predicated region
        $region81: #{funnel_classifier_forward.1} parent=79 // pred_check
          %p551 = pneg %p50
        $region82: #{funnel_classifier_forward.1} parent=79 // pred_check_branch
          %553 = sbr.rel (%p551) target = $region84
        $region83: #{funnel_classifier_forward.1} parent=79 // pred_region
          %p554 = scmp.lt.s32.totalorder %s30, 1
          %s555 = scalar_select %p554, %s30, 1
          %s556 = smul.addr %s555, 4
          %s557 = scalar_lea.vmem %s0, %s556
        $region84: #{funnel_classifier_forward.1} parent=79 // pred_fallthru
          _
        // Predicated region
        $region85: #{funnel_classifier_forward.1} parent=79 // pred_check
          %p558 = pneg %p76
        $region86: #{funnel_classifier_forward.1} parent=79 // pred_check_branch
          %560 = sbr.rel (%p558) target = $region88
        $region87: #{funnel_classifier_forward.1} parent=79 // pred_region
          %p561 = scmp.lt.s32.totalorder %s30, 1
          %s562 = scalar_select %p561, %s30, 1
          %s563 = scalar_lea.vmem %s1, %s562
        $region88: #{funnel_classifier_forward.1} parent=79 // pred_fallthru
          _
      $region80: #{funnel_classifier_forward.1} parent=5 // pred_fallthru
        _
      %p564 = scmp.le.s32.totalorder 1, %s30
      %p565 = scmp.lt.s32.totalorder %s30, 3
      %p566 = pnand %p564, %p565
      %p567 = pneg %p566
      // Predicated region
      $region89: #{funnel_classifier_forward.1} parent=5 // pred_check
        _
      $region90: #{funnel_classifier_forward.1} parent=5 // pred_check_branch
        %569 = sbr.rel (%p566) target = $region92
      $region91: #{funnel_classifier_forward.1} parent=5 // pred_region
        %s570 = ssub.s32 %s30, 1
        // Predicated region
        $region93: #{funnel_classifier_forward.1} parent=91 // pred_check
          %p571 = pneg %p145
        $region94: #{funnel_classifier_forward.1} parent=91 // pred_check_branch
          %573 = sbr.rel (%p571) target = $region96
        $region95: #{funnel_classifier_forward.1} parent=91 // pred_region
          %574 = dma.done [#allocation3], 1536
        $region96: #{funnel_classifier_forward.1} parent=91 // pred_fallthru
          _
        // Predicated region
        $region97: #{funnel_classifier_forward.1} parent=91 // pred_check
          %p575 = pneg %p187
        $region98: #{funnel_classifier_forward.1} parent=91 // pred_check_branch
          %577 = sbr.rel (%p575) target = $region100
        $region99: #{funnel_classifier_forward.1} parent=91 // pred_region
          %578 = dma.done [#allocation6], 1536
        $region100: #{funnel_classifier_forward.1} parent=91 // pred_fallthru
          _
        // Predicated region
        $region101: #{funnel_classifier_forward.1} parent=91 // pred_check
          %p579 = pneg %p271
        $region102: #{funnel_classifier_forward.1} parent=91 // pred_check_branch
          %581 = sbr.rel (%p579) target = $region104
        $region103: #{funnel_classifier_forward.1} parent=91 // pred_region
          %582 = dma.done [#allocation6], 1536
        $region104: #{funnel_classifier_forward.1} parent=91 // pred_fallthru
          _
        // Predicated region
        $region105: #{funnel_classifier_forward.1} parent=91 // pred_check
          %p583 = pneg %p397
        $region106: #{funnel_classifier_forward.1} parent=91 // pred_check_branch
          %585 = sbr.rel (%p583) target = $region108
        $region107: #{funnel_classifier_forward.1} parent=91 // pred_region
          %586 = dma.done [#allocation9], 256
        $region108: #{funnel_classifier_forward.1} parent=91 // pred_fallthru
          _
        %p587 = scmp.lt.s32.totalorder %s35, 1
        %s588 = scalar_select %p587, %s35, 1
        %s589 = smul.addr %s588, 4
        %s590 = scalar_lea.vmem %s0, %s589
        %p591 = pneg %p56
        %p592 = pneg %p53
        %p593 = scmp.lt.s32.totalorder %s35, 1
        %s594 = scalar_select %p593, %s35, 1
        %s595 = scalar_lea.vmem %s1, %s594
        %p596 = pneg %p82
        %p597 = pneg %p79
        %p598 = pneg %p103
        %p599 = pneg %p100
        %p600 = pneg %p124
        %p601 = pneg %p121
        %p602 = pneg %p145
        %p603 = pneg %p142
        %p604 = pneg %p166
        %p605 = pneg %p163
        %p606 = pneg %p187
        %p607 = pneg %p184
        %p608 = pneg %p208
        %p609 = pneg %p205
        %p610 = pneg %p229
        %p611 = pneg %p226
        %p612 = pneg %p250
        %p613 = pneg %p247
        %p614 = pneg %p271
        %p615 = pneg %p268
        %p616 = pneg %p292
        %p617 = pneg %p289
        %p618 = pneg %p313
        %p619 = pneg %p310
        %p620 = pneg %p334
        %p621 = pneg %p331
        %p622 = pneg %p355
        %p623 = pneg %p352
        %p624 = pneg %p376
        %p625 = pneg %p373
        %p626 = pneg %p397
        %p627 = pneg %p394
        %p628 = pneg %p418
        %p629 = pneg %p415
        %p630 = pneg %p444
        %p631 = pneg %p441
        %s632 = sand.u32 %s431, 1
        %s633 = scalar_lea.sflag [#allocation4], %s632
        %s634 = sand.u32 %s431, 1
        %s635 = scalar_lea.vmem [#allocation10], %s634
        %p636 = scmp.lt.s32.totalorder %s35, 1
        %s637 = scalar_select %p636, %s35, 1
        %s638 = smul.addr %s637, 4
        %s639 = scalar_lea.vmem %s0, %s638
        %p640 = scmp.lt.s32.totalorder %s35, 1
        %s641 = scalar_select %p640, %s35, 1
        %s642 = scalar_lea.vmem %s1, %s641
        %v644 = vld [vmem:[%s639] sm:$0xf]
        %v645 = vunpack.c.l.bf16 %v644
        %v646 = vld [vmem:[%s2] sm:$0x1]
        %v647 = vld [vmem:[%s3] sm:$0x1]
        %vm648 = vcmask 261120
        %v649 = vsel %vm648, %v645, 0.0
        %650 = vadd.xlane.f32.xlu0 %v649
        %v651 = vpop.xlane.xlu0 %650
        %v652 = vrcp.pop 32.0
        %v653 = vmul.f32 %v651, %v652
        %v654 = vsub.f32 %v645, %v653
        %v655 = vmul.f32 %v654, %v654
        %v656 = vsel %vm648, %v655, 0.0
        %657 = vadd.xlane.f32.xlu0 %v656
        %v658 = vpop.xlane.xlu0 %657
        %v659 = vmul.f32 %v658, %v652
        %v660 = vadd.f32 %v659, 1e-09
        %v661 = vrsqrt.pop %v660
        %v662 = vmul.f32 %v654, %v661
        %v663 = vunpack.c.l.bf16 %v646
        %v664 = vlaneseq
        %v665 = vshrl.u32 %v664, 7
        %v666 = vsub.s32 0, %v665
        %v667 = vrot.slane %v663, %v666
        %v668 = vmul.f32 %v662, %v667
        %v669 = vunpack.c.l.bf16 %v647
        %v670 = vlaneseq
        %v671 = vshrl.u32 %v670, 7
        %v672 = vsub.s32 0, %v671
        %v673 = vrot.slane %v669, %v672
        %v674 = vadd.f32 %v668, %v673
        %v675 = vld [vmem:[%s642] sm:$0x1]
        %v676 = vld [vmem:[#allocation2] sm:$0xf]
        %v677 = vld [vmem:[#allocation2 + $0x4] sm:$0xf]
        %v678 = vld [vmem:[#allocation2 + $0x8] sm:$0xf]
        %v679 = vld [vmem:[#allocation2 + $0xc] sm:$0xf]
        %v680 = vpack.c.bf16 %v674, %v674
        %v681 = vld [vmem:[%s5] sm:$0x1]
        %v682 = vunpack.c.l.bf16 %v681
        %v683 = vlaneseq
        %v684 = vshrl.u32 %v683, 7
        %v685 = vsub.s32 0, %v684
        %v686 = vrot.slane %v682, %v685
        %v691 = vunpack.c.l.b16 %v676
        %v692 = vunpack.c.l.b16 %v677
        %v693 = vunpack.c.l.b16 %v678
        %v694 = vunpack.c.l.b16 %v679
        %v695 = vpack.c.b16 %v692, %v691
        %v696 = vpack.c.b16 %v694, %v693
        %v700 = vsel %vm648, %v680, 0
        %702 = vmatprep.subr.bf16.mxu0 0
        %703 = vmatpush1.bf16.msra.mxu0 %v695
        %704 = vmatprep.subr.bf16.mxu0 0
        %705 = vmatpush1.bf16.msra.mxu0 %v696
        %706 = vmatprep.subr.bf16.mxu0 0
        %707 = vmatpush1.bf16.msra.mxu0 0
        %708 = vmatprep.subr.bf16.mxu0 0
        %709 = vmatpush1.bf16.msra.mxu0 0
        %710 = vmatprep.subr.bf16.mxu0 0
        %711 = vmatpush1.bf16.msra.mxu0 0
        %712 = vmatprep.subr.bf16.mxu0 0
        %713 = vmatpush1.bf16.msra.mxu0 0
        %714 = vmatprep.subr.bf16.mxu0 0
        %715 = vmatpush1.bf16.msra.mxu0 0
        %716 = vmatprep.subr.bf16.mxu0 0
        %717 = vmatpush1.bf16.msra.mxu0 0
        %718 = vmatprep.subr.bf16.mxu0 0
        %719 = vmatpush1.bf16.msra.mxu0 0
        %720 = vmatprep.subr.bf16.mxu0 0
        %721 = vmatpush1.bf16.msra.mxu0 0
        %722 = vmatprep.subr.bf16.mxu0 0
        %723 = vmatpush1.bf16.msra.mxu0 0
        %724 = vmatprep.subr.bf16.mxu0 0
        %725 = vmatpush1.bf16.msra.mxu0 0
        %726 = vmatprep.subr.bf16.mxu0 0
        %727 = vmatpush1.bf16.msra.mxu0 0
        %728 = vmatprep.subr.bf16.mxu0 0
        %729 = vmatpush1.bf16.msra.mxu0 0
        %730 = vmatprep.subr.bf16.mxu0 0
        %731 = vmatpush1.bf16.msra.mxu0 0
        %732 = vmatprep.subr.bf16.mxu0 0
        %733 = vmatpush1.bf16.msra.mxu0 0
        %734 = vmatprep.mubr.bf16.mxu0 0
        %735 = vmatmul.mubr.bf16.gmra.mrb[0].mxu0 %v700
        %v736 = vpop.f32.mrb[0].mxu0
        %v737 = vadd.f32 %v686, %v736
        %v738 = vpop.f32.mrb[0].mxu0
        %v739 = vpop.f32.mrb[0].mxu0
        %v740 = vpop.f32.mrb[0].mxu0
        %741 = vdwg.mxu0
        %v742 = vmul.f32 %v737, 0.25
        %v744 = vlaneseq
        %v745 = vshrl.u32 %v744, 7
        %v746 = vsub.s32 0, %v745
        %v747 = vrot.slane %v675, %v746
        %v749 = vpack.c.bf16 %v742, %v742
        %v750 = vpack.c.bf16 %v737, %v737
        %752 = vrot.lane.b32.xlu0 %v750, 96
        %v753 = vpop.permute.xlu0 %752
        %vm754 = vcmask 130048
        %v756 = vsel %vm754, %v749, 0
        %v759 = vsel %vm754, %v753, 0
        %761 = vmatprep.subr.bf16.mxu0 0
        %762 = vmatpush1.bf16.xpose.msra.mxu0 %v759
        %763 = vmatprep.subr.bf16.mxu0 0
        %764 = vmatpush1.bf16.xpose.msra.mxu0 0
        %765 = vmatprep.subr.bf16.mxu0 0
        %766 = vmatpush1.bf16.xpose.msra.mxu0 0
        %767 = vmatprep.subr.bf16.mxu0 0
        %768 = vmatpush1.bf16.xpose.msra.mxu0 0
        %769 = vmatprep.subr.bf16.mxu0 0
        %770 = vmatpush1.bf16.xpose.msra.mxu0 0
        %771 = vmatprep.subr.bf16.mxu0 0
        %772 = vmatpush1.bf16.xpose.msra.mxu0 0
        %773 = vmatprep.subr.bf16.mxu0 0
        %774 = vmatpush1.bf16.xpose.msra.mxu0 0
        %775 = vmatprep.subr.bf16.mxu0 0
        %776 = vmatpush1.bf16.xpose.msra.mxu0 0
        %777 = vmatprep.subr.bf16.mxu0 0
        %778 = vmatpush1.bf16.xpose.msra.mxu0 0
        %779 = vmatprep.subr.bf16.mxu0 0
        %780 = vmatpush1.bf16.xpose.msra.mxu0 0
        %781 = vmatprep.subr.bf16.mxu0 0
        %782 = vmatpush1.bf16.xpose.msra.mxu0 0
        %783 = vmatprep.subr.bf16.mxu0 0
        %784 = vmatpush1.bf16.xpose.msra.mxu0 0
        %785 = vmatprep.subr.bf16.mxu0 0
        %786 = vmatpush1.bf16.xpose.msra.mxu0 0
        %787 = vmatprep.subr.bf16.mxu0 0
        %788 = vmatpush1.bf16.xpose.msra.mxu0 0
        %789 = vmatprep.subr.bf16.mxu0 0
        %790 = vmatpush1.bf16.xpose.msra.mxu0 0
        %791 = vmatprep.subr.bf16.mxu0 0
        %792 = vmatpush1.bf16.xpose.msra.mxu0 0
        %793 = vmatprep.mubr.bf16.mxu0 0
        %794 = vmatmul.mubr.bf16.gmra.mrb[0].mxu0 %v756
        %v795 = vpop.f32.mrb[0].mxu0
        %v796 = vadd.f32 %v747, %v795
        %v797 = vpop.f32.mrb[0].mxu0
        %v798 = vpop.f32.mrb[0].mxu0
        %v799 = vpop.f32.mrb[0].mxu0
        %800 = vdwg.mxu0
        %vm801 = vcmask 64512
        %v802 = vsel %vm801, %v796, -inf
        %803 = vmax.xlane.f32.xlu0 %v802
        %v804 = vpop.xlane.xlu0 %803
        %v805 = vsub.f32 %v796, %v804
        %v806 = vmul.f32 %v805, 1.442695
        %v807 = vpow.pop %v806
        %v808 = vsel %vm801, %v807, 0.0
        %809 = vadd.xlane.f32.xlu0 %v808
        %v810 = vpop.xlane.xlu0 %809
        %v811 = vrcp.pop %v810
        %v812 = vmul.f32 %v807, %v811
        %v813 = vpack.c.bf16 %v812, %v812
        %814 = vrot.lane.b32.xlu0 %v750, 64
        %v815 = vpop.permute.xlu0 %814
        %v817 = vsel %vm801, %v813, 0
        %vm819 = vcmask 1043456
        %v821 = vsel %vm819, %v815, 0
        %823 = vmatprep.subr.bf16.mxu0 0
        %824 = vmatpush1.bf16.msra.mxu0 %v821
        %825 = vmatprep.subr.bf16.mxu0 0
        %826 = vmatpush1.bf16.msra.mxu0 0
        %827 = vmatprep.subr.bf16.mxu0 0
        %828 = vmatpush1.bf16.msra.mxu0 0
        %829 = vmatprep.subr.bf16.mxu0 0
        %830 = vmatpush1.bf16.msra.mxu0 0
        %831 = vmatprep.subr.bf16.mxu0 0
        %832 = vmatpush1.bf16.msra.mxu0 0
        %833 = vmatprep.subr.bf16.mxu0 0
        %834 = vmatpush1.bf16.msra.mxu0 0
        %835 = vmatprep.subr.bf16.mxu0 0
        %836 = vmatpush1.bf16.msra.mxu0 0
        %837 = vmatprep.subr.bf16.mxu0 0
        %838 = vmatpush1.bf16.msra.mxu0 0
        %839 = vmatprep.subr.bf16.mxu0 0
        %840 = vmatpush1.bf16.msra.mxu0 0
        %841 = vmatprep.subr.bf16.mxu0 0
        %842 = vmatpush1.bf16.msra.mxu0 0
        %843 = vmatprep.subr.bf16.mxu0 0
        %844 = vmatpush1.bf16.msra.mxu0 0
        %845 = vmatprep.subr.bf16.mxu0 0
        %846 = vmatpush1.bf16.msra.mxu0 0
        %847 = vmatprep.subr.bf16.mxu0 0
        %848 = vmatpush1.bf16.msra.mxu0 0
        %849 = vmatprep.subr.bf16.mxu0 0
        %850 = vmatpush1.bf16.msra.mxu0 0
        %851 = vmatprep.subr.bf16.mxu0 0
        %852 = vmatpush1.bf16.msra.mxu0 0
        %853 = vmatprep.subr.bf16.mxu0 0
        %854 = vmatpush1.bf16.msra.mxu0 0
        %855 = vmatprep.mubr.bf16.mxu0 0
        %856 = vmatmul.mubr.bf16.gmra.mrb[0].mxu0 %v817
        %v857 = vpop.f32.mrb[0].mxu0
        %v858 = vadd.f32 0.0, %v857
        %v859 = vpop.f32.mrb[0].mxu0
        %v860 = vpop.f32.mrb[0].mxu0
        %v861 = vpop.f32.mrb[0].mxu0
        %862 = vdwg.mxu0
        %864 = vrot.lane.b32.xlu0 %v749, 112
        %v865 = vpop.permute.xlu0 %864
        %866 = vrot.lane.b32.xlu0 %v750, 80
        %v867 = vpop.permute.xlu0 %866
        %v869 = vsel %vm754, %v865, 0
        %v872 = vsel %vm754, %v867, 0
        %874 = vmatprep.subr.bf16.mxu0 0
        %875 = vmatpush1.bf16.xpose.msra.mxu0 %v872
        %876 = vmatprep.subr.bf16.mxu0 0
        %877 = vmatpush1.bf16.xpose.msra.mxu0 0
        %878 = vmatprep.subr.bf16.mxu0 0
        %879 = vmatpush1.bf16.xpose.msra.mxu0 0
        %880 = vmatprep.subr.bf16.mxu0 0
        %881 = vmatpush1.bf16.xpose.msra.mxu0 0
        %882 = vmatprep.subr.bf16.mxu0 0
        %883 = vmatpush1.bf16.xpose.msra.mxu0 0
        %884 = vmatprep.subr.bf16.mxu0 0
        %885 = vmatpush1.bf16.xpose.msra.mxu0 0
        %886 = vmatprep.subr.bf16.mxu0 0
        %887 = vmatpush1.bf16.xpose.msra.mxu0 0
        %888 = vmatprep.subr.bf16.mxu0 0
        %889 = vmatpush1.bf16.xpose.msra.mxu0 0
        %890 = vmatprep.subr.bf16.mxu0 0
        %891 = vmatpush1.bf16.xpose.msra.mxu0 0
        %892 = vmatprep.subr.bf16.mxu0 0
        %893 = vmatpush1.bf16.xpose.msra.mxu0 0
        %894 = vmatprep.subr.bf16.mxu0 0
        %895 = vmatpush1.bf16.xpose.msra.mxu0 0
        %896 = vmatprep.subr.bf16.mxu0 0
        %897 = vmatpush1.bf16.xpose.msra.mxu0 0
        %898 = vmatprep.subr.bf16.mxu0 0
        %899 = vmatpush1.bf16.xpose.msra.mxu0 0
        %900 = vmatprep.subr.bf16.mxu0 0
        %901 = vmatpush1.bf16.xpose.msra.mxu0 0
        %902 = vmatprep.subr.bf16.mxu0 0
        %903 = vmatpush1.bf16.xpose.msra.mxu0 0
        %904 = vmatprep.subr.bf16.mxu0 0
        %905 = vmatpush1.bf16.xpose.msra.mxu0 0
        %906 = vmatprep.mubr.bf16.mxu0 0
        %907 = vmatmul.mubr.bf16.gmra.mrb[0].mxu0 %v869
        %v908 = vpop.f32.mrb[0].mxu0
        %v909 = vadd.f32 %v747, %v908
        %v910 = vpop.f32.mrb[0].mxu0
        %v911 = vpop.f32.mrb[0].mxu0
        %v912 = vpop.f32.mrb[0].mxu0
        %913 = vdwg.mxu0
        %v914 = vsel %vm801, %v909, -inf
        %915 = vmax.xlane.f32.xlu0 %v914
        %v916 = vpop.xlane.xlu0 %915
        %v917 = vsub.f32 %v909, %v916
        %v918 = vmul.f32 %v917, 1.442695
        %v919 = vpow.pop %v918
        %v920 = vsel %vm801, %v919, 0.0
        %921 = vadd.xlane.f32.xlu0 %v920
        %v922 = vpop.xlane.xlu0 %921
        %v923 = vrcp.pop %v922
        %v924 = vmul.f32 %v919, %v923
        %v925 = vpack.c.bf16 %v924, %v924
        %926 = vrot.lane.b32.xlu0 %v750, 48
        %v927 = vpop.permute.xlu0 %926
        %v929 = vsel %vm801, %v925, 0
        %v932 = vsel %vm819, %v927, 0
        %934 = vmatprep.subr.bf16.mxu0 0
        %935 = vmatpush1.bf16.msra.mxu0 %v932
        %936 = vmatprep.subr.bf16.mxu0 0
        %937 = vmatpush1.bf16.msra.mxu0 0
        %938 = vmatprep.subr.bf16.mxu0 0
        %939 = vmatpush1.bf16.msra.mxu0 0
        %940 = vmatprep.subr.bf16.mxu0 0
        %941 = vmatpush1.bf16.msra.mxu0 0
        %942 = vmatprep.subr.bf16.mxu0 0
        %943 = vmatpush1.bf16.msra.mxu0 0
        %944 = vmatprep.subr.bf16.mxu0 0
        %945 = vmatpush1.bf16.msra.mxu0 0
        %946 = vmatprep.subr.bf16.mxu0 0
        %947 = vmatpush1.bf16.msra.mxu0 0
        %948 = vmatprep.subr.bf16.mxu0 0
        %949 = vmatpush1.bf16.msra.mxu0 0
        %950 = vmatprep.subr.bf16.mxu0 0
        %951 = vmatpush1.bf16.msra.mxu0 0
        %952 = vmatprep.subr.bf16.mxu0 0
        %953 = vmatpush1.bf16.msra.mxu0 0
        %954 = vmatprep.subr.bf16.mxu0 0
        %955 = vmatpush1.bf16.msra.mxu0 0
        %956 = vmatprep.subr.bf16.mxu0 0
        %957 = vmatpush1.bf16.msra.mxu0 0
        %958 = vmatprep.subr.bf16.mxu0 0
        %959 = vmatpush1.bf16.msra.mxu0 0
        %960 = vmatprep.subr.bf16.mxu0 0
        %961 = vmatpush1.bf16.msra.mxu0 0
        %962 = vmatprep.subr.bf16.mxu0 0
        %963 = vmatpush1.bf16.msra.mxu0 0
        %964 = vmatprep.subr.bf16.mxu0 0
        %965 = vmatpush1.bf16.msra.mxu0 0
        %966 = vmatprep.mubr.bf16.mxu0 0
        %967 = vmatmul.mubr.bf16.gmra.mrb[0].mxu0 %v929
        %v968 = vpop.f32.mrb[0].mxu0
        %v969 = vadd.f32 0.0, %v968
        %v970 = vpop.f32.mrb[0].mxu0
        %v971 = vpop.f32.mrb[0].mxu0
        %v972 = vpop.f32.mrb[0].mxu0
        %973 = vdwg.mxu0
        %975 = vrot.lane.b32.xlu0 %v969, 16
        %v976 = vpop.permute.xlu0 %975
        %v978 = vsel %vm754, %v858, %v976
        %v979 = vld [vmem:[#allocation5] sm:$0xf]
        %v980 = vld [vmem:[#allocation5 + $0x4] sm:$0xf]
        %v981 = vld [vmem:[#allocation5 + $0x8] sm:$0xf]
        %v982 = vld [vmem:[#allocation5 + $0xc] sm:$0xf]
        %v983 = vpack.c.bf16 %v978, %v978
        %v984 = vld [vmem:[%s7] sm:$0x1]
        %v985 = vunpack.c.l.bf16 %v984
        %v986 = vlaneseq
        %v987 = vshrl.u32 %v986, 7
        %v988 = vsub.s32 0, %v987
        %v989 = vrot.slane %v985, %v988
        %v994 = vunpack.c.l.b16 %v979
        %v995 = vunpack.c.l.b16 %v980
        %v996 = vunpack.c.l.b16 %v981
        %v997 = vunpack.c.l.b16 %v982
        %v998 = vpack.c.b16 %v995, %v994
        %v999 = vpack.c.b16 %v997, %v996
        %v1003 = vsel %vm648, %v983, 0
        %1005 = vmatprep.subr.bf16.mxu0 0
        %1006 = vmatpush1.bf16.msra.mxu0 %v998
        %1007 = vmatprep.subr.bf16.mxu0 0
        %1008 = vmatpush1.bf16.msra.mxu0 %v999
        %1009 = vmatprep.subr.bf16.mxu0 0
        %1010 = vmatpush1.bf16.msra.mxu0 0
        %1011 = vmatprep.subr.bf16.mxu0 0
        %1012 = vmatpush1.bf16.msra.mxu0 0
        %1013 = vmatprep.subr.bf16.mxu0 0
        %1014 = vmatpush1.bf16.msra.mxu0 0
        %1015 = vmatprep.subr.bf16.mxu0 0
        %1016 = vmatpush1.bf16.msra.mxu0 0
        %1017 = vmatprep.subr.bf16.mxu0 0
        %1018 = vmatpush1.bf16.msra.mxu0 0
        %1019 = vmatprep.subr.bf16.mxu0 0
        %1020 = vmatpush1.bf16.msra.mxu0 0
        %1021 = vmatprep.subr.bf16.mxu0 0
        %1022 = vmatpush1.bf16.msra.mxu0 0
        %1023 = vmatprep.subr.bf16.mxu0 0
        %1024 = vmatpush1.bf16.msra.mxu0 0
        %1025 = vmatprep.subr.bf16.mxu0 0
        %1026 = vmatpush1.bf16.msra.mxu0 0
        %1027 = vmatprep.subr.bf16.mxu0 0
        %1028 = vmatpush1.bf16.msra.mxu0 0
        %1029 = vmatprep.subr.bf16.mxu0 0
        %1030 = vmatpush1.bf16.msra.mxu0 0
        %1031 = vmatprep.subr.bf16.mxu0 0
        %1032 = vmatpush1.bf16.msra.mxu0 0
        %1033 = vmatprep.subr.bf16.mxu0 0
        %1034 = vmatpush1.bf16.msra.mxu0 0
        %1035 = vmatprep.subr.bf16.mxu0 0
        %1036 = vmatpush1.bf16.msra.mxu0 0
        %1037 = vmatprep.mubr.bf16.mxu0 0
        %1038 = vmatmul.mubr.bf16.gmra.mrb[0].mxu0 %v1003
        %v1039 = vpop.f32.mrb[0].mxu0
        %v1040 = vadd.f32 %v989, %v1039
        %v1041 = vpop.f32.mrb[0].mxu0
        %v1042 = vpop.f32.mrb[0].mxu0
        %v1043 = vpop.f32.mrb[0].mxu0
        %1044 = vdwg.mxu0
        %v1045 = vadd.f32 %v674, %v1040
        %v1046 = vld [vmem:[%s8] sm:$0x1]
        %v1047 = vld [vmem:[%s9] sm:$0x1]
        %v1048 = vsel %vm648, %v1045, 0.0
        %1049 = vadd.xlane.f32.xlu0 %v1048
        %v1050 = vpop.xlane.xlu0 %1049
        %v1051 = vmul.f32 %v1050, %v652
        %v1052 = vsub.f32 %v1045, %v1051
        %v1053 = vmul.f32 %v1052, %v1052
        %v1054 = vsel %vm648, %v1053, 0.0
        %1055 = vadd.xlane.f32.xlu0 %v1054
        %v1056 = vpop.xlane.xlu0 %1055
        %v1057 = vmul.f32 %v1056, %v652
        %v1058 = vadd.f32 %v1057, 1e-09
        %v1059 = vrsqrt.pop %v1058
        %v1060 = vmul.f32 %v1052, %v1059
        %v1061 = vunpack.c.l.bf16 %v1046
        %v1062 = vlaneseq
        %v1063 = vshrl.u32 %v1062, 7
        %v1064 = vsub.s32 0, %v1063
        %v1065 = vrot.slane %v1061, %v1064
        %v1066 = vmul.f32 %v1060, %v1065
        %v1067 = vunpack.c.l.bf16 %v1047
        %v1068 = vlaneseq
        %v1069 = vshrl.u32 %v1068, 7
        %v1070 = vsub.s32 0, %v1069
        %v1071 = vrot.slane %v1067, %v1070
        %v1072 = vadd.f32 %v1066, %v1071
        %v1073 = vld [vmem:[#allocation7] sm:$0xf]
        %v1074 = vld [vmem:[#allocation7 + $0x4] sm:$0xf]
        %v1075 = vld [vmem:[#allocation7 + $0x8] sm:$0xf]
        %v1076 = vld [vmem:[#allocation7 + $0xc] sm:$0xf]
        %v1077 = vpack.c.bf16 %v1072, %v1072
        %v1078 = vld [vmem:[%s11] sm:$0x1]
        %v1079 = vunpack.c.l.bf16 %v1078
        %v1080 = vlaneseq
        %v1081 = vshrl.u32 %v1080, 7
        %v1082 = vsub.s32 0, %v1081
        %v1083 = vrot.slane %v1079, %v1082
        %v1088 = vunpack.c.l.b16 %v1073
        %v1089 = vunpack.c.l.b16 %v1074
        %v1090 = vunpack.c.l.b16 %v1075
        %v1091 = vunpack.c.l.b16 %v1076
        %v1092 = vpack.c.b16 %v1089, %v1088
        %v1093 = vpack.c.b16 %v1091, %v1090
        %v1097 = vsel %vm648, %v1077, 0
        %1099 = vmatprep.subr.bf16.mxu0 0
        %1100 = vmatpush1.bf16.msra.mxu0 %v1092
        %1101 = vmatprep.subr.bf16.mxu0 0
        %1102 = vmatpush1.bf16.msra.mxu0 %v1093
        %1103 = vmatprep.subr.bf16.mxu0 0
        %1104 = vmatpush1.bf16.msra.mxu0 0
        %1105 = vmatprep.subr.bf16.mxu0 0
        %1106 = vmatpush1.bf16.msra.mxu0 0
        %1107 = vmatprep.subr.bf16.mxu0 0
        %1108 = vmatpush1.bf16.msra.mxu0 0
        %1109 = vmatprep.subr.bf16.mxu0 0
        %1110 = vmatpush1.bf16.msra.mxu0 0
        %1111 = vmatprep.subr.bf16.mxu0 0
        %1112 = vmatpush1.bf16.msra.mxu0 0
        %1113 = vmatprep.subr.bf16.mxu0 0
        %1114 = vmatpush1.bf16.msra.mxu0 0
        %1115 = vmatprep.subr.bf16.mxu0 0
        %1116 = vmatpush1.bf16.msra.mxu0 0
        %1117 = vmatprep.subr.bf16.mxu0 0
        %1118 = vmatpush1.bf16.msra.mxu0 0
        %1119 = vmatprep.subr.bf16.mxu0 0
        %1120 = vmatpush1.bf16.msra.mxu0 0
        %1121 = vmatprep.subr.bf16.mxu0 0
        %1122 = vmatpush1.bf16.msra.mxu0 0
        %1123 = vmatprep.subr.bf16.mxu0 0
        %1124 = vmatpush1.bf16.msra.mxu0 0
        %1125 = vmatprep.subr.bf16.mxu0 0
        %1126 = vmatpush1.bf16.msra.mxu0 0
        %1127 = vmatprep.subr.bf16.mxu0 0
        %1128 = vmatpush1.bf16.msra.mxu0 0
        %1129 = vmatprep.subr.bf16.mxu0 0
        %1130 = vmatpush1.bf16.msra.mxu0 0
        %1131 = vmatprep.mubr.bf16.mxu0 0
        %1132 = vmatmul.mubr.bf16.gmra.mrb[0].mxu0 %v1097
        %v1133 = vpop.f32.mrb[0].mxu0
        %v1134 = vadd.f32 %v1083, %v1133
        %v1135 = vpop.f32.mrb[0].mxu0
        %v1136 = vpop.f32.mrb[0].mxu0
        %v1137 = vpop.f32.mrb[0].mxu0
        %1138 = vdwg.mxu0
        %v1139 = vmul.f32 %v1134, 0.5
        %v1140 = vmul.f32 %v1134, 0.044715
        %v1141 = vmul.f32 %v1140, %v1134
        %v1142 = vmul.f32 %v1141, %v1134
        %v1143 = vadd.f32 %v1134, %v1142
        %v1144 = vmul.f32 %v1143, 0.7978846
        %v1145 = vtanh.pop %v1144
        %v1146 = vadd.f32 %v1145, 1.0
        %v1147 = vmul.f32 %v1139, %v1146
        %v1148 = vld [vmem:[%s12] sm:$0xf]
        %v1149 = vld [vmem:[%s12 + $0x4] sm:$0xf]
        %v1150 = vld [vmem:[%s12 + $0x8] sm:$0xf]
        %v1151 = vld [vmem:[%s12 + $0xc] sm:$0xf]
        %v1152 = vld [vmem:[%s12 + $0x10] sm:$0xf]
        %v1153 = vld [vmem:[%s12 + $0x14] sm:$0xf]
        %v1154 = vld [vmem:[%s12 + $0x18] sm:$0xf]
        %v1155 = vld [vmem:[%s12 + $0x1c] sm:$0xf]
        %v1156 = vpack.c.bf16 %v1147, %v1147
        %v1157 = vld [vmem:[%s13] sm:$0x1]
        %v1158 = vunpack.c.l.bf16 %v1157
        %v1159 = vlaneseq
        %v1160 = vshrl.u32 %v1159, 7
        %v1161 = vsub.s32 0, %v1160
        %v1162 = vrot.slane %v1158, %v1161
        %v1171 = vunpack.c.l.b16 %v1148
        %v1172 = vunpack.c.l.b16 %v1149
        %v1173 = vunpack.c.l.b16 %v1150
        %v1174 = vunpack.c.l.b16 %v1151
        %v1175 = vunpack.c.l.b16 %v1152
        %v1176 = vunpack.c.l.b16 %v1153
        %v1177 = vunpack.c.l.b16 %v1154
        %v1178 = vunpack.c.l.b16 %v1155
        %v1179 = vpack.c.b16 %v1172, %v1171
        %v1180 = vpack.c.b16 %v1174, %v1173
        %v1181 = vpack.c.b16 %v1176, %v1175
        %v1182 = vpack.c.b16 %v1178, %v1177
        %vm1187 = vcmask 523264
        %v1189 = vsel %vm1187, %v1156, 0
        %1191 = vmatprep.subr.bf16.mxu0 0
        %1192 = vmatpush1.bf16.msra.mxu0 %v1179
        %1193 = vmatprep.subr.bf16.mxu0 0
        %1194 = vmatpush1.bf16.msra.mxu0 %v1180
        %1195 = vmatprep.subr.bf16.mxu0 0
        %1196 = vmatpush1.bf16.msra.mxu0 %v1181
        %1197 = vmatprep.subr.bf16.mxu0 0
        %1198 = vmatpush1.bf16.msra.mxu0 %v1182
        %1199 = vmatprep.subr.bf16.mxu0 0
        %1200 = vmatpush1.bf16.msra.mxu0 0
        %1201 = vmatprep.subr.bf16.mxu0 0
        %1202 = vmatpush1.bf16.msra.mxu0 0
        %1203 = vmatprep.subr.bf16.mxu0 0
        %1204 = vmatpush1.bf16.msra.mxu0 0
        %1205 = vmatprep.subr.bf16.mxu0 0
        %1206 = vmatpush1.bf16.msra.mxu0 0
        %1207 = vmatprep.subr.bf16.mxu0 0
        %1208 = vmatpush1.bf16.msra.mxu0 0
        %1209 = vmatprep.subr.bf16.mxu0 0
        %1210 = vmatpush1.bf16.msra.mxu0 0
        %1211 = vmatprep.subr.bf16.mxu0 0
        %1212 = vmatpush1.bf16.msra.mxu0 0
        %1213 = vmatprep.subr.bf16.mxu0 0
        %1214 = vmatpush1.bf16.msra.mxu0 0
        %1215 = vmatprep.subr.bf16.mxu0 0
        %1216 = vmatpush1.bf16.msra.mxu0 0
        %1217 = vmatprep.subr.bf16.mxu0 0
        %1218 = vmatpush1.bf16.msra.mxu0 0
        %1219 = vmatprep.subr.bf16.mxu0 0
        %1220 = vmatpush1.bf16.msra.mxu0 0
        %1221 = vmatprep.subr.bf16.mxu0 0
        %1222 = vmatpush1.bf16.msra.mxu0 0
        %1223 = vmatprep.mubr.bf16.mxu0 0
        %1224 = vmatmul.mubr.bf16.gmra.mrb[0].mxu0 %v1189
        %v1225 = vpop.f32.mrb[0].mxu0
        %v1226 = vadd.f32 %v1162, %v1225
        %v1227 = vpop.f32.mrb[0].mxu0
        %v1228 = vpop.f32.mrb[0].mxu0
        %v1229 = vpop.f32.mrb[0].mxu0
        %1230 = vdwg.mxu0
        %v1231 = vadd.f32 %v1072, %v1226
        %v1232 = vld [vmem:[%s14] sm:$0x1]
        %v1233 = vld [vmem:[%s15] sm:$0x1]
        %v1234 = vsel %vm648, %v1231, 0.0
        %1235 = vadd.xlane.f32.xlu0 %v1234
        %v1236 = vpop.xlane.xlu0 %1235
        %v1237 = vmul.f32 %v1236, %v652
        %v1238 = vsub.f32 %v1231, %v1237
        %v1239 = vmul.f32 %v1238, %v1238
        %v1240 = vsel %vm648, %v1239, 0.0
        %1241 = vadd.xlane.f32.xlu0 %v1240
        %v1242 = vpop.xlane.xlu0 %1241
        %v1243 = vmul.f32 %v1242, %v652
        %v1244 = vadd.f32 %v1243, 1e-09
        %v1245 = vrsqrt.pop %v1244
        %v1246 = vmul.f32 %v1238, %v1245
        %v1247 = vunpack.c.l.bf16 %v1232
        %v1248 = vlaneseq
        %v1249 = vshrl.u32 %v1248, 7
        %v1250 = vsub.s32 0, %v1249
        %v1251 = vrot.slane %v1247, %v1250
        %v1252 = vmul.f32 %v1246, %v1251
        %v1253 = vunpack.c.l.bf16 %v1233
        %v1254 = vlaneseq
        %v1255 = vshrl.u32 %v1254, 7
        %v1256 = vsub.s32 0, %v1255
        %v1257 = vrot.slane %v1253, %v1256
        %v1258 = vadd.f32 %v1252, %v1257
        %s1259 = scalar_lea.vmem [#allocation2], 16
        %v1260 = vld [vmem:[%s1259] sm:$0xf]
        %v1261 = vld [vmem:[%s1259 + $0x4] sm:$0xf]
        %v1262 = vld [vmem:[%s1259 + $0x8] sm:$0xf]
        %v1263 = vld [vmem:[%s1259 + $0xc] sm:$0xf]
        %v1264 = vpack.c.bf16 %v1258, %v1258
        %s1265 = scalar_lea.vmem %s5, 1
        %v1266 = vld [vmem:[%s1265] sm:$0x1]
        %v1267 = vunpack.c.l.bf16 %v1266
        %v1268 = vlaneseq
        %v1269 = vshrl.u32 %v1268, 7
        %v1270 = vsub.s32 0, %v1269
        %v1271 = vrot.slane %v1267, %v1270
        %v1276 = vunpack.c.l.b16 %v1260
        %v1277 = vunpack.c.l.b16 %v1261
        %v1278 = vunpack.c.l.b16 %v1262
        %v1279 = vunpack.c.l.b16 %v1263
        %v1280 = vpack.c.b16 %v1277, %v1276
        %v1281 = vpack.c.b16 %v1279, %v1278
        %v1285 = vsel %vm648, %v1264, 0
        %1287 = vmatprep.subr.bf16.mxu0 0
        %1288 = vmatpush1.bf16.msra.mxu0 %v1280
        %1289 = vmatprep.subr.bf16.mxu0 0
        %1290 = vmatpush1.bf16.msra.mxu0 %v1281
        %1291 = vmatprep.subr.bf16.mxu0 0
        %1292 = vmatpush1.bf16.msra.mxu0 0
        %1293 = vmatprep.subr.bf16.mxu0 0
        %1294 = vmatpush1.bf16.msra.mxu0 0
        %1295 = vmatprep.subr.bf16.mxu0 0
        %1296 = vmatpush1.bf16.msra.mxu0 0
        %1297 = vmatprep.subr.bf16.mxu0 0
        %1298 = vmatpush1.bf16.msra.mxu0 0
        %1299 = vmatprep.subr.bf16.mxu0 0
        %1300 = vmatpush1.bf16.msra.mxu0 0
        %1301 = vmatprep.subr.bf16.mxu0 0
        %1302 = vmatpush1.bf16.msra.mxu0 0
        %1303 = vmatprep.subr.bf16.mxu0 0
        %1304 = vmatpush1.bf16.msra.mxu0 0
        %1305 = vmatprep.subr.bf16.mxu0 0
        %1306 = vmatpush1.bf16.msra.mxu0 0
        %1307 = vmatprep.subr.bf16.mxu0 0
        %1308 = vmatpush1.bf16.msra.mxu0 0
        %1309 = vmatprep.subr.bf16.mxu0 0
        %1310 = vmatpush1.bf16.msra.mxu0 0
        %1311 = vmatprep.subr.bf16.mxu0 0
        %1312 = vmatpush1.bf16.msra.mxu0 0
        %1313 = vmatprep.subr.bf16.mxu0 0
        %1314 = vmatpush1.bf16.msra.mxu0 0
        %1315 = vmatprep.subr.bf16.mxu0 0
        %1316 = vmatpush1.bf16.msra.mxu0 0
        %1317 = vmatprep.subr.bf16.mxu0 0
        %1318 = vmatpush1.bf16.msra.mxu0 0
        %1319 = vmatprep.mubr.bf16.mxu0 0
        %1320 = vmatmul.mubr.bf16.gmra.mrb[0].mxu0 %v1285
        %v1321 = vpop.f32.mrb[0].mxu0
        %v1322 = vadd.f32 %v1271, %v1321
        %v1323 = vpop.f32.mrb[0].mxu0
        %v1324 = vpop.f32.mrb[0].mxu0
        %v1325 = vpop.f32.mrb[0].mxu0
        %1326 = vdwg.mxu0
        %v1327 = vmul.f32 %v1322, 0.25
        %v1328 = vpack.c.bf16 %v1327, %v1327
        %v1329 = vpack.c.bf16 %v1322, %v1322
        %1331 = vrot.lane.b32.xlu0 %v1329, 96
        %v1332 = vpop.permute.xlu0 %1331
        %v1334 = vsel %vm754, %v1328, 0
        %v1337 = vsel %vm754, %v1332, 0
        %1339 = vmatprep.subr.bf16.mxu0 0
        %1340 = vmatpush1.bf16.xpose.msra.mxu0 %v1337
        %1341 = vmatprep.subr.bf16.mxu0 0
        %1342 = vmatpush1.bf16.xpose.msra.mxu0 0
        %1343 = vmatprep.subr.bf16.mxu0 0
        %1344 = vmatpush1.bf16.xpose.msra.mxu0 0
        %1345 = vmatprep.subr.bf16.mxu0 0
        %1346 = vmatpush1.bf16.xpose.msra.mxu0 0
        %1347 = vmatprep.subr.bf16.mxu0 0
        %1348 = vmatpush1.bf16.xpose.msra.mxu0 0
        %1349 = vmatprep.subr.bf16.mxu0 0
        %1350 = vmatpush1.bf16.xpose.msra.mxu0 0
        %1351 = vmatprep.subr.bf16.mxu0 0
        %1352 = vmatpush1.bf16.xpose.msra.mxu0 0
        %1353 = vmatprep.subr.bf16.mxu0 0
        %1354 = vmatpush1.bf16.xpose.msra.mxu0 0
        %1355 = vmatprep.subr.bf16.mxu0 0
        %1356 = vmatpush1.bf16.xpose.msra.mxu0 0
        %1357 = vmatprep.subr.bf16.mxu0 0
        %1358 = vmatpush1.bf16.xpose.msra.mxu0 0
        %1359 = vmatprep.subr.bf16.mxu0 0
        %1360 = vmatpush1.bf16.xpose.msra.mxu0 0
        %1361 = vmatprep.subr.bf16.mxu0 0
        %1362 = vmatpush1.bf16.xpose.msra.mxu0 0
        %1363 = vmatprep.subr.bf16.mxu0 0
        %1364 = vmatpush1.bf16.xpose.msra.mxu0 0
        %1365 = vmatprep.subr.bf16.mxu0 0
        %1366 = vmatpush1.bf16.xpose.msra.mxu0 0
        %1367 = vmatprep.subr.bf16.mxu0 0
        %1368 = vmatpush1.bf16.xpose.msra.mxu0 0
        %1369 = vmatprep.subr.bf16.mxu0 0
        %1370 = vmatpush1.bf16.xpose.msra.mxu0 0
        %1371 = vmatprep.mubr.bf16.mxu0 0
        %1372 = vmatmul.mubr.bf16.gmra.mrb[0].mxu0 %v1334
        %v1373 = vpop.f32.mrb[0].mxu0
        %v1374 = vadd.f32 %v747, %v1373
        %v1375 = vpop.f32.mrb[0].mxu0
        %v1376 = vpop.f32.mrb[0].mxu0
        %v1377 = vpop.f32.mrb[0].mxu0
        %1378 = vdwg.mxu0
        %v1379 = vsel %vm801, %v1374, -inf
        %1380 = vmax.xlane.f32.xlu0 %v1379
        %v1381 = vpop.xlane.xlu0 %1380
        %v1382 = vsub.f32 %v1374, %v1381
        %v1383 = vmul.f32 %v1382, 1.442695
        %v1384 = vpow.pop %v1383
        %v1385 = vsel %vm801, %v1384, 0.0
        %1386 = vadd.xlane.f32.xlu0 %v1385
        %v1387 = vpop.xlane.xlu0 %1386
        %v1388 = vrcp.pop %v1387
        %v1389 = vmul.f32 %v1384, %v1388
        %v1390 = vpack.c.bf16 %v1389, %v1389
        %1391 = vrot.lane.b32.xlu0 %v1329, 64
        %v1392 = vpop.permute.xlu0 %1391
        %v1394 = vsel %vm801, %v1390, 0
        %v1397 = vsel %vm819, %v1392, 0
        %1399 = vmatprep.subr.bf16.mxu0 0
        %1400 = vmatpush1.bf16.msra.mxu0 %v1397
        %1401 = vmatprep.subr.bf16.mxu0 0
        %1402 = vmatpush1.bf16.msra.mxu0 0
        %1403 = vmatprep.subr.bf16.mxu0 0
        %1404 = vmatpush1.bf16.msra.mxu0 0
        %1405 = vmatprep.subr.bf16.mxu0 0
        %1406 = vmatpush1.bf16.msra.mxu0 0
        %1407 = vmatprep.subr.bf16.mxu0 0
        %1408 = vmatpush1.bf16.msra.mxu0 0
        %1409 = vmatprep.subr.bf16.mxu0 0
        %1410 = vmatpush1.bf16.msra.mxu0 0
        %1411 = vmatprep.subr.bf16.mxu0 0
        %1412 = vmatpush1.bf16.msra.mxu0 0
        %1413 = vmatprep.subr.bf16.mxu0 0
        %1414 = vmatpush1.bf16.msra.mxu0 0
        %1415 = vmatprep.subr.bf16.mxu0 0
        %1416 = vmatpush1.bf16.msra.mxu0 0
        %1417 = vmatprep.subr.bf16.mxu0 0
        %1418 = vmatpush1.bf16.msra.mxu0 0
        %1419 = vmatprep.subr.bf16.mxu0 0
        %1420 = vmatpush1.bf16.msra.mxu0 0
        %1421 = vmatprep.subr.bf16.mxu0 0
        %1422 = vmatpush1.bf16.msra.mxu0 0
        %1423 = vmatprep.subr.bf16.mxu0 0
        %1424 = vmatpush1.bf16.msra.mxu0 0
        %1425 = vmatprep.subr.bf16.mxu0 0
        %1426 = vmatpush1.bf16.msra.mxu0 0
        %1427 = vmatprep.subr.bf16.mxu0 0
        %1428 = vmatpush1.bf16.msra.mxu0 0
        %1429 = vmatprep.subr.bf16.mxu0 0
        %1430 = vmatpush1.bf16.msra.mxu0 0
        %1431 = vmatprep.mubr.bf16.mxu0 0
        %1432 = vmatmul.mubr.bf16.gmra.mrb[0].mxu0 %v1394
        %v1433 = vpop.f32.mrb[0].mxu0
        %v1434 = vadd.f32 0.0, %v1433
        %v1435 = vpop.f32.mrb[0].mxu0
        %v1436 = vpop.f32.mrb[0].mxu0
        %v1437 = vpop.f32.mrb[0].mxu0
        %1438 = vdwg.mxu0
        %1440 = vrot.lane.b32.xlu0 %v1328, 112
        %v1441 = vpop.permute.xlu0 %1440
        %1442 = vrot.lane.b32.xlu0 %v1329, 80
        %v1443 = vpop.permute.xlu0 %1442
        %v1445 = vsel %vm754, %v1441, 0
        %v1448 = vsel %vm754, %v1443, 0
        %1450 = vmatprep.subr.bf16.mxu0 0
        %1451 = vmatpush1.bf16.xpose.msra.mxu0 %v1448
        %1452 = vmatprep.subr.bf16.mxu0 0
        %1453 = vmatpush1.bf16.xpose.msra.mxu0 0
        %1454 = vmatprep.subr.bf16.mxu0 0
        %1455 = vmatpush1.bf16.xpose.msra.mxu0 0
        %1456 = vmatprep.subr.bf16.mxu0 0
        %1457 = vmatpush1.bf16.xpose.msra.mxu0 0
        %1458 = vmatprep.subr.bf16.mxu0 0
        %1459 = vmatpush1.bf16.xpose.msra.mxu0 0
        %1460 = vmatprep.subr.bf16.mxu0 0
        %1461 = vmatpush1.bf16.xpose.msra.mxu0 0
        %1462 = vmatprep.subr.bf16.mxu0 0
        %1463 = vmatpush1.bf16.xpose.msra.mxu0 0
        %1464 = vmatprep.subr.bf16.mxu0 0
        %1465 = vmatpush1.bf16.xpose.msra.mxu0 0
        %1466 = vmatprep.subr.bf16.mxu0 0
        %1467 = vmatpush1.bf16.xpose.msra.mxu0 0
        %1468 = vmatprep.subr.bf16.mxu0 0
        %1469 = vmatpush1.bf16.xpose.msra.mxu0 0
        %1470 = vmatprep.subr.bf16.mxu0 0
        %1471 = vmatpush1.bf16.xpose.msra.mxu0 0
        %1472 = vmatprep.subr.bf16.mxu0 0
        %1473 = vmatpush1.bf16.xpose.msra.mxu0 0
        %1474 = vmatprep.subr.bf16.mxu0 0
        %1475 = vmatpush1.bf16.xpose.msra.mxu0 0
        %1476 = vmatprep.subr.bf16.mxu0 0
        %1477 = vmatpush1.bf16.xpose.msra.mxu0 0
        %1478 = vmatprep.subr.bf16.mxu0 0
        %1479 = vmatpush1.bf16.xpose.msra.mxu0 0
        %1480 = vmatprep.subr.bf16.mxu0 0
        %1481 = vmatpush1.bf16.xpose.msra.mxu0 0
        %1482 = vmatprep.mubr.bf16.mxu0 0
        %1483 = vmatmul.mubr.bf16.gmra.mrb[0].mxu0 %v1445
        %v1484 = vpop.f32.mrb[0].mxu0
        %v1485 = vadd.f32 %v747, %v1484
        %v1486 = vpop.f32.mrb[0].mxu0
        %v1487 = vpop.f32.mrb[0].mxu0
        %v1488 = vpop.f32.mrb[0].mxu0
        %1489 = vdwg.mxu0
        %v1490 = vsel %vm801, %v1485, -inf
        %1491 = vmax.xlane.f32.xlu0 %v1490
        %v1492 = vpop.xlane.xlu0 %1491
        %v1493 = vsub.f32 %v1485, %v1492
        %v1494 = vmul.f32 %v1493, 1.442695
        %v1495 = vpow.pop %v1494
        %v1496 = vsel %vm801, %v1495, 0.0
        %1497 = vadd.xlane.f32.xlu0 %v1496
        %v1498 = vpop.xlane.xlu0 %1497
        %v1499 = vrcp.pop %v1498
        %v1500 = vmul.f32 %v1495, %v1499
        %v1501 = vpack.c.bf16 %v1500, %v1500
        %1502 = vrot.lane.b32.xlu0 %v1329, 48
        %v1503 = vpop.permute.xlu0 %1502
        %v1505 = vsel %vm801, %v1501, 0
        %v1508 = vsel %vm819, %v1503, 0
        %1510 = vmatprep.subr.bf16.mxu0 0
        %1511 = vmatpush1.bf16.msra.mxu0 %v1508
        %1512 = vmatprep.subr.bf16.mxu0 0
        %1513 = vmatpush1.bf16.msra.mxu0 0
        %1514 = vmatprep.subr.bf16.mxu0 0
        %1515 = vmatpush1.bf16.msra.mxu0 0
        %1516 = vmatprep.subr.bf16.mxu0 0
        %1517 = vmatpush1.bf16.msra.mxu0 0
        %1518 = vmatprep.subr.bf16.mxu0 0
        %1519 = vmatpush1.bf16.msra.mxu0 0
        %1520 = vmatprep.subr.bf16.mxu0 0
        %1521 = vmatpush1.bf16.msra.mxu0 0
        %1522 = vmatprep.subr.bf16.mxu0 0
        %1523 = vmatpush1.bf16.msra.mxu0 0
        %1524 = vmatprep.subr.bf16.mxu0 0
        %1525 = vmatpush1.bf16.msra.mxu0 0
        %1526 = vmatprep.subr.bf16.mxu0 0
        %1527 = vmatpush1.bf16.msra.mxu0 0
        %1528 = vmatprep.subr.bf16.mxu0 0
        %1529 = vmatpush1.bf16.msra.mxu0 0
        %1530 = vmatprep.subr.bf16.mxu0 0
        %1531 = vmatpush1.bf16.msra.mxu0 0
        %1532 = vmatprep.subr.bf16.mxu0 0
        %1533 = vmatpush1.bf16.msra.mxu0 0
        %1534 = vmatprep.subr.bf16.mxu0 0
        %1535 = vmatpush1.bf16.msra.mxu0 0
        %1536 = vmatprep.subr.bf16.mxu0 0
        %1537 = vmatpush1.bf16.msra.mxu0 0
        %1538 = vmatprep.subr.bf16.mxu0 0
        %1539 = vmatpush1.bf16.msra.mxu0 0
        %1540 = vmatprep.subr.bf16.mxu0 0
        %1541 = vmatpush1.bf16.msra.mxu0 0
        %1542 = vmatprep.mubr.bf16.mxu0 0
        %1543 = vmatmul.mubr.bf16.gmra.mrb[0].mxu0 %v1505
        %v1544 = vpop.f32.mrb[0].mxu0
        %v1545 = vadd.f32 0.0, %v1544
        %v1546 = vpop.f32.mrb[0].mxu0
        %v1547 = vpop.f32.mrb[0].mxu0
        %v1548 = vpop.f32.mrb[0].mxu0
        %1549 = vdwg.mxu0
        %1551 = vrot.lane.b32.xlu0 %v1545, 16
        %v1552 = vpop.permute.xlu0 %1551
        %v1554 = vsel %vm754, %v1434, %v1552
        %s1555 = scalar_lea.vmem [#allocation5], 16
        %v1556 = vld [vmem:[%s1555] sm:$0xf]
        %v1557 = vld [vmem:[%s1555 + $0x4] sm:$0xf]
        %v1558 = vld [vmem:[%s1555 + $0x8] sm:$0xf]
        %v1559 = vld [vmem:[%s1555 + $0xc] sm:$0xf]
        %v1560 = vpack.c.bf16 %v1554, %v1554
        %s1561 = scalar_lea.vmem %s7, 1
        %v1562 = vld [vmem:[%s1561] sm:$0x1]
        %v1563 = vunpack.c.l.bf16 %v1562
        %v1564 = vlaneseq
        %v1565 = vshrl.u32 %v1564, 7
        %v1566 = vsub.s32 0, %v1565
        %v1567 = vrot.slane %v1563, %v1566
        %v1572 = vunpack.c.l.b16 %v1556
        %v1573 = vunpack.c.l.b16 %v1557
        %v1574 = vunpack.c.l.b16 %v1558
        %v1575 = vunpack.c.l.b16 %v1559
        %v1576 = vpack.c.b16 %v1573, %v1572
        %v1577 = vpack.c.b16 %v1575, %v1574
        %v1581 = vsel %vm648, %v1560, 0
        %1583 = vmatprep.subr.bf16.mxu0 0
        %1584 = vmatpush1.bf16.msra.mxu0 %v1576
        %1585 = vmatprep.subr.bf16.mxu0 0
        %1586 = vmatpush1.bf16.msra.mxu0 %v1577
        %1587 = vmatprep.subr.bf16.mxu0 0
        %1588 = vmatpush1.bf16.msra.mxu0 0
        %1589 = vmatprep.subr.bf16.mxu0 0
        %1590 = vmatpush1.bf16.msra.mxu0 0
        %1591 = vmatprep.subr.bf16.mxu0 0
        %1592 = vmatpush1.bf16.msra.mxu0 0
        %1593 = vmatprep.subr.bf16.mxu0 0
        %1594 = vmatpush1.bf16.msra.mxu0 0
        %1595 = vmatprep.subr.bf16.mxu0 0
        %1596 = vmatpush1.bf16.msra.mxu0 0
        %1597 = vmatprep.subr.bf16.mxu0 0
        %1598 = vmatpush1.bf16.msra.mxu0 0
        %1599 = vmatprep.subr.bf16.mxu0 0
        %1600 = vmatpush1.bf16.msra.mxu0 0
        %1601 = vmatprep.subr.bf16.mxu0 0
        %1602 = vmatpush1.bf16.msra.mxu0 0
        %1603 = vmatprep.subr.bf16.mxu0 0
        %1604 = vmatpush1.bf16.msra.mxu0 0
        %1605 = vmatprep.subr.bf16.mxu0 0
        %1606 = vmatpush1.bf16.msra.mxu0 0
        %1607 = vmatprep.subr.bf16.mxu0 0
        %1608 = vmatpush1.bf16.msra.mxu0 0
        %1609 = vmatprep.subr.bf16.mxu0 0
        %1610 = vmatpush1.bf16.msra.mxu0 0
        %1611 = vmatprep.subr.bf16.mxu0 0
        %1612 = vmatpush1.bf16.msra.mxu0 0
        %1613 = vmatprep.subr.bf16.mxu0 0
        %1614 = vmatpush1.bf16.msra.mxu0 0
        %1615 = vmatprep.mubr.bf16.mxu0 0
        %1616 = vmatmul.mubr.bf16.gmra.mrb[0].mxu0 %v1581
        %v1617 = vpop.f32.mrb[0].mxu0
        %v1618 = vadd.f32 %v1567, %v1617
        %v1619 = vpop.f32.mrb[0].mxu0
        %v1620 = vpop.f32.mrb[0].mxu0
        %v1621 = vpop.f32.mrb[0].mxu0
        %1622 = vdwg.mxu0
        %v1623 = vadd.f32 %v1258, %v1618
        %s1624 = scalar_lea.vmem %s8, 1
        %v1625 = vld [vmem:[%s1624] sm:$0x1]
        %s1626 = scalar_lea.vmem %s9, 1
        %v1627 = vld [vmem:[%s1626] sm:$0x1]
        %v1628 = vsel %vm648, %v1623, 0.0
        %1629 = vadd.xlane.f32.xlu0 %v1628
        %v1630 = vpop.xlane.xlu0 %1629
        %v1631 = vmul.f32 %v1630, %v652
        %v1632 = vsub.f32 %v1623, %v1631
        %v1633 = vmul.f32 %v1632, %v1632
        %v1634 = vsel %vm648, %v1633, 0.0
        %1635 = vadd.xlane.f32.xlu0 %v1634
        %v1636 = vpop.xlane.xlu0 %1635
        %v1637 = vmul.f32 %v1636, %v652
        %v1638 = vadd.f32 %v1637, 1e-09
        %v1639 = vrsqrt.pop %v1638
        %v1640 = vmul.f32 %v1632, %v1639
        %v1641 = vunpack.c.l.bf16 %v1625
        %v1642 = vlaneseq
        %v1643 = vshrl.u32 %v1642, 7
        %v1644 = vsub.s32 0, %v1643
        %v1645 = vrot.slane %v1641, %v1644
        %v1646 = vmul.f32 %v1640, %v1645
        %v1647 = vunpack.c.l.bf16 %v1627
        %v1648 = vlaneseq
        %v1649 = vshrl.u32 %v1648, 7
        %v1650 = vsub.s32 0, %v1649
        %v1651 = vrot.slane %v1647, %v1650
        %v1652 = vadd.f32 %v1646, %v1651
        %s1653 = scalar_lea.vmem [#allocation7], 16
        %v1654 = vld [vmem:[%s1653] sm:$0xf]
        %v1655 = vld [vmem:[%s1653 + $0x4] sm:$0xf]
        %v1656 = vld [vmem:[%s1653 + $0x8] sm:$0xf]
        %v1657 = vld [vmem:[%s1653 + $0xc] sm:$0xf]
        %v1658 = vpack.c.bf16 %v1652, %v1652
        %s1659 = scalar_lea.vmem %s11, 1
        %v1660 = vld [vmem:[%s1659] sm:$0x1]
        %v1661 = vunpack.c.l.bf16 %v1660
        %v1662 = vlaneseq
        %v1663 = vshrl.u32 %v1662, 7
        %v1664 = vsub.s32 0, %v1663
        %v1665 = vrot.slane %v1661, %v1664
        %v1670 = vunpack.c.l.b16 %v1654
        %v1671 = vunpack.c.l.b16 %v1655
        %v1672 = vunpack.c.l.b16 %v1656
        %v1673 = vunpack.c.l.b16 %v1657
        %v1674 = vpack.c.b16 %v1671, %v1670
        %v1675 = vpack.c.b16 %v1673, %v1672
        %v1679 = vsel %vm648, %v1658, 0
        %1681 = vmatprep.subr.bf16.mxu0 0
        %1682 = vmatpush1.bf16.msra.mxu0 %v1674
        %1683 = vmatprep.subr.bf16.mxu0 0
        %1684 = vmatpush1.bf16.msra.mxu0 %v1675
        %1685 = vmatprep.subr.bf16.mxu0 0
        %1686 = vmatpush1.bf16.msra.mxu0 0
        %1687 = vmatprep.subr.bf16.mxu0 0
        %1688 = vmatpush1.bf16.msra.mxu0 0
        %1689 = vmatprep.subr.bf16.mxu0 0
        %1690 = vmatpush1.bf16.msra.mxu0 0
        %1691 = vmatprep.subr.bf16.mxu0 0
        %1692 = vmatpush1.bf16.msra.mxu0 0
        %1693 = vmatprep.subr.bf16.mxu0 0
        %1694 = vmatpush1.bf16.msra.mxu0 0
        %1695 = vmatprep.subr.bf16.mxu0 0
        %1696 = vmatpush1.bf16.msra.mxu0 0
        %1697 = vmatprep.subr.bf16.mxu0 0
        %1698 = vmatpush1.bf16.msra.mxu0 0
        %1699 = vmatprep.subr.bf16.mxu0 0
        %1700 = vmatpush1.bf16.msra.mxu0 0
        %1701 = vmatprep.subr.bf16.mxu0 0
        %1702 = vmatpush1.bf16.msra.mxu0 0
        %1703 = vmatprep.subr.bf16.mxu0 0
        %1704 = vmatpush1.bf16.msra.mxu0 0
        %1705 = vmatprep.subr.bf16.mxu0 0
        %1706 = vmatpush1.bf16.msra.mxu0 0
        %1707 = vmatprep.subr.bf16.mxu0 0
        %1708 = vmatpush1.bf16.msra.mxu0 0
        %1709 = vmatprep.subr.bf16.mxu0 0
        %1710 = vmatpush1.bf16.msra.mxu0 0
        %1711 = vmatprep.subr.bf16.mxu0 0
        %1712 = vmatpush1.bf16.msra.mxu0 0
        %1713 = vmatprep.mubr.bf16.mxu0 0
        %1714 = vmatmul.mubr.bf16.gmra.mrb[0].mxu0 %v1679
        %v1715 = vpop.f32.mrb[0].mxu0
        %v1716 = vadd.f32 %v1665, %v1715
        %v1717 = vpop.f32.mrb[0].mxu0
        %v1718 = vpop.f32.mrb[0].mxu0
        %v1719 = vpop.f32.mrb[0].mxu0
        %1720 = vdwg.mxu0
        %v1721 = vmul.f32 %v1716, 0.5
        %v1722 = vmul.f32 %v1716, 0.044715
        %v1723 = vmul.f32 %v1722, %v1716
        %v1724 = vmul.f32 %v1723, %v1716
        %v1725 = vadd.f32 %v1716, %v1724
        %v1726 = vmul.f32 %v1725, 0.7978846
        %v1727 = vtanh.pop %v1726
        %v1728 = vadd.f32 %v1727, 1.0
        %v1729 = vmul.f32 %v1721, %v1728
        %s1730 = scalar_lea.vmem %s12, 32
        %v1731 = vld [vmem:[%s1730] sm:$0xf]
        %v1732 = vld [vmem:[%s1730 + $0x4] sm:$0xf]
        %v1733 = vld [vmem:[%s1730 + $0x8] sm:$0xf]
        %v1734 = vld [vmem:[%s1730 + $0xc] sm:$0xf]
        %v1735 = vld [vmem:[%s1730 + $0x10] sm:$0xf]
        %v1736 = vld [vmem:[%s1730 + $0x14] sm:$0xf]
        %v1737 = vld [vmem:[%s1730 + $0x18] sm:$0xf]
        %v1738 = vld [vmem:[%s1730 + $0x1c] sm:$0xf]
        %v1739 = vpack.c.bf16 %v1729, %v1729
        %s1740 = scalar_lea.vmem %s13, 1
        %v1741 = vld [vmem:[%s1740] sm:$0x1]
        %v1742 = vunpack.c.l.bf16 %v1741
        %v1743 = vlaneseq
        %v1744 = vshrl.u32 %v1743, 7
        %v1745 = vsub.s32 0, %v1744
        %v1746 = vrot.slane %v1742, %v1745
        %v1755 = vunpack.c.l.b16 %v1731
        %v1756 = vunpack.c.l.b16 %v1732
        %v1757 = vunpack.c.l.b16 %v1733
        %v1758 = vunpack.c.l.b16 %v1734
        %v1759 = vunpack.c.l.b16 %v1735
        %v1760 = vunpack.c.l.b16 %v1736
        %v1761 = vunpack.c.l.b16 %v1737
        %v1762 = vunpack.c.l.b16 %v1738
        %v1763 = vpack.c.b16 %v1756, %v1755
        %v1764 = vpack.c.b16 %v1758, %v1757
        %v1765 = vpack.c.b16 %v1760, %v1759
        %v1766 = vpack.c.b16 %v1762, %v1761
        %v1772 = vsel %vm1187, %v1739, 0
        %1774 = vmatprep.subr.bf16.mxu0 0
        %1775 = vmatpush1.bf16.msra.mxu0 %v1763
        %1776 = vmatprep.subr.bf16.mxu0 0
        %1777 = vmatpush1.bf16.msra.mxu0 %v1764
        %1778 = vmatprep.subr.bf16.mxu0 0
        %1779 = vmatpush1.bf16.msra.mxu0 %v1765
        %1780 = vmatprep.subr.bf16.mxu0 0
        %1781 = vmatpush1.bf16.msra.mxu0 %v1766
        %1782 = vmatprep.subr.bf16.mxu0 0
        %1783 = vmatpush1.bf16.msra.mxu0 0
        %1784 = vmatprep.subr.bf16.mxu0 0
        %1785 = vmatpush1.bf16.msra.mxu0 0
        %1786 = vmatprep.subr.bf16.mxu0 0
        %1787 = vmatpush1.bf16.msra.mxu0 0
        %1788 = vmatprep.subr.bf16.mxu0 0
        %1789 = vmatpush1.bf16.msra.mxu0 0
        %1790 = vmatprep.subr.bf16.mxu0 0
        %1791 = vmatpush1.bf16.msra.mxu0 0
        %1792 = vmatprep.subr.bf16.mxu0 0
        %1793 = vmatpush1.bf16.msra.mxu0 0
        %1794 = vmatprep.subr.bf16.mxu0 0
        %1795 = vmatpush1.bf16.msra.mxu0 0
        %1796 = vmatprep.subr.bf16.mxu0 0
        %1797 = vmatpush1.bf16.msra.mxu0 0
        %1798 = vmatprep.subr.bf16.mxu0 0
        %1799 = vmatpush1.bf16.msra.mxu0 0
        %1800 = vmatprep.subr.bf16.mxu0 0
        %1801 = vmatpush1.bf16.msra.mxu0 0
        %1802 = vmatprep.subr.bf16.mxu0 0
        %1803 = vmatpush1.bf16.msra.mxu0 0
        %1804 = vmatprep.subr.bf16.mxu0 0
        %1805 = vmatpush1.bf16.msra.mxu0 0
        %1806 = vmatprep.mubr.bf16.mxu0 0
        %1807 = vmatmul.mubr.bf16.gmra.mrb[0].mxu0 %v1772
        %v1808 = vpop.f32.mrb[0].mxu0
        %v1809 = vadd.f32 %v1746, %v1808
        %v1810 = vpop.f32.mrb[0].mxu0
        %v1811 = vpop.f32.mrb[0].mxu0
        %v1812 = vpop.f32.mrb[0].mxu0
        %1813 = vdwg.mxu0
        %v1814 = vadd.f32 %v1652, %v1809
        %s1815 = scalar_lea.vmem %s14, 1
        %v1816 = vld [vmem:[%s1815] sm:$0x1]
        %s1817 = scalar_lea.vmem %s15, 1
        %v1818 = vld [vmem:[%s1817] sm:$0x1]
        %v1819 = vsel %vm648, %v1814, 0.0
        %1820 = vadd.xlane.f32.xlu0 %v1819
        %v1821 = vpop.xlane.xlu0 %1820
        %v1822 = vmul.f32 %v1821, %v652
        %v1823 = vsub.f32 %v1814, %v1822
        %v1824 = vmul.f32 %v1823, %v1823
        %v1825 = vsel %vm648, %v1824, 0.0
        %1826 = vadd.xlane.f32.xlu0 %v1825
        %v1827 = vpop.xlane.xlu0 %1826
        %v1828 = vmul.f32 %v1827, %v652
        %v1829 = vadd.f32 %v1828, 1e-09
        %v1830 = vrsqrt.pop %v1829
        %v1831 = vmul.f32 %v1823, %v1830
        %v1832 = vunpack.c.l.bf16 %v1816
        %v1833 = vlaneseq
        %v1834 = vshrl.u32 %v1833, 7
        %v1835 = vsub.s32 0, %v1834
        %v1836 = vrot.slane %v1832, %v1835
        %v1837 = vmul.f32 %v1831, %v1836
        %v1838 = vunpack.c.l.bf16 %v1818
        %v1839 = vlaneseq
        %v1840 = vshrl.u32 %v1839, 7
        %v1841 = vsub.s32 0, %v1840
        %v1842 = vrot.slane %v1838, %v1841
        %v1843 = vadd.f32 %v1837, %v1842
        %v1844 = vlaneseq
        %v1845 = vshrl.u32 %v1844, 7
        %v1846 = vlaneseq
        %v1847 = vand.u32 %v1846, 127
        %v1848 = vmul.u32 %v1845, 2
        %vm1849 = vcmp.eq.s32.totalorder %v1847, %v1848
        %v1850 = vadd.s32 %v1848, 1
        %vm1851 = vcmp.eq.s32.totalorder %v1847, %v1850
        %vm1852 = vmor %vm1849, %vm1851
        %v1853 = vsel %vm1852, 0.5, 0.0
        %v1854 = vsel %vm801, %v675, 0
        %v1857 = vsel %vm801, %v1853, 0
        %1859 = vmatprep.subr.mxu0 0.0
        %1860 = vmatpush1.xpose.msra.mxu0 %v1857
        %1861 = vmatprep.subr.mxu0 0.0
        %1862 = vmatpush1.xpose.msra.mxu0 0.0
        %1863 = vmatprep.subr.mxu0 0.0
        %1864 = vmatpush1.xpose.msra.mxu0 0.0
        %1865 = vmatprep.subr.mxu0 0.0
        %1866 = vmatpush1.xpose.msra.mxu0 0.0
        %1867 = vmatprep.subr.mxu0 0.0
        %1868 = vmatpush1.xpose.msra.mxu0 0.0
        %1869 = vmatprep.subr.mxu0 0.0
        %1870 = vmatpush1.xpose.msra.mxu0 0.0
        %1871 = vmatprep.subr.mxu0 0.0
        %1872 = vmatpush1.xpose.msra.mxu0 0.0
        %1873 = vmatprep.subr.mxu0 0.0
        %1874 = vmatpush1.xpose.msra.mxu0 0.0
        %1875 = vmatprep.subr.mxu0 0.0
        %1876 = vmatpush1.xpose.msra.mxu0 0.0
        %1877 = vmatprep.subr.mxu0 0.0
        %1878 = vmatpush1.xpose.msra.mxu0 0.0
        %1879 = vmatprep.subr.mxu0 0.0
        %1880 = vmatpush1.xpose.msra.mxu0 0.0
        %1881 = vmatprep.subr.mxu0 0.0
        %1882 = vmatpush1.xpose.msra.mxu0 0.0
        %1883 = vmatprep.subr.mxu0 0.0
        %1884 = vmatpush1.xpose.msra.mxu0 0.0
        %1885 = vmatprep.subr.mxu0 0.0
        %1886 = vmatpush1.xpose.msra.mxu0 0.0
        %1887 = vmatprep.subr.mxu0 0.0
        %1888 = vmatpush1.xpose.msra.mxu0 0.0
        %1889 = vmatprep.subr.mxu0 0.0
        %1890 = vmatpush1.xpose.msra.mxu0 0.0
        %1891 = vmatprep.subr.mxu0 0.0
        %1892 = vmatpush1.xpose.msra.mxu0 0.0
        %1893 = vmatprep.subr.mxu0 0.0
        %1894 = vmatpush1.xpose.msra.mxu0 0.0
        %1895 = vmatprep.subr.mxu0 0.0
        %1896 = vmatpush1.xpose.msra.mxu0 0.0
        %1897 = vmatprep.subr.mxu0 0.0
        %1898 = vmatpush1.xpose.msra.mxu0 0.0
        %1899 = vmatprep.subr.mxu0 0.0
        %1900 = vmatpush1.xpose.msra.mxu0 0.0
        %1901 = vmatprep.subr.mxu0 0.0
        %1902 = vmatpush1.xpose.msra.mxu0 0.0
        %1903 = vmatprep.subr.mxu0 0.0
        %1904 = vmatpush1.xpose.msra.mxu0 0.0
        %1905 = vmatprep.subr.mxu0 0.0
        %1906 = vmatpush1.xpose.msra.mxu0 0.0
        %1907 = vmatprep.subr.mxu0 0.0
        %1908 = vmatpush1.xpose.msra.mxu0 0.0
        %1909 = vmatprep.subr.mxu0 0.0
        %1910 = vmatpush1.xpose.msra.mxu0 0.0
        %1911 = vmatprep.subr.mxu0 0.0
        %1912 = vmatpush1.xpose.msra.mxu0 0.0
        %1913 = vmatprep.subr.mxu0 0.0
        %1914 = vmatpush1.xpose.msra.mxu0 0.0
        %1915 = vmatprep.subr.mxu0 0.0
        %1916 = vmatpush1.xpose.msra.mxu0 0.0
        %1917 = vmatprep.subr.mxu0 0.0
        %1918 = vmatpush1.xpose.msra.mxu0 0.0
        %1919 = vmatprep.subr.mxu0 0.0
        %1920 = vmatpush1.xpose.msra.mxu0 0.0
        %1921 = vmatprep.subr.mxu0 0.0
        %1922 = vmatpush1.xpose.msra.mxu0 0.0
        %1923 = vmatprep.mubr.f32.mxu0 0.0
        %1924 = vmatmul.mubr.f32.gmra.mrb[0].mxu0 %v1854
        %v1925 = vpop.f32.mrb[0].mxu0
        %v1926 = vadd.f32 0.0, %v1925
        %v1927 = vpop.f32.mrb[0].mxu0
        %1928 = vdwg.mxu0
        %s1929 = scalar_lea.vmem [#allocation2], 32
        %v1930 = vld [vmem:[%s1929] sm:$0xf]
        %v1931 = vld [vmem:[%s1929 + $0x4] sm:$0xf]
        %v1932 = vld [vmem:[%s1929 + $0x8] sm:$0xf]
        %v1933 = vld [vmem:[%s1929 + $0xc] sm:$0xf]
        %v1934 = vpack.c.bf16 %v1843, %v1843
        %s1935 = scalar_lea.vmem %s5, 2
        %v1936 = vld [vmem:[%s1935] sm:$0x1]
        %v1937 = vunpack.c.l.bf16 %v1936
        %v1938 = vlaneseq
        %v1939 = vshrl.u32 %v1938, 7
        %v1940 = vsub.s32 0, %v1939
        %v1941 = vrot.slane %v1937, %v1940
        %v1946 = vunpack.c.l.b16 %v1930
        %v1947 = vunpack.c.l.b16 %v1931
        %v1948 = vunpack.c.l.b16 %v1932
        %v1949 = vunpack.c.l.b16 %v1933
        %v1950 = vpack.c.b16 %v1947, %v1946
        %v1951 = vpack.c.b16 %v1949, %v1948
        %v1955 = vsel %vm648, %v1934, 0
        %1957 = vmatprep.subr.bf16.mxu0 0
        %1958 = vmatpush1.bf16.msra.mxu0 %v1950
        %1959 = vmatprep.subr.bf16.mxu0 0
        %1960 = vmatpush1.bf16.msra.mxu0 %v1951
        %1961 = vmatprep.subr.bf16.mxu0 0
        %1962 = vmatpush1.bf16.msra.mxu0 0
        %1963 = vmatprep.subr.bf16.mxu0 0
        %1964 = vmatpush1.bf16.msra.mxu0 0
        %1965 = vmatprep.subr.bf16.mxu0 0
        %1966 = vmatpush1.bf16.msra.mxu0 0
        %1967 = vmatprep.subr.bf16.mxu0 0
        %1968 = vmatpush1.bf16.msra.mxu0 0
        %1969 = vmatprep.subr.bf16.mxu0 0
        %1970 = vmatpush1.bf16.msra.mxu0 0
        %1971 = vmatprep.subr.bf16.mxu0 0
        %1972 = vmatpush1.bf16.msra.mxu0 0
        %1973 = vmatprep.subr.bf16.mxu0 0
        %1974 = vmatpush1.bf16.msra.mxu0 0
        %1975 = vmatprep.subr.bf16.mxu0 0
        %1976 = vmatpush1.bf16.msra.mxu0 0
        %1977 = vmatprep.subr.bf16.mxu0 0
        %1978 = vmatpush1.bf16.msra.mxu0 0
        %1979 = vmatprep.subr.bf16.mxu0 0
        %1980 = vmatpush1.bf16.msra.mxu0 0
        %1981 = vmatprep.subr.bf16.mxu0 0
        %1982 = vmatpush1.bf16.msra.mxu0 0
        %1983 = vmatprep.subr.bf16.mxu0 0
        %1984 = vmatpush1.bf16.msra.mxu0 0
        %1985 = vmatprep.subr.bf16.mxu0 0
        %1986 = vmatpush1.bf16.msra.mxu0 0
        %1987 = vmatprep.subr.bf16.mxu0 0
        %1988 = vmatpush1.bf16.msra.mxu0 0
        %1989 = vmatprep.mubr.bf16.mxu0 0
        %1990 = vmatmul.mubr.bf16.gmra.mrb[0].mxu0 %v1955
        %v1991 = vpop.f32.mrb[0].mxu0
        %v1992 = vadd.f32 %v1941, %v1991
        %v1993 = vpop.f32.mrb[0].mxu0
        %v1994 = vpop.f32.mrb[0].mxu0
        %v1995 = vpop.f32.mrb[0].mxu0
        %1996 = vdwg.mxu0
        %1997 = vmatprep.subr.mxu0 0.0
        %1998 = vmatpush1.msra.mxu0 %v1992
        %1999 = vmatprep.subr.mxu0 0.0
        %2000 = vmatpush1.msra.mxu0 0.0
        %2001 = vmatprep.subr.mxu0 0.0
        %2002 = vmatpush1.msra.mxu0 0.0
        %2003 = vmatprep.subr.mxu0 0.0
        %2004 = vmatpush1.msra.mxu0 0.0
        %2005 = vmatprep.subr.mxu0 0.0
        %2006 = vmatpush1.msra.mxu0 0.0
        %2007 = vmatprep.subr.mxu0 0.0
        %2008 = vmatpush1.msra.mxu0 0.0
        %2009 = vmatprep.subr.mxu0 0.0
        %2010 = vmatpush1.msra.mxu0 0.0
        %2011 = vmatprep.subr.mxu0 0.0
        %2012 = vmatpush1.msra.mxu0 0.0
        %2013 = vmatprep.subr.mxu0 0.0
        %2014 = vmatpush1.msra.mxu0 0.0
        %2015 = vmatprep.subr.mxu0 0.0
        %2016 = vmatpush1.msra.mxu0 0.0
        %2017 = vmatprep.subr.mxu0 0.0
        %2018 = vmatpush1.msra.mxu0 0.0
        %2019 = vmatprep.subr.mxu0 0.0
        %2020 = vmatpush1.msra.mxu0 0.0
        %2021 = vmatprep.subr.mxu0 0.0
        %2022 = vmatpush1.msra.mxu0 0.0
        %2023 = vmatprep.subr.mxu0 0.0
        %2024 = vmatpush1.msra.mxu0 0.0
        %2025 = vmatprep.subr.mxu0 0.0
        %2026 = vmatpush1.msra.mxu0 0.0
        %2027 = vmatprep.subr.mxu0 0.0
        %2028 = vmatpush1.msra.mxu0 0.0
        %2029 = vmatprep.subr.mxu0 0.0
        %2030 = vmatpush1.msra.mxu0 0.0
        %2031 = vmatprep.subr.mxu0 0.0
        %2032 = vmatpush1.msra.mxu0 0.0
        %2033 = vmatprep.subr.mxu0 0.0
        %2034 = vmatpush1.msra.mxu0 0.0
        %2035 = vmatprep.subr.mxu0 0.0
        %2036 = vmatpush1.msra.mxu0 0.0
        %2037 = vmatprep.subr.mxu0 0.0
        %2038 = vmatpush1.msra.mxu0 0.0
        %2039 = vmatprep.subr.mxu0 0.0
        %2040 = vmatpush1.msra.mxu0 0.0
        %2041 = vmatprep.subr.mxu0 0.0
        %2042 = vmatpush1.msra.mxu0 0.0
        %2043 = vmatprep.subr.mxu0 0.0
        %2044 = vmatpush1.msra.mxu0 0.0
        %2045 = vmatprep.subr.mxu0 0.0
        %2046 = vmatpush1.msra.mxu0 0.0
        %2047 = vmatprep.subr.mxu0 0.0
        %2048 = vmatpush1.msra.mxu0 0.0
        %2049 = vmatprep.subr.mxu0 0.0
        %2050 = vmatpush1.msra.mxu0 0.0
        %2051 = vmatprep.subr.mxu0 0.0
        %2052 = vmatpush1.msra.mxu0 0.0
        %2053 = vmatprep.subr.mxu0 0.0
        %2054 = vmatpush1.msra.mxu0 0.0
        %2055 = vmatprep.subr.mxu0 0.0
        %2056 = vmatpush1.msra.mxu0 0.0
        %2057 = vmatprep.subr.mxu0 0.0
        %2058 = vmatpush1.msra.mxu0 0.0
        %2059 = vmatprep.subr.mxu0 0.0
        %2060 = vmatpush1.msra.mxu0 0.0
        %2061 = vmatprep.mubr.f32.mxu0 0.0
        %2062 = vmatmul.mubr.f32.gmra.mrb[0].mxu0 %v1857
        %v2063 = vpop.f32.mrb[0].mxu0
        %v2064 = vadd.f32 0.0, %v2063
        %v2065 = vpop.f32.mrb[0].mxu0
        %2066 = vdwg.mxu0
        %v2067 = vmul.f32 %v2064, 0.25
        %v2068 = vpack.c.bf16 %v2067, %v2067
        %v2069 = vpack.c.bf16 %v1992, %v1992
        %2071 = vrot.lane.b32.xlu0 %v2069, 96
        %v2072 = vpop.permute.xlu0 %2071
        %v2074 = vsel %vm754, %v2068, 0
        %v2077 = vsel %vm754, %v2072, 0
        %2079 = vmatprep.subr.bf16.mxu0 0
        %2080 = vmatpush1.bf16.xpose.msra.mxu0 %v2077
        %2081 = vmatprep.subr.bf16.mxu0 0
        %2082 = vmatpush1.bf16.xpose.msra.mxu0 0
        %2083 = vmatprep.subr.bf16.mxu0 0
        %2084 = vmatpush1.bf16.xpose.msra.mxu0 0
        %2085 = vmatprep.subr.bf16.mxu0 0
        %2086 = vmatpush1.bf16.xpose.msra.mxu0 0
        %2087 = vmatprep.subr.bf16.mxu0 0
        %2088 = vmatpush1.bf16.xpose.msra.mxu0 0
        %2089 = vmatprep.subr.bf16.mxu0 0
        %2090 = vmatpush1.bf16.xpose.msra.mxu0 0
        %2091 = vmatprep.subr.bf16.mxu0 0
        %2092 = vmatpush1.bf16.xpose.msra.mxu0 0
        %2093 = vmatprep.subr.bf16.mxu0 0
        %2094 = vmatpush1.bf16.xpose.msra.mxu0 0
        %2095 = vmatprep.subr.bf16.mxu0 0
        %2096 = vmatpush1.bf16.xpose.msra.mxu0 0
        %2097 = vmatprep.subr.bf16.mxu0 0
        %2098 = vmatpush1.bf16.xpose.msra.mxu0 0
        %2099 = vmatprep.subr.bf16.mxu0 0
        %2100 = vmatpush1.bf16.xpose.msra.mxu0 0
        %2101 = vmatprep.subr.bf16.mxu0 0
        %2102 = vmatpush1.bf16.xpose.msra.mxu0 0
        %2103 = vmatprep.subr.bf16.mxu0 0
        %2104 = vmatpush1.bf16.xpose.msra.mxu0 0
        %2105 = vmatprep.subr.bf16.mxu0 0
        %2106 = vmatpush1.bf16.xpose.msra.mxu0 0
        %2107 = vmatprep.subr.bf16.mxu0 0
        %2108 = vmatpush1.bf16.xpose.msra.mxu0 0
        %2109 = vmatprep.subr.bf16.mxu0 0
        %2110 = vmatpush1.bf16.xpose.msra.mxu0 0
        %2111 = vmatprep.mubr.bf16.mxu0 0
        %2112 = vmatmul.mubr.bf16.gmra.mrb[0].mxu0 %v2074
        %v2113 = vpop.f32.mrb[0].mxu0
        %v2114 = vadd.f32 %v747, %v2113
        %v2115 = vpop.f32.mrb[0].mxu0
        %v2116 = vpop.f32.mrb[0].mxu0
        %v2117 = vpop.f32.mrb[0].mxu0
        %2118 = vdwg.mxu0
        %vm2119 = vcmask 60416
        %v2120 = vsel %vm2119, %v2114, -inf
        %2121 = vmax.xlane.f32.xlu0 %v2120
        %v2122 = vpop.xlane.xlu0 %2121
        %v2123 = vsub.f32 %v2114, %v2122
        %v2124 = vmul.f32 %v2123, 1.442695
        %v2125 = vpow.pop %v2124
        %v2126 = vsel %vm2119, %v2125, 0.0
        %2127 = vadd.xlane.f32.xlu0 %v2126
        %v2128 = vpop.xlane.xlu0 %2127
        %v2129 = vrcp.pop %v2128
        %v2130 = vmul.f32 %v2125, %v2129
        %v2131 = vpack.c.bf16 %v2130, %v2130
        %2132 = vrot.lane.b32.xlu0 %v2069, 64
        %v2133 = vpop.permute.xlu0 %2132
        %v2135 = vsel %vm801, %v2131, 0
        %v2138 = vsel %vm819, %v2133, 0
        %2140 = vmatprep.subr.bf16.mxu0 0
        %2141 = vmatpush1.bf16.msra.mxu0 %v2138
        %2142 = vmatprep.subr.bf16.mxu0 0
        %2143 = vmatpush1.bf16.msra.mxu0 0
        %2144 = vmatprep.subr.bf16.mxu0 0
        %2145 = vmatpush1.bf16.msra.mxu0 0
        %2146 = vmatprep.subr.bf16.mxu0 0
        %2147 = vmatpush1.bf16.msra.mxu0 0
        %2148 = vmatprep.subr.bf16.mxu0 0
        %2149 = vmatpush1.bf16.msra.mxu0 0
        %2150 = vmatprep.subr.bf16.mxu0 0
        %2151 = vmatpush1.bf16.msra.mxu0 0
        %2152 = vmatprep.subr.bf16.mxu0 0
        %2153 = vmatpush1.bf16.msra.mxu0 0
        %2154 = vmatprep.subr.bf16.mxu0 0
        %2155 = vmatpush1.bf16.msra.mxu0 0
        %2156 = vmatprep.subr.bf16.mxu0 0
        %2157 = vmatpush1.bf16.msra.mxu0 0
        %2158 = vmatprep.subr.bf16.mxu0 0
        %2159 = vmatpush1.bf16.msra.mxu0 0
        %2160 = vmatprep.subr.bf16.mxu0 0
        %2161 = vmatpush1.bf16.msra.mxu0 0
        %2162 = vmatprep.subr.bf16.mxu0 0
        %2163 = vmatpush1.bf16.msra.mxu0 0
        %2164 = vmatprep.subr.bf16.mxu0 0
        %2165 = vmatpush1.bf16.msra.mxu0 0
        %2166 = vmatprep.subr.bf16.mxu0 0
        %2167 = vmatpush1.bf16.msra.mxu0 0
        %2168 = vmatprep.subr.bf16.mxu0 0
        %2169 = vmatpush1.bf16.msra.mxu0 0
        %2170 = vmatprep.subr.bf16.mxu0 0
        %2171 = vmatpush1.bf16.msra.mxu0 0
        %2172 = vmatprep.mubr.bf16.mxu0 0
        %2173 = vmatmul.mubr.bf16.gmra.mrb[0].mxu0 %v2135
        %v2174 = vpop.f32.mrb[0].mxu0
        %v2175 = vadd.f32 0.0, %v2174
        %v2176 = vpop.f32.mrb[0].mxu0
        %v2177 = vpop.f32.mrb[0].mxu0
        %v2178 = vpop.f32.mrb[0].mxu0
        %2179 = vdwg.mxu0
        %2181 = vrot.lane.b32.xlu0 %v2068, 112
        %v2182 = vpop.permute.xlu0 %2181
        %2183 = vrot.lane.b32.xlu0 %v2069, 80
        %v2184 = vpop.permute.xlu0 %2183
        %v2186 = vsel %vm754, %v2182, 0
        %v2189 = vsel %vm754, %v2184, 0
        %2191 = vmatprep.subr.bf16.mxu0 0
        %2192 = vmatpush1.bf16.xpose.msra.mxu0 %v2189
        %2193 = vmatprep.subr.bf16.mxu0 0
        %2194 = vmatpush1.bf16.xpose.msra.mxu0 0
        %2195 = vmatprep.subr.bf16.mxu0 0
        %2196 = vmatpush1.bf16.xpose.msra.mxu0 0
        %2197 = vmatprep.subr.bf16.mxu0 0
        %2198 = vmatpush1.bf16.xpose.msra.mxu0 0
        %2199 = vmatprep.subr.bf16.mxu0 0
        %2200 = vmatpush1.bf16.xpose.msra.mxu0 0
        %2201 = vmatprep.subr.bf16.mxu0 0
        %2202 = vmatpush1.bf16.xpose.msra.mxu0 0
        %2203 = vmatprep.subr.bf16.mxu0 0
        %2204 = vmatpush1.bf16.xpose.msra.mxu0 0
        %2205 = vmatprep.subr.bf16.mxu0 0
        %2206 = vmatpush1.bf16.xpose.msra.mxu0 0
        %2207 = vmatprep.subr.bf16.mxu0 0
        %2208 = vmatpush1.bf16.xpose.msra.mxu0 0
        %2209 = vmatprep.subr.bf16.mxu0 0
        %2210 = vmatpush1.bf16.xpose.msra.mxu0 0
        %2211 = vmatprep.subr.bf16.mxu0 0
        %2212 = vmatpush1.bf16.xpose.msra.mxu0 0
        %2213 = vmatprep.subr.bf16.mxu0 0
        %2214 = vmatpush1.bf16.xpose.msra.mxu0 0
        %2215 = vmatprep.subr.bf16.mxu0 0
        %2216 = vmatpush1.bf16.xpose.msra.mxu0 0
        %2217 = vmatprep.subr.bf16.mxu0 0
        %2218 = vmatpush1.bf16.xpose.msra.mxu0 0
        %2219 = vmatprep.subr.bf16.mxu0 0
        %2220 = vmatpush1.bf16.xpose.msra.mxu0 0
        %2221 = vmatprep.subr.bf16.mxu0 0
        %2222 = vmatpush1.bf16.xpose.msra.mxu0 0
        %2223 = vmatprep.mubr.bf16.mxu0 0
        %2224 = vmatmul.mubr.bf16.gmra.mrb[0].mxu0 %v2186
        %v2225 = vpop.f32.mrb[0].mxu0
        %v2226 = vadd.f32 %v747, %v2225
        %v2227 = vpop.f32.mrb[0].mxu0
        %v2228 = vpop.f32.mrb[0].mxu0
        %v2229 = vpop.f32.mrb[0].mxu0
        %2230 = vdwg.mxu0
        %v2231 = vsel %vm2119, %v2226, -inf
        %2232 = vmax.xlane.f32.xlu0 %v2231
        %v2233 = vpop.xlane.xlu0 %2232
        %v2234 = vsub.f32 %v2226, %v2233
        %v2235 = vmul.f32 %v2234, 1.442695
        %v2236 = vpow.pop %v2235
        %v2237 = vsel %vm2119, %v2236, 0.0
        %2238 = vadd.xlane.f32.xlu0 %v2237
        %v2239 = vpop.xlane.xlu0 %2238
        %v2240 = vrcp.pop %v2239
        %v2241 = vmul.f32 %v2236, %v2240
        %v2242 = vpack.c.bf16 %v2241, %v2241
        %2243 = vrot.lane.b32.xlu0 %v2069, 48
        %v2244 = vpop.permute.xlu0 %2243
        %v2246 = vsel %vm801, %v2242, 0
        %v2249 = vsel %vm819, %v2244, 0
        %2251 = vmatprep.subr.bf16.mxu0 0
        %2252 = vmatpush1.bf16.msra.mxu0 %v2249
        %2253 = vmatprep.subr.bf16.mxu0 0
        %2254 = vmatpush1.bf16.msra.mxu0 0
        %2255 = vmatprep.subr.bf16.mxu0 0
        %2256 = vmatpush1.bf16.msra.mxu0 0
        %2257 = vmatprep.subr.bf16.mxu0 0
        %2258 = vmatpush1.bf16.msra.mxu0 0
        %2259 = vmatprep.subr.bf16.mxu0 0
        %2260 = vmatpush1.bf16.msra.mxu0 0
        %2261 = vmatprep.subr.bf16.mxu0 0
        %2262 = vmatpush1.bf16.msra.mxu0 0
        %2263 = vmatprep.subr.bf16.mxu0 0
        %2264 = vmatpush1.bf16.msra.mxu0 0
        %2265 = vmatprep.subr.bf16.mxu0 0
        %2266 = vmatpush1.bf16.msra.mxu0 0
        %2267 = vmatprep.subr.bf16.mxu0 0
        %2268 = vmatpush1.bf16.msra.mxu0 0
        %2269 = vmatprep.subr.bf16.mxu0 0
        %2270 = vmatpush1.bf16.msra.mxu0 0
        %2271 = vmatprep.subr.bf16.mxu0 0
        %2272 = vmatpush1.bf16.msra.mxu0 0
        %2273 = vmatprep.subr.bf16.mxu0 0
        %2274 = vmatpush1.bf16.msra.mxu0 0
        %2275 = vmatprep.subr.bf16.mxu0 0
        %2276 = vmatpush1.bf16.msra.mxu0 0
        %2277 = vmatprep.subr.bf16.mxu0 0
        %2278 = vmatpush1.bf16.msra.mxu0 0
        %2279 = vmatprep.subr.bf16.mxu0 0
        %2280 = vmatpush1.bf16.msra.mxu0 0
        %2281 = vmatprep.subr.bf16.mxu0 0
        %2282 = vmatpush1.bf16.msra.mxu0 0
        %2283 = vmatprep.mubr.bf16.mxu0 0
        %2284 = vmatmul.mubr.bf16.gmra.mrb[0].mxu0 %v2246
        %v2285 = vpop.f32.mrb[0].mxu0
        %v2286 = vadd.f32 0.0, %v2285
        %v2287 = vpop.f32.mrb[0].mxu0
        %v2288 = vpop.f32.mrb[0].mxu0
        %v2289 = vpop.f32.mrb[0].mxu0
        %2290 = vdwg.mxu0
        %2292 = vrot.lane.b32.xlu0 %v2286, 16
        %v2293 = vpop.permute.xlu0 %2292
        %v2295 = vsel %vm754, %v2175, %v2293
        %s2296 = scalar_lea.vmem [#allocation5], 32
        %v2297 = vld [vmem:[%s2296] sm:$0xf]
        %v2298 = vld [vmem:[%s2296 + $0x4] sm:$0xf]
        %v2299 = vld [vmem:[%s2296 + $0x8] sm:$0xf]
        %v2300 = vld [vmem:[%s2296 + $0xc] sm:$0xf]
        %v2301 = vpack.c.bf16 %v2295, %v2295
        %s2302 = scalar_lea.vmem %s7, 2
        %v2303 = vld [vmem:[%s2302] sm:$0x1]
        %v2304 = vunpack.c.l.bf16 %v2303
        %v2305 = vlaneseq
        %v2306 = vshrl.u32 %v2305, 7
        %v2307 = vsub.s32 0, %v2306
        %v2308 = vrot.slane %v2304, %v2307
        %v2313 = vunpack.c.l.b16 %v2297
        %v2314 = vunpack.c.l.b16 %v2298
        %v2315 = vunpack.c.l.b16 %v2299
        %v2316 = vunpack.c.l.b16 %v2300
        %v2317 = vpack.c.b16 %v2314, %v2313
        %v2318 = vpack.c.b16 %v2316, %v2315
        %v2322 = vsel %vm648, %v2301, 0
        %2324 = vmatprep.subr.bf16.mxu0 0
        %2325 = vmatpush1.bf16.msra.mxu0 %v2317
        %2326 = vmatprep.subr.bf16.mxu0 0
        %2327 = vmatpush1.bf16.msra.mxu0 %v2318
        %2328 = vmatprep.subr.bf16.mxu0 0
        %2329 = vmatpush1.bf16.msra.mxu0 0
        %2330 = vmatprep.subr.bf16.mxu0 0
        %2331 = vmatpush1.bf16.msra.mxu0 0
        %2332 = vmatprep.subr.bf16.mxu0 0
        %2333 = vmatpush1.bf16.msra.mxu0 0
        %2334 = vmatprep.subr.bf16.mxu0 0
        %2335 = vmatpush1.bf16.msra.mxu0 0
        %2336 = vmatprep.subr.bf16.mxu0 0
        %2337 = vmatpush1.bf16.msra.mxu0 0
        %2338 = vmatprep.subr.bf16.mxu0 0
        %2339 = vmatpush1.bf16.msra.mxu0 0
        %2340 = vmatprep.subr.bf16.mxu0 0
        %2341 = vmatpush1.bf16.msra.mxu0 0
        %2342 = vmatprep.subr.bf16.mxu0 0
        %2343 = vmatpush1.bf16.msra.mxu0 0
        %2344 = vmatprep.subr.bf16.mxu0 0
        %2345 = vmatpush1.bf16.msra.mxu0 0
        %2346 = vmatprep.subr.bf16.mxu0 0
        %2347 = vmatpush1.bf16.msra.mxu0 0
        %2348 = vmatprep.subr.bf16.mxu0 0
        %2349 = vmatpush1.bf16.msra.mxu0 0
        %2350 = vmatprep.subr.bf16.mxu0 0
        %2351 = vmatpush1.bf16.msra.mxu0 0
        %2352 = vmatprep.subr.bf16.mxu0 0
        %2353 = vmatpush1.bf16.msra.mxu0 0
        %2354 = vmatprep.subr.bf16.mxu0 0
        %2355 = vmatpush1.bf16.msra.mxu0 0
        %2356 = vmatprep.mubr.bf16.mxu0 0
        %2357 = vmatmul.mubr.bf16.gmra.mrb[0].mxu0 %v2322
        %v2358 = vpop.f32.mrb[0].mxu0
        %v2359 = vadd.f32 %v2308, %v2358
        %v2360 = vpop.f32.mrb[0].mxu0
        %v2361 = vpop.f32.mrb[0].mxu0
        %v2362 = vpop.f32.mrb[0].mxu0
        %2363 = vdwg.mxu0
        %2364 = vmatprep.subr.mxu0 0.0
        %2365 = vmatpush1.msra.mxu0 %v1843
        %2366 = vmatprep.subr.mxu0 0.0
        %2367 = vmatpush1.msra.mxu0 0.0
        %2368 = vmatprep.subr.mxu0 0.0
        %2369 = vmatpush1.msra.mxu0 0.0
        %2370 = vmatprep.subr.mxu0 0.0
        %2371 = vmatpush1.msra.mxu0 0.0
        %2372 = vmatprep.subr.mxu0 0.0
        %2373 = vmatpush1.msra.mxu0 0.0
        %2374 = vmatprep.subr.mxu0 0.0
        %2375 = vmatpush1.msra.mxu0 0.0
        %2376 = vmatprep.subr.mxu0 0.0
        %2377 = vmatpush1.msra.mxu0 0.0
        %2378 = vmatprep.subr.mxu0 0.0
        %2379 = vmatpush1.msra.mxu0 0.0
        %2380 = vmatprep.subr.mxu0 0.0
        %2381 = vmatpush1.msra.mxu0 0.0
        %2382 = vmatprep.subr.mxu0 0.0
        %2383 = vmatpush1.msra.mxu0 0.0
        %2384 = vmatprep.subr.mxu0 0.0
        %2385 = vmatpush1.msra.mxu0 0.0
        %2386 = vmatprep.subr.mxu0 0.0
        %2387 = vmatpush1.msra.mxu0 0.0
        %2388 = vmatprep.subr.mxu0 0.0
        %2389 = vmatpush1.msra.mxu0 0.0
        %2390 = vmatprep.subr.mxu0 0.0
        %2391 = vmatpush1.msra.mxu0 0.0
        %2392 = vmatprep.subr.mxu0 0.0
        %2393 = vmatpush1.msra.mxu0 0.0
        %2394 = vmatprep.subr.mxu0 0.0
        %2395 = vmatpush1.msra.mxu0 0.0
        %2396 = vmatprep.subr.mxu0 0.0
        %2397 = vmatpush1.msra.mxu0 0.0
        %2398 = vmatprep.subr.mxu0 0.0
        %2399 = vmatpush1.msra.mxu0 0.0
        %2400 = vmatprep.subr.mxu0 0.0
        %2401 = vmatpush1.msra.mxu0 0.0
        %2402 = vmatprep.subr.mxu0 0.0
        %2403 = vmatpush1.msra.mxu0 0.0
        %2404 = vmatprep.subr.mxu0 0.0
        %2405 = vmatpush1.msra.mxu0 0.0
        %2406 = vmatprep.subr.mxu0 0.0
        %2407 = vmatpush1.msra.mxu0 0.0
        %2408 = vmatprep.subr.mxu0 0.0
        %2409 = vmatpush1.msra.mxu0 0.0
        %2410 = vmatprep.subr.mxu0 0.0
        %2411 = vmatpush1.msra.mxu0 0.0
        %2412 = vmatprep.subr.mxu0 0.0
        %2413 = vmatpush1.msra.mxu0 0.0
        %2414 = vmatprep.subr.mxu0 0.0
        %2415 = vmatpush1.msra.mxu0 0.0
        %2416 = vmatprep.subr.mxu0 0.0
        %2417 = vmatpush1.msra.mxu0 0.0
        %2418 = vmatprep.subr.mxu0 0.0
        %2419 = vmatpush1.msra.mxu0 0.0
        %2420 = vmatprep.subr.mxu0 0.0
        %2421 = vmatpush1.msra.mxu0 0.0
        %2422 = vmatprep.subr.mxu0 0.0
        %2423 = vmatpush1.msra.mxu0 0.0
        %2424 = vmatprep.subr.mxu0 0.0
        %2425 = vmatpush1.msra.mxu0 0.0
        %2426 = vmatprep.subr.mxu0 0.0
        %2427 = vmatpush1.msra.mxu0 0.0
        %2428 = vmatprep.mubr.f32.mxu0 0.0
        %2429 = vmatmul.mubr.f32.gmra.mrb[0].mxu0 %v1857
        %v2430 = vpop.f32.mrb[0].mxu0
        %v2431 = vadd.f32 %v2359, %v2430
        %v2432 = vpop.f32.mrb[0].mxu0
        %2433 = vdwg.mxu0
        %s2434 = scalar_lea.vmem %s8, 2
        %v2435 = vld [vmem:[%s2434] sm:$0x1]
        %s2436 = scalar_lea.vmem %s9, 2
        %v2437 = vld [vmem:[%s2436] sm:$0x1]
        %vm2438 = vcmask 257024
        %v2439 = vsel %vm2438, %v2431, 0.0
        %2440 = vadd.xlane.f32.xlu0 %v2439
        %v2441 = vpop.xlane.xlu0 %2440
        %v2442 = vmul.f32 %v2441, %v652
        %v2443 = vsub.f32 %v2431, %v2442
        %v2444 = vmul.f32 %v2443, %v2443
        %v2445 = vsel %vm2438, %v2444, 0.0
        %2446 = vadd.xlane.f32.xlu0 %v2445
        %v2447 = vpop.xlane.xlu0 %2446
        %v2448 = vmul.f32 %v2447, %v652
        %v2449 = vadd.f32 %v2448, 1e-09
        %v2450 = vrsqrt.pop %v2449
        %v2451 = vmul.f32 %v2443, %v2450
        %v2452 = vunpack.c.l.bf16 %v2435
        %v2453 = vlaneseq
        %v2454 = vshrl.u32 %v2453, 7
        %v2455 = vsub.s32 0, %v2454
        %v2456 = vrot.slane %v2452, %v2455
        %v2457 = vmul.f32 %v2451, %v2456
        %v2458 = vunpack.c.l.bf16 %v2437
        %v2459 = vlaneseq
        %v2460 = vshrl.u32 %v2459, 7
        %v2461 = vsub.s32 0, %v2460
        %v2462 = vrot.slane %v2458, %v2461
        %v2463 = vadd.f32 %v2457, %v2462
        %s2464 = scalar_lea.vmem [#allocation7], 32
        %v2465 = vld [vmem:[%s2464] sm:$0xf]
        %v2466 = vld [vmem:[%s2464 + $0x4] sm:$0xf]
        %v2467 = vld [vmem:[%s2464 + $0x8] sm:$0xf]
        %v2468 = vld [vmem:[%s2464 + $0xc] sm:$0xf]
        %v2469 = vpack.c.bf16 %v2463, %v2463
        %s2470 = scalar_lea.vmem %s11, 2
        %v2471 = vld [vmem:[%s2470] sm:$0x1]
        %v2472 = vunpack.c.l.bf16 %v2471
        %v2473 = vlaneseq
        %v2474 = vshrl.u32 %v2473, 7
        %v2475 = vsub.s32 0, %v2474
        %v2476 = vrot.slane %v2472, %v2475
        %v2481 = vunpack.c.l.b16 %v2465
        %v2482 = vunpack.c.l.b16 %v2466
        %v2483 = vunpack.c.l.b16 %v2467
        %v2484 = vunpack.c.l.b16 %v2468
        %v2485 = vpack.c.b16 %v2482, %v2481
        %v2486 = vpack.c.b16 %v2484, %v2483
        %v2490 = vsel %vm648, %v2469, 0
        %2492 = vmatprep.subr.bf16.mxu0 0
        %2493 = vmatpush1.bf16.msra.mxu0 %v2485
        %2494 = vmatprep.subr.bf16.mxu0 0
        %2495 = vmatpush1.bf16.msra.mxu0 %v2486
        %2496 = vmatprep.subr.bf16.mxu0 0
        %2497 = vmatpush1.bf16.msra.mxu0 0
        %2498 = vmatprep.subr.bf16.mxu0 0
        %2499 = vmatpush1.bf16.msra.mxu0 0
        %2500 = vmatprep.subr.bf16.mxu0 0
        %2501 = vmatpush1.bf16.msra.mxu0 0
        %2502 = vmatprep.subr.bf16.mxu0 0
        %2503 = vmatpush1.bf16.msra.mxu0 0
        %2504 = vmatprep.subr.bf16.mxu0 0
        %2505 = vmatpush1.bf16.msra.mxu0 0
        %2506 = vmatprep.subr.bf16.mxu0 0
        %2507 = vmatpush1.bf16.msra.mxu0 0
        %2508 = vmatprep.subr.bf16.mxu0 0
        %2509 = vmatpush1.bf16.msra.mxu0 0
        %2510 = vmatprep.subr.bf16.mxu0 0
        %2511 = vmatpush1.bf16.msra.mxu0 0
        %2512 = vmatprep.subr.bf16.mxu0 0
        %2513 = vmatpush1.bf16.msra.mxu0 0
        %2514 = vmatprep.subr.bf16.mxu0 0
        %2515 = vmatpush1.bf16.msra.mxu0 0
        %2516 = vmatprep.subr.bf16.mxu0 0
        %2517 = vmatpush1.bf16.msra.mxu0 0
        %2518 = vmatprep.subr.bf16.mxu0 0
        %2519 = vmatpush1.bf16.msra.mxu0 0
        %2520 = vmatprep.subr.bf16.mxu0 0
        %2521 = vmatpush1.bf16.msra.mxu0 0
        %2522 = vmatprep.subr.bf16.mxu0 0
        %2523 = vmatpush1.bf16.msra.mxu0 0
        %2524 = vmatprep.mubr.bf16.mxu0 0
        %2525 = vmatmul.mubr.bf16.gmra.mrb[0].mxu0 %v2490
        %v2526 = vpop.f32.mrb[0].mxu0
        %v2527 = vadd.f32 %v2476, %v2526
        %v2528 = vpop.f32.mrb[0].mxu0
        %v2529 = vpop.f32.mrb[0].mxu0
        %v2530 = vpop.f32.mrb[0].mxu0
        %2531 = vdwg.mxu0
        %v2532 = vmul.f32 %v2527, 0.5
        %v2533 = vmul.f32 %v2527, 0.044715
        %v2534 = vmul.f32 %v2533, %v2527
        %v2535 = vmul.f32 %v2534, %v2527
        %v2536 = vadd.f32 %v2527, %v2535
        %v2537 = vmul.f32 %v2536, 0.7978846
        %v2538 = vtanh.pop %v2537
        %v2539 = vadd.f32 %v2538, 1.0
        %v2540 = vmul.f32 %v2532, %v2539
        %s2541 = scalar_lea.vmem %s12, 64
        %v2542 = vld [vmem:[%s2541] sm:$0xf]
        %v2543 = vld [vmem:[%s2541 + $0x4] sm:$0xf]
        %v2544 = vld [vmem:[%s2541 + $0x8] sm:$0xf]
        %v2545 = vld [vmem:[%s2541 + $0xc] sm:$0xf]
        %v2546 = vld [vmem:[%s2541 + $0x10] sm:$0xf]
        %v2547 = vld [vmem:[%s2541 + $0x14] sm:$0xf]
        %v2548 = vld [vmem:[%s2541 + $0x18] sm:$0xf]
        %v2549 = vld [vmem:[%s2541 + $0x1c] sm:$0xf]
        %v2550 = vpack.c.bf16 %v2540, %v2540
        %s2551 = scalar_lea.vmem %s13, 2
        %v2552 = vld [vmem:[%s2551] sm:$0x1]
        %v2553 = vunpack.c.l.bf16 %v2552
        %v2554 = vlaneseq
        %v2555 = vshrl.u32 %v2554, 7
        %v2556 = vsub.s32 0, %v2555
        %v2557 = vrot.slane %v2553, %v2556
        %v2566 = vunpack.c.l.b16 %v2542
        %v2567 = vunpack.c.l.b16 %v2543
        %v2568 = vunpack.c.l.b16 %v2544
        %v2569 = vunpack.c.l.b16 %v2545
        %v2570 = vunpack.c.l.b16 %v2546
        %v2571 = vunpack.c.l.b16 %v2547
        %v2572 = vunpack.c.l.b16 %v2548
        %v2573 = vunpack.c.l.b16 %v2549
        %v2574 = vpack.c.b16 %v2567, %v2566
        %v2575 = vpack.c.b16 %v2569, %v2568
        %v2576 = vpack.c.b16 %v2571, %v2570
        %v2577 = vpack.c.b16 %v2573, %v2572
        %v2583 = vsel %vm1187, %v2550, 0
        %2585 = vmatprep.subr.bf16.mxu0 0
        %2586 = vmatpush1.bf16.msra.mxu0 %v2574
        %2587 = vmatprep.subr.bf16.mxu0 0
        %2588 = vmatpush1.bf16.msra.mxu0 %v2575
        %2589 = vmatprep.subr.bf16.mxu0 0
        %2590 = vmatpush1.bf16.msra.mxu0 %v2576
        %2591 = vmatprep.subr.bf16.mxu0 0
        %2592 = vmatpush1.bf16.msra.mxu0 %v2577
        %2593 = vmatprep.subr.bf16.mxu0 0
        %2594 = vmatpush1.bf16.msra.mxu0 0
        %2595 = vmatprep.subr.bf16.mxu0 0
        %2596 = vmatpush1.bf16.msra.mxu0 0
        %2597 = vmatprep.subr.bf16.mxu0 0
        %2598 = vmatpush1.bf16.msra.mxu0 0
        %2599 = vmatprep.subr.bf16.mxu0 0
        %2600 = vmatpush1.bf16.msra.mxu0 0
        %2601 = vmatprep.subr.bf16.mxu0 0
        %2602 = vmatpush1.bf16.msra.mxu0 0
        %2603 = vmatprep.subr.bf16.mxu0 0
        %2604 = vmatpush1.bf16.msra.mxu0 0
        %2605 = vmatprep.subr.bf16.mxu0 0
        %2606 = vmatpush1.bf16.msra.mxu0 0
        %2607 = vmatprep.subr.bf16.mxu0 0
        %2608 = vmatpush1.bf16.msra.mxu0 0
        %2609 = vmatprep.subr.bf16.mxu0 0
        %2610 = vmatpush1.bf16.msra.mxu0 0
        %2611 = vmatprep.subr.bf16.mxu0 0
        %2612 = vmatpush1.bf16.msra.mxu0 0
        %2613 = vmatprep.subr.bf16.mxu0 0
        %2614 = vmatpush1.bf16.msra.mxu0 0
        %2615 = vmatprep.subr.bf16.mxu0 0
        %2616 = vmatpush1.bf16.msra.mxu0 0
        %2617 = vmatprep.mubr.bf16.mxu0 0
        %2618 = vmatmul.mubr.bf16.gmra.mrb[0].mxu0 %v2583
        %v2619 = vpop.f32.mrb[0].mxu0
        %v2620 = vadd.f32 %v2557, %v2619
        %v2621 = vpop.f32.mrb[0].mxu0
        %v2622 = vpop.f32.mrb[0].mxu0
        %v2623 = vpop.f32.mrb[0].mxu0
        %2624 = vdwg.mxu0
        %v2625 = vadd.f32 %v2463, %v2620
        %s2626 = scalar_lea.vmem %s14, 2
        %v2627 = vld [vmem:[%s2626] sm:$0x1]
        %s2628 = scalar_lea.vmem %s15, 2
        %v2629 = vld [vmem:[%s2628] sm:$0x1]
        %v2630 = vsel %vm2438, %v2625, 0.0
        %2631 = vadd.xlane.f32.xlu0 %v2630
        %v2632 = vpop.xlane.xlu0 %2631
        %v2633 = vmul.f32 %v2632, %v652
        %v2634 = vsub.f32 %v2625, %v2633
        %v2635 = vmul.f32 %v2634, %v2634
        %v2636 = vsel %vm2438, %v2635, 0.0
        %2637 = vadd.xlane.f32.xlu0 %v2636
        %v2638 = vpop.xlane.xlu0 %2637
        %v2639 = vmul.f32 %v2638, %v652
        %v2640 = vadd.f32 %v2639, 1e-09
        %v2641 = vrsqrt.pop %v2640
        %v2642 = vmul.f32 %v2634, %v2641
        %v2643 = vunpack.c.l.bf16 %v2627
        %v2644 = vlaneseq
        %v2645 = vshrl.u32 %v2644, 7
        %v2646 = vsub.s32 0, %v2645
        %v2647 = vrot.slane %v2643, %v2646
        %v2648 = vmul.f32 %v2642, %v2647
        %v2649 = vunpack.c.l.bf16 %v2629
        %v2650 = vlaneseq
        %v2651 = vshrl.u32 %v2650, 7
        %v2652 = vsub.s32 0, %v2651
        %v2653 = vrot.slane %v2649, %v2652
        %v2654 = vadd.f32 %v2648, %v2653
        %s2655 = scalar_lea.vmem [#allocation2], 48
        %v2656 = vld [vmem:[%s2655] sm:$0xf]
        %v2657 = vld [vmem:[%s2655 + $0x4] sm:$0xf]
        %v2658 = vld [vmem:[%s2655 + $0x8] sm:$0xf]
        %v2659 = vld [vmem:[%s2655 + $0xc] sm:$0xf]
        %v2660 = vpack.c.bf16 %v2654, %v2654
        %s2661 = scalar_lea.vmem %s5, 3
        %v2662 = vld [vmem:[%s2661] sm:$0x1]
        %v2663 = vunpack.c.l.bf16 %v2662
        %v2664 = vlaneseq
        %v2665 = vshrl.u32 %v2664, 7
        %v2666 = vsub.s32 0, %v2665
        %v2667 = vrot.slane %v2663, %v2666
        %v2672 = vunpack.c.l.b16 %v2656
        %v2673 = vunpack.c.l.b16 %v2657
        %v2674 = vunpack.c.l.b16 %v2658
        %v2675 = vunpack.c.l.b16 %v2659
        %v2676 = vpack.c.b16 %v2673, %v2672
        %v2677 = vpack.c.b16 %v2675, %v2674
        %v2681 = vsel %vm648, %v2660, 0
        %2683 = vmatprep.subr.bf16.mxu0 0
        %2684 = vmatpush1.bf16.msra.mxu0 %v2676
        %2685 = vmatprep.subr.bf16.mxu0 0
        %2686 = vmatpush1.bf16.msra.mxu0 %v2677
        %2687 = vmatprep.subr.bf16.mxu0 0
        %2688 = vmatpush1.bf16.msra.mxu0 0
        %2689 = vmatprep.subr.bf16.mxu0 0
        %2690 = vmatpush1.bf16.msra.mxu0 0
        %2691 = vmatprep.subr.bf16.mxu0 0
        %2692 = vmatpush1.bf16.msra.mxu0 0
        %2693 = vmatprep.subr.bf16.mxu0 0
        %2694 = vmatpush1.bf16.msra.mxu0 0
        %2695 = vmatprep.subr.bf16.mxu0 0
        %2696 = vmatpush1.bf16.msra.mxu0 0
        %2697 = vmatprep.subr.bf16.mxu0 0
        %2698 = vmatpush1.bf16.msra.mxu0 0
        %2699 = vmatprep.subr.bf16.mxu0 0
        %2700 = vmatpush1.bf16.msra.mxu0 0
        %2701 = vmatprep.subr.bf16.mxu0 0
        %2702 = vmatpush1.bf16.msra.mxu0 0
        %2703 = vmatprep.subr.bf16.mxu0 0
        %2704 = vmatpush1.bf16.msra.mxu0 0
        %2705 = vmatprep.subr.bf16.mxu0 0
        %2706 = vmatpush1.bf16.msra.mxu0 0
        %2707 = vmatprep.subr.bf16.mxu0 0
        %2708 = vmatpush1.bf16.msra.mxu0 0
        %2709 = vmatprep.subr.bf16.mxu0 0
        %2710 = vmatpush1.bf16.msra.mxu0 0
        %2711 = vmatprep.subr.bf16.mxu0 0
        %2712 = vmatpush1.bf16.msra.mxu0 0
        %2713 = vmatprep.subr.bf16.mxu0 0
        %2714 = vmatpush1.bf16.msra.mxu0 0
        %2715 = vmatprep.mubr.bf16.mxu0 0
        %2716 = vmatmul.mubr.bf16.gmra.mrb[0].mxu0 %v2681
        %v2717 = vpop.f32.mrb[0].mxu0
        %v2718 = vadd.f32 %v2667, %v2717
        %v2719 = vpop.f32.mrb[0].mxu0
        %v2720 = vpop.f32.mrb[0].mxu0
        %v2721 = vpop.f32.mrb[0].mxu0
        %2722 = vdwg.mxu0
        %v2723 = vmul.f32 %v2718, 0.25
        %v2724 = vlaneseq
        %v2725 = vshrl.u32 %v2724, 7
        %v2726 = vsub.s32 0, %v2725
        %v2727 = vrot.slane %v1926, %v2726
        %v2728 = vpack.c.bf16 %v2723, %v2723
        %v2729 = vpack.c.bf16 %v2718, %v2718
        %2731 = vrot.lane.b32.xlu0 %v2729, 96
        %v2732 = vpop.permute.xlu0 %2731
        %v2734 = vsel %vm754, %v2728, 0
        %v2737 = vsel %vm754, %v2732, 0
        %2739 = vmatprep.subr.bf16.mxu0 0
        %2740 = vmatpush1.bf16.xpose.msra.mxu0 %v2737
        %2741 = vmatprep.subr.bf16.mxu0 0
        %2742 = vmatpush1.bf16.xpose.msra.mxu0 0
        %2743 = vmatprep.subr.bf16.mxu0 0
        %2744 = vmatpush1.bf16.xpose.msra.mxu0 0
        %2745 = vmatprep.subr.bf16.mxu0 0
        %2746 = vmatpush1.bf16.xpose.msra.mxu0 0
        %2747 = vmatprep.subr.bf16.mxu0 0
        %2748 = vmatpush1.bf16.xpose.msra.mxu0 0
        %2749 = vmatprep.subr.bf16.mxu0 0
        %2750 = vmatpush1.bf16.xpose.msra.mxu0 0
        %2751 = vmatprep.subr.bf16.mxu0 0
        %2752 = vmatpush1.bf16.xpose.msra.mxu0 0
        %2753 = vmatprep.subr.bf16.mxu0 0
        %2754 = vmatpush1.bf16.xpose.msra.mxu0 0
        %2755 = vmatprep.subr.bf16.mxu0 0
        %2756 = vmatpush1.bf16.xpose.msra.mxu0 0
        %2757 = vmatprep.subr.bf16.mxu0 0
        %2758 = vmatpush1.bf16.xpose.msra.mxu0 0
        %2759 = vmatprep.subr.bf16.mxu0 0
        %2760 = vmatpush1.bf16.xpose.msra.mxu0 0
        %2761 = vmatprep.subr.bf16.mxu0 0
        %2762 = vmatpush1.bf16.xpose.msra.mxu0 0
        %2763 = vmatprep.subr.bf16.mxu0 0
        %2764 = vmatpush1.bf16.xpose.msra.mxu0 0
        %2765 = vmatprep.subr.bf16.mxu0 0
        %2766 = vmatpush1.bf16.xpose.msra.mxu0 0
        %2767 = vmatprep.subr.bf16.mxu0 0
        %2768 = vmatpush1.bf16.xpose.msra.mxu0 0
        %2769 = vmatprep.subr.bf16.mxu0 0
        %2770 = vmatpush1.bf16.xpose.msra.mxu0 0
        %2771 = vmatprep.mubr.bf16.mxu0 0
        %2772 = vmatmul.mubr.bf16.gmra.mrb[0].mxu0 %v2734
        %v2773 = vpop.f32.mrb[0].mxu0
        %v2774 = vadd.f32 %v2727, %v2773
        %v2775 = vpop.f32.mrb[0].mxu0
        %v2776 = vpop.f32.mrb[0].mxu0
        %v2777 = vpop.f32.mrb[0].mxu0
        %2778 = vdwg.mxu0
        %vm2779 = vcmask 27648
        %v2780 = vsel %vm2779, %v2774, -inf
        %2781 = vmax.xlane.f32.xlu0 %v2780
        %v2782 = vpop.xlane.xlu0 %2781
        %v2783 = vsub.f32 %v2774, %v2782
        %v2784 = vmul.f32 %v2783, 1.442695
        %v2785 = vpow.pop %v2784
        %v2786 = vsel %vm2779, %v2785, 0.0
        %2787 = vadd.xlane.f32.xlu0 %v2786
        %v2788 = vpop.xlane.xlu0 %2787
        %v2789 = vrcp.pop %v2788
        %v2790 = vmul.f32 %v2785, %v2789
        %v2791 = vpack.c.bf16 %v2790, %v2790
        %2792 = vrot.lane.b32.xlu0 %v2729, 64
        %v2793 = vpop.permute.xlu0 %2792
        %vm2794 = vcmask 31744
        %v2796 = vsel %vm2794, %v2791, 0
        %vm2798 = vcmask 1041408
        %v2800 = vsel %vm2798, %v2793, 0
        %2802 = vmatprep.subr.bf16.mxu0 0
        %2803 = vmatpush1.bf16.msra.mxu0 %v2800
        %2804 = vmatprep.subr.bf16.mxu0 0
        %2805 = vmatpush1.bf16.msra.mxu0 0
        %2806 = vmatprep.subr.bf16.mxu0 0
        %2807 = vmatpush1.bf16.msra.mxu0 0
        %2808 = vmatprep.subr.bf16.mxu0 0
        %2809 = vmatpush1.bf16.msra.mxu0 0
        %2810 = vmatprep.subr.bf16.mxu0 0
        %2811 = vmatpush1.bf16.msra.mxu0 0
        %2812 = vmatprep.subr.bf16.mxu0 0
        %2813 = vmatpush1.bf16.msra.mxu0 0
        %2814 = vmatprep.subr.bf16.mxu0 0
        %2815 = vmatpush1.bf16.msra.mxu0 0
        %2816 = vmatprep.subr.bf16.mxu0 0
        %2817 = vmatpush1.bf16.msra.mxu0 0
        %2818 = vmatprep.subr.bf16.mxu0 0
        %2819 = vmatpush1.bf16.msra.mxu0 0
        %2820 = vmatprep.subr.bf16.mxu0 0
        %2821 = vmatpush1.bf16.msra.mxu0 0
        %2822 = vmatprep.subr.bf16.mxu0 0
        %2823 = vmatpush1.bf16.msra.mxu0 0
        %2824 = vmatprep.subr.bf16.mxu0 0
        %2825 = vmatpush1.bf16.msra.mxu0 0
        %2826 = vmatprep.subr.bf16.mxu0 0
        %2827 = vmatpush1.bf16.msra.mxu0 0
        %2828 = vmatprep.subr.bf16.mxu0 0
        %2829 = vmatpush1.bf16.msra.mxu0 0
        %2830 = vmatprep.subr.bf16.mxu0 0
        %2831 = vmatpush1.bf16.msra.mxu0 0
        %2832 = vmatprep.subr.bf16.mxu0 0
        %2833 = vmatpush1.bf16.msra.mxu0 0
        %2834 = vmatprep.mubr.bf16.mxu0 0
        %2835 = vmatmul.mubr.bf16.gmra.mrb[0].mxu0 %v2796
        %v2836 = vpop.f32.mrb[0].mxu0
        %v2837 = vadd.f32 0.0, %v2836
        %v2838 = vpop.f32.mrb[0].mxu0
        %v2839 = vpop.f32.mrb[0].mxu0
        %v2840 = vpop.f32.mrb[0].mxu0
        %2841 = vdwg.mxu0
        %2843 = vrot.lane.b32.xlu0 %v2728, 112
        %v2844 = vpop.permute.xlu0 %2843
        %2845 = vrot.lane.b32.xlu0 %v2729, 80
        %v2846 = vpop.permute.xlu0 %2845
        %v2848 = vsel %vm754, %v2844, 0
        %v2851 = vsel %vm754, %v2846, 0
        %2853 = vmatprep.subr.bf16.mxu0 0
        %2854 = vmatpush1.bf16.xpose.msra.mxu0 %v2851
        %2855 = vmatprep.subr.bf16.mxu0 0
        %2856 = vmatpush1.bf16.xpose.msra.mxu0 0
        %2857 = vmatprep.subr.bf16.mxu0 0
        %2858 = vmatpush1.bf16.xpose.msra.mxu0 0
        %2859 = vmatprep.subr.bf16.mxu0 0
        %2860 = vmatpush1.bf16.xpose.msra.mxu0 0
        %2861 = vmatprep.subr.bf16.mxu0 0
        %2862 = vmatpush1.bf16.xpose.msra.mxu0 0
        %2863 = vmatprep.subr.bf16.mxu0 0
        %2864 = vmatpush1.bf16.xpose.msra.mxu0 0
        %2865 = vmatprep.subr.bf16.mxu0 0
        %2866 = vmatpush1.bf16.xpose.msra.mxu0 0
        %2867 = vmatprep.subr.bf16.mxu0 0
        %2868 = vmatpush1.bf16.xpose.msra.mxu0 0
        %2869 = vmatprep.subr.bf16.mxu0 0
        %2870 = vmatpush1.bf16.xpose.msra.mxu0 0
        %2871 = vmatprep.subr.bf16.mxu0 0
        %2872 = vmatpush1.bf16.xpose.msra.mxu0 0
        %2873 = vmatprep.subr.bf16.mxu0 0
        %2874 = vmatpush1.bf16.xpose.msra.mxu0 0
        %2875 = vmatprep.subr.bf16.mxu0 0
        %2876 = vmatpush1.bf16.xpose.msra.mxu0 0
        %2877 = vmatprep.subr.bf16.mxu0 0
        %2878 = vmatpush1.bf16.xpose.msra.mxu0 0
        %2879 = vmatprep.subr.bf16.mxu0 0
        %2880 = vmatpush1.bf16.xpose.msra.mxu0 0
        %2881 = vmatprep.subr.bf16.mxu0 0
        %2882 = vmatpush1.bf16.xpose.msra.mxu0 0
        %2883 = vmatprep.subr.bf16.mxu0 0
        %2884 = vmatpush1.bf16.xpose.msra.mxu0 0
        %2885 = vmatprep.mubr.bf16.mxu0 0
        %2886 = vmatmul.mubr.bf16.gmra.mrb[0].mxu0 %v2848
        %v2887 = vpop.f32.mrb[0].mxu0
        %v2888 = vadd.f32 %v2727, %v2887
        %v2889 = vpop.f32.mrb[0].mxu0
        %v2890 = vpop.f32.mrb[0].mxu0
        %v2891 = vpop.f32.mrb[0].mxu0
        %2892 = vdwg.mxu0
        %v2893 = vsel %vm2779, %v2888, -inf
        %2894 = vmax.xlane.f32.xlu0 %v2893
        %v2895 = vpop.xlane.xlu0 %2894
        %v2896 = vsub.f32 %v2888, %v2895
        %v2897 = vmul.f32 %v2896, 1.442695
        %v2898 = vpow.pop %v2897
        %v2899 = vsel %vm2779, %v2898, 0.0
        %2900 = vadd.xlane.f32.xlu0 %v2899
        %v2901 = vpop.xlane.xlu0 %2900
        %v2902 = vrcp.pop %v2901
        %v2903 = vmul.f32 %v2898, %v2902
        %v2904 = vpack.c.bf16 %v2903, %v2903
        %2905 = vrot.lane.b32.xlu0 %v2729, 48
        %v2906 = vpop.permute.xlu0 %2905
        %v2908 = vsel %vm2794, %v2904, 0
        %v2911 = vsel %vm2798, %v2906, 0
        %2913 = vmatprep.subr.bf16.mxu0 0
        %2914 = vmatpush1.bf16.msra.mxu0 %v2911
        %2915 = vmatprep.subr.bf16.mxu0 0
        %2916 = vmatpush1.bf16.msra.mxu0 0
        %2917 = vmatprep.subr.bf16.mxu0 0
        %2918 = vmatpush1.bf16.msra.mxu0 0
        %2919 = vmatprep.subr.bf16.mxu0 0
        %2920 = vmatpush1.bf16.msra.mxu0 0
        %2921 = vmatprep.subr.bf16.mxu0 0
        %2922 = vmatpush1.bf16.msra.mxu0 0
        %2923 = vmatprep.subr.bf16.mxu0 0
        %2924 = vmatpush1.bf16.msra.mxu0 0
        %2925 = vmatprep.subr.bf16.mxu0 0
        %2926 = vmatpush1.bf16.msra.mxu0 0
        %2927 = vmatprep.subr.bf16.mxu0 0
        %2928 = vmatpush1.bf16.msra.mxu0 0
        %2929 = vmatprep.subr.bf16.mxu0 0
        %2930 = vmatpush1.bf16.msra.mxu0 0
        %2931 = vmatprep.subr.bf16.mxu0 0
        %2932 = vmatpush1.bf16.msra.mxu0 0
        %2933 = vmatprep.subr.bf16.mxu0 0
        %2934 = vmatpush1.bf16.msra.mxu0 0
        %2935 = vmatprep.subr.bf16.mxu0 0
        %2936 = vmatpush1.bf16.msra.mxu0 0
        %2937 = vmatprep.subr.bf16.mxu0 0
        %2938 = vmatpush1.bf16.msra.mxu0 0
        %2939 = vmatprep.subr.bf16.mxu0 0
        %2940 = vmatpush1.bf16.msra.mxu0 0
        %2941 = vmatprep.subr.bf16.mxu0 0
        %2942 = vmatpush1.bf16.msra.mxu0 0
        %2943 = vmatprep.subr.bf16.mxu0 0
        %2944 = vmatpush1.bf16.msra.mxu0 0
        %2945 = vmatprep.mubr.bf16.mxu0 0
        %2946 = vmatmul.mubr.bf16.gmra.mrb[0].mxu0 %v2908
        %v2947 = vpop.f32.mrb[0].mxu0
        %v2948 = vadd.f32 0.0, %v2947
        %v2949 = vpop.f32.mrb[0].mxu0
        %v2950 = vpop.f32.mrb[0].mxu0
        %v2951 = vpop.f32.mrb[0].mxu0
        %2952 = vdwg.mxu0
        %2954 = vrot.lane.b32.xlu0 %v2948, 16
        %v2955 = vpop.permute.xlu0 %2954
        %v2957 = vsel %vm754, %v2837, %v2955
        %s2958 = scalar_lea.vmem [#allocation5], 48
        %v2959 = vld [vmem:[%s2958] sm:$0xf]
        %v2960 = vld [vmem:[%s2958 + $0x4] sm:$0xf]
        %v2961 = vld [vmem:[%s2958 + $0x8] sm:$0xf]
        %v2962 = vld [vmem:[%s2958 + $0xc] sm:$0xf]
        %v2963 = vpack.c.bf16 %v2957, %v2957
        %s2964 = scalar_lea.vmem %s7, 3
        %v2965 = vld [vmem:[%s2964] sm:$0x1]
        %v2966 = vunpack.c.l.bf16 %v2965
        %v2967 = vlaneseq
        %v2968 = vshrl.u32 %v2967, 7
        %v2969 = vsub.s32 0, %v2968
        %v2970 = vrot.slane %v2966, %v2969
        %v2975 = vunpack.c.l.b16 %v2959
        %v2976 = vunpack.c.l.b16 %v2960
        %v2977 = vunpack.c.l.b16 %v2961
        %v2978 = vunpack.c.l.b16 %v2962
        %v2979 = vpack.c.b16 %v2976, %v2975
        %v2980 = vpack.c.b16 %v2978, %v2977
        %v2984 = vsel %vm648, %v2963, 0
        %2986 = vmatprep.subr.bf16.mxu0 0
        %2987 = vmatpush1.bf16.msra.mxu0 %v2979
        %2988 = vmatprep.subr.bf16.mxu0 0
        %2989 = vmatpush1.bf16.msra.mxu0 %v2980
        %2990 = vmatprep.subr.bf16.mxu0 0
        %2991 = vmatpush1.bf16.msra.mxu0 0
        %2992 = vmatprep.subr.bf16.mxu0 0
        %2993 = vmatpush1.bf16.msra.mxu0 0
        %2994 = vmatprep.subr.bf16.mxu0 0
        %2995 = vmatpush1.bf16.msra.mxu0 0
        %2996 = vmatprep.subr.bf16.mxu0 0
        %2997 = vmatpush1.bf16.msra.mxu0 0
        %2998 = vmatprep.subr.bf16.mxu0 0
        %2999 = vmatpush1.bf16.msra.mxu0 0
        %3000 = vmatprep.subr.bf16.mxu0 0
        %3001 = vmatpush1.bf16.msra.mxu0 0
        %3002 = vmatprep.subr.bf16.mxu0 0
        %3003 = vmatpush1.bf16.msra.mxu0 0
        %3004 = vmatprep.subr.bf16.mxu0 0
        %3005 = vmatpush1.bf16.msra.mxu0 0
        %3006 = vmatprep.subr.bf16.mxu0 0
        %3007 = vmatpush1.bf16.msra.mxu0 0
        %3008 = vmatprep.subr.bf16.mxu0 0
        %3009 = vmatpush1.bf16.msra.mxu0 0
        %3010 = vmatprep.subr.bf16.mxu0 0
        %3011 = vmatpush1.bf16.msra.mxu0 0
        %3012 = vmatprep.subr.bf16.mxu0 0
        %3013 = vmatpush1.bf16.msra.mxu0 0
        %3014 = vmatprep.subr.bf16.mxu0 0
        %3015 = vmatpush1.bf16.msra.mxu0 0
        %3016 = vmatprep.subr.bf16.mxu0 0
        %3017 = vmatpush1.bf16.msra.mxu0 0
        %3018 = vmatprep.mubr.bf16.mxu0 0
        %3019 = vmatmul.mubr.bf16.gmra.mrb[0].mxu0 %v2984
        %v3020 = vpop.f32.mrb[0].mxu0
        %v3021 = vadd.f32 %v2970, %v3020
        %v3022 = vpop.f32.mrb[0].mxu0
        %v3023 = vpop.f32.mrb[0].mxu0
        %v3024 = vpop.f32.mrb[0].mxu0
        %3025 = vdwg.mxu0
        %v3026 = vadd.f32 %v2654, %v3021
        %s3027 = scalar_lea.vmem %s8, 3
        %v3028 = vld [vmem:[%s3027] sm:$0x1]
        %s3029 = scalar_lea.vmem %s9, 3
        %v3030 = vld [vmem:[%s3029] sm:$0x1]
        %v3031 = vsel %vm2438, %v3026, 0.0
        %3032 = vadd.xlane.f32.xlu0 %v3031
        %v3033 = vpop.xlane.xlu0 %3032
        %v3034 = vmul.f32 %v3033, %v652
        %v3035 = vsub.f32 %v3026, %v3034
        %v3036 = vmul.f32 %v3035, %v3035
        %v3037 = vsel %vm2438, %v3036, 0.0
        %3038 = vadd.xlane.f32.xlu0 %v3037
        %v3039 = vpop.xlane.xlu0 %3038
        %v3040 = vmul.f32 %v3039, %v652
        %v3041 = vadd.f32 %v3040, 1e-09
        %v3042 = vrsqrt.pop %v3041
        %v3043 = vmul.f32 %v3035, %v3042
        %v3044 = vunpack.c.l.bf16 %v3028
        %v3045 = vlaneseq
        %v3046 = vshrl.u32 %v3045, 7
        %v3047 = vsub.s32 0, %v3046
        %v3048 = vrot.slane %v3044, %v3047
        %v3049 = vmul.f32 %v3043, %v3048
        %v3050 = vunpack.c.l.bf16 %v3030
        %v3051 = vlaneseq
        %v3052 = vshrl.u32 %v3051, 7
        %v3053 = vsub.s32 0, %v3052
        %v3054 = vrot.slane %v3050, %v3053
        %v3055 = vadd.f32 %v3049, %v3054
        %s3056 = scalar_lea.vmem [#allocation7], 48
        %v3057 = vld [vmem:[%s3056] sm:$0xf]
        %v3058 = vld [vmem:[%s3056 + $0x4] sm:$0xf]
        %v3059 = vld [vmem:[%s3056 + $0x8] sm:$0xf]
        %v3060 = vld [vmem:[%s3056 + $0xc] sm:$0xf]
        %v3061 = vpack.c.bf16 %v3055, %v3055
        %s3062 = scalar_lea.vmem %s11, 3
        %v3063 = vld [vmem:[%s3062] sm:$0x1]
        %v3064 = vunpack.c.l.bf16 %v3063
        %v3065 = vlaneseq
        %v3066 = vshrl.u32 %v3065, 7
        %v3067 = vsub.s32 0, %v3066
        %v3068 = vrot.slane %v3064, %v3067
        %v3073 = vunpack.c.l.b16 %v3057
        %v3074 = vunpack.c.l.b16 %v3058
        %v3075 = vunpack.c.l.b16 %v3059
        %v3076 = vunpack.c.l.b16 %v3060
        %v3077 = vpack.c.b16 %v3074, %v3073
        %v3078 = vpack.c.b16 %v3076, %v3075
        %v3082 = vsel %vm648, %v3061, 0
        %3084 = vmatprep.subr.bf16.mxu0 0
        %3085 = vmatpush1.bf16.msra.mxu0 %v3077
        %3086 = vmatprep.subr.bf16.mxu0 0
        %3087 = vmatpush1.bf16.msra.mxu0 %v3078
        %3088 = vmatprep.subr.bf16.mxu0 0
        %3089 = vmatpush1.bf16.msra.mxu0 0
        %3090 = vmatprep.subr.bf16.mxu0 0
        %3091 = vmatpush1.bf16.msra.mxu0 0
        %3092 = vmatprep.subr.bf16.mxu0 0
        %3093 = vmatpush1.bf16.msra.mxu0 0
        %3094 = vmatprep.subr.bf16.mxu0 0
        %3095 = vmatpush1.bf16.msra.mxu0 0
        %3096 = vmatprep.subr.bf16.mxu0 0
        %3097 = vmatpush1.bf16.msra.mxu0 0
        %3098 = vmatprep.subr.bf16.mxu0 0
        %3099 = vmatpush1.bf16.msra.mxu0 0
        %3100 = vmatprep.subr.bf16.mxu0 0
        %3101 = vmatpush1.bf16.msra.mxu0 0
        %3102 = vmatprep.subr.bf16.mxu0 0
        %3103 = vmatpush1.bf16.msra.mxu0 0
        %3104 = vmatprep.subr.bf16.mxu0 0
        %3105 = vmatpush1.bf16.msra.mxu0 0
        %3106 = vmatprep.subr.bf16.mxu0 0
        %3107 = vmatpush1.bf16.msra.mxu0 0
        %3108 = vmatprep.subr.bf16.mxu0 0
        %3109 = vmatpush1.bf16.msra.mxu0 0
        %3110 = vmatprep.subr.bf16.mxu0 0
        %3111 = vmatpush1.bf16.msra.mxu0 0
        %3112 = vmatprep.subr.bf16.mxu0 0
        %3113 = vmatpush1.bf16.msra.mxu0 0
        %3114 = vmatprep.subr.bf16.mxu0 0
        %3115 = vmatpush1.bf16.msra.mxu0 0
        %3116 = vmatprep.mubr.bf16.mxu0 0
        %3117 = vmatmul.mubr.bf16.gmra.mrb[0].mxu0 %v3082
        %v3118 = vpop.f32.mrb[0].mxu0
        %v3119 = vadd.f32 %v3068, %v3118
        %v3120 = vpop.f32.mrb[0].mxu0
        %v3121 = vpop.f32.mrb[0].mxu0
        %v3122 = vpop.f32.mrb[0].mxu0
        %3123 = vdwg.mxu0
        %v3124 = vmul.f32 %v3119, 0.5
        %v3125 = vmul.f32 %v3119, 0.044715
        %v3126 = vmul.f32 %v3125, %v3119
        %v3127 = vmul.f32 %v3126, %v3119
        %v3128 = vadd.f32 %v3119, %v3127
        %v3129 = vmul.f32 %v3128, 0.7978846
        %v3130 = vtanh.pop %v3129
        %v3131 = vadd.f32 %v3130, 1.0
        %v3132 = vmul.f32 %v3124, %v3131
        %s3133 = scalar_lea.vmem %s12, 96
        %v3134 = vld [vmem:[%s3133] sm:$0xf]
        %v3135 = vld [vmem:[%s3133 + $0x4] sm:$0xf]
        %v3136 = vld [vmem:[%s3133 + $0x8] sm:$0xf]
        %v3137 = vld [vmem:[%s3133 + $0xc] sm:$0xf]
        %v3138 = vld [vmem:[%s3133 + $0x10] sm:$0xf]
        %v3139 = vld [vmem:[%s3133 + $0x14] sm:$0xf]
        %v3140 = vld [vmem:[%s3133 + $0x18] sm:$0xf]
        %v3141 = vld [vmem:[%s3133 + $0x1c] sm:$0xf]
        %v3142 = vpack.c.bf16 %v3132, %v3132
        %s3143 = scalar_lea.vmem %s13, 3
        %v3144 = vld [vmem:[%s3143] sm:$0x1]
        %v3145 = vunpack.c.l.bf16 %v3144
        %v3146 = vlaneseq
        %v3147 = vshrl.u32 %v3146, 7
        %v3148 = vsub.s32 0, %v3147
        %v3149 = vrot.slane %v3145, %v3148
        %v3158 = vunpack.c.l.b16 %v3134
        %v3159 = vunpack.c.l.b16 %v3135
        %v3160 = vunpack.c.l.b16 %v3136
        %v3161 = vunpack.c.l.b16 %v3137
        %v3162 = vunpack.c.l.b16 %v3138
        %v3163 = vunpack.c.l.b16 %v3139
        %v3164 = vunpack.c.l.b16 %v3140
        %v3165 = vunpack.c.l.b16 %v3141
        %v3166 = vpack.c.b16 %v3159, %v3158
        %v3167 = vpack.c.b16 %v3161, %v3160
        %v3168 = vpack.c.b16 %v3163, %v3162
        %v3169 = vpack.c.b16 %v3165, %v3164
        %v3175 = vsel %vm1187, %v3142, 0
        %3177 = vmatprep.subr.bf16.mxu0 0
        %3178 = vmatpush1.bf16.msra.mxu0 %v3166
        %3179 = vmatprep.subr.bf16.mxu0 0
        %3180 = vmatpush1.bf16.msra.mxu0 %v3167
        %3181 = vmatprep.subr.bf16.mxu0 0
        %3182 = vmatpush1.bf16.msra.mxu0 %v3168
        %3183 = vmatprep.subr.bf16.mxu0 0
        %3184 = vmatpush1.bf16.msra.mxu0 %v3169
        %3185 = vmatprep.subr.bf16.mxu0 0
        %3186 = vmatpush1.bf16.msra.mxu0 0
        %3187 = vmatprep.subr.bf16.mxu0 0
        %3188 = vmatpush1.bf16.msra.mxu0 0
        %3189 = vmatprep.subr.bf16.mxu0 0
        %3190 = vmatpush1.bf16.msra.mxu0 0
        %3191 = vmatprep.subr.bf16.mxu0 0
        %3192 = vmatpush1.bf16.msra.mxu0 0
        %3193 = vmatprep.subr.bf16.mxu0 0
        %3194 = vmatpush1.bf16.msra.mxu0 0
        %3195 = vmatprep.subr.bf16.mxu0 0
        %3196 = vmatpush1.bf16.msra.mxu0 0
        %3197 = vmatprep.subr.bf16.mxu0 0
        %3198 = vmatpush1.bf16.msra.mxu0 0
        %3199 = vmatprep.subr.bf16.mxu0 0
        %3200 = vmatpush1.bf16.msra.mxu0 0
        %3201 = vmatprep.subr.bf16.mxu0 0
        %3202 = vmatpush1.bf16.msra.mxu0 0
        %3203 = vmatprep.subr.bf16.mxu0 0
        %3204 = vmatpush1.bf16.msra.mxu0 0
        %3205 = vmatprep.subr.bf16.mxu0 0
        %3206 = vmatpush1.bf16.msra.mxu0 0
        %3207 = vmatprep.subr.bf16.mxu0 0
        %3208 = vmatpush1.bf16.msra.mxu0 0
        %3209 = vmatprep.mubr.bf16.mxu0 0
        %3210 = vmatmul.mubr.bf16.gmra.mrb[0].mxu0 %v3175
        %v3211 = vpop.f32.mrb[0].mxu0
        %v3212 = vadd.f32 %v3149, %v3211
        %v3213 = vpop.f32.mrb[0].mxu0
        %v3214 = vpop.f32.mrb[0].mxu0
        %v3215 = vpop.f32.mrb[0].mxu0
        %3216 = vdwg.mxu0
        %v3217 = vadd.f32 %v3055, %v3212
        %s3218 = scalar_lea.vmem %s14, 3
        %v3219 = vld [vmem:[%s3218] sm:$0x1]
        %s3220 = scalar_lea.vmem %s15, 3
        %v3221 = vld [vmem:[%s3220] sm:$0x1]
        %v3222 = vsel %vm2438, %v3217, 0.0
        %3223 = vadd.xlane.f32.xlu0 %v3222
        %v3224 = vpop.xlane.xlu0 %3223
        %v3225 = vmul.f32 %v3224, %v652
        %v3226 = vsub.f32 %v3217, %v3225
        %v3227 = vmul.f32 %v3226, %v3226
        %v3228 = vsel %vm2438, %v3227, 0.0
        %3229 = vadd.xlane.f32.xlu0 %v3228
        %v3230 = vpop.xlane.xlu0 %3229
        %v3231 = vmul.f32 %v3230, %v652
        %v3232 = vadd.f32 %v3231, 1e-09
        %v3233 = vrsqrt.pop %v3232
        %v3234 = vmul.f32 %v3226, %v3233
        %v3235 = vunpack.c.l.bf16 %v3219
        %v3236 = vlaneseq
        %v3237 = vshrl.u32 %v3236, 7
        %v3238 = vsub.s32 0, %v3237
        %v3239 = vrot.slane %v3235, %v3238
        %v3240 = vmul.f32 %v3234, %v3239
        %v3241 = vunpack.c.l.bf16 %v3221
        %v3242 = vlaneseq
        %v3243 = vshrl.u32 %v3242, 7
        %v3244 = vsub.s32 0, %v3243
        %v3245 = vrot.slane %v3241, %v3244
        %v3246 = vadd.f32 %v3240, %v3245
        %v3247 = vmul.u32 %v1847, 2
        %vm3248 = vcmp.ge.s32.totalorder %v1845, %v3247
        %v3249 = vadd.s32 %v1847, 1
        %v3250 = vmul.u32 %v3249, 2
        %vm3251 = vcmp.lt.s32.totalorder %v1845, %v3250
        %vm3252 = vmand %vm3248, %vm3251
        %v3253 = vsel %vm3252, 1.0, 0.0
        %v3255 = vsel %vm2794, %v3253, 0
        %v3258 = vsel %vm819, %v3246, 0
        %3260 = vmatprep.subr.mxu0 0.0
        %3261 = vmatpush1.msra.mxu0 %v3258
        %3262 = vmatprep.subr.mxu0 0.0
        %3263 = vmatpush1.msra.mxu0 0.0
        %3264 = vmatprep.subr.mxu0 0.0
        %3265 = vmatpush1.msra.mxu0 0.0
        %3266 = vmatprep.subr.mxu0 0.0
        %3267 = vmatpush1.msra.mxu0 0.0
        %3268 = vmatprep.subr.mxu0 0.0
        %3269 = vmatpush1.msra.mxu0 0.0
        %3270 = vmatprep.subr.mxu0 0.0
        %3271 = vmatpush1.msra.mxu0 0.0
        %3272 = vmatprep.subr.mxu0 0.0
        %3273 = vmatpush1.msra.mxu0 0.0
        %3274 = vmatprep.subr.mxu0 0.0
        %3275 = vmatpush1.msra.mxu0 0.0
        %3276 = vmatprep.subr.mxu0 0.0
        %3277 = vmatpush1.msra.mxu0 0.0
        %3278 = vmatprep.subr.mxu0 0.0
        %3279 = vmatpush1.msra.mxu0 0.0
        %3280 = vmatprep.subr.mxu0 0.0
        %3281 = vmatpush1.msra.mxu0 0.0
        %3282 = vmatprep.subr.mxu0 0.0
        %3283 = vmatpush1.msra.mxu0 0.0
        %3284 = vmatprep.subr.mxu0 0.0
        %3285 = vmatpush1.msra.mxu0 0.0
        %3286 = vmatprep.subr.mxu0 0.0
        %3287 = vmatpush1.msra.mxu0 0.0
        %3288 = vmatprep.subr.mxu0 0.0
        %3289 = vmatpush1.msra.mxu0 0.0
        %3290 = vmatprep.subr.mxu0 0.0
        %3291 = vmatpush1.msra.mxu0 0.0
        %3292 = vmatprep.subr.mxu0 0.0
        %3293 = vmatpush1.msra.mxu0 0.0
        %3294 = vmatprep.subr.mxu0 0.0
        %3295 = vmatpush1.msra.mxu0 0.0
        %3296 = vmatprep.subr.mxu0 0.0
        %3297 = vmatpush1.msra.mxu0 0.0
        %3298 = vmatprep.subr.mxu0 0.0
        %3299 = vmatpush1.msra.mxu0 0.0
        %3300 = vmatprep.subr.mxu0 0.0
        %3301 = vmatpush1.msra.mxu0 0.0
        %3302 = vmatprep.subr.mxu0 0.0
        %3303 = vmatpush1.msra.mxu0 0.0
        %3304 = vmatprep.subr.mxu0 0.0
        %3305 = vmatpush1.msra.mxu0 0.0
        %3306 = vmatprep.subr.mxu0 0.0
        %3307 = vmatpush1.msra.mxu0 0.0
        %3308 = vmatprep.subr.mxu0 0.0
        %3309 = vmatpush1.msra.mxu0 0.0
        %3310 = vmatprep.subr.mxu0 0.0
        %3311 = vmatpush1.msra.mxu0 0.0
        %3312 = vmatprep.subr.mxu0 0.0
        %3313 = vmatpush1.msra.mxu0 0.0
        %3314 = vmatprep.subr.mxu0 0.0
        %3315 = vmatpush1.msra.mxu0 0.0
        %3316 = vmatprep.subr.mxu0 0.0
        %3317 = vmatpush1.msra.mxu0 0.0
        %3318 = vmatprep.subr.mxu0 0.0
        %3319 = vmatpush1.msra.mxu0 0.0
        %3320 = vmatprep.subr.mxu0 0.0
        %3321 = vmatpush1.msra.mxu0 0.0
        %3322 = vmatprep.subr.mxu0 0.0
        %3323 = vmatpush1.msra.mxu0 0.0
        %3324 = vmatprep.mubr.f32.mxu0 0.0
        %3325 = vmatmul.mubr.f32.gmra.mrb[0].mxu0 %v3255
        %v3326 = vpop.f32.mrb[0].mxu0
        %v3327 = vadd.f32 %v1843, %v3326
        %v3328 = vpop.f32.mrb[0].mxu0
        %3329 = vdwg.mxu0
        %s3330 = scalar_lea.vmem [#allocation2], 64
        %v3331 = vld [vmem:[%s3330] sm:$0xf]
        %v3332 = vld [vmem:[%s3330 + $0x4] sm:$0xf]
        %v3333 = vld [vmem:[%s3330 + $0x8] sm:$0xf]
        %v3334 = vld [vmem:[%s3330 + $0xc] sm:$0xf]
        %v3335 = vpack.c.bf16 %v3327, %v3327
        %s3336 = scalar_lea.vmem %s5, 4
        %v3337 = vld [vmem:[%s3336] sm:$0x1]
        %v3338 = vunpack.c.l.bf16 %v3337
        %v3339 = vlaneseq
        %v3340 = vshrl.u32 %v3339, 7
        %v3341 = vsub.s32 0, %v3340
        %v3342 = vrot.slane %v3338, %v3341
        %v3347 = vunpack.c.l.b16 %v3331
        %v3348 = vunpack.c.l.b16 %v3332
        %v3349 = vunpack.c.l.b16 %v3333
        %v3350 = vunpack.c.l.b16 %v3334
        %v3351 = vpack.c.b16 %v3348, %v3347
        %v3352 = vpack.c.b16 %v3350, %v3349
        %v3356 = vsel %vm648, %v3335, 0
        %3358 = vmatprep.subr.bf16.mxu0 0
        %3359 = vmatpush1.bf16.msra.mxu0 %v3351
        %3360 = vmatprep.subr.bf16.mxu0 0
        %3361 = vmatpush1.bf16.msra.mxu0 %v3352
        %3362 = vmatprep.subr.bf16.mxu0 0
        %3363 = vmatpush1.bf16.msra.mxu0 0
        %3364 = vmatprep.subr.bf16.mxu0 0
        %3365 = vmatpush1.bf16.msra.mxu0 0
        %3366 = vmatprep.subr.bf16.mxu0 0
        %3367 = vmatpush1.bf16.msra.mxu0 0
        %3368 = vmatprep.subr.bf16.mxu0 0
        %3369 = vmatpush1.bf16.msra.mxu0 0
        %3370 = vmatprep.subr.bf16.mxu0 0
        %3371 = vmatpush1.bf16.msra.mxu0 0
        %3372 = vmatprep.subr.bf16.mxu0 0
        %3373 = vmatpush1.bf16.msra.mxu0 0
        %3374 = vmatprep.subr.bf16.mxu0 0
        %3375 = vmatpush1.bf16.msra.mxu0 0
        %3376 = vmatprep.subr.bf16.mxu0 0
        %3377 = vmatpush1.bf16.msra.mxu0 0
        %3378 = vmatprep.subr.bf16.mxu0 0
        %3379 = vmatpush1.bf16.msra.mxu0 0
        %3380 = vmatprep.subr.bf16.mxu0 0
        %3381 = vmatpush1.bf16.msra.mxu0 0
        %3382 = vmatprep.subr.bf16.mxu0 0
        %3383 = vmatpush1.bf16.msra.mxu0 0
        %3384 = vmatprep.subr.bf16.mxu0 0
        %3385 = vmatpush1.bf16.msra.mxu0 0
        %3386 = vmatprep.subr.bf16.mxu0 0
        %3387 = vmatpush1.bf16.msra.mxu0 0
        %3388 = vmatprep.subr.bf16.mxu0 0
        %3389 = vmatpush1.bf16.msra.mxu0 0
        %3390 = vmatprep.mubr.bf16.mxu0 0
        %3391 = vmatmul.mubr.bf16.gmra.mrb[0].mxu0 %v3356
        %v3392 = vpop.f32.mrb[0].mxu0
        %v3393 = vadd.f32 %v3342, %v3392
        %v3394 = vpop.f32.mrb[0].mxu0
        %v3395 = vpop.f32.mrb[0].mxu0
        %v3396 = vpop.f32.mrb[0].mxu0
        %3397 = vdwg.mxu0
        %v3398 = vmul.f32 %v3393, 0.25
        %v3399 = vpack.c.bf16 %v3398, %v3398
        %v3400 = vpack.c.bf16 %v3393, %v3393
        %3402 = vrot.lane.b32.xlu0 %v3400, 96
        %v3403 = vpop.permute.xlu0 %3402
        %v3405 = vsel %vm754, %v3399, 0
        %v3408 = vsel %vm754, %v3403, 0
        %3410 = vmatprep.subr.bf16.mxu0 0
        %3411 = vmatpush1.bf16.xpose.msra.mxu0 %v3408
        %3412 = vmatprep.subr.bf16.mxu0 0
        %3413 = vmatpush1.bf16.xpose.msra.mxu0 0
        %3414 = vmatprep.subr.bf16.mxu0 0
        %3415 = vmatpush1.bf16.xpose.msra.mxu0 0
        %3416 = vmatprep.subr.bf16.mxu0 0
        %3417 = vmatpush1.bf16.xpose.msra.mxu0 0
        %3418 = vmatprep.subr.bf16.mxu0 0
        %3419 = vmatpush1.bf16.xpose.msra.mxu0 0
        %3420 = vmatprep.subr.bf16.mxu0 0
        %3421 = vmatpush1.bf16.xpose.msra.mxu0 0
        %3422 = vmatprep.subr.bf16.mxu0 0
        %3423 = vmatpush1.bf16.xpose.msra.mxu0 0
        %3424 = vmatprep.subr.bf16.mxu0 0
        %3425 = vmatpush1.bf16.xpose.msra.mxu0 0
        %3426 = vmatprep.subr.bf16.mxu0 0
        %3427 = vmatpush1.bf16.xpose.msra.mxu0 0
        %3428 = vmatprep.subr.bf16.mxu0 0
        %3429 = vmatpush1.bf16.xpose.msra.mxu0 0
        %3430 = vmatprep.subr.bf16.mxu0 0
        %3431 = vmatpush1.bf16.xpose.msra.mxu0 0
        %3432 = vmatprep.subr.bf16.mxu0 0
        %3433 = vmatpush1.bf16.xpose.msra.mxu0 0
        %3434 = vmatprep.subr.bf16.mxu0 0
        %3435 = vmatpush1.bf16.xpose.msra.mxu0 0
        %3436 = vmatprep.subr.bf16.mxu0 0
        %3437 = vmatpush1.bf16.xpose.msra.mxu0 0
        %3438 = vmatprep.subr.bf16.mxu0 0
        %3439 = vmatpush1.bf16.xpose.msra.mxu0 0
        %3440 = vmatprep.subr.bf16.mxu0 0
        %3441 = vmatpush1.bf16.xpose.msra.mxu0 0
        %3442 = vmatprep.mubr.bf16.mxu0 0
        %3443 = vmatmul.mubr.bf16.gmra.mrb[0].mxu0 %v3405
        %v3444 = vpop.f32.mrb[0].mxu0
        %v3445 = vadd.f32 %v747, %v3444
        %v3446 = vpop.f32.mrb[0].mxu0
        %v3447 = vpop.f32.mrb[0].mxu0
        %v3448 = vpop.f32.mrb[0].mxu0
        %3449 = vdwg.mxu0
        %v3450 = vsel %vm801, %v3445, -inf
        %3451 = vmax.xlane.f32.xlu0 %v3450
        %v3452 = vpop.xlane.xlu0 %3451
        %v3453 = vsub.f32 %v3445, %v3452
        %v3454 = vmul.f32 %v3453, 1.442695
        %v3455 = vpow.pop %v3454
        %v3456 = vsel %vm801, %v3455, 0.0
        %3457 = vadd.xlane.f32.xlu0 %v3456
        %v3458 = vpop.xlane.xlu0 %3457
        %v3459 = vrcp.pop %v3458
        %v3460 = vmul.f32 %v3455, %v3459
        %v3461 = vpack.c.bf16 %v3460, %v3460
        %3462 = vrot.lane.b32.xlu0 %v3400, 64
        %v3463 = vpop.permute.xlu0 %3462
        %v3465 = vsel %vm801, %v3461, 0
        %v3468 = vsel %vm819, %v3463, 0
        %3470 = vmatprep.subr.bf16.mxu0 0
        %3471 = vmatpush1.bf16.msra.mxu0 %v3468
        %3472 = vmatprep.subr.bf16.mxu0 0
        %3473 = vmatpush1.bf16.msra.mxu0 0
        %3474 = vmatprep.subr.bf16.mxu0 0
        %3475 = vmatpush1.bf16.msra.mxu0 0
        %3476 = vmatprep.subr.bf16.mxu0 0
        %3477 = vmatpush1.bf16.msra.mxu0 0
        %3478 = vmatprep.subr.bf16.mxu0 0
        %3479 = vmatpush1.bf16.msra.mxu0 0
        %3480 = vmatprep.subr.bf16.mxu0 0
        %3481 = vmatpush1.bf16.msra.mxu0 0
        %3482 = vmatprep.subr.bf16.mxu0 0
        %3483 = vmatpush1.bf16.msra.mxu0 0
        %3484 = vmatprep.subr.bf16.mxu0 0
        %3485 = vmatpush1.bf16.msra.mxu0 0
        %3486 = vmatprep.subr.bf16.mxu0 0
        %3487 = vmatpush1.bf16.msra.mxu0 0
        %3488 = vmatprep.subr.bf16.mxu0 0
        %3489 = vmatpush1.bf16.msra.mxu0 0
        %3490 = vmatprep.subr.bf16.mxu0 0
        %3491 = vmatpush1.bf16.msra.mxu0 0
        %3492 = vmatprep.subr.bf16.mxu0 0
        %3493 = vmatpush1.bf16.msra.mxu0 0
        %3494 = vmatprep.subr.bf16.mxu0 0
        %3495 = vmatpush1.bf16.msra.mxu0 0
        %3496 = vmatprep.subr.bf16.mxu0 0
        %3497 = vmatpush1.bf16.msra.mxu0 0
        %3498 = vmatprep.subr.bf16.mxu0 0
        %3499 = vmatpush1.bf16.msra.mxu0 0
        %3500 = vmatprep.subr.bf16.mxu0 0
        %3501 = vmatpush1.bf16.msra.mxu0 0
        %3502 = vmatprep.mubr.bf16.mxu0 0
        %3503 = vmatmul.mubr.bf16.gmra.mrb[0].mxu0 %v3465
        %v3504 = vpop.f32.mrb[0].mxu0
        %v3505 = vadd.f32 0.0, %v3504
        %v3506 = vpop.f32.mrb[0].mxu0
        %v3507 = vpop.f32.mrb[0].mxu0
        %v3508 = vpop.f32.mrb[0].mxu0
        %3509 = vdwg.mxu0
        %3511 = vrot.lane.b32.xlu0 %v3399, 112
        %v3512 = vpop.permute.xlu0 %3511
        %3513 = vrot.lane.b32.xlu0 %v3400, 80
        %v3514 = vpop.permute.xlu0 %3513
        %v3516 = vsel %vm754, %v3512, 0
        %v3519 = vsel %vm754, %v3514, 0
        %3521 = vmatprep.subr.bf16.mxu0 0
        %3522 = vmatpush1.bf16.xpose.msra.mxu0 %v3519
        %3523 = vmatprep.subr.bf16.mxu0 0
        %3524 = vmatpush1.bf16.xpose.msra.mxu0 0
        %3525 = vmatprep.subr.bf16.mxu0 0
        %3526 = vmatpush1.bf16.xpose.msra.mxu0 0
        %3527 = vmatprep.subr.bf16.mxu0 0
        %3528 = vmatpush1.bf16.xpose.msra.mxu0 0
        %3529 = vmatprep.subr.bf16.mxu0 0
        %3530 = vmatpush1.bf16.xpose.msra.mxu0 0
        %3531 = vmatprep.subr.bf16.mxu0 0
        %3532 = vmatpush1.bf16.xpose.msra.mxu0 0
        %3533 = vmatprep.subr.bf16.mxu0 0
        %3534 = vmatpush1.bf16.xpose.msra.mxu0 0
        %3535 = vmatprep.subr.bf16.mxu0 0
        %3536 = vmatpush1.bf16.xpose.msra.mxu0 0
        %3537 = vmatprep.subr.bf16.mxu0 0
        %3538 = vmatpush1.bf16.xpose.msra.mxu0 0
        %3539 = vmatprep.subr.bf16.mxu0 0
        %3540 = vmatpush1.bf16.xpose.msra.mxu0 0
        %3541 = vmatprep.subr.bf16.mxu0 0
        %3542 = vmatpush1.bf16.xpose.msra.mxu0 0
        %3543 = vmatprep.subr.bf16.mxu0 0
        %3544 = vmatpush1.bf16.xpose.msra.mxu0 0
        %3545 = vmatprep.subr.bf16.mxu0 0
        %3546 = vmatpush1.bf16.xpose.msra.mxu0 0
        %3547 = vmatprep.subr.bf16.mxu0 0
        %3548 = vmatpush1.bf16.xpose.msra.mxu0 0
        %3549 = vmatprep.subr.bf16.mxu0 0
        %3550 = vmatpush1.bf16.xpose.msra.mxu0 0
        %3551 = vmatprep.subr.bf16.mxu0 0
        %3552 = vmatpush1.bf16.xpose.msra.mxu0 0
        %3553 = vmatprep.mubr.bf16.mxu0 0
        %3554 = vmatmul.mubr.bf16.gmra.mrb[0].mxu0 %v3516
        %v3555 = vpop.f32.mrb[0].mxu0
        %v3556 = vadd.f32 %v747, %v3555
        %v3557 = vpop.f32.mrb[0].mxu0
        %v3558 = vpop.f32.mrb[0].mxu0
        %v3559 = vpop.f32.mrb[0].mxu0
        %3560 = vdwg.mxu0
        %v3561 = vsel %vm801, %v3556, -inf
        %3562 = vmax.xlane.f32.xlu0 %v3561
        %v3563 = vpop.xlane.xlu0 %3562
        %v3564 = vsub.f32 %v3556, %v3563
        %v3565 = vmul.f32 %v3564, 1.442695
        %v3566 = vpow.pop %v3565
        %v3567 = vsel %vm801, %v3566, 0.0
        %3568 = vadd.xlane.f32.xlu0 %v3567
        %v3569 = vpop.xlane.xlu0 %3568
        %v3570 = vrcp.pop %v3569
        %v3571 = vmul.f32 %v3566, %v3570
        %v3572 = vpack.c.bf16 %v3571, %v3571
        %3573 = vrot.lane.b32.xlu0 %v3400, 48
        %v3574 = vpop.permute.xlu0 %3573
        %v3576 = vsel %vm801, %v3572, 0
        %v3579 = vsel %vm819, %v3574, 0
        %3581 = vmatprep.subr.bf16.mxu0 0
        %3582 = vmatpush1.bf16.msra.mxu0 %v3579
        %3583 = vmatprep.subr.bf16.mxu0 0
        %3584 = vmatpush1.bf16.msra.mxu0 0
        %3585 = vmatprep.subr.bf16.mxu0 0
        %3586 = vmatpush1.bf16.msra.mxu0 0
        %3587 = vmatprep.subr.bf16.mxu0 0
        %3588 = vmatpush1.bf16.msra.mxu0 0
        %3589 = vmatprep.subr.bf16.mxu0 0
        %3590 = vmatpush1.bf16.msra.mxu0 0
        %3591 = vmatprep.subr.bf16.mxu0 0
        %3592 = vmatpush1.bf16.msra.mxu0 0
        %3593 = vmatprep.subr.bf16.mxu0 0
        %3594 = vmatpush1.bf16.msra.mxu0 0
        %3595 = vmatprep.subr.bf16.mxu0 0
        %3596 = vmatpush1.bf16.msra.mxu0 0
        %3597 = vmatprep.subr.bf16.mxu0 0
        %3598 = vmatpush1.bf16.msra.mxu0 0
        %3599 = vmatprep.subr.bf16.mxu0 0
        %3600 = vmatpush1.bf16.msra.mxu0 0
        %3601 = vmatprep.subr.bf16.mxu0 0
        %3602 = vmatpush1.bf16.msra.mxu0 0
        %3603 = vmatprep.subr.bf16.mxu0 0
        %3604 = vmatpush1.bf16.msra.mxu0 0
        %3605 = vmatprep.subr.bf16.mxu0 0
        %3606 = vmatpush1.bf16.msra.mxu0 0
        %3607 = vmatprep.subr.bf16.mxu0 0
        %3608 = vmatpush1.bf16.msra.mxu0 0
        %3609 = vmatprep.subr.bf16.mxu0 0
        %3610 = vmatpush1.bf16.msra.mxu0 0
        %3611 = vmatprep.subr.bf16.mxu0 0
        %3612 = vmatpush1.bf16.msra.mxu0 0
        %3613 = vmatprep.mubr.bf16.mxu0 0
        %3614 = vmatmul.mubr.bf16.gmra.mrb[0].mxu0 %v3576
        %v3615 = vpop.f32.mrb[0].mxu0
        %v3616 = vadd.f32 0.0, %v3615
        %v3617 = vpop.f32.mrb[0].mxu0
        %v3618 = vpop.f32.mrb[0].mxu0
        %v3619 = vpop.f32.mrb[0].mxu0
        %3620 = vdwg.mxu0
        %3622 = vrot.lane.b32.xlu0 %v3616, 16
        %v3623 = vpop.permute.xlu0 %3622
        %v3625 = vsel %vm754, %v3505, %v3623
        %s3626 = scalar_lea.vmem [#allocation5], 64
        %v3627 = vld [vmem:[%s3626] sm:$0xf]
        %v3628 = vld [vmem:[%s3626 + $0x4] sm:$0xf]
        %v3629 = vld [vmem:[%s3626 + $0x8] sm:$0xf]
        %v3630 = vld [vmem:[%s3626 + $0xc] sm:$0xf]
        %v3631 = vpack.c.bf16 %v3625, %v3625
        %s3632 = scalar_lea.vmem %s7, 4
        %v3633 = vld [vmem:[%s3632] sm:$0x1]
        %v3634 = vunpack.c.l.bf16 %v3633
        %v3635 = vlaneseq
        %v3636 = vshrl.u32 %v3635, 7
        %v3637 = vsub.s32 0, %v3636
        %v3638 = vrot.slane %v3634, %v3637
        %v3643 = vunpack.c.l.b16 %v3627
        %v3644 = vunpack.c.l.b16 %v3628
        %v3645 = vunpack.c.l.b16 %v3629
        %v3646 = vunpack.c.l.b16 %v3630
        %v3647 = vpack.c.b16 %v3644, %v3643
        %v3648 = vpack.c.b16 %v3646, %v3645
        %v3652 = vsel %vm648, %v3631, 0
        %3654 = vmatprep.subr.bf16.mxu0 0
        %3655 = vmatpush1.bf16.msra.mxu0 %v3647
        %3656 = vmatprep.subr.bf16.mxu0 0
        %3657 = vmatpush1.bf16.msra.mxu0 %v3648
        %3658 = vmatprep.subr.bf16.mxu0 0
        %3659 = vmatpush1.bf16.msra.mxu0 0
        %3660 = vmatprep.subr.bf16.mxu0 0
        %3661 = vmatpush1.bf16.msra.mxu0 0
        %3662 = vmatprep.subr.bf16.mxu0 0
        %3663 = vmatpush1.bf16.msra.mxu0 0
        %3664 = vmatprep.subr.bf16.mxu0 0
        %3665 = vmatpush1.bf16.msra.mxu0 0
        %3666 = vmatprep.subr.bf16.mxu0 0
        %3667 = vmatpush1.bf16.msra.mxu0 0
        %3668 = vmatprep.subr.bf16.mxu0 0
        %3669 = vmatpush1.bf16.msra.mxu0 0
        %3670 = vmatprep.subr.bf16.mxu0 0
        %3671 = vmatpush1.bf16.msra.mxu0 0
        %3672 = vmatprep.subr.bf16.mxu0 0
        %3673 = vmatpush1.bf16.msra.mxu0 0
        %3674 = vmatprep.subr.bf16.mxu0 0
        %3675 = vmatpush1.bf16.msra.mxu0 0
        %3676 = vmatprep.subr.bf16.mxu0 0
        %3677 = vmatpush1.bf16.msra.mxu0 0
        %3678 = vmatprep.subr.bf16.mxu0 0
        %3679 = vmatpush1.bf16.msra.mxu0 0
        %3680 = vmatprep.subr.bf16.mxu0 0
        %3681 = vmatpush1.bf16.msra.mxu0 0
        %3682 = vmatprep.subr.bf16.mxu0 0
        %3683 = vmatpush1.bf16.msra.mxu0 0
        %3684 = vmatprep.subr.bf16.mxu0 0
        %3685 = vmatpush1.bf16.msra.mxu0 0
        %3686 = vmatprep.mubr.bf16.mxu0 0
        %3687 = vmatmul.mubr.bf16.gmra.mrb[0].mxu0 %v3652
        %v3688 = vpop.f32.mrb[0].mxu0
        %v3689 = vadd.f32 %v3638, %v3688
        %v3690 = vpop.f32.mrb[0].mxu0
        %v3691 = vpop.f32.mrb[0].mxu0
        %v3692 = vpop.f32.mrb[0].mxu0
        %3693 = vdwg.mxu0
        %v3694 = vadd.f32 %v3327, %v3689
        %s3695 = scalar_lea.vmem %s8, 4
        %v3696 = vld [vmem:[%s3695] sm:$0x1]
        %s3697 = scalar_lea.vmem %s9, 4
        %v3698 = vld [vmem:[%s3697] sm:$0x1]
        %v3699 = vsel %vm648, %v3694, 0.0
        %3700 = vadd.xlane.f32.xlu0 %v3699
        %v3701 = vpop.xlane.xlu0 %3700
        %v3702 = vmul.f32 %v3701, %v652
        %v3703 = vsub.f32 %v3694, %v3702
        %v3704 = vmul.f32 %v3703, %v3703
        %v3705 = vsel %vm648, %v3704, 0.0
        %3706 = vadd.xlane.f32.xlu0 %v3705
        %v3707 = vpop.xlane.xlu0 %3706
        %v3708 = vmul.f32 %v3707, %v652
        %v3709 = vadd.f32 %v3708, 1e-09
        %v3710 = vrsqrt.pop %v3709
        %v3711 = vmul.f32 %v3703, %v3710
        %v3712 = vunpack.c.l.bf16 %v3696
        %v3713 = vlaneseq
        %v3714 = vshrl.u32 %v3713, 7
        %v3715 = vsub.s32 0, %v3714
        %v3716 = vrot.slane %v3712, %v3715
        %v3717 = vmul.f32 %v3711, %v3716
        %v3718 = vunpack.c.l.bf16 %v3698
        %v3719 = vlaneseq
        %v3720 = vshrl.u32 %v3719, 7
        %v3721 = vsub.s32 0, %v3720
        %v3722 = vrot.slane %v3718, %v3721
        %v3723 = vadd.f32 %v3717, %v3722
        %s3724 = scalar_lea.vmem [#allocation7], 64
        %v3725 = vld [vmem:[%s3724] sm:$0xf]
        %v3726 = vld [vmem:[%s3724 + $0x4] sm:$0xf]
        %v3727 = vld [vmem:[%s3724 + $0x8] sm:$0xf]
        %v3728 = vld [vmem:[%s3724 + $0xc] sm:$0xf]
        %v3729 = vpack.c.bf16 %v3723, %v3723
        %s3730 = scalar_lea.vmem %s11, 4
        %v3731 = vld [vmem:[%s3730] sm:$0x1]
        %v3732 = vunpack.c.l.bf16 %v3731
        %v3733 = vlaneseq
        %v3734 = vshrl.u32 %v3733, 7
        %v3735 = vsub.s32 0, %v3734
        %v3736 = vrot.slane %v3732, %v3735
        %v3741 = vunpack.c.l.b16 %v3725
        %v3742 = vunpack.c.l.b16 %v3726
        %v3743 = vunpack.c.l.b16 %v3727
        %v3744 = vunpack.c.l.b16 %v3728
        %v3745 = vpack.c.b16 %v3742, %v3741
        %v3746 = vpack.c.b16 %v3744, %v3743
        %v3750 = vsel %vm648, %v3729, 0
        %3752 = vmatprep.subr.bf16.mxu0 0
        %3753 = vmatpush1.bf16.msra.mxu0 %v3745
        %3754 = vmatprep.subr.bf16.mxu0 0
        %3755 = vmatpush1.bf16.msra.mxu0 %v3746
        %3756 = vmatprep.subr.bf16.mxu0 0
        %3757 = vmatpush1.bf16.msra.mxu0 0
        %3758 = vmatprep.subr.bf16.mxu0 0
        %3759 = vmatpush1.bf16.msra.mxu0 0
        %3760 = vmatprep.subr.bf16.mxu0 0
        %3761 = vmatpush1.bf16.msra.mxu0 0
        %3762 = vmatprep.subr.bf16.mxu0 0
        %3763 = vmatpush1.bf16.msra.mxu0 0
        %3764 = vmatprep.subr.bf16.mxu0 0
        %3765 = vmatpush1.bf16.msra.mxu0 0
        %3766 = vmatprep.subr.bf16.mxu0 0
        %3767 = vmatpush1.bf16.msra.mxu0 0
        %3768 = vmatprep.subr.bf16.mxu0 0
        %3769 = vmatpush1.bf16.msra.mxu0 0
        %3770 = vmatprep.subr.bf16.mxu0 0
        %3771 = vmatpush1.bf16.msra.mxu0 0
        %3772 = vmatprep.subr.bf16.mxu0 0
        %3773 = vmatpush1.bf16.msra.mxu0 0
        %3774 = vmatprep.subr.bf16.mxu0 0
        %3775 = vmatpush1.bf16.msra.mxu0 0
        %3776 = vmatprep.subr.bf16.mxu0 0
        %3777 = vmatpush1.bf16.msra.mxu0 0
        %3778 = vmatprep.subr.bf16.mxu0 0
        %3779 = vmatpush1.bf16.msra.mxu0 0
        %3780 = vmatprep.subr.bf16.mxu0 0
        %3781 = vmatpush1.bf16.msra.mxu0 0
        %3782 = vmatprep.subr.bf16.mxu0 0
        %3783 = vmatpush1.bf16.msra.mxu0 0
        %3784 = vmatprep.mubr.bf16.mxu0 0
        %3785 = vmatmul.mubr.bf16.gmra.mrb[0].mxu0 %v3750
        %v3786 = vpop.f32.mrb[0].mxu0
        %v3787 = vadd.f32 %v3736, %v3786
        %v3788 = vpop.f32.mrb[0].mxu0
        %v3789 = vpop.f32.mrb[0].mxu0
        %v3790 = vpop.f32.mrb[0].mxu0
        %3791 = vdwg.mxu0
        %v3792 = vmul.f32 %v3787, 0.5
        %v3793 = vmul.f32 %v3787, 0.044715
        %v3794 = vmul.f32 %v3793, %v3787
        %v3795 = vmul.f32 %v3794, %v3787
        %v3796 = vadd.f32 %v3787, %v3795
        %v3797 = vmul.f32 %v3796, 0.7978846
        %v3798 = vtanh.pop %v3797
        %v3799 = vadd.f32 %v3798, 1.0
        %v3800 = vmul.f32 %v3792, %v3799
        %s3801 = scalar_lea.vmem %s12, 128
        %v3802 = vld [vmem:[%s3801] sm:$0xf]
        %v3803 = vld [vmem:[%s3801 + $0x4] sm:$0xf]
        %v3804 = vld [vmem:[%s3801 + $0x8] sm:$0xf]
        %v3805 = vld [vmem:[%s3801 + $0xc] sm:$0xf]
        %v3806 = vld [vmem:[%s3801 + $0x10] sm:$0xf]
        %v3807 = vld [vmem:[%s3801 + $0x14] sm:$0xf]
        %v3808 = vld [vmem:[%s3801 + $0x18] sm:$0xf]
        %v3809 = vld [vmem:[%s3801 + $0x1c] sm:$0xf]
        %v3810 = vpack.c.bf16 %v3800, %v3800
        %s3811 = scalar_lea.vmem %s13, 4
        %v3812 = vld [vmem:[%s3811] sm:$0x1]
        %v3813 = vunpack.c.l.bf16 %v3812
        %v3814 = vlaneseq
        %v3815 = vshrl.u32 %v3814, 7
        %v3816 = vsub.s32 0, %v3815
        %v3817 = vrot.slane %v3813, %v3816
        %v3826 = vunpack.c.l.b16 %v3802
        %v3827 = vunpack.c.l.b16 %v3803
        %v3828 = vunpack.c.l.b16 %v3804
        %v3829 = vunpack.c.l.b16 %v3805
        %v3830 = vunpack.c.l.b16 %v3806
        %v3831 = vunpack.c.l.b16 %v3807
        %v3832 = vunpack.c.l.b16 %v3808
        %v3833 = vunpack.c.l.b16 %v3809
        %v3834 = vpack.c.b16 %v3827, %v3826
        %v3835 = vpack.c.b16 %v3829, %v3828
        %v3836 = vpack.c.b16 %v3831, %v3830
        %v3837 = vpack.c.b16 %v3833, %v3832
        %v3843 = vsel %vm1187, %v3810, 0
        %3845 = vmatprep.subr.bf16.mxu0 0
        %3846 = vmatpush1.bf16.msra.mxu0 %v3834
        %3847 = vmatprep.subr.bf16.mxu0 0
        %3848 = vmatpush1.bf16.msra.mxu0 %v3835
        %3849 = vmatprep.subr.bf16.mxu0 0
        %3850 = vmatpush1.bf16.msra.mxu0 %v3836
        %3851 = vmatprep.subr.bf16.mxu0 0
        %3852 = vmatpush1.bf16.msra.mxu0 %v3837
        %3853 = vmatprep.subr.bf16.mxu0 0
        %3854 = vmatpush1.bf16.msra.mxu0 0
        %3855 = vmatprep.subr.bf16.mxu0 0
        %3856 = vmatpush1.bf16.msra.mxu0 0
        %3857 = vmatprep.subr.bf16.mxu0 0
        %3858 = vmatpush1.bf16.msra.mxu0 0
        %3859 = vmatprep.subr.bf16.mxu0 0
        %3860 = vmatpush1.bf16.msra.mxu0 0
        %3861 = vmatprep.subr.bf16.mxu0 0
        %3862 = vmatpush1.bf16.msra.mxu0 0
        %3863 = vmatprep.subr.bf16.mxu0 0
        %3864 = vmatpush1.bf16.msra.mxu0 0
        %3865 = vmatprep.subr.bf16.mxu0 0
        %3866 = vmatpush1.bf16.msra.mxu0 0
        %3867 = vmatprep.subr.bf16.mxu0 0
        %3868 = vmatpush1.bf16.msra.mxu0 0
        %3869 = vmatprep.subr.bf16.mxu0 0
        %3870 = vmatpush1.bf16.msra.mxu0 0
        %3871 = vmatprep.subr.bf16.mxu0 0
        %3872 = vmatpush1.bf16.msra.mxu0 0
        %3873 = vmatprep.subr.bf16.mxu0 0
        %3874 = vmatpush1.bf16.msra.mxu0 0
        %3875 = vmatprep.subr.bf16.mxu0 0
        %3876 = vmatpush1.bf16.msra.mxu0 0
        %3877 = vmatprep.mubr.bf16.mxu0 0
        %3878 = vmatmul.mubr.bf16.gmra.mrb[0].mxu0 %v3843
        %v3879 = vpop.f32.mrb[0].mxu0
        %v3880 = vadd.f32 %v3817, %v3879
        %v3881 = vpop.f32.mrb[0].mxu0
        %v3882 = vpop.f32.mrb[0].mxu0
        %v3883 = vpop.f32.mrb[0].mxu0
        %3884 = vdwg.mxu0
        %v3885 = vadd.f32 %v3723, %v3880
        %s3886 = scalar_lea.vmem %s14, 4
        %v3887 = vld [vmem:[%s3886] sm:$0x1]
        %s3888 = scalar_lea.vmem %s15, 4
        %v3889 = vld [vmem:[%s3888] sm:$0x1]
        %v3890 = vsel %vm648, %v3885, 0.0
        %3891 = vadd.xlane.f32.xlu0 %v3890
        %v3892 = vpop.xlane.xlu0 %3891
        %v3893 = vmul.f32 %v3892, %v652
        %v3894 = vsub.f32 %v3885, %v3893
        %v3895 = vmul.f32 %v3894, %v3894
        %v3896 = vsel %vm648, %v3895, 0.0
        %3897 = vadd.xlane.f32.xlu0 %v3896
        %v3898 = vpop.xlane.xlu0 %3897
        %v3899 = vmul.f32 %v3898, %v652
        %v3900 = vadd.f32 %v3899, 1e-09
        %v3901 = vrsqrt.pop %v3900
        %v3902 = vmul.f32 %v3894, %v3901
        %v3903 = vunpack.c.l.bf16 %v3887
        %v3904 = vlaneseq
        %v3905 = vshrl.u32 %v3904, 7
        %v3906 = vsub.s32 0, %v3905
        %v3907 = vrot.slane %v3903, %v3906
        %v3908 = vmul.f32 %v3902, %v3907
        %v3909 = vunpack.c.l.bf16 %v3889
        %v3910 = vlaneseq
        %v3911 = vshrl.u32 %v3910, 7
        %v3912 = vsub.s32 0, %v3911
        %v3913 = vrot.slane %v3909, %v3912
        %v3914 = vadd.f32 %v3908, %v3913
        %s3915 = scalar_lea.vmem [#allocation2], 80
        %v3916 = vld [vmem:[%s3915] sm:$0xf]
        %v3917 = vld [vmem:[%s3915 + $0x4] sm:$0xf]
        %v3918 = vld [vmem:[%s3915 + $0x8] sm:$0xf]
        %v3919 = vld [vmem:[%s3915 + $0xc] sm:$0xf]
        %v3920 = vpack.c.bf16 %v3914, %v3914
        %s3921 = scalar_lea.vmem %s5, 5
        %v3922 = vld [vmem:[%s3921] sm:$0x1]
        %v3923 = vunpack.c.l.bf16 %v3922
        %v3924 = vlaneseq
        %v3925 = vshrl.u32 %v3924, 7
        %v3926 = vsub.s32 0, %v3925
        %v3927 = vrot.slane %v3923, %v3926
        %v3932 = vunpack.c.l.b16 %v3916
        %v3933 = vunpack.c.l.b16 %v3917
        %v3934 = vunpack.c.l.b16 %v3918
        %v3935 = vunpack.c.l.b16 %v3919
        %v3936 = vpack.c.b16 %v3933, %v3932
        %v3937 = vpack.c.b16 %v3935, %v3934
        %v3941 = vsel %vm648, %v3920, 0
        %3943 = vmatprep.subr.bf16.mxu0 0
        %3944 = vmatpush1.bf16.msra.mxu0 %v3936
        %3945 = vmatprep.subr.bf16.mxu0 0
        %3946 = vmatpush1.bf16.msra.mxu0 %v3937
        %3947 = vmatprep.subr.bf16.mxu0 0
        %3948 = vmatpush1.bf16.msra.mxu0 0
        %3949 = vmatprep.subr.bf16.mxu0 0
        %3950 = vmatpush1.bf16.msra.mxu0 0
        %3951 = vmatprep.subr.bf16.mxu0 0
        %3952 = vmatpush1.bf16.msra.mxu0 0
        %3953 = vmatprep.subr.bf16.mxu0 0
        %3954 = vmatpush1.bf16.msra.mxu0 0
        %3955 = vmatprep.subr.bf16.mxu0 0
        %3956 = vmatpush1.bf16.msra.mxu0 0
        %3957 = vmatprep.subr.bf16.mxu0 0
        %3958 = vmatpush1.bf16.msra.mxu0 0
        %3959 = vmatprep.subr.bf16.mxu0 0
        %3960 = vmatpush1.bf16.msra.mxu0 0
        %3961 = vmatprep.subr.bf16.mxu0 0
        %3962 = vmatpush1.bf16.msra.mxu0 0
        %3963 = vmatprep.subr.bf16.mxu0 0
        %3964 = vmatpush1.bf16.msra.mxu0 0
        %3965 = vmatprep.subr.bf16.mxu0 0
        %3966 = vmatpush1.bf16.msra.mxu0 0
        %3967 = vmatprep.subr.bf16.mxu0 0
        %3968 = vmatpush1.bf16.msra.mxu0 0
        %3969 = vmatprep.subr.bf16.mxu0 0
        %3970 = vmatpush1.bf16.msra.mxu0 0
        %3971 = vmatprep.subr.bf16.mxu0 0
        %3972 = vmatpush1.bf16.msra.mxu0 0
        %3973 = vmatprep.subr.bf16.mxu0 0
        %3974 = vmatpush1.bf16.msra.mxu0 0
        %3975 = vmatprep.mubr.bf16.mxu0 0
        %3976 = vmatmul.mubr.bf16.gmra.mrb[0].mxu0 %v3941
        %v3977 = vpop.f32.mrb[0].mxu0
        %v3978 = vadd.f32 %v3927, %v3977
        %v3979 = vpop.f32.mrb[0].mxu0
        %v3980 = vpop.f32.mrb[0].mxu0
        %v3981 = vpop.f32.mrb[0].mxu0
        %3982 = vdwg.mxu0
        %v3983 = vmul.f32 %v3978, 0.25
        %v3984 = vpack.c.bf16 %v3983, %v3983
        %v3985 = vpack.c.bf16 %v3978, %v3978
        %3987 = vrot.lane.b32.xlu0 %v3985, 96
        %v3988 = vpop.permute.xlu0 %3987
        %v3990 = vsel %vm754, %v3984, 0
        %v3993 = vsel %vm754, %v3988, 0
        %3995 = vmatprep.subr.bf16.mxu0 0
        %3996 = vmatpush1.bf16.xpose.msra.mxu0 %v3993
        %3997 = vmatprep.subr.bf16.mxu0 0
        %3998 = vmatpush1.bf16.xpose.msra.mxu0 0
        %3999 = vmatprep.subr.bf16.mxu0 0
        %4000 = vmatpush1.bf16.xpose.msra.mxu0 0
        %4001 = vmatprep.subr.bf16.mxu0 0
        %4002 = vmatpush1.bf16.xpose.msra.mxu0 0
        %4003 = vmatprep.subr.bf16.mxu0 0
        %4004 = vmatpush1.bf16.xpose.msra.mxu0 0
        %4005 = vmatprep.subr.bf16.mxu0 0
        %4006 = vmatpush1.bf16.xpose.msra.mxu0 0
        %4007 = vmatprep.subr.bf16.mxu0 0
        %4008 = vmatpush1.bf16.xpose.msra.mxu0 0
        %4009 = vmatprep.subr.bf16.mxu0 0
        %4010 = vmatpush1.bf16.xpose.msra.mxu0 0
        %4011 = vmatprep.subr.bf16.mxu0 0
        %4012 = vmatpush1.bf16.xpose.msra.mxu0 0
        %4013 = vmatprep.subr.bf16.mxu0 0
        %4014 = vmatpush1.bf16.xpose.msra.mxu0 0
        %4015 = vmatprep.subr.bf16.mxu0 0
        %4016 = vmatpush1.bf16.xpose.msra.mxu0 0
        %4017 = vmatprep.subr.bf16.mxu0 0
        %4018 = vmatpush1.bf16.xpose.msra.mxu0 0
        %4019 = vmatprep.subr.bf16.mxu0 0
        %4020 = vmatpush1.bf16.xpose.msra.mxu0 0
        %4021 = vmatprep.subr.bf16.mxu0 0
        %4022 = vmatpush1.bf16.xpose.msra.mxu0 0
        %4023 = vmatprep.subr.bf16.mxu0 0
        %4024 = vmatpush1.bf16.xpose.msra.mxu0 0
        %4025 = vmatprep.subr.bf16.mxu0 0
        %4026 = vmatpush1.bf16.xpose.msra.mxu0 0
        %4027 = vmatprep.mubr.bf16.mxu0 0
        %4028 = vmatmul.mubr.bf16.gmra.mrb[0].mxu0 %v3990
        %v4029 = vpop.f32.mrb[0].mxu0
        %v4030 = vadd.f32 %v747, %v4029
        %v4031 = vpop.f32.mrb[0].mxu0
        %v4032 = vpop.f32.mrb[0].mxu0
        %v4033 = vpop.f32.mrb[0].mxu0
        %4034 = vdwg.mxu0
        %v4035 = vsel %vm801, %v4030, -inf
        %4036 = vmax.xlane.f32.xlu0 %v4035
        %v4037 = vpop.xlane.xlu0 %4036
        %v4038 = vsub.f32 %v4030, %v4037
        %v4039 = vmul.f32 %v4038, 1.442695
        %v4040 = vpow.pop %v4039
        %v4041 = vsel %vm801, %v4040, 0.0
        %4042 = vadd.xlane.f32.xlu0 %v4041
        %v4043 = vpop.xlane.xlu0 %4042
        %v4044 = vrcp.pop %v4043
        %v4045 = vmul.f32 %v4040, %v4044
        %v4046 = vpack.c.bf16 %v4045, %v4045
        %4047 = vrot.lane.b32.xlu0 %v3985, 64
        %v4048 = vpop.permute.xlu0 %4047
        %v4050 = vsel %vm801, %v4046, 0
        %v4053 = vsel %vm819, %v4048, 0
        %4055 = vmatprep.subr.bf16.mxu0 0
        %4056 = vmatpush1.bf16.msra.mxu0 %v4053
        %4057 = vmatprep.subr.bf16.mxu0 0
        %4058 = vmatpush1.bf16.msra.mxu0 0
        %4059 = vmatprep.subr.bf16.mxu0 0
        %4060 = vmatpush1.bf16.msra.mxu0 0
        %4061 = vmatprep.subr.bf16.mxu0 0
        %4062 = vmatpush1.bf16.msra.mxu0 0
        %4063 = vmatprep.subr.bf16.mxu0 0
        %4064 = vmatpush1.bf16.msra.mxu0 0
        %4065 = vmatprep.subr.bf16.mxu0 0
        %4066 = vmatpush1.bf16.msra.mxu0 0
        %4067 = vmatprep.subr.bf16.mxu0 0
        %4068 = vmatpush1.bf16.msra.mxu0 0
        %4069 = vmatprep.subr.bf16.mxu0 0
        %4070 = vmatpush1.bf16.msra.mxu0 0
        %4071 = vmatprep.subr.bf16.mxu0 0
        %4072 = vmatpush1.bf16.msra.mxu0 0
        %4073 = vmatprep.subr.bf16.mxu0 0
        %4074 = vmatpush1.bf16.msra.mxu0 0
        %4075 = vmatprep.subr.bf16.mxu0 0
        %4076 = vmatpush1.bf16.msra.mxu0 0
        %4077 = vmatprep.subr.bf16.mxu0 0
        %4078 = vmatpush1.bf16.msra.mxu0 0
        %4079 = vmatprep.subr.bf16.mxu0 0
        %4080 = vmatpush1.bf16.msra.mxu0 0
        %4081 = vmatprep.subr.bf16.mxu0 0
        %4082 = vmatpush1.bf16.msra.mxu0 0
        %4083 = vmatprep.subr.bf16.mxu0 0
        %4084 = vmatpush1.bf16.msra.mxu0 0
        %4085 = vmatprep.subr.bf16.mxu0 0
        %4086 = vmatpush1.bf16.msra.mxu0 0
        %4087 = vmatprep.mubr.bf16.mxu0 0
        %4088 = vmatmul.mubr.bf16.gmra.mrb[0].mxu0 %v4050
        %v4089 = vpop.f32.mrb[0].mxu0
        %v4090 = vadd.f32 0.0, %v4089
        %v4091 = vpop.f32.mrb[0].mxu0
        %v4092 = vpop.f32.mrb[0].mxu0
        %v4093 = vpop.f32.mrb[0].mxu0
        %4094 = vdwg.mxu0
        %4096 = vrot.lane.b32.xlu0 %v3984, 112
        %v4097 = vpop.permute.xlu0 %4096
        %4098 = vrot.lane.b32.xlu0 %v3985, 80
        %v4099 = vpop.permute.xlu0 %4098
        %v4101 = vsel %vm754, %v4097, 0
        %v4104 = vsel %vm754, %v4099, 0
        %4106 = vmatprep.subr.bf16.mxu0 0
        %4107 = vmatpush1.bf16.xpose.msra.mxu0 %v4104
        %4108 = vmatprep.subr.bf16.mxu0 0
        %4109 = vmatpush1.bf16.xpose.msra.mxu0 0
        %4110 = vmatprep.subr.bf16.mxu0 0
        %4111 = vmatpush1.bf16.xpose.msra.mxu0 0
        %4112 = vmatprep.subr.bf16.mxu0 0
        %4113 = vmatpush1.bf16.xpose.msra.mxu0 0
        %4114 = vmatprep.subr.bf16.mxu0 0
        %4115 = vmatpush1.bf16.xpose.msra.mxu0 0
        %4116 = vmatprep.subr.bf16.mxu0 0
        %4117 = vmatpush1.bf16.xpose.msra.mxu0 0
        %4118 = vmatprep.subr.bf16.mxu0 0
        %4119 = vmatpush1.bf16.xpose.msra.mxu0 0
        %4120 = vmatprep.subr.bf16.mxu0 0
        %4121 = vmatpush1.bf16.xpose.msra.mxu0 0
        %4122 = vmatprep.subr.bf16.mxu0 0
        %4123 = vmatpush1.bf16.xpose.msra.mxu0 0
        %4124 = vmatprep.subr.bf16.mxu0 0
        %4125 = vmatpush1.bf16.xpose.msra.mxu0 0
        %4126 = vmatprep.subr.bf16.mxu0 0
        %4127 = vmatpush1.bf16.xpose.msra.mxu0 0
        %4128 = vmatprep.subr.bf16.mxu0 0
        %4129 = vmatpush1.bf16.xpose.msra.mxu0 0
        %4130 = vmatprep.subr.bf16.mxu0 0
        %4131 = vmatpush1.bf16.xpose.msra.mxu0 0
        %4132 = vmatprep.subr.bf16.mxu0 0
        %4133 = vmatpush1.bf16.xpose.msra.mxu0 0
        %4134 = vmatprep.subr.bf16.mxu0 0
        %4135 = vmatpush1.bf16.xpose.msra.mxu0 0
        %4136 = vmatprep.subr.bf16.mxu0 0
        %4137 = vmatpush1.bf16.xpose.msra.mxu0 0
        %4138 = vmatprep.mubr.bf16.mxu0 0
        %4139 = vmatmul.mubr.bf16.gmra.mrb[0].mxu0 %v4101
        %v4140 = vpop.f32.mrb[0].mxu0
        %v4141 = vadd.f32 %v747, %v4140
        %v4142 = vpop.f32.mrb[0].mxu0
        %v4143 = vpop.f32.mrb[0].mxu0
        %v4144 = vpop.f32.mrb[0].mxu0
        %4145 = vdwg.mxu0
        %v4146 = vsel %vm801, %v4141, -inf
        %4147 = vmax.xlane.f32.xlu0 %v4146
        %v4148 = vpop.xlane.xlu0 %4147
        %v4149 = vsub.f32 %v4141, %v4148
        %v4150 = vmul.f32 %v4149, 1.442695
        %v4151 = vpow.pop %v4150
        %v4152 = vsel %vm801, %v4151, 0.0
        %4153 = vadd.xlane.f32.xlu0 %v4152
        %v4154 = vpop.xlane.xlu0 %4153
        %v4155 = vrcp.pop %v4154
        %v4156 = vmul.f32 %v4151, %v4155
        %v4157 = vpack.c.bf16 %v4156, %v4156
        %4158 = vrot.lane.b32.xlu0 %v3985, 48
        %v4159 = vpop.permute.xlu0 %4158
        %v4161 = vsel %vm801, %v4157, 0
        %v4164 = vsel %vm819, %v4159, 0
        %4166 = vmatprep.subr.bf16.mxu0 0
        %4167 = vmatpush1.bf16.msra.mxu0 %v4164
        %4168 = vmatprep.subr.bf16.mxu0 0
        %4169 = vmatpush1.bf16.msra.mxu0 0
        %4170 = vmatprep.subr.bf16.mxu0 0
        %4171 = vmatpush1.bf16.msra.mxu0 0
        %4172 = vmatprep.subr.bf16.mxu0 0
        %4173 = vmatpush1.bf16.msra.mxu0 0
        %4174 = vmatprep.subr.bf16.mxu0 0
        %4175 = vmatpush1.bf16.msra.mxu0 0
        %4176 = vmatprep.subr.bf16.mxu0 0
        %4177 = vmatpush1.bf16.msra.mxu0 0
        %4178 = vmatprep.subr.bf16.mxu0 0
        %4179 = vmatpush1.bf16.msra.mxu0 0
        %4180 = vmatprep.subr.bf16.mxu0 0
        %4181 = vmatpush1.bf16.msra.mxu0 0
        %4182 = vmatprep.subr.bf16.mxu0 0
        %4183 = vmatpush1.bf16.msra.mxu0 0
        %4184 = vmatprep.subr.bf16.mxu0 0
        %4185 = vmatpush1.bf16.msra.mxu0 0
        %4186 = vmatprep.subr.bf16.mxu0 0
        %4187 = vmatpush1.bf16.msra.mxu0 0
        %4188 = vmatprep.subr.bf16.mxu0 0
        %4189 = vmatpush1.bf16.msra.mxu0 0
        %4190 = vmatprep.subr.bf16.mxu0 0
        %4191 = vmatpush1.bf16.msra.mxu0 0
        %4192 = vmatprep.subr.bf16.mxu0 0
        %4193 = vmatpush1.bf16.msra.mxu0 0
        %4194 = vmatprep.subr.bf16.mxu0 0
        %4195 = vmatpush1.bf16.msra.mxu0 0
        %4196 = vmatprep.subr.bf16.mxu0 0
        %4197 = vmatpush1.bf16.msra.mxu0 0
        %4198 = vmatprep.mubr.bf16.mxu0 0
        %4199 = vmatmul.mubr.bf16.gmra.mrb[0].mxu0 %v4161
        %v4200 = vpop.f32.mrb[0].mxu0
        %v4201 = vadd.f32 0.0, %v4200
        %v4202 = vpop.f32.mrb[0].mxu0
        %v4203 = vpop.f32.mrb[0].mxu0
        %v4204 = vpop.f32.mrb[0].mxu0
        %4205 = vdwg.mxu0
        %4207 = vrot.lane.b32.xlu0 %v4201, 16
        %v4208 = vpop.permute.xlu0 %4207
        %v4210 = vsel %vm754, %v4090, %v4208
        %s4211 = scalar_lea.vmem [#allocation5], 80
        %v4212 = vld [vmem:[%s4211] sm:$0xf]
        %v4213 = vld [vmem:[%s4211 + $0x4] sm:$0xf]
        %v4214 = vld [vmem:[%s4211 + $0x8] sm:$0xf]
        %v4215 = vld [vmem:[%s4211 + $0xc] sm:$0xf]
        %v4216 = vpack.c.bf16 %v4210, %v4210
        %s4217 = scalar_lea.vmem %s7, 5
        %v4218 = vld [vmem:[%s4217] sm:$0x1]
        %v4219 = vunpack.c.l.bf16 %v4218
        %v4220 = vlaneseq
        %v4221 = vshrl.u32 %v4220, 7
        %v4222 = vsub.s32 0, %v4221
        %v4223 = vrot.slane %v4219, %v4222
        %v4228 = vunpack.c.l.b16 %v4212
        %v4229 = vunpack.c.l.b16 %v4213
        %v4230 = vunpack.c.l.b16 %v4214
        %v4231 = vunpack.c.l.b16 %v4215
        %v4232 = vpack.c.b16 %v4229, %v4228
        %v4233 = vpack.c.b16 %v4231, %v4230
        %v4237 = vsel %vm648, %v4216, 0
        %4239 = vmatprep.subr.bf16.mxu0 0
        %4240 = vmatpush1.bf16.msra.mxu0 %v4232
        %4241 = vmatprep.subr.bf16.mxu0 0
        %4242 = vmatpush1.bf16.msra.mxu0 %v4233
        %4243 = vmatprep.subr.bf16.mxu0 0
        %4244 = vmatpush1.bf16.msra.mxu0 0
        %4245 = vmatprep.subr.bf16.mxu0 0
        %4246 = vmatpush1.bf16.msra.mxu0 0
        %4247 = vmatprep.subr.bf16.mxu0 0
        %4248 = vmatpush1.bf16.msra.mxu0 0
        %4249 = vmatprep.subr.bf16.mxu0 0
        %4250 = vmatpush1.bf16.msra.mxu0 0
        %4251 = vmatprep.subr.bf16.mxu0 0
        %4252 = vmatpush1.bf16.msra.mxu0 0
        %4253 = vmatprep.subr.bf16.mxu0 0
        %4254 = vmatpush1.bf16.msra.mxu0 0
        %4255 = vmatprep.subr.bf16.mxu0 0
        %4256 = vmatpush1.bf16.msra.mxu0 0
        %4257 = vmatprep.subr.bf16.mxu0 0
        %4258 = vmatpush1.bf16.msra.mxu0 0
        %4259 = vmatprep.subr.bf16.mxu0 0
        %4260 = vmatpush1.bf16.msra.mxu0 0
        %4261 = vmatprep.subr.bf16.mxu0 0
        %4262 = vmatpush1.bf16.msra.mxu0 0
        %4263 = vmatprep.subr.bf16.mxu0 0
        %4264 = vmatpush1.bf16.msra.mxu0 0
        %4265 = vmatprep.subr.bf16.mxu0 0
        %4266 = vmatpush1.bf16.msra.mxu0 0
        %4267 = vmatprep.subr.bf16.mxu0 0
        %4268 = vmatpush1.bf16.msra.mxu0 0
        %4269 = vmatprep.subr.bf16.mxu0 0
        %4270 = vmatpush1.bf16.msra.mxu0 0
        %4271 = vmatprep.mubr.bf16.mxu0 0
        %4272 = vmatmul.mubr.bf16.gmra.mrb[0].mxu0 %v4237
        %v4273 = vpop.f32.mrb[0].mxu0
        %v4274 = vadd.f32 %v4223, %v4273
        %v4275 = vpop.f32.mrb[0].mxu0
        %v4276 = vpop.f32.mrb[0].mxu0
        %v4277 = vpop.f32.mrb[0].mxu0
        %4278 = vdwg.mxu0
        %v4279 = vadd.f32 %v3914, %v4274
        %s4280 = scalar_lea.vmem %s8, 5
        %v4281 = vld [vmem:[%s4280] sm:$0x1]
        %s4282 = scalar_lea.vmem %s9, 5
        %v4283 = vld [vmem:[%s4282] sm:$0x1]
        %v4284 = vsel %vm648, %v4279, 0.0
        %4285 = vadd.xlane.f32.xlu0 %v4284
        %v4286 = vpop.xlane.xlu0 %4285
        %v4287 = vmul.f32 %v4286, %v652
        %v4288 = vsub.f32 %v4279, %v4287
        %v4289 = vmul.f32 %v4288, %v4288
        %v4290 = vsel %vm648, %v4289, 0.0
        %4291 = vadd.xlane.f32.xlu0 %v4290
        %v4292 = vpop.xlane.xlu0 %4291
        %v4293 = vmul.f32 %v4292, %v652
        %v4294 = vadd.f32 %v4293, 1e-09
        %v4295 = vrsqrt.pop %v4294
        %v4296 = vmul.f32 %v4288, %v4295
        %v4297 = vunpack.c.l.bf16 %v4281
        %v4298 = vlaneseq
        %v4299 = vshrl.u32 %v4298, 7
        %v4300 = vsub.s32 0, %v4299
        %v4301 = vrot.slane %v4297, %v4300
        %v4302 = vmul.f32 %v4296, %v4301
        %v4303 = vunpack.c.l.bf16 %v4283
        %v4304 = vlaneseq
        %v4305 = vshrl.u32 %v4304, 7
        %v4306 = vsub.s32 0, %v4305
        %v4307 = vrot.slane %v4303, %v4306
        %v4308 = vadd.f32 %v4302, %v4307
        %s4309 = scalar_lea.vmem [#allocation7], 80
        %v4310 = vld [vmem:[%s4309] sm:$0xf]
        %v4311 = vld [vmem:[%s4309 + $0x4] sm:$0xf]
        %v4312 = vld [vmem:[%s4309 + $0x8] sm:$0xf]
        %v4313 = vld [vmem:[%s4309 + $0xc] sm:$0xf]
        %v4314 = vpack.c.bf16 %v4308, %v4308
        %s4315 = scalar_lea.vmem %s11, 5
        %v4316 = vld [vmem:[%s4315] sm:$0x1]
        %v4317 = vunpack.c.l.bf16 %v4316
        %v4318 = vlaneseq
        %v4319 = vshrl.u32 %v4318, 7
        %v4320 = vsub.s32 0, %v4319
        %v4321 = vrot.slane %v4317, %v4320
        %v4326 = vunpack.c.l.b16 %v4310
        %v4327 = vunpack.c.l.b16 %v4311
        %v4328 = vunpack.c.l.b16 %v4312
        %v4329 = vunpack.c.l.b16 %v4313
        %v4330 = vpack.c.b16 %v4327, %v4326
        %v4331 = vpack.c.b16 %v4329, %v4328
        %v4335 = vsel %vm648, %v4314, 0
        %4337 = vmatprep.subr.bf16.mxu0 0
        %4338 = vmatpush1.bf16.msra.mxu0 %v4330
        %4339 = vmatprep.subr.bf16.mxu0 0
        %4340 = vmatpush1.bf16.msra.mxu0 %v4331
        %4341 = vmatprep.subr.bf16.mxu0 0
        %4342 = vmatpush1.bf16.msra.mxu0 0
        %4343 = vmatprep.subr.bf16.mxu0 0
        %4344 = vmatpush1.bf16.msra.mxu0 0
        %4345 = vmatprep.subr.bf16.mxu0 0
        %4346 = vmatpush1.bf16.msra.mxu0 0
        %4347 = vmatprep.subr.bf16.mxu0 0
        %4348 = vmatpush1.bf16.msra.mxu0 0
        %4349 = vmatprep.subr.bf16.mxu0 0
        %4350 = vmatpush1.bf16.msra.mxu0 0
        %4351 = vmatprep.subr.bf16.mxu0 0
        %4352 = vmatpush1.bf16.msra.mxu0 0
        %4353 = vmatprep.subr.bf16.mxu0 0
        %4354 = vmatpush1.bf16.msra.mxu0 0
        %4355 = vmatprep.subr.bf16.mxu0 0
        %4356 = vmatpush1.bf16.msra.mxu0 0
        %4357 = vmatprep.subr.bf16.mxu0 0
        %4358 = vmatpush1.bf16.msra.mxu0 0
        %4359 = vmatprep.subr.bf16.mxu0 0
        %4360 = vmatpush1.bf16.msra.mxu0 0
        %4361 = vmatprep.subr.bf16.mxu0 0
        %4362 = vmatpush1.bf16.msra.mxu0 0
        %4363 = vmatprep.subr.bf16.mxu0 0
        %4364 = vmatpush1.bf16.msra.mxu0 0
        %4365 = vmatprep.subr.bf16.mxu0 0
        %4366 = vmatpush1.bf16.msra.mxu0 0
        %4367 = vmatprep.subr.bf16.mxu0 0
        %4368 = vmatpush1.bf16.msra.mxu0 0
        %4369 = vmatprep.mubr.bf16.mxu0 0
        %4370 = vmatmul.mubr.bf16.gmra.mrb[0].mxu0 %v4335
        %v4371 = vpop.f32.mrb[0].mxu0
        %v4372 = vadd.f32 %v4321, %v4371
        %v4373 = vpop.f32.mrb[0].mxu0
        %v4374 = vpop.f32.mrb[0].mxu0
        %v4375 = vpop.f32.mrb[0].mxu0
        %4376 = vdwg.mxu0
        %v4377 = vmul.f32 %v4372, 0.5
        %v4378 = vmul.f32 %v4372, 0.044715
        %v4379 = vmul.f32 %v4378, %v4372
        %v4380 = vmul.f32 %v4379, %v4372
        %v4381 = vadd.f32 %v4372, %v4380
        %v4382 = vmul.f32 %v4381, 0.7978846
        %v4383 = vtanh.pop %v4382
        %v4384 = vadd.f32 %v4383, 1.0
        %v4385 = vmul.f32 %v4377, %v4384
        %s4386 = scalar_lea.vmem %s12, 160
        %v4387 = vld [vmem:[%s4386] sm:$0xf]
        %v4388 = vld [vmem:[%s4386 + $0x4] sm:$0xf]
        %v4389 = vld [vmem:[%s4386 + $0x8] sm:$0xf]
        %v4390 = vld [vmem:[%s4386 + $0xc] sm:$0xf]
        %v4391 = vld [vmem:[%s4386 + $0x10] sm:$0xf]
        %v4392 = vld [vmem:[%s4386 + $0x14] sm:$0xf]
        %v4393 = vld [vmem:[%s4386 + $0x18] sm:$0xf]
        %v4394 = vld [vmem:[%s4386 + $0x1c] sm:$0xf]
        %v4395 = vpack.c.bf16 %v4385, %v4385
        %s4396 = scalar_lea.vmem %s13, 5
        %v4397 = vld [vmem:[%s4396] sm:$0x1]
        %v4398 = vunpack.c.l.bf16 %v4397
        %v4399 = vlaneseq
        %v4400 = vshrl.u32 %v4399, 7
        %v4401 = vsub.s32 0, %v4400
        %v4402 = vrot.slane %v4398, %v4401
        %v4411 = vunpack.c.l.b16 %v4387
        %v4412 = vunpack.c.l.b16 %v4388
        %v4413 = vunpack.c.l.b16 %v4389
        %v4414 = vunpack.c.l.b16 %v4390
        %v4415 = vunpack.c.l.b16 %v4391
        %v4416 = vunpack.c.l.b16 %v4392
        %v4417 = vunpack.c.l.b16 %v4393
        %v4418 = vunpack.c.l.b16 %v4394
        %v4419 = vpack.c.b16 %v4412, %v4411
        %v4420 = vpack.c.b16 %v4414, %v4413
        %v4421 = vpack.c.b16 %v4416, %v4415
        %v4422 = vpack.c.b16 %v4418, %v4417
        %v4428 = vsel %vm1187, %v4395, 0
        %4430 = vmatprep.subr.bf16.mxu0 0
        %4431 = vmatpush1.bf16.msra.mxu0 %v4419
        %4432 = vmatprep.subr.bf16.mxu0 0
        %4433 = vmatpush1.bf16.msra.mxu0 %v4420
        %4434 = vmatprep.subr.bf16.mxu0 0
        %4435 = vmatpush1.bf16.msra.mxu0 %v4421
        %4436 = vmatprep.subr.bf16.mxu0 0
        %4437 = vmatpush1.bf16.msra.mxu0 %v4422
        %4438 = vmatprep.subr.bf16.mxu0 0
        %4439 = vmatpush1.bf16.msra.mxu0 0
        %4440 = vmatprep.subr.bf16.mxu0 0
        %4441 = vmatpush1.bf16.msra.mxu0 0
        %4442 = vmatprep.subr.bf16.mxu0 0
        %4443 = vmatpush1.bf16.msra.mxu0 0
        %4444 = vmatprep.subr.bf16.mxu0 0
        %4445 = vmatpush1.bf16.msra.mxu0 0
        %4446 = vmatprep.subr.bf16.mxu0 0
        %4447 = vmatpush1.bf16.msra.mxu0 0
        %4448 = vmatprep.subr.bf16.mxu0 0
        %4449 = vmatpush1.bf16.msra.mxu0 0
        %4450 = vmatprep.subr.bf16.mxu0 0
        %4451 = vmatpush1.bf16.msra.mxu0 0
        %4452 = vmatprep.subr.bf16.mxu0 0
        %4453 = vmatpush1.bf16.msra.mxu0 0
        %4454 = vmatprep.subr.bf16.mxu0 0
        %4455 = vmatpush1.bf16.msra.mxu0 0
        %4456 = vmatprep.subr.bf16.mxu0 0
        %4457 = vmatpush1.bf16.msra.mxu0 0
        %4458 = vmatprep.subr.bf16.mxu0 0
        %4459 = vmatpush1.bf16.msra.mxu0 0
        %4460 = vmatprep.subr.bf16.mxu0 0
        %4461 = vmatpush1.bf16.msra.mxu0 0
        %4462 = vmatprep.mubr.bf16.mxu0 0
        %4463 = vmatmul.mubr.bf16.gmra.mrb[0].mxu0 %v4428
        %v4464 = vpop.f32.mrb[0].mxu0
        %v4465 = vadd.f32 %v4402, %v4464
        %v4466 = vpop.f32.mrb[0].mxu0
        %v4467 = vpop.f32.mrb[0].mxu0
        %v4468 = vpop.f32.mrb[0].mxu0
        %4469 = vdwg.mxu0
        %v4470 = vadd.f32 %v4308, %v4465
        %s4471 = scalar_lea.vmem %s14, 5
        %v4472 = vld [vmem:[%s4471] sm:$0x1]
        %s4473 = scalar_lea.vmem %s15, 5
        %v4474 = vld [vmem:[%s4473] sm:$0x1]
        %v4475 = vsel %vm648, %v4470, 0.0
        %4476 = vadd.xlane.f32.xlu0 %v4475
        %v4477 = vpop.xlane.xlu0 %4476
        %v4478 = vmul.f32 %v4477, %v652
        %v4479 = vsub.f32 %v4470, %v4478
        %v4480 = vmul.f32 %v4479, %v4479
        %v4481 = vsel %vm648, %v4480, 0.0
        %4482 = vadd.xlane.f32.xlu0 %v4481
        %v4483 = vpop.xlane.xlu0 %4482
        %v4484 = vmul.f32 %v4483, %v652
        %v4485 = vadd.f32 %v4484, 1e-09
        %v4486 = vrsqrt.pop %v4485
        %v4487 = vmul.f32 %v4479, %v4486
        %v4488 = vunpack.c.l.bf16 %v4472
        %v4489 = vlaneseq
        %v4490 = vshrl.u32 %v4489, 7
        %v4491 = vsub.s32 0, %v4490
        %v4492 = vrot.slane %v4488, %v4491
        %v4493 = vmul.f32 %v4487, %v4492
        %v4494 = vunpack.c.l.bf16 %v4474
        %v4495 = vlaneseq
        %v4496 = vshrl.u32 %v4495, 7
        %v4497 = vsub.s32 0, %v4496
        %v4498 = vrot.slane %v4494, %v4497
        %v4499 = vadd.f32 %v4493, %v4498
        %v4500 = vld [vmem:[#allocation8] sm:$0xf]
        %v4501 = vld [vmem:[#allocation8 + $0x4] sm:$0xf]
        %v4502 = vld [vmem:[#allocation8 + $0x8] sm:$0xf]
        %v4503 = vld [vmem:[#allocation8 + $0xc] sm:$0xf]
        %v4504 = vpack.c.bf16 %v4499, %v4499
        %v4505 = vld [vmem:[%s17] sm:$0x1]
        %v4506 = vunpack.c.l.bf16 %v4505
        %v4508 = vshrl.u32 %v4504, 16
        %v4510 = vrot.slane %v4508, 3
        %v4515 = vunpack.c.l.b16 %v4500
        %v4516 = vunpack.c.l.b16 %v4501
        %v4517 = vunpack.c.l.b16 %v4502
        %v4518 = vunpack.c.l.b16 %v4503
        %v4519 = vpack.c.b16 %v4516, %v4515
        %v4520 = vpack.c.b16 %v4518, %v4517
        %v4524 = vsel %vm648, %v4510, 0
        %4526 = vmatprep.subr.bf16.mxu0 0
        %4527 = vmatpush1.bf16.msra.mxu0 %v4519
        %4528 = vmatprep.subr.bf16.mxu0 0
        %4529 = vmatpush1.bf16.msra.mxu0 %v4520
        %4530 = vmatprep.subr.bf16.mxu0 0
        %4531 = vmatpush1.bf16.msra.mxu0 0
        %4532 = vmatprep.subr.bf16.mxu0 0
        %4533 = vmatpush1.bf16.msra.mxu0 0
        %4534 = vmatprep.subr.bf16.mxu0 0
        %4535 = vmatpush1.bf16.msra.mxu0 0
        %4536 = vmatprep.subr.bf16.mxu0 0
        %4537 = vmatpush1.bf16.msra.mxu0 0
        %4538 = vmatprep.subr.bf16.mxu0 0
        %4539 = vmatpush1.bf16.msra.mxu0 0
        %4540 = vmatprep.subr.bf16.mxu0 0
        %4541 = vmatpush1.bf16.msra.mxu0 0
        %4542 = vmatprep.subr.bf16.mxu0 0
        %4543 = vmatpush1.bf16.msra.mxu0 0
        %4544 = vmatprep.subr.bf16.mxu0 0
        %4545 = vmatpush1.bf16.msra.mxu0 0
        %4546 = vmatprep.subr.bf16.mxu0 0
        %4547 = vmatpush1.bf16.msra.mxu0 0
        %4548 = vmatprep.subr.bf16.mxu0 0
        %4549 = vmatpush1.bf16.msra.mxu0 0
        %4550 = vmatprep.subr.bf16.mxu0 0
        %4551 = vmatpush1.bf16.msra.mxu0 0
        %4552 = vmatprep.subr.bf16.mxu0 0
        %4553 = vmatpush1.bf16.msra.mxu0 0
        %4554 = vmatprep.subr.bf16.mxu0 0
        %4555 = vmatpush1.bf16.msra.mxu0 0
        %4556 = vmatprep.subr.bf16.mxu0 0
        %4557 = vmatpush1.bf16.msra.mxu0 0
        %4558 = vmatprep.mubr.bf16.mxu0 0
        %4559 = vmatmul.mubr.bf16.gmra.mrb[0].mxu0 %v4524
        %v4560 = vpop.f32.mrb[0].mxu0
        %v4561 = vadd.f32 %v4506, %v4560
        %v4562 = vpop.f32.mrb[0].mxu0
        %v4563 = vpop.f32.mrb[0].mxu0
        %v4564 = vpop.f32.mrb[0].mxu0
        %4565 = vdwg.mxu0
        %vm4566 = vcmask 16384
        %4567 = vst.msk [vmem:[%s635] sm:$0x1] %vm4566, %v4561
        %s4568 = sand.u32 %s431, 1
        %s4569 = scalar_lea.sflag [#allocation4], %s4568
        %s4570 = sand.u32 %s431, 1
        %s4571 = scalar_lea.vmem [#allocation10], %s4570
        // Predicated region
        $region109: #{funnel_classifier_forward.1} parent=91 // pred_check
          %p4572 = pneg %p441
        $region110: #{funnel_classifier_forward.1} parent=91 // pred_check_branch
          %4574 = sbr.rel (%p4572) target = $region112
        $region111: #{funnel_classifier_forward.1} parent=91 // pred_region
          %s4576 = ssub.s32 16, 16
          %4577 = vsyncadd %s4569, %s4576
          %s4578 = smul.addr %s35, 16
          %s4579 = scalar_lea.hbm %s18, %s4578
          %s4581 = sshll.u32 %s4571, 4
          %s4582 = int_to_ptr.vmem [resolvable:$true] %s4581
          %4584 = dma.vmem_to_hbm [thread:$0]  %s4582, 16, %s4579, %s4569
        $region112: #{funnel_classifier_forward.1} parent=91 // pred_fallthru
          _
      $region92: #{funnel_classifier_forward.1} parent=5 // pred_fallthru
        _
      %p4585 = scmp.le.s32.totalorder 2, %s30
      // Predicated region
      $region113: #{funnel_classifier_forward.1} parent=5 // pred_check
        %p4586 = pneg %p4585
      $region114: #{funnel_classifier_forward.1} parent=5 // pred_check_branch
        %4588 = sbr.rel (%p4586) target = $region116
      $region115: #{funnel_classifier_forward.1} parent=5 // pred_region
        %s4589 = ssub.s32 %s30, 2
        // Predicated region
        $region117: #{funnel_classifier_forward.1} parent=115 // pred_check
          %p4590 = pneg %p447
        $region118: #{funnel_classifier_forward.1} parent=115 // pred_check_branch
          %4592 = sbr.rel (%p4590) target = $region120
        $region119: #{funnel_classifier_forward.1} parent=115 // pred_region
          %s4593 = sand.u32 %s432, 1
          %s4594 = scalar_lea.sflag [#allocation4], %s4593
          %s4595 = sand.u32 %s432, 1
          %s4596 = scalar_lea.vmem [#allocation10], %s4595
          %4597 = dma.done %s4594, 16
        $region120: #{funnel_classifier_forward.1} parent=115 // pred_fallthru
          _
      $region116: #{funnel_classifier_forward.1} parent=5 // pred_fallthru
        _
    $region6: #{funnel_classifier_forward.1} parent=1 // loop_footer
      %s34 = sadd.s32 1, %s30
    $region7: #{funnel_classifier_forward.1} parent=1 // loop_footer_branch
      %29 = sbr.rel target = $region3
    $region8: #{funnel_classifier_forward.1} parent=1 // loop_exit
      _
    %4598 = vsyncpa [#allocation3], 1
    %s4599 = scalar_lea.sflag [#allocation3], 1
    %4600 = vsyncpa %s4599, 1
    %4601 = vsyncpa [#allocation6], 1
    %4602 = vsyncpa [#allocation9], 1
    %4603 = vsyncpa [#allocation4], 1
    %s4604 = scalar_lea.sflag [#allocation4], 1
    %4605 = vsyncpa %s4604, 1

</llo_original>
